<compile_context>
chip_gen: v6e
topology: v6e:2x2x1
jax: 0.10.0
libtpu: 0.0.40
codegen_flags: <defaults>
</compile_context>

<pallas_src>
import functools

import jax
import jax.numpy as jnp
from jax.experimental import pallas as pl
from jax.experimental.pallas import tpu as pltpu


def _round_up(x, m):
    return ((x + m - 1) // m) * m


# ----------------------------------------------------------------------------
# Pallas kernel 1: single-K-block  out = act(x @ w + b)
#   x tile (tm, Kp) bf16, w (Kp, N) bf16 (grid-invariant, stays resident),
#   b (1, N) f32.  No K loop -> dot writes straight through the epilogue.
# ----------------------------------------------------------------------------
def _matmul_bias_act_kernel(x_ref, w_ref, b_ref, o_ref, *, apply_relu):
    acc = jnp.dot(x_ref[...], w_ref[...], preferred_element_type=jnp.float32)
    out = acc + b_ref[...]
    if apply_relu:
        out = jnp.maximum(out, 0.0)
    o_ref[...] = out.astype(o_ref.dtype)


def matmul_bias_act(x, w, b, apply_relu, out_dtype=jnp.bfloat16):
    """y = act(x @ w + b).  x:(M,K)  w:(K,N)  b:(N,)  -> (M,N)."""
    M, K = x.shape
    K2, N = w.shape
    assert K == K2, (K, K2)

    # Shape-aware M tiling.
    if M >= 2048:
        tm = 512                              # several parallel blocks
    elif M > 128:
        tm = _round_up((M + 1) // 2, 8)       # two blocks (megacore-friendly)
    else:
        tm = _round_up(max(M, 8), 8)          # single block
    Mp = _round_up(M, tm)

    # K lives in one block; pad to a lane multiple only when required.
    Kp = _round_up(K, 128)

    xp = x.astype(jnp.bfloat16)
    if Mp != M or Kp != K:
        xp = jnp.pad(xp, ((0, Mp - M), (0, Kp - K)))
    wp = w.astype(jnp.bfloat16)
    if Kp != K:
        wp = jnp.pad(wp, ((0, Kp - K), (0, 0)))
    b2 = b.reshape(1, N).astype(jnp.float32)

    kernel = functools.partial(_matmul_bias_act_kernel, apply_relu=apply_relu)
    out = pl.pallas_call(
        kernel,
        out_shape=jax.ShapeDtypeStruct((Mp, N), out_dtype),
        grid=(Mp // tm,),
        in_specs=[
            pl.BlockSpec((tm, Kp), lambda i: (i, 0)),
            pl.BlockSpec((Kp, N), lambda i: (0, 0)),   # resident across grid
            pl.BlockSpec((1, N), lambda i: (0, 0)),
        ],
        out_specs=pl.BlockSpec((tm, N), lambda i: (i, 0)),
        compiler_params=pltpu.CompilerParams(
            dimension_semantics=("parallel",)
        ),
    )(xp, wp, b2)
    if Mp != M:
        out = out[:M]
    return out


# ----------------------------------------------------------------------------
# Pallas kernel 2: fused FC head  out = relu(x @ w1 + b1) @ w2 + b2
#   Grid-less: all operands (x padded to 8 rows, both weights) sit in VMEM.
# ----------------------------------------------------------------------------
def _fc_head_kernel(x_ref, w1_ref, b1_ref, w2_ref, b2_ref, o_ref):
    h = jnp.dot(x_ref[...], w1_ref[...], preferred_element_type=jnp.float32)
    h = jnp.maximum(h + b1_ref[...], 0.0)
    out = jnp.dot(h.astype(jnp.bfloat16), w2_ref[...],
                  preferred_element_type=jnp.float32)
    o_ref[...] = (out + b2_ref[...]).astype(o_ref.dtype)


def fc_head(x, w1, b1, w2, b2):
    """x:(M,K1)  w1:(K1,N1)  w2:(N1,N2)  -> (M,N2) f32, fc1+ReLU+fc2 fused."""
    M, _ = x.shape
    N1 = w1.shape[1]
    N2 = w2.shape[1]
    Mp = _round_up(max(M, 8), 8)
    xp = x.astype(jnp.bfloat16)
    if Mp != M:
        xp = jnp.pad(xp, ((0, Mp - M), (0, 0)))
    out = pl.pallas_call(
        _fc_head_kernel,
        out_shape=jax.ShapeDtypeStruct((Mp, N2), jnp.float32),
    )(
        xp,
        w1.astype(jnp.bfloat16),
        b1.reshape(1, N1).astype(jnp.float32),
        w2.astype(jnp.bfloat16),
        b2.reshape(1, N2).astype(jnp.float32),
    )
    return out[:M]


# ----------------------------------------------------------------------------
# Convolution = im2col (glue) + Pallas matmul kernel (hot path)
# ----------------------------------------------------------------------------
def _im2col(x_nhwc, kh, kw, stride):
    B, H, W, C = x_nhwc.shape
    oh = (H - kh) // stride + 1
    ow = (W - kw) // stride + 1
    patches = []
    for i in range(kh):
        for j in range(kw):
            patches.append(
                x_nhwc[:, i : i + stride * oh : stride, j : j + stride * ow : stride, :]
            )
    # (B, oh, ow, C, kh*kw) -> flatten K in (c, kh, kw) order to match PyTorch
    # weight layout (OC, C, KH, KW).reshape(OC, -1).
    cols = jnp.stack(patches, axis=-1)
    cols = cols.reshape(B, oh, ow, C * kh * kw)
    return cols.reshape(B * oh * ow, C * kh * kw), oh, ow


def conv2d_act(x_nhwc, w_ochw, b, stride, apply_relu=True):
    oc, c, kh, kw = w_ochw.shape
    x_nhwc = x_nhwc.astype(jnp.bfloat16)  # cols are emitted directly in bf16
    cols, oh, ow = _im2col(x_nhwc, kh, kw, stride)
    wmat = w_ochw.reshape(oc, c * kh * kw).T  # (C*KH*KW, OC)
    y = matmul_bias_act(cols, wmat, b, apply_relu, out_dtype=jnp.bfloat16)
    B = x_nhwc.shape[0]
    return y.reshape(B, oh, ow, oc)


# ----------------------------------------------------------------------------
# DQN parameters + forward
# ----------------------------------------------------------------------------
def init_dqn_params(key, in_channels, num_actions):
    def uniform(k, shape, fan_in):
        bound = 1.0 / jnp.sqrt(jnp.float32(fan_in))
        return jax.random.uniform(k, shape, jnp.float32, -bound, bound)

    keys = jax.random.split(key, 12)
    p = {}
    p["w1"] = uniform(keys[0], (32, in_channels, 8, 8), in_channels * 8 * 8)
    p["b1"] = uniform(keys[1], (32,), in_channels * 8 * 8)
    p["w2"] = uniform(keys[2], (64, 32, 4, 4), 32 * 4 * 4)
    p["b2"] = uniform(keys[3], (64,), 32 * 4 * 4)
    p["w3"] = uniform(keys[4], (128, 64, 3, 3), 64 * 3 * 3)
    p["b3"] = uniform(keys[5], (128,), 64 * 3 * 3)
    p["w4"] = uniform(keys[6], (128, 128, 3, 3), 128 * 3 * 3)
    p["b4"] = uniform(keys[7], (128,), 128 * 3 * 3)
    p["wfc1"] = uniform(keys[8], (512, 128 * 5 * 5), 128 * 5 * 5)
    p["bfc1"] = uniform(keys[9], (512,), 128 * 5 * 5)
    p["wfc2"] = uniform(keys[10], (num_actions, 512), 512)
    p["bfc2"] = uniform(keys[11], (num_actions,), 512)
    return p


@jax.jit
def dqn_forward(x_nchw, params):
    # layout: input NCHW (PyTorch); internal NHWC, bf16 activations.
    x = jnp.transpose(x_nchw, (0, 2, 3, 1))
    x = conv2d_act(x, params["w1"], params["b1"], stride=4, apply_relu=True)
    x = conv2d_act(x, params["w2"], params["b2"], stride=2, apply_relu=True)
    x = conv2d_act(x, params["w3"], params["b3"], stride=2, apply_relu=True)
    x = conv2d_act(x, params["w4"], params["b4"], stride=2, apply_relu=True)
    # PyTorch flattens the NCHW tensor -> (B, C*H*W): go back to channel-major.
    B = x.shape[0]
    x = jnp.transpose(x, (0, 3, 1, 2)).reshape(B, -1)  # (B, 128*5*5)
    return fc_head(x, params["wfc1"].T, params["bfc1"],
                   params["wfc2"].T, params["bfc2"])


if __name__ == "__main__":
    # The module hard-codes flattened_size = 128*5*5, which through the
    # 8/4, 4/2, 3/2, 3/2 conv stack implies a 196x196 input (the minimum).
    batch, in_channels, height, width = 2, 4, 196, 196
    num_actions = 6

    key = jax.random.PRNGKey(0)
    k_params, k_x = jax.random.split(key)
    params = init_dqn_params(k_params, in_channels, num_actions)
    x = jax.random.normal(k_x, (batch, in_channels, height, width), jnp.float32)

    out = dqn_forward(x, params)
    out = jax.block_until_ready(out)
    assert out.shape == (batch, num_actions), out.shape
    print("KERNEL_OK")
</pallas_src>

<mosaic_0001>
module attributes {stable_mosaic.version = 11 : i64} {
  func.func @_matmul_bias_act_kernel(%arg0: i32, %arg1: memref<512x256xbf16, #tpu.memory_space<vmem>>, %arg2: memref<256x32xbf16, #tpu.memory_space<vmem>>, %arg3: memref<1x32xf32, #tpu.memory_space<vmem>>, %arg4: memref<512x32xbf16, #tpu.memory_space<vmem>>) attributes {dimension_semantics = [#tpu.dimension_semantics<parallel>], iteration_bounds = array<i64: 9>, scalar_prefetch = 0 : i64, scratch_operands = 0 : i64, tpu.core_type = #tpu.core_type<tc>, window_params = [{transform_indices = @transform_0, window_bounds = array<i64: 512, 256>}, {pipeline_mode = #tpu.pipeline_mode<synchronous>, transform_indices = @transform_1, window_bounds = array<i64: 256, 32>}, {pipeline_mode = #tpu.pipeline_mode<synchronous>, transform_indices = @transform_2, window_bounds = array<i64: 1, 32>}, {transform_indices = @transform_3, window_bounds = array<i64: 512, 32>}]} {
    %c0 = arith.constant 0 : index
    %c0_0 = arith.constant 0 : index
    %0 = vector.load %arg1[%c0, %c0_0] : memref<512x256xbf16, #tpu.memory_space<vmem>>, vector<512x256xbf16>
    %c0_1 = arith.constant 0 : index
    %c0_2 = arith.constant 0 : index
    %1 = vector.load %arg2[%c0_1, %c0_2] : memref<256x32xbf16, #tpu.memory_space<vmem>>, vector<256x32xbf16>
    %cst = arith.constant dense<0.000000e+00> : vector<512x32xf32>
    %2 = tpu.matmul %0, %1, %cst {dimension_numbers = #tpu.dot_dimension_numbers<[1], [0], [0], [1], [0, 0, 1, 1], [], []>} : vector<512x256xbf16>, vector<256x32xbf16>, vector<512x32xf32> -> vector<512x32xf32>
    %c0_3 = arith.constant 0 : index
    %c0_4 = arith.constant 0 : index
    %3 = vector.load %arg3[%c0_3, %c0_4] : memref<1x32xf32, #tpu.memory_space<vmem>>, vector<1x32xf32>
    %4 = vector.broadcast %3 : vector<1x32xf32> to vector<512x32xf32>
    %5 = arith.addf %2, %4 : vector<512x32xf32>
    %cst_5 = arith.constant 0.000000e+00 : f32
    %6 = vector.broadcast %cst_5 : f32 to vector<512x32xf32>
    %7 = arith.maximumf %5, %6 : vector<512x32xf32>
    %8 = arith.truncf %7 : vector<512x32xf32> to vector<512x32xbf16>
    %c0_6 = arith.constant 0 : index
    %c0_7 = arith.constant 0 : index
    %9 = vector.load %arg4[%c0_6, %c0_7] : memref<512x32xbf16, #tpu.memory_space<vmem>>, vector<512x32xbf16>
    tpu.vector_store %arg4[%c0_6, %c0_7], %8 {strides = array<i32>} : memref<512x32xbf16, #tpu.memory_space<vmem>>, vector<512x32xbf16>,
    return
  }
  func.func @transform_0(%arg0: i32) -> (i32, i32) {
    %c0_i32 = arith.constant 0 : i32
    %c0_i32_0 = arith.constant 0 : i32
    return %arg0, %c0_i32 : i32, i32
  }
  func.func @transform_1(%arg0: i32) -> (i32, i32) {
    %c0_i32 = arith.constant 0 : i32
    %c0_i32_0 = arith.constant 0 : i32
    %c0_i32_1 = arith.constant 0 : i32
    return %c0_i32, %c0_i32_0 : i32, i32
  }
  func.func @transform_2(%arg0: i32) -> (i32, i32) {
    %c0_i32 = arith.constant 0 : i32
    %c0_i32_0 = arith.constant 0 : i32
    %c0_i32_1 = arith.constant 0 : i32
    return %c0_i32, %c0_i32_0 : i32, i32
  }
  func.func @transform_3(%arg0: i32) -> (i32, i32) {
    %c0_i32 = arith.constant 0 : i32
    %c0_i32_0 = arith.constant 0 : i32
    return %arg0, %c0_i32 : i32, i32
  }
}

module attributes {stable_mosaic.version = 11 : i64} {
  func.func @_matmul_bias_act_kernel(%arg0: i32, %arg1: memref<536x512xbf16, #tpu.memory_space<vmem>>, %arg2: memref<512x64xbf16, #tpu.memory_space<vmem>>, %arg3: memref<1x64xf32, #tpu.memory_space<vmem>>, %arg4: memref<536x64xbf16, #tpu.memory_space<vmem>>) attributes {dimension_semantics = [#tpu.dimension_semantics<parallel>], iteration_bounds = array<i64: 2>, scalar_prefetch = 0 : i64, scratch_operands = 0 : i64, tpu.core_type = #tpu.core_type<tc>, window_params = [{transform_indices = @transform_0, window_bounds = array<i64: 536, 512>}, {pipeline_mode = #tpu.pipeline_mode<synchronous>, transform_indices = @transform_1, window_bounds = array<i64: 512, 64>}, {pipeline_mode = #tpu.pipeline_mode<synchronous>, transform_indices = @transform_2, window_bounds = array<i64: 1, 64>}, {transform_indices = @transform_3, window_bounds = array<i64: 536, 64>}]} {
    %c0 = arith.constant 0 : index
    %c0_0 = arith.constant 0 : index
    %0 = vector.load %arg1[%c0, %c0_0] : memref<536x512xbf16, #tpu.memory_space<vmem>>, vector<536x512xbf16>
    %c0_1 = arith.constant 0 : index
    %c0_2 = arith.constant 0 : index
    %1 = vector.load %arg2[%c0_1, %c0_2] : memref<512x64xbf16, #tpu.memory_space<vmem>>, vector<512x64xbf16>
    %cst = arith.constant dense<0.000000e+00> : vector<536x64xf32>
    %2 = tpu.matmul %0, %1, %cst {dimension_numbers = #tpu.dot_dimension_numbers<[1], [0], [0], [1], [0, 0, 1, 1], [], []>} : vector<536x512xbf16>, vector<512x64xbf16>, vector<536x64xf32> -> vector<536x64xf32>
    %c0_3 = arith.constant 0 : index
    %c0_4 = arith.constant 0 : index
    %3 = vector.load %arg3[%c0_3, %c0_4] : memref<1x64xf32, #tpu.memory_space<vmem>>, vector<1x64xf32>
    %4 = vector.broadcast %3 : vector<1x64xf32> to vector<536x64xf32>
    %5 = arith.addf %2, %4 : vector<536x64xf32>
    %cst_5 = arith.constant 0.000000e+00 : f32
    %6 = vector.broadcast %cst_5 : f32 to vector<536x64xf32>
    %7 = arith.maximumf %5, %6 : vector<536x64xf32>
    %8 = arith.truncf %7 : vector<536x64xf32> to vector<536x64xbf16>
    %c0_6 = arith.constant 0 : index
    %c0_7 = arith.constant 0 : index
    %9 = vector.load %arg4[%c0_6, %c0_7] : memref<536x64xbf16, #tpu.memory_space<vmem>>, vector<536x64xbf16>
    tpu.vector_store %arg4[%c0_6, %c0_7], %8 {strides = array<i32>} : memref<536x64xbf16, #tpu.memory_space<vmem>>, vector<536x64xbf16>,
    return
  }
  func.func @transform_0(%arg0: i32) -> (i32, i32) {
    %c0_i32 = arith.constant 0 : i32
    %c0_i32_0 = arith.constant 0 : i32
    return %arg0, %c0_i32 : i32, i32
  }
  func.func @transform_1(%arg0: i32) -> (i32, i32) {
    %c0_i32 = arith.constant 0 : i32
    %c0_i32_0 = arith.constant 0 : i32
    %c0_i32_1 = arith.constant 0 : i32
    return %c0_i32, %c0_i32_0 : i32, i32
  }
  func.func @transform_2(%arg0: i32) -> (i32, i32) {
    %c0_i32 = arith.constant 0 : i32
    %c0_i32_0 = arith.constant 0 : i32
    %c0_i32_1 = arith.constant 0 : i32
    return %c0_i32, %c0_i32_0 : i32, i32
  }
  func.func @transform_3(%arg0: i32) -> (i32, i32) {
    %c0_i32 = arith.constant 0 : i32
    %c0_i32_0 = arith.constant 0 : i32
    return %arg0, %c0_i32 : i32, i32
  }
}

module attributes {stable_mosaic.version = 11 : i64} {
  func.func @_matmul_bias_act_kernel(%arg0: i32, %arg1: memref<128x640xbf16, #tpu.memory_space<vmem>>, %arg2: memref<640x128xbf16, #tpu.memory_space<vmem>>, %arg3: memref<1x128xf32, #tpu.memory_space<vmem>>, %arg4: memref<128x128xbf16, #tpu.memory_space<vmem>>) attributes {dimension_semantics = [#tpu.dimension_semantics<parallel>], iteration_bounds = array<i64: 2>, scalar_prefetch = 0 : i64, scratch_operands = 0 : i64, tpu.core_type = #tpu.core_type<tc>, window_params = [{transform_indices = @transform_0, window_bounds = array<i64: 128, 640>}, {pipeline_mode = #tpu.pipeline_mode<synchronous>, transform_indices = @transform_1, window_bounds = array<i64: 640, 128>}, {pipeline_mode = #tpu.pipeline_mode<synchronous>, transform_indices = @transform_2, window_bounds = array<i64: 1, 128>}, {transform_indices = @transform_3, window_bounds = array<i64: 128, 128>}]} {
    %c0 = arith.constant 0 : index
    %c0_0 = arith.constant 0 : index
    %0 = vector.load %arg1[%c0, %c0_0] : memref<128x640xbf16, #tpu.memory_space<vmem>>, vector<128x640xbf16>
    %c0_1 = arith.constant 0 : index
    %c0_2 = arith.constant 0 : index
    %1 = vector.load %arg2[%c0_1, %c0_2] : memref<640x128xbf16, #tpu.memory_space<vmem>>, vector<640x128xbf16>
    %cst = arith.constant dense<0.000000e+00> : vector<128x128xf32>
    %2 = tpu.matmul %0, %1, %cst {dimension_numbers = #tpu.dot_dimension_numbers<[1], [0], [0], [1], [0, 0, 1, 1], [], []>} : vector<128x640xbf16>, vector<640x128xbf16>, vector<128x128xf32> -> vector<128x128xf32>
    %c0_3 = arith.constant 0 : index
    %c0_4 = arith.constant 0 : index
    %3 = vector.load %arg3[%c0_3, %c0_4] : memref<1x128xf32, #tpu.memory_space<vmem>>, vector<1x128xf32>
    %4 = vector.broadcast %3 : vector<1x128xf32> to vector<128x128xf32>
    %5 = arith.addf %2, %4 : vector<128x128xf32>
    %cst_5 = arith.constant 0.000000e+00 : f32
    %6 = vector.broadcast %cst_5 : f32 to vector<128x128xf32>
    %7 = arith.maximumf %5, %6 : vector<128x128xf32>
    %8 = arith.truncf %7 : vector<128x128xf32> to vector<128x128xbf16>
    %c0_6 = arith.constant 0 : index
    %c0_7 = arith.constant 0 : index
    %9 = vector.load %arg4[%c0_6, %c0_7] : memref<128x128xbf16, #tpu.memory_space<vmem>>, vector<128x128xbf16>
    tpu.vector_store %arg4[%c0_6, %c0_7], %8 {strides = array<i32>} : memref<128x128xbf16, #tpu.memory_space<vmem>>, vector<128x128xbf16>,
    return
  }
  func.func @transform_0(%arg0: i32) -> (i32, i32) {
    %c0_i32 = arith.constant 0 : i32
    %c0_i32_0 = arith.constant 0 : i32
    return %arg0, %c0_i32 : i32, i32
  }
  func.func @transform_1(%arg0: i32) -> (i32, i32) {
    %c0_i32 = arith.constant 0 : i32
    %c0_i32_0 = arith.constant 0 : i32
    %c0_i32_1 = arith.constant 0 : i32
    return %c0_i32, %c0_i32_0 : i32, i32
  }
  func.func @transform_2(%arg0: i32) -> (i32, i32) {
    %c0_i32 = arith.constant 0 : i32
    %c0_i32_0 = arith.constant 0 : i32
    %c0_i32_1 = arith.constant 0 : i32
    return %c0_i32, %c0_i32_0 : i32, i32
  }
  func.func @transform_3(%arg0: i32) -> (i32, i32) {
    %c0_i32 = arith.constant 0 : i32
    %c0_i32_0 = arith.constant 0 : i32
    return %arg0, %c0_i32 : i32, i32
  }
}

module attributes {stable_mosaic.version = 11 : i64} {
  func.func @_matmul_bias_act_kernel(%arg0: i32, %arg1: memref<56x1152xbf16, #tpu.memory_space<vmem>>, %arg2: memref<1152x128xbf16, #tpu.memory_space<vmem>>, %arg3: memref<1x128xf32, #tpu.memory_space<vmem>>, %arg4: memref<56x128xbf16, #tpu.memory_space<vmem>>) attributes {dimension_semantics = [#tpu.dimension_semantics<parallel>], iteration_bounds = array<i64: 1>, scalar_prefetch = 0 : i64, scratch_operands = 0 : i64, tpu.core_type = #tpu.core_type<tc>, window_params = [{transform_indices = @transform_0, window_bounds = array<i64: 56, 1152>}, {pipeline_mode = #tpu.pipeline_mode<synchronous>, transform_indices = @transform_1, window_bounds = array<i64: 1152, 128>}, {pipeline_mode = #tpu.pipeline_mode<synchronous>, transform_indices = @transform_2, window_bounds = array<i64: 1, 128>}, {transform_indices = @transform_3, window_bounds = array<i64: 56, 128>}]} {
    %c0 = arith.constant 0 : index
    %c0_0 = arith.constant 0 : index
    %0 = vector.load %arg1[%c0, %c0_0] : memref<56x1152xbf16, #tpu.memory_space<vmem>>, vector<56x1152xbf16>
    %c0_1 = arith.constant 0 : index
    %c0_2 = arith.constant 0 : index
    %1 = vector.load %arg2[%c0_1, %c0_2] : memref<1152x128xbf16, #tpu.memory_space<vmem>>, vector<1152x128xbf16>
    %cst = arith.constant dense<0.000000e+00> : vector<56x128xf32>
    %2 = tpu.matmul %0, %1, %cst {dimension_numbers = #tpu.dot_dimension_numbers<[1], [0], [0], [1], [0, 0, 1, 1], [], []>} : vector<56x1152xbf16>, vector<1152x128xbf16>, vector<56x128xf32> -> vector<56x128xf32>
    %c0_3 = arith.constant 0 : index
    %c0_4 = arith.constant 0 : index
    %3 = vector.load %arg3[%c0_3, %c0_4] : memref<1x128xf32, #tpu.memory_space<vmem>>, vector<1x128xf32>
    %4 = vector.broadcast %3 : vector<1x128xf32> to vector<56x128xf32>
    %5 = arith.addf %2, %4 : vector<56x128xf32>
    %cst_5 = arith.constant 0.000000e+00 : f32
    %6 = vector.broadcast %cst_5 : f32 to vector<56x128xf32>
    %7 = arith.maximumf %5, %6 : vector<56x128xf32>
    %8 = arith.truncf %7 : vector<56x128xf32> to vector<56x128xbf16>
    %c0_6 = arith.constant 0 : index
    %c0_7 = arith.constant 0 : index
    %9 = vector.load %arg4[%c0_6, %c0_7] : memref<56x128xbf16, #tpu.memory_space<vmem>>, vector<56x128xbf16>
    tpu.vector_store %arg4[%c0_6, %c0_7], %8 {strides = array<i32>} : memref<56x128xbf16, #tpu.memory_space<vmem>>, vector<56x128xbf16>,
    return
  }
  func.func @transform_0(%arg0: i32) -> (i32, i32) {
    %c0_i32 = arith.constant 0 : i32
    %c0_i32_0 = arith.constant 0 : i32
    return %arg0, %c0_i32 : i32, i32
  }
  func.func @transform_1(%arg0: i32) -> (i32, i32) {
    %c0_i32 = arith.constant 0 : i32
    %c0_i32_0 = arith.constant 0 : i32
    %c0_i32_1 = arith.constant 0 : i32
    return %c0_i32, %c0_i32_0 : i32, i32
  }
  func.func @transform_2(%arg0: i32) -> (i32, i32) {
    %c0_i32 = arith.constant 0 : i32
    %c0_i32_0 = arith.constant 0 : i32
    %c0_i32_1 = arith.constant 0 : i32
    return %c0_i32, %c0_i32_0 : i32, i32
  }
  func.func @transform_3(%arg0: i32) -> (i32, i32) {
    %c0_i32 = arith.constant 0 : i32
    %c0_i32_0 = arith.constant 0 : i32
    return %arg0, %c0_i32 : i32, i32
  }
}

module attributes {stable_mosaic.version = 11 : i64} {
  func.func @_fc_head_kernel(%arg0: memref<8x3200xbf16, #tpu.memory_space<vmem>>, %arg1: memref<3200x512xbf16, #tpu.memory_space<vmem>>, %arg2: memref<1x512xf32, #tpu.memory_space<vmem>>, %arg3: memref<512x6xbf16, #tpu.memory_space<vmem>>, %arg4: memref<1x6xf32, #tpu.memory_space<vmem>>, %arg5: memref<8x6xf32, #tpu.memory_space<vmem>>) attributes {dimension_semantics = [], scalar_prefetch = 0 : i64, scratch_operands = 0 : i64, tpu.core_type = #tpu.core_type<tc>} {
    %c0 = arith.constant 0 : index
    %c0_0 = arith.constant 0 : index
    %0 = vector.load %arg0[%c0, %c0_0] : memref<8x3200xbf16, #tpu.memory_space<vmem>>, vector<8x3200xbf16>
    %c0_1 = arith.constant 0 : index
    %c0_2 = arith.constant 0 : index
    %1 = vector.load %arg1[%c0_1, %c0_2] : memref<3200x512xbf16, #tpu.memory_space<vmem>>, vector<3200x512xbf16>
    %cst = arith.constant dense<0.000000e+00> : vector<8x512xf32>
    %2 = tpu.matmul %0, %1, %cst {dimension_numbers = #tpu.dot_dimension_numbers<[1], [0], [0], [1], [0, 0, 1, 1], [], []>} : vector<8x3200xbf16>, vector<3200x512xbf16>, vector<8x512xf32> -> vector<8x512xf32>
    %c0_3 = arith.constant 0 : index
    %c0_4 = arith.constant 0 : index
    %3 = vector.load %arg2[%c0_3, %c0_4] : memref<1x512xf32, #tpu.memory_space<vmem>>, vector<1x512xf32>
    %4 = vector.broadcast %3 : vector<1x512xf32> to vector<8x512xf32>
    %5 = arith.addf %2, %4 : vector<8x512xf32>
    %cst_5 = arith.constant 0.000000e+00 : f32
    %6 = vector.broadcast %cst_5 : f32 to vector<8x512xf32>
    %7 = arith.maximumf %5, %6 : vector<8x512xf32>
    %8 = arith.truncf %7 : vector<8x512xf32> to vector<8x512xbf16>
    %c0_6 = arith.constant 0 : index
    %c0_7 = arith.constant 0 : index
    %9 = vector.load %arg3[%c0_6, %c0_7] : memref<512x6xbf16, #tpu.memory_space<vmem>>, vector<512x6xbf16>
    %cst_8 = arith.constant dense<0.000000e+00> : vector<8x6xf32>
    %10 = tpu.matmul %8, %9, %cst_8 {dimension_numbers = #tpu.dot_dimension_numbers<[1], [0], [0], [1], [0, 0, 1, 1], [], []>} : vector<8x512xbf16>, vector<512x6xbf16>, vector<8x6xf32> -> vector<8x6xf32>
    %c0_9 = arith.constant 0 : index
    %c0_10 = arith.constant 0 : index
    %11 = vector.load %arg4[%c0_9, %c0_10] : memref<1x6xf32, #tpu.memory_space<vmem>>, vector<1x6xf32>
    %12 = vector.broadcast %11 : vector<1x6xf32> to vector<8x6xf32>
    %13 = arith.addf %10, %12 : vector<8x6xf32>
    %c0_11 = arith.constant 0 : index
    %c0_12 = arith.constant 0 : index
    %14 = vector.load %arg5[%c0_11, %c0_12] : memref<8x6xf32, #tpu.memory_space<vmem>>, vector<8x6xf32>
    tpu.vector_store %arg5[%c0_11, %c0_12], %13 {strides = array<i32>} : memref<8x6xf32, #tpu.memory_space<vmem>>, vector<8x6xf32>,
    return
  }
}

</mosaic_0001>

<llo_original>
// kernel: dqn_forward.5
$region0: #{dqn_forward.5}
  #allocation0 [shape = 'u32[]', space=smem, size = 0x4, offset = 0x4, fixed_abs, tag = 'smem constant byte address 0x4 - core index']
  #allocation1 [shape = 'u32[144,128]{1,0:T(1,128)}', space=vmem, size = 0x12000, scoped, tag = 'internal scratch']
  %s0 = inlined_call_operand.vmem [shape: bf16[4608,256], index: 0, kind: input, shape index: {}]
  %s1 = inlined_call_operand.vmem [shape: bf16[256,32], index: 1, kind: input, shape index: {}]
  %s2 = inlined_call_operand.vmem [shape: f32[1,32], index: 2, kind: input, shape index: {}]
  %s3 = inlined_call_operand.vmem [shape: bf16[4608,32], index: 3, kind: output, shape index: {}]
  %s4 = sld [smem:[#allocation0]]
  $region45: #{dqn_forward.5} parent=0
    _
  %s6 = ssub.s32 1, %s4
  %s7 = scalar_select 0, %s6, %s4
  loop: start=0, step=1, limit=11
  $region2: #{dqn_forward.5} parent=0 // loop_pre_header
    _
  $region3: #{dqn_forward.5} parent=0 // loop_header
    %s9 = sphi 0, %s13
    %p10 = scmp.ge.s32.totalorder %s9, 11
    %s19 = sphi 0, %s21
    %s22 = sphi 0, %s19
    %s23 = sphi 0, %s22
    %s39 = sphi 0, %s23
    %s43 = sphi 0, %s43
    %s45 = sphi 0, %s43
    %s46 = sphi 0, %s45
    %s60 = sphi 0, %s46
    %s64 = sphi 0, %s64
    %s66 = sphi 0, %s64
    %s67 = sphi 0, %s66
    %s81 = sphi 0, %s67
    %s87 = sphi 0, %s89
    %s90 = sphi 0, %s87
    %s91 = sphi 0, %s90
    %s107 = sphi 0, %s91
  $region4: #{dqn_forward.5} parent=0 // loop_header_branch
    %12 = sbr.rel (%p10) target = $region8
  $region5: #{dqn_forward.5} parent=0 // loop_body
    %s14 = ssub.s32 %s9, 1
    %s15 = ssub.s32 %s9, 2
    %s16 = sadd.s32 %s9, 1
    %s17 = ssub.s32 %s9, %s16
    %p18 = scmp.eq.s32.totalorder %s17, 0
    %s20 = sadd.s32 %s19, 1
    %s21 = scalar_select %p18, %s19, %s20
    %p24 = pneg %p18
    %p25 = scmp.eq.s32.totalorder %s9, 8
    %p26 = por %p24, %p25
    %p27 = scmp.ne.s32.totalorder %s19, %s22
    %p28 = scmp.eq.s32.totalorder %s9, 0
    %p29 = por %p27, %p28
    %p30 = scmp.ne.s32.totalorder %s19, %s22
    %p31 = scmp.eq.s32.totalorder %s14, 8
    %p32 = por %p30, %p31
    %p33 = scmp.ne.s32.totalorder %s22, %s23
    %p34 = scmp.eq.s32.totalorder %s14, 0
    %p35 = por %p33, %p34
    %p36 = scmp.ne.s32.totalorder %s22, %s23
    %p37 = scmp.eq.s32.totalorder %s15, 8
    %p38 = por %p36, %p37
    %p40 = scmp.ne.s32.totalorder %s23, %s39
    %p41 = scmp.eq.s32.totalorder %s15, 0
    %p42 = por %p40, %p41
    %s44 = sadd.s32 %s43, 1
    %p47 = scmp.eq.s32.totalorder %s9, 8
    %p48 = scmp.ne.s32.totalorder %s43, %s45
    %p49 = scmp.eq.s32.totalorder %s9, 0
    %p50 = por %p48, %p49
    %p51 = scmp.ne.s32.totalorder %s43, %s45
    %p52 = scmp.eq.s32.totalorder %s14, 8
    %p53 = por %p51, %p52
    %p54 = scmp.ne.s32.totalorder %s45, %s46
    %p55 = scmp.eq.s32.totalorder %s14, 0
    %p56 = por %p54, %p55
    %p57 = scmp.ne.s32.totalorder %s45, %s46
    %p58 = scmp.eq.s32.totalorder %s15, 8
    %p59 = por %p57, %p58
    %p61 = scmp.ne.s32.totalorder %s46, %s60
    %p62 = scmp.eq.s32.totalorder %s15, 0
    %p63 = por %p61, %p62
    %s65 = sadd.s32 %s64, 1
    %p68 = scmp.eq.s32.totalorder %s9, 8
    %p69 = scmp.ne.s32.totalorder %s64, %s66
    %p70 = scmp.eq.s32.totalorder %s9, 0
    %p71 = por %p69, %p70
    %p72 = scmp.ne.s32.totalorder %s64, %s66
    %p73 = scmp.eq.s32.totalorder %s14, 8
    %p74 = por %p72, %p73
    %p75 = scmp.ne.s32.totalorder %s66, %s67
    %p76 = scmp.eq.s32.totalorder %s14, 0
    %p77 = por %p75, %p76
    %p78 = scmp.ne.s32.totalorder %s66, %s67
    %p79 = scmp.eq.s32.totalorder %s15, 8
    %p80 = por %p78, %p79
    %p82 = scmp.ne.s32.totalorder %s67, %s81
    %p83 = scmp.eq.s32.totalorder %s15, 0
    %p84 = por %p82, %p83
    %s85 = ssub.s32 %s9, %s16
    %p86 = scmp.eq.s32.totalorder %s85, 0
    %s88 = sadd.s32 %s87, 1
    %s89 = scalar_select %p86, %s87, %s88
    %p92 = pneg %p86
    %p93 = scmp.eq.s32.totalorder %s9, 8
    %p94 = por %p92, %p93
    %p95 = scmp.ne.s32.totalorder %s87, %s90
    %p96 = scmp.eq.s32.totalorder %s9, 0
    %p97 = por %p95, %p96
    %p98 = scmp.ne.s32.totalorder %s87, %s90
    %p99 = scmp.eq.s32.totalorder %s14, 8
    %p100 = por %p98, %p99
    %p101 = scmp.ne.s32.totalorder %s90, %s91
    %p102 = scmp.eq.s32.totalorder %s14, 0
    %p103 = por %p101, %p102
    %p104 = scmp.ne.s32.totalorder %s90, %s91
    %p105 = scmp.eq.s32.totalorder %s15, 8
    %p106 = por %p104, %p105
    %p108 = scmp.ne.s32.totalorder %s91, %s107
    %p109 = scmp.eq.s32.totalorder %s15, 0
    %p110 = por %p108, %p109
    %p111 = scmp.le.s32.totalorder 1, %s9
    %p112 = scmp.lt.s32.totalorder %s9, 10
    %p113 = pnand %p111, %p112
    %p114 = pneg %p113
    // Predicated region
    $region9: #{dqn_forward.5} parent=5 // pred_check
      _
    $region10: #{dqn_forward.5} parent=5 // pred_check_branch
      %116 = sbr.rel (%p113) target = $region12
    $region11: #{dqn_forward.5} parent=5 // pred_region
      %s117 = ssub.s32 %s9, 1
      // Predicated region
      $region13: #{dqn_forward.5} parent=11 // pred_check
        %p118 = pneg %p56
      $region14: #{dqn_forward.5} parent=11 // pred_check_branch
        %120 = sbr.rel (%p118) target = $region16
      $region15: #{dqn_forward.5} parent=11 // pred_region
        _
      $region16: #{dqn_forward.5} parent=11 // pred_fallthru
        _
      // Predicated region
      $region17: #{dqn_forward.5} parent=11 // pred_check
        %p121 = pneg %p77
      $region18: #{dqn_forward.5} parent=11 // pred_check_branch
        %123 = sbr.rel (%p121) target = $region20
      $region19: #{dqn_forward.5} parent=11 // pred_region
        _
      $region20: #{dqn_forward.5} parent=11 // pred_fallthru
        _
    $region12: #{dqn_forward.5} parent=5 // pred_fallthru
      _
    %p124 = scmp.lt.s32.totalorder %s9, 9
    // Predicated region
    $region21: #{dqn_forward.5} parent=5 // pred_check
      %p125 = pneg %p124
    $region22: #{dqn_forward.5} parent=5 // pred_check_branch
      %127 = sbr.rel (%p125) target = $region24
    $region23: #{dqn_forward.5} parent=5 // pred_region
      // Predicated region
      $region25: #{dqn_forward.5} parent=23 // pred_check
        %p128 = pneg %p29
      $region26: #{dqn_forward.5} parent=23 // pred_check_branch
        %130 = sbr.rel (%p128) target = $region28
      $region27: #{dqn_forward.5} parent=23 // pred_region
        %s131 = smul.u32 64, %s9
        %p132 = scmp.lt.s32.totalorder %s131, 575
        %s133 = scalar_select %p132, %s131, 575
        %s134 = smul.addr %s133, 2
        %s135 = smul.addr %s134, 4
        %s136 = scalar_lea.vmem %s0, %s135
        %s137 = smul.u32 64, %s9
      $region28: #{dqn_forward.5} parent=23 // pred_fallthru
        _
    $region24: #{dqn_forward.5} parent=5 // pred_fallthru
      _
    %p138 = scmp.le.s32.totalorder 1, %s9
    %p139 = scmp.lt.s32.totalorder %s9, 10
    %p140 = pnand %p138, %p139
    %p141 = pneg %p140
    // Predicated region
    $region29: #{dqn_forward.5} parent=5 // pred_check
      _
    $region30: #{dqn_forward.5} parent=5 // pred_check_branch
      %143 = sbr.rel (%p140) target = $region32
    $region31: #{dqn_forward.5} parent=5 // pred_region
      %s144 = ssub.s32 %s9, 1
      %s145 = smul.u32 64, %s14
      %p146 = scmp.lt.s32.totalorder %s145, 575
      %s147 = scalar_select %p146, %s145, 575
      %s148 = smul.addr %s147, 2
      %s149 = smul.addr %s148, 4
      %s150 = scalar_lea.vmem %s0, %s149
      %p151 = pneg %p35
      %p152 = pneg %p32
      %p153 = pneg %p56
      %p154 = pneg %p53
      %p155 = pneg %p77
      %p156 = pneg %p74
      %p157 = pneg %p103
      %p158 = pneg %p100
      %s159 = smul.u32 64, %s14
      %p160 = scmp.lt.s32.totalorder %s159, 575
      %s161 = scalar_select %p160, %s159, 575
      %s162 = smul.addr %s161, 4
      %s163 = scalar_lea.vmem %s3, %s162
      %s164 = smul.u32 64, %s14
      %p165 = scmp.lt.s32.totalorder %s164, 575
      %s166 = scalar_select %p165, %s164, 575
      %s167 = smul.addr %s166, 2
      %s168 = smul.addr %s167, 4
      %s169 = scalar_lea.vmem %s0, %s168
      %s170 = smul.u32 64, %s14
      %s171 = smul.u32 64, %s14
      %p172 = scmp.lt.s32.totalorder %s171, 575
      %s173 = scalar_select %p172, %s171, 575
      %s174 = smul.addr %s173, 4
      %s175 = scalar_lea.vmem %s3, %s174
      %s176 = smul.u32 64, %s14
      %v178 = vld [vmem:[%s169] sm:$0xff]
      %v179 = vld [vmem:[%s169 + $0x8] sm:$0xff]
      %v180 = vld [vmem:[%s169 + $0x10] sm:$0xff]
      %v181 = vld [vmem:[%s169 + $0x18] sm:$0xff]
      %v182 = vld [vmem:[%s169 + $0x20] sm:$0xff]
      %v183 = vld [vmem:[%s169 + $0x28] sm:$0xff]
      %v184 = vld [vmem:[%s169 + $0x30] sm:$0xff]
      %v185 = vld [vmem:[%s169 + $0x38] sm:$0xff]
      %v186 = vld [vmem:[%s169 + $0x40] sm:$0xff]
      %v187 = vld [vmem:[%s169 + $0x48] sm:$0xff]
      %v188 = vld [vmem:[%s169 + $0x50] sm:$0xff]
      %v189 = vld [vmem:[%s169 + $0x58] sm:$0xff]
      %v190 = vld [vmem:[%s169 + $0x60] sm:$0xff]
      %v191 = vld [vmem:[%s169 + $0x68] sm:$0xff]
      %v192 = vld [vmem:[%s169 + $0x70] sm:$0xff]
      %v193 = vld [vmem:[%s169 + $0x78] sm:$0xff]
      %v194 = vld [vmem:[%s169 + $0x80] sm:$0xff]
      %v195 = vld [vmem:[%s169 + $0x88] sm:$0xff]
      %v196 = vld [vmem:[%s169 + $0x90] sm:$0xff]
      %v197 = vld [vmem:[%s169 + $0x98] sm:$0xff]
      %v198 = vld [vmem:[%s169 + $0xa0] sm:$0xff]
      %v199 = vld [vmem:[%s169 + $0xa8] sm:$0xff]
      %v200 = vld [vmem:[%s169 + $0xb0] sm:$0xff]
      %v201 = vld [vmem:[%s169 + $0xb8] sm:$0xff]
      %v202 = vld [vmem:[%s169 + $0xc0] sm:$0xff]
      %v203 = vld [vmem:[%s169 + $0xc8] sm:$0xff]
      %v204 = vld [vmem:[%s169 + $0xd0] sm:$0xff]
      %v205 = vld [vmem:[%s169 + $0xd8] sm:$0xff]
      %v206 = vld [vmem:[%s169 + $0xe0] sm:$0xff]
      %v207 = vld [vmem:[%s169 + $0xe8] sm:$0xff]
      %v208 = vld [vmem:[%s169 + $0xf0] sm:$0xff]
      %v209 = vld [vmem:[%s169 + $0xf8] sm:$0xff]
      %v210 = vld [vmem:[%s169 + $0x100] sm:$0xff]
      %v211 = vld [vmem:[%s169 + $0x108] sm:$0xff]
      %v212 = vld [vmem:[%s169 + $0x110] sm:$0xff]
      %v213 = vld [vmem:[%s169 + $0x118] sm:$0xff]
      %v214 = vld [vmem:[%s169 + $0x120] sm:$0xff]
      %v215 = vld [vmem:[%s169 + $0x128] sm:$0xff]
      %v216 = vld [vmem:[%s169 + $0x130] sm:$0xff]
      %v217 = vld [vmem:[%s169 + $0x138] sm:$0xff]
      %v218 = vld [vmem:[%s169 + $0x140] sm:$0xff]
      %v219 = vld [vmem:[%s169 + $0x148] sm:$0xff]
      %v220 = vld [vmem:[%s169 + $0x150] sm:$0xff]
      %v221 = vld [vmem:[%s169 + $0x158] sm:$0xff]
      %v222 = vld [vmem:[%s169 + $0x160] sm:$0xff]
      %v223 = vld [vmem:[%s169 + $0x168] sm:$0xff]
      %v224 = vld [vmem:[%s169 + $0x170] sm:$0xff]
      %v225 = vld [vmem:[%s169 + $0x178] sm:$0xff]
      %v226 = vld [vmem:[%s169 + $0x180] sm:$0xff]
      %v227 = vld [vmem:[%s169 + $0x188] sm:$0xff]
      %v228 = vld [vmem:[%s169 + $0x190] sm:$0xff]
      %v229 = vld [vmem:[%s169 + $0x198] sm:$0xff]
      %v230 = vld [vmem:[%s169 + $0x1a0] sm:$0xff]
      %v231 = vld [vmem:[%s169 + $0x1a8] sm:$0xff]
      %v232 = vld [vmem:[%s169 + $0x1b0] sm:$0xff]
      %v233 = vld [vmem:[%s169 + $0x1b8] sm:$0xff]
      %v234 = vld [vmem:[%s169 + $0x1c0] sm:$0xff]
      %v235 = vld [vmem:[%s169 + $0x1c8] sm:$0xff]
      %v236 = vld [vmem:[%s169 + $0x1d0] sm:$0xff]
      %v237 = vld [vmem:[%s169 + $0x1d8] sm:$0xff]
      %v238 = vld [vmem:[%s169 + $0x1e0] sm:$0xff]
      %v239 = vld [vmem:[%s169 + $0x1e8] sm:$0xff]
      %v240 = vld [vmem:[%s169 + $0x1f0] sm:$0xff]
      %v241 = vld [vmem:[%s169 + $0x1f8] sm:$0xff]
      %v242 = vld [vmem:[%s1] sm:$0xf]
      %v243 = vld [vmem:[%s1 + $0x4] sm:$0xf]
      %v244 = vld [vmem:[%s1 + $0x8] sm:$0xf]
      %v245 = vld [vmem:[%s1 + $0xc] sm:$0xf]
      %v246 = vld [vmem:[%s1 + $0x10] sm:$0xf]
      %v247 = vld [vmem:[%s1 + $0x14] sm:$0xf]
      %v248 = vld [vmem:[%s1 + $0x18] sm:$0xf]
      %v249 = vld [vmem:[%s1 + $0x1c] sm:$0xf]
      %v250 = vld [vmem:[%s1 + $0x20] sm:$0xf]
      %v251 = vld [vmem:[%s1 + $0x24] sm:$0xf]
      %v252 = vld [vmem:[%s1 + $0x28] sm:$0xf]
      %v253 = vld [vmem:[%s1 + $0x2c] sm:$0xf]
      %v254 = vld [vmem:[%s1 + $0x30] sm:$0xf]
      %v255 = vld [vmem:[%s1 + $0x34] sm:$0xf]
      %v256 = vld [vmem:[%s1 + $0x38] sm:$0xf]
      %v257 = vld [vmem:[%s1 + $0x3c] sm:$0xf]
      %v258 = vld [vmem:[%s1 + $0x40] sm:$0xf]
      %v259 = vld [vmem:[%s1 + $0x44] sm:$0xf]
      %v260 = vld [vmem:[%s1 + $0x48] sm:$0xf]
      %v261 = vld [vmem:[%s1 + $0x4c] sm:$0xf]
      %v262 = vld [vmem:[%s1 + $0x50] sm:$0xf]
      %v263 = vld [vmem:[%s1 + $0x54] sm:$0xf]
      %v264 = vld [vmem:[%s1 + $0x58] sm:$0xf]
      %v265 = vld [vmem:[%s1 + $0x5c] sm:$0xf]
      %v266 = vld [vmem:[%s1 + $0x60] sm:$0xf]
      %v267 = vld [vmem:[%s1 + $0x64] sm:$0xf]
      %v268 = vld [vmem:[%s1 + $0x68] sm:$0xf]
      %v269 = vld [vmem:[%s1 + $0x6c] sm:$0xf]
      %v270 = vld [vmem:[%s1 + $0x70] sm:$0xf]
      %v271 = vld [vmem:[%s1 + $0x74] sm:$0xf]
      %v272 = vld [vmem:[%s1 + $0x78] sm:$0xf]
      %v273 = vld [vmem:[%s1 + $0x7c] sm:$0xf]
      %v274 = vld [vmem:[%s2] sm:$0x1]
      %v276 = vlaneseq
      %v277 = vshrl.u32 %v276, 7
      %v278 = vsub.s32 0, %v277
      %v279 = vrot.slane %v274, %v278
      %v345 = vunpack.c.l.b16 %v178
      %v346 = vunpack.c.h.b16 %v178
      %v347 = vunpack.c.l.b16 %v179
      %v348 = vunpack.c.h.b16 %v179
      %v349 = vunpack.c.l.b16 %v180
      %v350 = vunpack.c.h.b16 %v180
      %v351 = vunpack.c.l.b16 %v181
      %v352 = vunpack.c.h.b16 %v181
      %v353 = vunpack.c.l.b16 %v182
      %v354 = vunpack.c.h.b16 %v182
      %v355 = vunpack.c.l.b16 %v183
      %v356 = vunpack.c.h.b16 %v183
      %v357 = vunpack.c.l.b16 %v184
      %v358 = vunpack.c.h.b16 %v184
      %v359 = vunpack.c.l.b16 %v185
      %v360 = vunpack.c.h.b16 %v185
      %v361 = vunpack.c.l.b16 %v186
      %v362 = vunpack.c.h.b16 %v186
      %v363 = vunpack.c.l.b16 %v187
      %v364 = vunpack.c.h.b16 %v187
      %v365 = vunpack.c.l.b16 %v188
      %v366 = vunpack.c.h.b16 %v188
      %v367 = vunpack.c.l.b16 %v189
      %v368 = vunpack.c.h.b16 %v189
      %v369 = vunpack.c.l.b16 %v190
      %v370 = vunpack.c.h.b16 %v190
      %v371 = vunpack.c.l.b16 %v191
      %v372 = vunpack.c.h.b16 %v191
      %v373 = vunpack.c.l.b16 %v192
      %v374 = vunpack.c.h.b16 %v192
      %v375 = vunpack.c.l.b16 %v193
      %v376 = vunpack.c.h.b16 %v193
      %v377 = vunpack.c.l.b16 %v194
      %v378 = vunpack.c.h.b16 %v194
      %v379 = vunpack.c.l.b16 %v195
      %v380 = vunpack.c.h.b16 %v195
      %v381 = vunpack.c.l.b16 %v196
      %v382 = vunpack.c.h.b16 %v196
      %v383 = vunpack.c.l.b16 %v197
      %v384 = vunpack.c.h.b16 %v197
      %v385 = vunpack.c.l.b16 %v198
      %v386 = vunpack.c.h.b16 %v198
      %v387 = vunpack.c.l.b16 %v199
      %v388 = vunpack.c.h.b16 %v199
      %v389 = vunpack.c.l.b16 %v200
      %v390 = vunpack.c.h.b16 %v200
      %v391 = vunpack.c.l.b16 %v201
      %v392 = vunpack.c.h.b16 %v201
      %v393 = vunpack.c.l.b16 %v202
      %v394 = vunpack.c.h.b16 %v202
      %v395 = vunpack.c.l.b16 %v203
      %v396 = vunpack.c.h.b16 %v203
      %v397 = vunpack.c.l.b16 %v204
      %v398 = vunpack.c.h.b16 %v204
      %v399 = vunpack.c.l.b16 %v205
      %v400 = vunpack.c.h.b16 %v205
      %v401 = vunpack.c.l.b16 %v206
      %v402 = vunpack.c.h.b16 %v206
      %v403 = vunpack.c.l.b16 %v207
      %v404 = vunpack.c.h.b16 %v207
      %v405 = vunpack.c.l.b16 %v208
      %v406 = vunpack.c.h.b16 %v208
      %v407 = vunpack.c.l.b16 %v209
      %v408 = vunpack.c.h.b16 %v209
      %v409 = vunpack.c.l.b16 %v210
      %v410 = vunpack.c.h.b16 %v210
      %v411 = vunpack.c.l.b16 %v211
      %v412 = vunpack.c.h.b16 %v211
      %v413 = vunpack.c.l.b16 %v212
      %v414 = vunpack.c.h.b16 %v212
      %v415 = vunpack.c.l.b16 %v213
      %v416 = vunpack.c.h.b16 %v213
      %v417 = vunpack.c.l.b16 %v214
      %v418 = vunpack.c.h.b16 %v214
      %v419 = vunpack.c.l.b16 %v215
      %v420 = vunpack.c.h.b16 %v215
      %v421 = vunpack.c.l.b16 %v216
      %v422 = vunpack.c.h.b16 %v216
      %v423 = vunpack.c.l.b16 %v217
      %v424 = vunpack.c.h.b16 %v217
      %v425 = vunpack.c.l.b16 %v218
      %v426 = vunpack.c.h.b16 %v218
      %v427 = vunpack.c.l.b16 %v219
      %v428 = vunpack.c.h.b16 %v219
      %v429 = vunpack.c.l.b16 %v220
      %v430 = vunpack.c.h.b16 %v220
      %v431 = vunpack.c.l.b16 %v221
      %v432 = vunpack.c.h.b16 %v221
      %v433 = vunpack.c.l.b16 %v222
      %v434 = vunpack.c.h.b16 %v222
      %v435 = vunpack.c.l.b16 %v223
      %v436 = vunpack.c.h.b16 %v223
      %v437 = vunpack.c.l.b16 %v224
      %v438 = vunpack.c.h.b16 %v224
      %v439 = vunpack.c.l.b16 %v225
      %v440 = vunpack.c.h.b16 %v225
      %v441 = vunpack.c.l.b16 %v226
      %v442 = vunpack.c.h.b16 %v226
      %v443 = vunpack.c.l.b16 %v227
      %v444 = vunpack.c.h.b16 %v227
      %v445 = vunpack.c.l.b16 %v228
      %v446 = vunpack.c.h.b16 %v228
      %v447 = vunpack.c.l.b16 %v229
      %v448 = vunpack.c.h.b16 %v229
      %v449 = vunpack.c.l.b16 %v230
      %v450 = vunpack.c.h.b16 %v230
      %v451 = vunpack.c.l.b16 %v231
      %v452 = vunpack.c.h.b16 %v231
      %v453 = vunpack.c.l.b16 %v232
      %v454 = vunpack.c.h.b16 %v232
      %v455 = vunpack.c.l.b16 %v233
      %v456 = vunpack.c.h.b16 %v233
      %v457 = vunpack.c.l.b16 %v234
      %v458 = vunpack.c.h.b16 %v234
      %v459 = vunpack.c.l.b16 %v235
      %v460 = vunpack.c.h.b16 %v235
      %v461 = vunpack.c.l.b16 %v236
      %v462 = vunpack.c.h.b16 %v236
      %v463 = vunpack.c.l.b16 %v237
      %v464 = vunpack.c.h.b16 %v237
      %v465 = vunpack.c.l.b16 %v238
      %v466 = vunpack.c.h.b16 %v238
      %v467 = vunpack.c.l.b16 %v239
      %v468 = vunpack.c.h.b16 %v239
      %v469 = vunpack.c.l.b16 %v240
      %v470 = vunpack.c.h.b16 %v240
      %v471 = vunpack.c.l.b16 %v241
      %v472 = vunpack.c.h.b16 %v241
      %v473 = vpack.c.b16 %v347, %v345
      %v474 = vpack.c.b16 %v348, %v346
      %v475 = vpack.c.b16 %v351, %v349
      %v476 = vpack.c.b16 %v352, %v350
      %v477 = vpack.c.b16 %v355, %v353
      %v478 = vpack.c.b16 %v356, %v354
      %v479 = vpack.c.b16 %v359, %v357
      %v480 = vpack.c.b16 %v360, %v358
      %v481 = vpack.c.b16 %v363, %v361
      %v482 = vpack.c.b16 %v364, %v362
      %v483 = vpack.c.b16 %v367, %v365
      %v484 = vpack.c.b16 %v368, %v366
      %v485 = vpack.c.b16 %v371, %v369
      %v486 = vpack.c.b16 %v372, %v370
      %v487 = vpack.c.b16 %v375, %v373
      %v488 = vpack.c.b16 %v376, %v374
      %v489 = vpack.c.b16 %v379, %v377
      %v490 = vpack.c.b16 %v380, %v378
      %v491 = vpack.c.b16 %v383, %v381
      %v492 = vpack.c.b16 %v384, %v382
      %v493 = vpack.c.b16 %v387, %v385
      %v494 = vpack.c.b16 %v388, %v386
      %v495 = vpack.c.b16 %v391, %v389
      %v496 = vpack.c.b16 %v392, %v390
      %v497 = vpack.c.b16 %v395, %v393
      %v498 = vpack.c.b16 %v396, %v394
      %v499 = vpack.c.b16 %v399, %v397
      %v500 = vpack.c.b16 %v400, %v398
      %v501 = vpack.c.b16 %v403, %v401
      %v502 = vpack.c.b16 %v404, %v402
      %v503 = vpack.c.b16 %v407, %v405
      %v504 = vpack.c.b16 %v408, %v406
      %v505 = vpack.c.b16 %v411, %v409
      %v506 = vpack.c.b16 %v412, %v410
      %v507 = vpack.c.b16 %v415, %v413
      %v508 = vpack.c.b16 %v416, %v414
      %v509 = vpack.c.b16 %v419, %v417
      %v510 = vpack.c.b16 %v420, %v418
      %v511 = vpack.c.b16 %v423, %v421
      %v512 = vpack.c.b16 %v424, %v422
      %v513 = vpack.c.b16 %v427, %v425
      %v514 = vpack.c.b16 %v428, %v426
      %v515 = vpack.c.b16 %v431, %v429
      %v516 = vpack.c.b16 %v432, %v430
      %v517 = vpack.c.b16 %v435, %v433
      %v518 = vpack.c.b16 %v436, %v434
      %v519 = vpack.c.b16 %v439, %v437
      %v520 = vpack.c.b16 %v440, %v438
      %v521 = vpack.c.b16 %v443, %v441
      %v522 = vpack.c.b16 %v444, %v442
      %v523 = vpack.c.b16 %v447, %v445
      %v524 = vpack.c.b16 %v448, %v446
      %v525 = vpack.c.b16 %v451, %v449
      %v526 = vpack.c.b16 %v452, %v450
      %v527 = vpack.c.b16 %v455, %v453
      %v528 = vpack.c.b16 %v456, %v454
      %v529 = vpack.c.b16 %v459, %v457
      %v530 = vpack.c.b16 %v460, %v458
      %v531 = vpack.c.b16 %v463, %v461
      %v532 = vpack.c.b16 %v464, %v462
      %v533 = vpack.c.b16 %v467, %v465
      %v534 = vpack.c.b16 %v468, %v466
      %v535 = vpack.c.b16 %v471, %v469
      %v536 = vpack.c.b16 %v472, %v470
      %v633 = vunpack.c.l.b16 %v242
      %v634 = vunpack.c.l.b16 %v243
      %v635 = vunpack.c.l.b16 %v244
      %v636 = vunpack.c.l.b16 %v245
      %v637 = vunpack.c.l.b16 %v246
      %v638 = vunpack.c.l.b16 %v247
      %v639 = vunpack.c.l.b16 %v248
      %v640 = vunpack.c.l.b16 %v249
      %v641 = vunpack.c.l.b16 %v250
      %v642 = vunpack.c.l.b16 %v251
      %v643 = vunpack.c.l.b16 %v252
      %v644 = vunpack.c.l.b16 %v253
      %v645 = vunpack.c.l.b16 %v254
      %v646 = vunpack.c.l.b16 %v255
      %v647 = vunpack.c.l.b16 %v256
      %v648 = vunpack.c.l.b16 %v257
      %v649 = vunpack.c.l.b16 %v258
      %v650 = vunpack.c.l.b16 %v259
      %v651 = vunpack.c.l.b16 %v260
      %v652 = vunpack.c.l.b16 %v261
      %v653 = vunpack.c.l.b16 %v262
      %v654 = vunpack.c.l.b16 %v263
      %v655 = vunpack.c.l.b16 %v264
      %v656 = vunpack.c.l.b16 %v265
      %v657 = vunpack.c.l.b16 %v266
      %v658 = vunpack.c.l.b16 %v267
      %v659 = vunpack.c.l.b16 %v268
      %v660 = vunpack.c.l.b16 %v269
      %v661 = vunpack.c.l.b16 %v270
      %v662 = vunpack.c.l.b16 %v271
      %v663 = vunpack.c.l.b16 %v272
      %v664 = vunpack.c.l.b16 %v273
      %v665 = vpack.c.b16 %v634, %v633
      %v666 = vpack.c.b16 %v636, %v635
      %v667 = vpack.c.b16 %v638, %v637
      %v668 = vpack.c.b16 %v640, %v639
      %v669 = vpack.c.b16 %v642, %v641
      %v670 = vpack.c.b16 %v644, %v643
      %v671 = vpack.c.b16 %v646, %v645
      %v672 = vpack.c.b16 %v648, %v647
      %v673 = vpack.c.b16 %v650, %v649
      %v674 = vpack.c.b16 %v652, %v651
      %v675 = vpack.c.b16 %v654, %v653
      %v676 = vpack.c.b16 %v656, %v655
      %v677 = vpack.c.b16 %v658, %v657
      %v678 = vpack.c.b16 %v660, %v659
      %v679 = vpack.c.b16 %v662, %v661
      %v680 = vpack.c.b16 %v664, %v663
      %697 = vmatprep.subr.bf16.mxu0 0
      %698 = vmatpush1.bf16.msra.mxu0 %v672
      %699 = vmatprep.subr.bf16.mxu0 0
      %700 = vmatpush1.bf16.msra.mxu0 %v671
      %701 = vmatprep.subr.bf16.mxu0 0
      %702 = vmatpush1.bf16.msra.mxu0 %v670
      %703 = vmatprep.subr.bf16.mxu0 0
      %704 = vmatpush1.bf16.msra.mxu0 %v669
      %705 = vmatprep.subr.bf16.mxu0 0
      %706 = vmatpush1.bf16.msra.mxu0 %v668
      %707 = vmatprep.subr.bf16.mxu0 0
      %708 = vmatpush1.bf16.msra.mxu0 %v667
      %709 = vmatprep.subr.bf16.mxu0 0
      %710 = vmatpush1.bf16.msra.mxu0 %v666
      %711 = vmatprep.subr.bf16.mxu0 0
      %712 = vmatpush1.bf16.msra.mxu0 %v665
      %713 = vmatprep.subr.bf16.mxu0 0
      %714 = vmatpush2.bf16.msra.mxu0 %v680
      %715 = vmatprep.subr.bf16.mxu0 0
      %716 = vmatpush2.bf16.msra.mxu0 %v679
      %717 = vmatprep.subr.bf16.mxu0 0
      %718 = vmatpush2.bf16.msra.mxu0 %v678
      %719 = vmatprep.subr.bf16.mxu0 0
      %720 = vmatpush2.bf16.msra.mxu0 %v677
      %721 = vmatprep.subr.bf16.mxu0 0
      %722 = vmatpush2.bf16.msra.mxu0 %v676
      %723 = vmatprep.subr.bf16.mxu0 0
      %724 = vmatpush2.bf16.msra.mxu0 %v675
      %725 = vmatprep.subr.bf16.mxu0 0
      %726 = vmatpush2.bf16.msra.mxu0 %v674
      %727 = vmatprep.subr.bf16.mxu0 0
      %728 = vmatpush2.bf16.msra.mxu0 %v673
      %729 = vmatprep.mubr.bf16.mxu0 %v474
      %730 = vmatmul.mubr.bf16.gmra.mxu0 %v473
      %v731 = vpop.f32.mrf.mxu0
      %v732 = vadd.f32 %v279, %v731
      %v733 = vpop.f32.mrf.mxu0
      %v734 = vpop.f32.mrf.mxu0
      %v735 = vadd.f32 %v279, %v734
      %v736 = vpop.f32.mrf.mxu0
      %737 = vmatprep.mubr.bf16.mxu0 %v476
      %738 = vmatmul.mubr.bf16.gmra.mxu0 %v475
      %v739 = vpop.f32.mrf.mxu0
      %v740 = vadd.f32 %v279, %v739
      %v741 = vpop.f32.mrf.mxu0
      %v742 = vpop.f32.mrf.mxu0
      %v743 = vadd.f32 %v279, %v742
      %v744 = vpop.f32.mrf.mxu0
      %745 = vmatprep.mubr.bf16.mxu0 %v478
      %746 = vmatmul.mubr.bf16.gmra.mxu0 %v477
      %v747 = vpop.f32.mrf.mxu0
      %v748 = vadd.f32 %v279, %v747
      %v749 = vpop.f32.mrf.mxu0
      %v750 = vpop.f32.mrf.mxu0
      %v751 = vadd.f32 %v279, %v750
      %v752 = vpop.f32.mrf.mxu0
      %753 = vmatprep.mubr.bf16.mxu0 %v480
      %754 = vmatmul.mubr.bf16.gmra.mxu0 %v479
      %v755 = vpop.f32.mrf.mxu0
      %v756 = vadd.f32 %v279, %v755
      %v757 = vpop.f32.mrf.mxu0
      %v758 = vpop.f32.mrf.mxu0
      %v759 = vadd.f32 %v279, %v758
      %v760 = vpop.f32.mrf.mxu0
      %761 = vmatprep.mubr.bf16.mxu0 %v482
      %762 = vmatmul.mubr.bf16.gmra.mxu0 %v481
      %v763 = vpop.f32.mrf.mxu0
      %v764 = vadd.f32 %v279, %v763
      %v765 = vpop.f32.mrf.mxu0
      %v766 = vpop.f32.mrf.mxu0
      %v767 = vadd.f32 %v279, %v766
      %v768 = vpop.f32.mrf.mxu0
      %769 = vmatprep.mubr.bf16.mxu0 %v484
      %770 = vmatmul.mubr.bf16.gmra.mxu0 %v483
      %v771 = vpop.f32.mrf.mxu0
      %v772 = vadd.f32 %v279, %v771
      %v773 = vpop.f32.mrf.mxu0
      %v774 = vpop.f32.mrf.mxu0
      %v775 = vadd.f32 %v279, %v774
      %v776 = vpop.f32.mrf.mxu0
      %777 = vmatprep.mubr.bf16.mxu0 %v486
      %778 = vmatmul.mubr.bf16.gmra.mxu0 %v485
      %v779 = vpop.f32.mrf.mxu0
      %v780 = vadd.f32 %v279, %v779
      %v781 = vpop.f32.mrf.mxu0
      %v782 = vpop.f32.mrf.mxu0
      %v783 = vadd.f32 %v279, %v782
      %v784 = vpop.f32.mrf.mxu0
      %785 = vmatprep.mubr.bf16.mxu0 %v488
      %786 = vmatmul.mubr.bf16.gmra.mxu0 %v487
      %v787 = vpop.f32.mrf.mxu0
      %v788 = vadd.f32 %v279, %v787
      %v789 = vpop.f32.mrf.mxu0
      %v790 = vpop.f32.mrf.mxu0
      %v791 = vadd.f32 %v279, %v790
      %v792 = vpop.f32.mrf.mxu0
      %793 = vmatprep.mubr.bf16.mxu0 %v490
      %794 = vmatmul.mubr.bf16.gmra.mxu0 %v489
      %v795 = vpop.f32.mrf.mxu0
      %v796 = vadd.f32 %v279, %v795
      %v797 = vpop.f32.mrf.mxu0
      %v798 = vpop.f32.mrf.mxu0
      %v799 = vadd.f32 %v279, %v798
      %v800 = vpop.f32.mrf.mxu0
      %801 = vmatprep.mubr.bf16.mxu0 %v492
      %802 = vmatmul.mubr.bf16.gmra.mxu0 %v491
      %v803 = vpop.f32.mrf.mxu0
      %v804 = vadd.f32 %v279, %v803
      %v805 = vpop.f32.mrf.mxu0
      %v806 = vpop.f32.mrf.mxu0
      %v807 = vadd.f32 %v279, %v806
      %v808 = vpop.f32.mrf.mxu0
      %809 = vmatprep.mubr.bf16.mxu0 %v494
      %810 = vmatmul.mubr.bf16.gmra.mxu0 %v493
      %v811 = vpop.f32.mrf.mxu0
      %v812 = vadd.f32 %v279, %v811
      %v813 = vpop.f32.mrf.mxu0
      %v814 = vpop.f32.mrf.mxu0
      %v815 = vadd.f32 %v279, %v814
      %v816 = vpop.f32.mrf.mxu0
      %817 = vmatprep.mubr.bf16.mxu0 %v496
      %818 = vmatmul.mubr.bf16.gmra.mxu0 %v495
      %v819 = vpop.f32.mrf.mxu0
      %v820 = vadd.f32 %v279, %v819
      %v821 = vpop.f32.mrf.mxu0
      %v822 = vpop.f32.mrf.mxu0
      %v823 = vadd.f32 %v279, %v822
      %v824 = vpop.f32.mrf.mxu0
      %825 = vmatprep.mubr.bf16.mxu0 %v498
      %826 = vmatmul.mubr.bf16.gmra.mxu0 %v497
      %v827 = vpop.f32.mrf.mxu0
      %v828 = vadd.f32 %v279, %v827
      %v829 = vpop.f32.mrf.mxu0
      %v830 = vpop.f32.mrf.mxu0
      %v831 = vadd.f32 %v279, %v830
      %v832 = vpop.f32.mrf.mxu0
      %833 = vmatprep.mubr.bf16.mxu0 %v500
      %834 = vmatmul.mubr.bf16.gmra.mxu0 %v499
      %v835 = vpop.f32.mrf.mxu0
      %v836 = vadd.f32 %v279, %v835
      %v837 = vpop.f32.mrf.mxu0
      %v838 = vpop.f32.mrf.mxu0
      %v839 = vadd.f32 %v279, %v838
      %v840 = vpop.f32.mrf.mxu0
      %841 = vmatprep.mubr.bf16.mxu0 %v502
      %842 = vmatmul.mubr.bf16.gmra.mxu0 %v501
      %v843 = vpop.f32.mrf.mxu0
      %v844 = vadd.f32 %v279, %v843
      %v845 = vpop.f32.mrf.mxu0
      %v846 = vpop.f32.mrf.mxu0
      %v847 = vadd.f32 %v279, %v846
      %v848 = vpop.f32.mrf.mxu0
      %849 = vmatprep.mubr.bf16.mxu0 %v504
      %850 = vmatmul.mubr.bf16.gmra.mxu0 %v503
      %v851 = vpop.f32.mrf.mxu0
      %v852 = vadd.f32 %v279, %v851
      %v853 = vpop.f32.mrf.mxu0
      %v854 = vpop.f32.mrf.mxu0
      %v855 = vadd.f32 %v279, %v854
      %v856 = vpop.f32.mrf.mxu0
      %857 = vmatprep.mubr.bf16.mxu0 %v506
      %858 = vmatmul.mubr.bf16.gmra.mxu0 %v505
      %v859 = vpop.f32.mrf.mxu0
      %v860 = vadd.f32 %v279, %v859
      %v861 = vpop.f32.mrf.mxu0
      %v862 = vpop.f32.mrf.mxu0
      %v863 = vadd.f32 %v279, %v862
      %v864 = vpop.f32.mrf.mxu0
      %865 = vmatprep.mubr.bf16.mxu0 %v508
      %866 = vmatmul.mubr.bf16.gmra.mxu0 %v507
      %v867 = vpop.f32.mrf.mxu0
      %v868 = vadd.f32 %v279, %v867
      %v869 = vpop.f32.mrf.mxu0
      %v870 = vpop.f32.mrf.mxu0
      %v871 = vadd.f32 %v279, %v870
      %v872 = vpop.f32.mrf.mxu0
      %873 = vmatprep.mubr.bf16.mxu0 %v510
      %874 = vmatmul.mubr.bf16.gmra.mxu0 %v509
      %v875 = vpop.f32.mrf.mxu0
      %v876 = vadd.f32 %v279, %v875
      %v877 = vpop.f32.mrf.mxu0
      %v878 = vpop.f32.mrf.mxu0
      %v879 = vadd.f32 %v279, %v878
      %v880 = vpop.f32.mrf.mxu0
      %881 = vmatprep.mubr.bf16.mxu0 %v512
      %882 = vmatmul.mubr.bf16.gmra.mxu0 %v511
      %v883 = vpop.f32.mrf.mxu0
      %v884 = vadd.f32 %v279, %v883
      %v885 = vpop.f32.mrf.mxu0
      %v886 = vpop.f32.mrf.mxu0
      %v887 = vadd.f32 %v279, %v886
      %v888 = vpop.f32.mrf.mxu0
      %889 = vmatprep.mubr.bf16.mxu0 %v514
      %890 = vmatmul.mubr.bf16.gmra.mxu0 %v513
      %v891 = vpop.f32.mrf.mxu0
      %v892 = vadd.f32 %v279, %v891
      %v893 = vpop.f32.mrf.mxu0
      %v894 = vpop.f32.mrf.mxu0
      %v895 = vadd.f32 %v279, %v894
      %v896 = vpop.f32.mrf.mxu0
      %897 = vmatprep.mubr.bf16.mxu0 %v516
      %898 = vmatmul.mubr.bf16.gmra.mxu0 %v515
      %v899 = vpop.f32.mrf.mxu0
      %v900 = vadd.f32 %v279, %v899
      %v901 = vpop.f32.mrf.mxu0
      %v902 = vpop.f32.mrf.mxu0
      %v903 = vadd.f32 %v279, %v902
      %v904 = vpop.f32.mrf.mxu0
      %905 = vmatprep.mubr.bf16.mxu0 %v518
      %906 = vmatmul.mubr.bf16.gmra.mxu0 %v517
      %v907 = vpop.f32.mrf.mxu0
      %v908 = vadd.f32 %v279, %v907
      %v909 = vpop.f32.mrf.mxu0
      %v910 = vpop.f32.mrf.mxu0
      %v911 = vadd.f32 %v279, %v910
      %v912 = vpop.f32.mrf.mxu0
      %913 = vmatprep.mubr.bf16.mxu0 %v520
      %914 = vmatmul.mubr.bf16.gmra.mxu0 %v519
      %v915 = vpop.f32.mrf.mxu0
      %v916 = vadd.f32 %v279, %v915
      %v917 = vpop.f32.mrf.mxu0
      %v918 = vpop.f32.mrf.mxu0
      %v919 = vadd.f32 %v279, %v918
      %v920 = vpop.f32.mrf.mxu0
      %921 = vmatprep.mubr.bf16.mxu0 %v522
      %922 = vmatmul.mubr.bf16.gmra.mxu0 %v521
      %v923 = vpop.f32.mrf.mxu0
      %v924 = vadd.f32 %v279, %v923
      %v925 = vpop.f32.mrf.mxu0
      %v926 = vpop.f32.mrf.mxu0
      %v927 = vadd.f32 %v279, %v926
      %v928 = vpop.f32.mrf.mxu0
      %929 = vmatprep.mubr.bf16.mxu0 %v524
      %930 = vmatmul.mubr.bf16.gmra.mxu0 %v523
      %v931 = vpop.f32.mrf.mxu0
      %v932 = vadd.f32 %v279, %v931
      %v933 = vpop.f32.mrf.mxu0
      %v934 = vpop.f32.mrf.mxu0
      %v935 = vadd.f32 %v279, %v934
      %v936 = vpop.f32.mrf.mxu0
      %937 = vmatprep.mubr.bf16.mxu0 %v526
      %938 = vmatmul.mubr.bf16.gmra.mxu0 %v525
      %v939 = vpop.f32.mrf.mxu0
      %v940 = vadd.f32 %v279, %v939
      %v941 = vpop.f32.mrf.mxu0
      %v942 = vpop.f32.mrf.mxu0
      %v943 = vadd.f32 %v279, %v942
      %v944 = vpop.f32.mrf.mxu0
      %945 = vmatprep.mubr.bf16.mxu0 %v528
      %946 = vmatmul.mubr.bf16.gmra.mxu0 %v527
      %v947 = vpop.f32.mrf.mxu0
      %v948 = vadd.f32 %v279, %v947
      %v949 = vpop.f32.mrf.mxu0
      %v950 = vpop.f32.mrf.mxu0
      %v951 = vadd.f32 %v279, %v950
      %v952 = vpop.f32.mrf.mxu0
      %953 = vmatprep.mubr.bf16.mxu0 %v530
      %954 = vmatmul.mubr.bf16.gmra.mxu0 %v529
      %v955 = vpop.f32.mrf.mxu0
      %v956 = vadd.f32 %v279, %v955
      %v957 = vpop.f32.mrf.mxu0
      %v958 = vpop.f32.mrf.mxu0
      %v959 = vadd.f32 %v279, %v958
      %v960 = vpop.f32.mrf.mxu0
      %961 = vmatprep.mubr.bf16.mxu0 %v532
      %962 = vmatmul.mubr.bf16.gmra.mxu0 %v531
      %v963 = vpop.f32.mrf.mxu0
      %v964 = vadd.f32 %v279, %v963
      %v965 = vpop.f32.mrf.mxu0
      %v966 = vpop.f32.mrf.mxu0
      %v967 = vadd.f32 %v279, %v966
      %v968 = vpop.f32.mrf.mxu0
      %969 = vmatprep.mubr.bf16.mxu0 %v534
      %970 = vmatmul.mubr.bf16.gmra.mxu0 %v533
      %v971 = vpop.f32.mrf.mxu0
      %v972 = vadd.f32 %v279, %v971
      %v973 = vpop.f32.mrf.mxu0
      %v974 = vpop.f32.mrf.mxu0
      %v975 = vadd.f32 %v279, %v974
      %v976 = vpop.f32.mrf.mxu0
      %977 = vmatprep.mubr.bf16.mxu0 %v536
      %978 = vmatmul.mubr.bf16.gmra.mxu0 %v535
      %v979 = vpop.f32.mrf.mxu0
      %v980 = vadd.f32 %v279, %v979
      %v981 = vpop.f32.mrf.mxu0
      %v982 = vpop.f32.mrf.mxu0
      %v983 = vadd.f32 %v279, %v982
      %v984 = vpop.f32.mrf.mxu0
      %985 = vdwg.mxu0
      %v986 = vmax.f32 %v732, 0.0
      %v987 = vmax.f32 %v735, 0.0
      %v988 = vmax.f32 %v740, 0.0
      %v989 = vmax.f32 %v743, 0.0
      %v990 = vmax.f32 %v748, 0.0
      %v991 = vmax.f32 %v751, 0.0
      %v992 = vmax.f32 %v756, 0.0
      %v993 = vmax.f32 %v759, 0.0
      %v994 = vmax.f32 %v764, 0.0
      %v995 = vmax.f32 %v767, 0.0
      %v996 = vmax.f32 %v772, 0.0
      %v997 = vmax.f32 %v775, 0.0
      %v998 = vmax.f32 %v780, 0.0
      %v999 = vmax.f32 %v783, 0.0
      %v1000 = vmax.f32 %v788, 0.0
      %v1001 = vmax.f32 %v791, 0.0
      %v1002 = vmax.f32 %v796, 0.0
      %v1003 = vmax.f32 %v799, 0.0
      %v1004 = vmax.f32 %v804, 0.0
      %v1005 = vmax.f32 %v807, 0.0
      %v1006 = vmax.f32 %v812, 0.0
      %v1007 = vmax.f32 %v815, 0.0
      %v1008 = vmax.f32 %v820, 0.0
      %v1009 = vmax.f32 %v823, 0.0
      %v1010 = vmax.f32 %v828, 0.0
      %v1011 = vmax.f32 %v831, 0.0
      %v1012 = vmax.f32 %v836, 0.0
      %v1013 = vmax.f32 %v839, 0.0
      %v1014 = vmax.f32 %v844, 0.0
      %v1015 = vmax.f32 %v847, 0.0
      %v1016 = vmax.f32 %v852, 0.0
      %v1017 = vmax.f32 %v855, 0.0
      %v1018 = vmax.f32 %v860, 0.0
      %v1019 = vmax.f32 %v863, 0.0
      %v1020 = vmax.f32 %v868, 0.0
      %v1021 = vmax.f32 %v871, 0.0
      %v1022 = vmax.f32 %v876, 0.0
      %v1023 = vmax.f32 %v879, 0.0
      %v1024 = vmax.f32 %v884, 0.0
      %v1025 = vmax.f32 %v887, 0.0
      %v1026 = vmax.f32 %v892, 0.0
      %v1027 = vmax.f32 %v895, 0.0
      %v1028 = vmax.f32 %v900, 0.0
      %v1029 = vmax.f32 %v903, 0.0
      %v1030 = vmax.f32 %v908, 0.0
      %v1031 = vmax.f32 %v911, 0.0
      %v1032 = vmax.f32 %v916, 0.0
      %v1033 = vmax.f32 %v919, 0.0
      %v1034 = vmax.f32 %v924, 0.0
      %v1035 = vmax.f32 %v927, 0.0
      %v1036 = vmax.f32 %v932, 0.0
      %v1037 = vmax.f32 %v935, 0.0
      %v1038 = vmax.f32 %v940, 0.0
      %v1039 = vmax.f32 %v943, 0.0
      %v1040 = vmax.f32 %v948, 0.0
      %v1041 = vmax.f32 %v951, 0.0
      %v1042 = vmax.f32 %v956, 0.0
      %v1043 = vmax.f32 %v959, 0.0
      %v1044 = vmax.f32 %v964, 0.0
      %v1045 = vmax.f32 %v967, 0.0
      %v1046 = vmax.f32 %v972, 0.0
      %v1047 = vmax.f32 %v975, 0.0
      %v1048 = vmax.f32 %v980, 0.0
      %v1049 = vmax.f32 %v983, 0.0
      %v1050 = vpack.c.bf16 %v987, %v986
      %v1051 = vpack.c.bf16 %v989, %v988
      %v1052 = vpack.c.bf16 %v991, %v990
      %v1053 = vpack.c.bf16 %v993, %v992
      %v1054 = vpack.c.bf16 %v995, %v994
      %v1055 = vpack.c.bf16 %v997, %v996
      %v1056 = vpack.c.bf16 %v999, %v998
      %v1057 = vpack.c.bf16 %v1001, %v1000
      %v1058 = vpack.c.bf16 %v1003, %v1002
      %v1059 = vpack.c.bf16 %v1005, %v1004
      %v1060 = vpack.c.bf16 %v1007, %v1006
      %v1061 = vpack.c.bf16 %v1009, %v1008
      %v1062 = vpack.c.bf16 %v1011, %v1010
      %v1063 = vpack.c.bf16 %v1013, %v1012
      %v1064 = vpack.c.bf16 %v1015, %v1014
      %v1065 = vpack.c.bf16 %v1017, %v1016
      %v1066 = vpack.c.bf16 %v1019, %v1018
      %v1067 = vpack.c.bf16 %v1021, %v1020
      %v1068 = vpack.c.bf16 %v1023, %v1022
      %v1069 = vpack.c.bf16 %v1025, %v1024
      %v1070 = vpack.c.bf16 %v1027, %v1026
      %v1071 = vpack.c.bf16 %v1029, %v1028
      %v1072 = vpack.c.bf16 %v1031, %v1030
      %v1073 = vpack.c.bf16 %v1033, %v1032
      %v1074 = vpack.c.bf16 %v1035, %v1034
      %v1075 = vpack.c.bf16 %v1037, %v1036
      %v1076 = vpack.c.bf16 %v1039, %v1038
      %v1077 = vpack.c.bf16 %v1041, %v1040
      %v1078 = vpack.c.bf16 %v1043, %v1042
      %v1079 = vpack.c.bf16 %v1045, %v1044
      %v1080 = vpack.c.bf16 %v1047, %v1046
      %v1081 = vpack.c.bf16 %v1049, %v1048
      %v1114 = vunpack.c.l.b16 %v1050
      %v1115 = vunpack.c.h.b16 %v1050
      %v1116 = vunpack.c.l.b16 %v1051
      %v1117 = vunpack.c.h.b16 %v1051
      %v1118 = vunpack.c.l.b16 %v1052
      %v1119 = vunpack.c.h.b16 %v1052
      %v1120 = vunpack.c.l.b16 %v1053
      %v1121 = vunpack.c.h.b16 %v1053
      %v1122 = vunpack.c.l.b16 %v1054
      %v1123 = vunpack.c.h.b16 %v1054
      %v1124 = vunpack.c.l.b16 %v1055
      %v1125 = vunpack.c.h.b16 %v1055
      %v1126 = vunpack.c.l.b16 %v1056
      %v1127 = vunpack.c.h.b16 %v1056
      %v1128 = vunpack.c.l.b16 %v1057
      %v1129 = vunpack.c.h.b16 %v1057
      %v1130 = vunpack.c.l.b16 %v1058
      %v1131 = vunpack.c.h.b16 %v1058
      %v1132 = vunpack.c.l.b16 %v1059
      %v1133 = vunpack.c.h.b16 %v1059
      %v1134 = vunpack.c.l.b16 %v1060
      %v1135 = vunpack.c.h.b16 %v1060
      %v1136 = vunpack.c.l.b16 %v1061
      %v1137 = vunpack.c.h.b16 %v1061
      %v1138 = vunpack.c.l.b16 %v1062
      %v1139 = vunpack.c.h.b16 %v1062
      %v1140 = vunpack.c.l.b16 %v1063
      %v1141 = vunpack.c.h.b16 %v1063
      %v1142 = vunpack.c.l.b16 %v1064
      %v1143 = vunpack.c.h.b16 %v1064
      %v1144 = vunpack.c.l.b16 %v1065
      %v1145 = vunpack.c.h.b16 %v1065
      %v1146 = vunpack.c.l.b16 %v1066
      %v1147 = vunpack.c.h.b16 %v1066
      %v1148 = vunpack.c.l.b16 %v1067
      %v1149 = vunpack.c.h.b16 %v1067
      %v1150 = vunpack.c.l.b16 %v1068
      %v1151 = vunpack.c.h.b16 %v1068
      %v1152 = vunpack.c.l.b16 %v1069
      %v1153 = vunpack.c.h.b16 %v1069
      %v1154 = vunpack.c.l.b16 %v1070
      %v1155 = vunpack.c.h.b16 %v1070
      %v1156 = vunpack.c.l.b16 %v1071
      %v1157 = vunpack.c.h.b16 %v1071
      %v1158 = vunpack.c.l.b16 %v1072
      %v1159 = vunpack.c.h.b16 %v1072
      %v1160 = vunpack.c.l.b16 %v1073
      %v1161 = vunpack.c.h.b16 %v1073
      %v1162 = vunpack.c.l.b16 %v1074
      %v1163 = vunpack.c.h.b16 %v1074
      %v1164 = vunpack.c.l.b16 %v1075
      %v1165 = vunpack.c.h.b16 %v1075
      %v1166 = vunpack.c.l.b16 %v1076
      %v1167 = vunpack.c.h.b16 %v1076
      %v1168 = vunpack.c.l.b16 %v1077
      %v1169 = vunpack.c.h.b16 %v1077
      %v1170 = vunpack.c.l.b16 %v1078
      %v1171 = vunpack.c.h.b16 %v1078
      %v1172 = vunpack.c.l.b16 %v1079
      %v1173 = vunpack.c.h.b16 %v1079
      %v1174 = vunpack.c.l.b16 %v1080
      %v1175 = vunpack.c.h.b16 %v1080
      %v1176 = vunpack.c.l.b16 %v1081
      %v1177 = vunpack.c.h.b16 %v1081
      %v1178 = vpack.c.b16 %v1114, %v1114
      %v1179 = vpack.c.b16 %v1115, %v1115
      %v1180 = vpack.c.b16 %v1116, %v1116
      %v1181 = vpack.c.b16 %v1117, %v1117
      %v1182 = vpack.c.b16 %v1118, %v1118
      %v1183 = vpack.c.b16 %v1119, %v1119
      %v1184 = vpack.c.b16 %v1120, %v1120
      %v1185 = vpack.c.b16 %v1121, %v1121
      %v1186 = vpack.c.b16 %v1122, %v1122
      %v1187 = vpack.c.b16 %v1123, %v1123
      %v1188 = vpack.c.b16 %v1124, %v1124
      %v1189 = vpack.c.b16 %v1125, %v1125
      %v1190 = vpack.c.b16 %v1126, %v1126
      %v1191 = vpack.c.b16 %v1127, %v1127
      %v1192 = vpack.c.b16 %v1128, %v1128
      %v1193 = vpack.c.b16 %v1129, %v1129
      %v1194 = vpack.c.b16 %v1130, %v1130
      %v1195 = vpack.c.b16 %v1131, %v1131
      %v1196 = vpack.c.b16 %v1132, %v1132
      %v1197 = vpack.c.b16 %v1133, %v1133
      %v1198 = vpack.c.b16 %v1134, %v1134
      %v1199 = vpack.c.b16 %v1135, %v1135
      %v1200 = vpack.c.b16 %v1136, %v1136
      %v1201 = vpack.c.b16 %v1137, %v1137
      %v1202 = vpack.c.b16 %v1138, %v1138
      %v1203 = vpack.c.b16 %v1139, %v1139
      %v1204 = vpack.c.b16 %v1140, %v1140
      %v1205 = vpack.c.b16 %v1141, %v1141
      %v1206 = vpack.c.b16 %v1142, %v1142
      %v1207 = vpack.c.b16 %v1143, %v1143
      %v1208 = vpack.c.b16 %v1144, %v1144
      %v1209 = vpack.c.b16 %v1145, %v1145
      %v1210 = vpack.c.b16 %v1146, %v1146
      %v1211 = vpack.c.b16 %v1147, %v1147
      %v1212 = vpack.c.b16 %v1148, %v1148
      %v1213 = vpack.c.b16 %v1149, %v1149
      %v1214 = vpack.c.b16 %v1150, %v1150
      %v1215 = vpack.c.b16 %v1151, %v1151
      %v1216 = vpack.c.b16 %v1152, %v1152
      %v1217 = vpack.c.b16 %v1153, %v1153
      %v1218 = vpack.c.b16 %v1154, %v1154
      %v1219 = vpack.c.b16 %v1155, %v1155
      %v1220 = vpack.c.b16 %v1156, %v1156
      %v1221 = vpack.c.b16 %v1157, %v1157
      %v1222 = vpack.c.b16 %v1158, %v1158
      %v1223 = vpack.c.b16 %v1159, %v1159
      %v1224 = vpack.c.b16 %v1160, %v1160
      %v1225 = vpack.c.b16 %v1161, %v1161
      %v1226 = vpack.c.b16 %v1162, %v1162
      %v1227 = vpack.c.b16 %v1163, %v1163
      %v1228 = vpack.c.b16 %v1164, %v1164
      %v1229 = vpack.c.b16 %v1165, %v1165
      %v1230 = vpack.c.b16 %v1166, %v1166
      %v1231 = vpack.c.b16 %v1167, %v1167
      %v1232 = vpack.c.b16 %v1168, %v1168
      %v1233 = vpack.c.b16 %v1169, %v1169
      %v1234 = vpack.c.b16 %v1170, %v1170
      %v1235 = vpack.c.b16 %v1171, %v1171
      %v1236 = vpack.c.b16 %v1172, %v1172
      %v1237 = vpack.c.b16 %v1173, %v1173
      %v1238 = vpack.c.b16 %v1174, %v1174
      %v1239 = vpack.c.b16 %v1175, %v1175
      %v1240 = vpack.c.b16 %v1176, %v1176
      %v1241 = vpack.c.b16 %v1177, %v1177
      %vm1306 = vcmask 257024
      %1307 = vst.msk [vmem:[%s175] sm:$0xf] %vm1306, %v1178
      %1308 = vst.msk [vmem:[%s175 + $0x4] sm:$0xf] %vm1306, %v1179
      %1309 = vst.msk [vmem:[%s175 + $0x8] sm:$0xf] %vm1306, %v1180
      %1310 = vst.msk [vmem:[%s175 + $0xc] sm:$0xf] %vm1306, %v1181
      %1311 = vst.msk [vmem:[%s175 + $0x10] sm:$0xf] %vm1306, %v1182
      %1312 = vst.msk [vmem:[%s175 + $0x14] sm:$0xf] %vm1306, %v1183
      %1313 = vst.msk [vmem:[%s175 + $0x18] sm:$0xf] %vm1306, %v1184
      %1314 = vst.msk [vmem:[%s175 + $0x1c] sm:$0xf] %vm1306, %v1185
      %1315 = vst.msk [vmem:[%s175 + $0x20] sm:$0xf] %vm1306, %v1186
      %1316 = vst.msk [vmem:[%s175 + $0x24] sm:$0xf] %vm1306, %v1187
      %1317 = vst.msk [vmem:[%s175 + $0x28] sm:$0xf] %vm1306, %v1188
      %1318 = vst.msk [vmem:[%s175 + $0x2c] sm:$0xf] %vm1306, %v1189
      %1319 = vst.msk [vmem:[%s175 + $0x30] sm:$0xf] %vm1306, %v1190
      %1320 = vst.msk [vmem:[%s175 + $0x34] sm:$0xf] %vm1306, %v1191
      %1321 = vst.msk [vmem:[%s175 + $0x38] sm:$0xf] %vm1306, %v1192
      %1322 = vst.msk [vmem:[%s175 + $0x3c] sm:$0xf] %vm1306, %v1193
      %1323 = vst.msk [vmem:[%s175 + $0x40] sm:$0xf] %vm1306, %v1194
      %1324 = vst.msk [vmem:[%s175 + $0x44] sm:$0xf] %vm1306, %v1195
      %1325 = vst.msk [vmem:[%s175 + $0x48] sm:$0xf] %vm1306, %v1196
      %1326 = vst.msk [vmem:[%s175 + $0x4c] sm:$0xf] %vm1306, %v1197
      %1327 = vst.msk [vmem:[%s175 + $0x50] sm:$0xf] %vm1306, %v1198
      %1328 = vst.msk [vmem:[%s175 + $0x54] sm:$0xf] %vm1306, %v1199
      %1329 = vst.msk [vmem:[%s175 + $0x58] sm:$0xf] %vm1306, %v1200
      %1330 = vst.msk [vmem:[%s175 + $0x5c] sm:$0xf] %vm1306, %v1201
      %1331 = vst.msk [vmem:[%s175 + $0x60] sm:$0xf] %vm1306, %v1202
      %1332 = vst.msk [vmem:[%s175 + $0x64] sm:$0xf] %vm1306, %v1203
      %1333 = vst.msk [vmem:[%s175 + $0x68] sm:$0xf] %vm1306, %v1204
      %1334 = vst.msk [vmem:[%s175 + $0x6c] sm:$0xf] %vm1306, %v1205
      %1335 = vst.msk [vmem:[%s175 + $0x70] sm:$0xf] %vm1306, %v1206
      %1336 = vst.msk [vmem:[%s175 + $0x74] sm:$0xf] %vm1306, %v1207
      %1337 = vst.msk [vmem:[%s175 + $0x78] sm:$0xf] %vm1306, %v1208
      %1338 = vst.msk [vmem:[%s175 + $0x7c] sm:$0xf] %vm1306, %v1209
      %1339 = vst.msk [vmem:[%s175 + $0x80] sm:$0xf] %vm1306, %v1210
      %1340 = vst.msk [vmem:[%s175 + $0x84] sm:$0xf] %vm1306, %v1211
      %1341 = vst.msk [vmem:[%s175 + $0x88] sm:$0xf] %vm1306, %v1212
      %1342 = vst.msk [vmem:[%s175 + $0x8c] sm:$0xf] %vm1306, %v1213
      %1343 = vst.msk [vmem:[%s175 + $0x90] sm:$0xf] %vm1306, %v1214
      %1344 = vst.msk [vmem:[%s175 + $0x94] sm:$0xf] %vm1306, %v1215
      %1345 = vst.msk [vmem:[%s175 + $0x98] sm:$0xf] %vm1306, %v1216
      %1346 = vst.msk [vmem:[%s175 + $0x9c] sm:$0xf] %vm1306, %v1217
      %1347 = vst.msk [vmem:[%s175 + $0xa0] sm:$0xf] %vm1306, %v1218
      %1348 = vst.msk [vmem:[%s175 + $0xa4] sm:$0xf] %vm1306, %v1219
      %1349 = vst.msk [vmem:[%s175 + $0xa8] sm:$0xf] %vm1306, %v1220
      %1350 = vst.msk [vmem:[%s175 + $0xac] sm:$0xf] %vm1306, %v1221
      %1351 = vst.msk [vmem:[%s175 + $0xb0] sm:$0xf] %vm1306, %v1222
      %1352 = vst.msk [vmem:[%s175 + $0xb4] sm:$0xf] %vm1306, %v1223
      %1353 = vst.msk [vmem:[%s175 + $0xb8] sm:$0xf] %vm1306, %v1224
      %1354 = vst.msk [vmem:[%s175 + $0xbc] sm:$0xf] %vm1306, %v1225
      %1355 = vst.msk [vmem:[%s175 + $0xc0] sm:$0xf] %vm1306, %v1226
      %1356 = vst.msk [vmem:[%s175 + $0xc4] sm:$0xf] %vm1306, %v1227
      %1357 = vst.msk [vmem:[%s175 + $0xc8] sm:$0xf] %vm1306, %v1228
      %1358 = vst.msk [vmem:[%s175 + $0xcc] sm:$0xf] %vm1306, %v1229
      %1359 = vst.msk [vmem:[%s175 + $0xd0] sm:$0xf] %vm1306, %v1230
      %1360 = vst.msk [vmem:[%s175 + $0xd4] sm:$0xf] %vm1306, %v1231
      %1361 = vst.msk [vmem:[%s175 + $0xd8] sm:$0xf] %vm1306, %v1232
      %1362 = vst.msk [vmem:[%s175 + $0xdc] sm:$0xf] %vm1306, %v1233
      %1363 = vst.msk [vmem:[%s175 + $0xe0] sm:$0xf] %vm1306, %v1234
      %1364 = vst.msk [vmem:[%s175 + $0xe4] sm:$0xf] %vm1306, %v1235
      %1365 = vst.msk [vmem:[%s175 + $0xe8] sm:$0xf] %vm1306, %v1236
      %1366 = vst.msk [vmem:[%s175 + $0xec] sm:$0xf] %vm1306, %v1237
      %1367 = vst.msk [vmem:[%s175 + $0xf0] sm:$0xf] %vm1306, %v1238
      %1368 = vst.msk [vmem:[%s175 + $0xf4] sm:$0xf] %vm1306, %v1239
      %1369 = vst.msk [vmem:[%s175 + $0xf8] sm:$0xf] %vm1306, %v1240
      %1370 = vst.msk [vmem:[%s175 + $0xfc] sm:$0xf] %vm1306, %v1241
      %s1371 = smul.u32 64, %s14
      %p1372 = scmp.lt.s32.totalorder %s1371, 575
      %s1373 = scalar_select %p1372, %s1371, 575
      %s1374 = smul.addr %s1373, 4
      %s1375 = scalar_lea.vmem %s3, %s1374
      // Predicated region
      $region33: #{dqn_forward.5} parent=31 // pred_check
        %p1376 = pneg %p100
      $region34: #{dqn_forward.5} parent=31 // pred_check_branch
        %1378 = sbr.rel (%p1376) target = $region36
      $region35: #{dqn_forward.5} parent=31 // pred_region
        %s1379 = smul.u32 64, %s14
      $region36: #{dqn_forward.5} parent=31 // pred_fallthru
        _
    $region32: #{dqn_forward.5} parent=5 // pred_fallthru
      _
    %p1380 = scmp.le.s32.totalorder 2, %s9
    // Predicated region
    $region37: #{dqn_forward.5} parent=5 // pred_check
      %p1381 = pneg %p1380
    $region38: #{dqn_forward.5} parent=5 // pred_check_branch
      %1383 = sbr.rel (%p1381) target = $region40
    $region39: #{dqn_forward.5} parent=5 // pred_region
      %s1384 = ssub.s32 %s9, 2
      // Predicated region
      $region41: #{dqn_forward.5} parent=39 // pred_check
        %p1385 = pneg %p106
      $region42: #{dqn_forward.5} parent=39 // pred_check_branch
        %1387 = sbr.rel (%p1385) target = $region44
      $region43: #{dqn_forward.5} parent=39 // pred_region
        %s1388 = smul.u32 64, %s15
        %p1389 = scmp.lt.s32.totalorder %s1388, 575
        %s1390 = scalar_select %p1389, %s1388, 575
        %s1391 = smul.addr %s1390, 4
        %s1392 = scalar_lea.vmem %s3, %s1391
      $region44: #{dqn_forward.5} parent=39 // pred_fallthru
        _
    $region40: #{dqn_forward.5} parent=5 // pred_fallthru
      _
  $region6: #{dqn_forward.5} parent=0 // loop_footer
    %s13 = sadd.s32 1, %s9
  $region7: #{dqn_forward.5} parent=0 // loop_footer_branch
    %8 = sbr.rel target = $region3
  $region8: #{dqn_forward.5} parent=0 // loop_exit
    _

// kernel: dqn_forward.6
$region0: #{dqn_forward.6}
  #allocation0 [shape = 'u32[]', space=smem, size = 0x4, offset = 0x4, fixed_abs, tag = 'smem constant byte address 0x4 - core index']
  #allocation1 [shape = 'u32[144,128]{1,0:T(1,128)}', space=vmem, size = 0x12000, scoped, tag = 'internal scratch']
  %s0 = inlined_call_operand.vmem [shape: bf16[1072,512], index: 0, kind: input, shape index: {}]
  %s1 = inlined_call_operand.vmem [shape: bf16[512,64], index: 1, kind: input, shape index: {}]
  %s2 = inlined_call_operand.vmem [shape: f32[1,64], index: 2, kind: input, shape index: {}]
  %s3 = inlined_call_operand.vmem [shape: bf16[1072,64], index: 3, kind: output, shape index: {}]
  %s4 = sld [smem:[#allocation0]]
  $region45: #{dqn_forward.6} parent=0
    _
  %s6 = ssub.s32 1, %s4
  %s7 = scalar_select 0, %s6, %s4
  loop: start=0, step=1, limit=4
  $region2: #{dqn_forward.6} parent=0 // loop_pre_header
    _
  $region3: #{dqn_forward.6} parent=0 // loop_header
    %s9 = sphi 0, %s13
    %p10 = scmp.ge.s32.totalorder %s9, 4
    %s19 = sphi 0, %s21
    %s22 = sphi 0, %s19
    %s23 = sphi 0, %s22
    %s39 = sphi 0, %s23
    %s43 = sphi 0, %s43
    %s45 = sphi 0, %s43
    %s46 = sphi 0, %s45
    %s60 = sphi 0, %s46
    %s64 = sphi 0, %s64
    %s66 = sphi 0, %s64
    %s67 = sphi 0, %s66
    %s81 = sphi 0, %s67
    %s87 = sphi 0, %s89
    %s90 = sphi 0, %s87
    %s91 = sphi 0, %s90
    %s107 = sphi 0, %s91
  $region4: #{dqn_forward.6} parent=0 // loop_header_branch
    %12 = sbr.rel (%p10) target = $region8
  $region5: #{dqn_forward.6} parent=0 // loop_body
    %s14 = ssub.s32 %s9, 1
    %s15 = ssub.s32 %s9, 2
    %s16 = sadd.s32 %s9, 1
    %s17 = ssub.s32 %s9, %s16
    %p18 = scmp.eq.s32.totalorder %s17, 0
    %s20 = sadd.s32 %s19, 1
    %s21 = scalar_select %p18, %s19, %s20
    %p24 = pneg %p18
    %p25 = scmp.eq.s32.totalorder %s9, 1
    %p26 = por %p24, %p25
    %p27 = scmp.ne.s32.totalorder %s19, %s22
    %p28 = scmp.eq.s32.totalorder %s9, 0
    %p29 = por %p27, %p28
    %p30 = scmp.ne.s32.totalorder %s19, %s22
    %p31 = scmp.eq.s32.totalorder %s14, 1
    %p32 = por %p30, %p31
    %p33 = scmp.ne.s32.totalorder %s22, %s23
    %p34 = scmp.eq.s32.totalorder %s14, 0
    %p35 = por %p33, %p34
    %p36 = scmp.ne.s32.totalorder %s22, %s23
    %p37 = scmp.eq.s32.totalorder %s15, 1
    %p38 = por %p36, %p37
    %p40 = scmp.ne.s32.totalorder %s23, %s39
    %p41 = scmp.eq.s32.totalorder %s15, 0
    %p42 = por %p40, %p41
    %s44 = sadd.s32 %s43, 1
    %p47 = scmp.eq.s32.totalorder %s9, 1
    %p48 = scmp.ne.s32.totalorder %s43, %s45
    %p49 = scmp.eq.s32.totalorder %s9, 0
    %p50 = por %p48, %p49
    %p51 = scmp.ne.s32.totalorder %s43, %s45
    %p52 = scmp.eq.s32.totalorder %s14, 1
    %p53 = por %p51, %p52
    %p54 = scmp.ne.s32.totalorder %s45, %s46
    %p55 = scmp.eq.s32.totalorder %s14, 0
    %p56 = por %p54, %p55
    %p57 = scmp.ne.s32.totalorder %s45, %s46
    %p58 = scmp.eq.s32.totalorder %s15, 1
    %p59 = por %p57, %p58
    %p61 = scmp.ne.s32.totalorder %s46, %s60
    %p62 = scmp.eq.s32.totalorder %s15, 0
    %p63 = por %p61, %p62
    %s65 = sadd.s32 %s64, 1
    %p68 = scmp.eq.s32.totalorder %s9, 1
    %p69 = scmp.ne.s32.totalorder %s64, %s66
    %p70 = scmp.eq.s32.totalorder %s9, 0
    %p71 = por %p69, %p70
    %p72 = scmp.ne.s32.totalorder %s64, %s66
    %p73 = scmp.eq.s32.totalorder %s14, 1
    %p74 = por %p72, %p73
    %p75 = scmp.ne.s32.totalorder %s66, %s67
    %p76 = scmp.eq.s32.totalorder %s14, 0
    %p77 = por %p75, %p76
    %p78 = scmp.ne.s32.totalorder %s66, %s67
    %p79 = scmp.eq.s32.totalorder %s15, 1
    %p80 = por %p78, %p79
    %p82 = scmp.ne.s32.totalorder %s67, %s81
    %p83 = scmp.eq.s32.totalorder %s15, 0
    %p84 = por %p82, %p83
    %s85 = ssub.s32 %s9, %s16
    %p86 = scmp.eq.s32.totalorder %s85, 0
    %s88 = sadd.s32 %s87, 1
    %s89 = scalar_select %p86, %s87, %s88
    %p92 = pneg %p86
    %p93 = scmp.eq.s32.totalorder %s9, 1
    %p94 = por %p92, %p93
    %p95 = scmp.ne.s32.totalorder %s87, %s90
    %p96 = scmp.eq.s32.totalorder %s9, 0
    %p97 = por %p95, %p96
    %p98 = scmp.ne.s32.totalorder %s87, %s90
    %p99 = scmp.eq.s32.totalorder %s14, 1
    %p100 = por %p98, %p99
    %p101 = scmp.ne.s32.totalorder %s90, %s91
    %p102 = scmp.eq.s32.totalorder %s14, 0
    %p103 = por %p101, %p102
    %p104 = scmp.ne.s32.totalorder %s90, %s91
    %p105 = scmp.eq.s32.totalorder %s15, 1
    %p106 = por %p104, %p105
    %p108 = scmp.ne.s32.totalorder %s91, %s107
    %p109 = scmp.eq.s32.totalorder %s15, 0
    %p110 = por %p108, %p109
    %p111 = scmp.le.s32.totalorder 1, %s9
    %p112 = scmp.lt.s32.totalorder %s9, 3
    %p113 = pnand %p111, %p112
    %p114 = pneg %p113
    // Predicated region
    $region9: #{dqn_forward.6} parent=5 // pred_check
      _
    $region10: #{dqn_forward.6} parent=5 // pred_check_branch
      %116 = sbr.rel (%p113) target = $region12
    $region11: #{dqn_forward.6} parent=5 // pred_region
      %s117 = ssub.s32 %s9, 1
      // Predicated region
      $region13: #{dqn_forward.6} parent=11 // pred_check
        %p118 = pneg %p56
      $region14: #{dqn_forward.6} parent=11 // pred_check_branch
        %120 = sbr.rel (%p118) target = $region16
      $region15: #{dqn_forward.6} parent=11 // pred_region
        _
      $region16: #{dqn_forward.6} parent=11 // pred_fallthru
        _
      // Predicated region
      $region17: #{dqn_forward.6} parent=11 // pred_check
        %p121 = pneg %p77
      $region18: #{dqn_forward.6} parent=11 // pred_check_branch
        %123 = sbr.rel (%p121) target = $region20
      $region19: #{dqn_forward.6} parent=11 // pred_region
        _
      $region20: #{dqn_forward.6} parent=11 // pred_fallthru
        _
    $region12: #{dqn_forward.6} parent=5 // pred_fallthru
      _
    %p124 = scmp.lt.s32.totalorder %s9, 2
    // Predicated region
    $region21: #{dqn_forward.6} parent=5 // pred_check
      %p125 = pneg %p124
    $region22: #{dqn_forward.6} parent=5 // pred_check_branch
      %127 = sbr.rel (%p125) target = $region24
    $region23: #{dqn_forward.6} parent=5 // pred_region
      // Predicated region
      $region25: #{dqn_forward.6} parent=23 // pred_check
        %p128 = pneg %p29
      $region26: #{dqn_forward.6} parent=23 // pred_check_branch
        %130 = sbr.rel (%p128) target = $region28
      $region27: #{dqn_forward.6} parent=23 // pred_region
        %s131 = smul.u32 67, %s9
        %p132 = scmp.lt.s32.totalorder %s131, 133
        %s133 = scalar_select %p132, %s131, 133
        %s134 = smul.addr %s133, 4
        %s135 = smul.addr %s134, 4
        %s136 = scalar_lea.vmem %s0, %s135
        %s137 = smul.u32 67, %s9
      $region28: #{dqn_forward.6} parent=23 // pred_fallthru
        _
    $region24: #{dqn_forward.6} parent=5 // pred_fallthru
      _
    %p138 = scmp.le.s32.totalorder 1, %s9
    %p139 = scmp.lt.s32.totalorder %s9, 3
    %p140 = pnand %p138, %p139
    %p141 = pneg %p140
    // Predicated region
    $region29: #{dqn_forward.6} parent=5 // pred_check
      _
    $region30: #{dqn_forward.6} parent=5 // pred_check_branch
      %143 = sbr.rel (%p140) target = $region32
    $region31: #{dqn_forward.6} parent=5 // pred_region
      %s144 = ssub.s32 %s9, 1
      %s145 = smul.u32 67, %s14
      %p146 = scmp.lt.s32.totalorder %s145, 133
      %s147 = scalar_select %p146, %s145, 133
      %s148 = smul.addr %s147, 4
      %s149 = smul.addr %s148, 4
      %s150 = scalar_lea.vmem %s0, %s149
      %p151 = pneg %p35
      %p152 = pneg %p32
      %p153 = pneg %p56
      %p154 = pneg %p53
      %p155 = pneg %p77
      %p156 = pneg %p74
      %p157 = pneg %p103
      %p158 = pneg %p100
      %s159 = smul.u32 67, %s14
      %p160 = scmp.lt.s32.totalorder %s159, 133
      %s161 = scalar_select %p160, %s159, 133
      %s162 = smul.addr %s161, 4
      %s163 = scalar_lea.vmem %s3, %s162
      %s164 = smul.u32 67, %s14
      %p165 = scmp.lt.s32.totalorder %s164, 133
      %s166 = scalar_select %p165, %s164, 133
      %s167 = smul.addr %s166, 4
      %s168 = smul.addr %s167, 4
      %s169 = scalar_lea.vmem %s0, %s168
      %s170 = smul.u32 67, %s14
      %s171 = smul.u32 67, %s14
      %p172 = scmp.lt.s32.totalorder %s171, 133
      %s173 = scalar_select %p172, %s171, 133
      %s174 = smul.addr %s173, 4
      %s175 = scalar_lea.vmem %s3, %s174
      %s176 = smul.u32 67, %s14
      %v178 = vld [vmem:[%s169] sm:$0xff]
      %v179 = vld [vmem:[%s169 + $0x8] sm:$0xff]
      %v180 = vld [vmem:[%s169 + $0x10] sm:$0xff]
      %v181 = vld [vmem:[%s169 + $0x18] sm:$0xff]
      %v182 = vld [vmem:[%s169 + $0x20] sm:$0xff]
      %v183 = vld [vmem:[%s169 + $0x28] sm:$0xff]
      %v184 = vld [vmem:[%s169 + $0x30] sm:$0xff]
      %v185 = vld [vmem:[%s169 + $0x38] sm:$0xff]
      %v186 = vld [vmem:[%s169 + $0x40] sm:$0xff]
      %v187 = vld [vmem:[%s169 + $0x48] sm:$0xff]
      %v188 = vld [vmem:[%s169 + $0x50] sm:$0xff]
      %v189 = vld [vmem:[%s169 + $0x58] sm:$0xff]
      %v190 = vld [vmem:[%s169 + $0x60] sm:$0xff]
      %v191 = vld [vmem:[%s169 + $0x68] sm:$0xff]
      %v192 = vld [vmem:[%s169 + $0x70] sm:$0xff]
      %v193 = vld [vmem:[%s169 + $0x78] sm:$0xff]
      %v194 = vld [vmem:[%s169 + $0x80] sm:$0xff]
      %v195 = vld [vmem:[%s169 + $0x88] sm:$0xff]
      %v196 = vld [vmem:[%s169 + $0x90] sm:$0xff]
      %v197 = vld [vmem:[%s169 + $0x98] sm:$0xff]
      %v198 = vld [vmem:[%s169 + $0xa0] sm:$0xff]
      %v199 = vld [vmem:[%s169 + $0xa8] sm:$0xff]
      %v200 = vld [vmem:[%s169 + $0xb0] sm:$0xff]
      %v201 = vld [vmem:[%s169 + $0xb8] sm:$0xff]
      %v202 = vld [vmem:[%s169 + $0xc0] sm:$0xff]
      %v203 = vld [vmem:[%s169 + $0xc8] sm:$0xff]
      %v204 = vld [vmem:[%s169 + $0xd0] sm:$0xff]
      %v205 = vld [vmem:[%s169 + $0xd8] sm:$0xff]
      %v206 = vld [vmem:[%s169 + $0xe0] sm:$0xff]
      %v207 = vld [vmem:[%s169 + $0xe8] sm:$0xff]
      %v208 = vld [vmem:[%s169 + $0xf0] sm:$0xff]
      %v209 = vld [vmem:[%s169 + $0xf8] sm:$0xff]
      %v210 = vld [vmem:[%s169 + $0x100] sm:$0xff]
      %v211 = vld [vmem:[%s169 + $0x108] sm:$0xff]
      %v212 = vld [vmem:[%s169 + $0x110] sm:$0xff]
      %v213 = vld [vmem:[%s169 + $0x118] sm:$0xff]
      %v214 = vld [vmem:[%s169 + $0x120] sm:$0xff]
      %v215 = vld [vmem:[%s169 + $0x128] sm:$0xff]
      %v216 = vld [vmem:[%s169 + $0x130] sm:$0xff]
      %v217 = vld [vmem:[%s169 + $0x138] sm:$0xff]
      %v218 = vld [vmem:[%s169 + $0x140] sm:$0xff]
      %v219 = vld [vmem:[%s169 + $0x148] sm:$0xff]
      %v220 = vld [vmem:[%s169 + $0x150] sm:$0xff]
      %v221 = vld [vmem:[%s169 + $0x158] sm:$0xff]
      %v222 = vld [vmem:[%s169 + $0x160] sm:$0xff]
      %v223 = vld [vmem:[%s169 + $0x168] sm:$0xff]
      %v224 = vld [vmem:[%s169 + $0x170] sm:$0xff]
      %v225 = vld [vmem:[%s169 + $0x178] sm:$0xff]
      %v226 = vld [vmem:[%s169 + $0x180] sm:$0xff]
      %v227 = vld [vmem:[%s169 + $0x188] sm:$0xff]
      %v228 = vld [vmem:[%s169 + $0x190] sm:$0xff]
      %v229 = vld [vmem:[%s169 + $0x198] sm:$0xff]
      %v230 = vld [vmem:[%s169 + $0x1a0] sm:$0xff]
      %v231 = vld [vmem:[%s169 + $0x1a8] sm:$0xff]
      %v232 = vld [vmem:[%s169 + $0x1b0] sm:$0xff]
      %v233 = vld [vmem:[%s169 + $0x1b8] sm:$0xff]
      %v234 = vld [vmem:[%s169 + $0x1c0] sm:$0xff]
      %v235 = vld [vmem:[%s169 + $0x1c8] sm:$0xff]
      %v236 = vld [vmem:[%s169 + $0x1d0] sm:$0xff]
      %v237 = vld [vmem:[%s169 + $0x1d8] sm:$0xff]
      %v238 = vld [vmem:[%s169 + $0x1e0] sm:$0xff]
      %v239 = vld [vmem:[%s169 + $0x1e8] sm:$0xff]
      %v240 = vld [vmem:[%s169 + $0x1f0] sm:$0xff]
      %v241 = vld [vmem:[%s169 + $0x1f8] sm:$0xff]
      %v242 = vld [vmem:[%s169 + $0x200] sm:$0xff]
      %v243 = vld [vmem:[%s169 + $0x208] sm:$0xff]
      %v244 = vld [vmem:[%s169 + $0x210] sm:$0xff]
      %v245 = vld [vmem:[%s169 + $0x218] sm:$0xff]
      %v246 = vld [vmem:[%s169 + $0x220] sm:$0xff]
      %v247 = vld [vmem:[%s169 + $0x228] sm:$0xff]
      %v248 = vld [vmem:[%s169 + $0x230] sm:$0xff]
      %v249 = vld [vmem:[%s169 + $0x238] sm:$0xff]
      %v250 = vld [vmem:[%s169 + $0x240] sm:$0xff]
      %v251 = vld [vmem:[%s169 + $0x248] sm:$0xff]
      %v252 = vld [vmem:[%s169 + $0x250] sm:$0xff]
      %v253 = vld [vmem:[%s169 + $0x258] sm:$0xff]
      %v254 = vld [vmem:[%s169 + $0x260] sm:$0xff]
      %v255 = vld [vmem:[%s169 + $0x268] sm:$0xff]
      %v256 = vld [vmem:[%s169 + $0x270] sm:$0xff]
      %v257 = vld [vmem:[%s169 + $0x278] sm:$0xff]
      %v258 = vld [vmem:[%s169 + $0x280] sm:$0xff]
      %v259 = vld [vmem:[%s169 + $0x288] sm:$0xff]
      %v260 = vld [vmem:[%s169 + $0x290] sm:$0xff]
      %v261 = vld [vmem:[%s169 + $0x298] sm:$0xff]
      %v262 = vld [vmem:[%s169 + $0x2a0] sm:$0xff]
      %v263 = vld [vmem:[%s169 + $0x2a8] sm:$0xff]
      %v264 = vld [vmem:[%s169 + $0x2b0] sm:$0xff]
      %v265 = vld [vmem:[%s169 + $0x2b8] sm:$0xff]
      %v266 = vld [vmem:[%s169 + $0x2c0] sm:$0xff]
      %v267 = vld [vmem:[%s169 + $0x2c8] sm:$0xff]
      %v268 = vld [vmem:[%s169 + $0x2d0] sm:$0xff]
      %v269 = vld [vmem:[%s169 + $0x2d8] sm:$0xff]
      %v270 = vld [vmem:[%s169 + $0x2e0] sm:$0xff]
      %v271 = vld [vmem:[%s169 + $0x2e8] sm:$0xff]
      %v272 = vld [vmem:[%s169 + $0x2f0] sm:$0xff]
      %v273 = vld [vmem:[%s169 + $0x2f8] sm:$0xff]
      %v274 = vld [vmem:[%s169 + $0x300] sm:$0xff]
      %v275 = vld [vmem:[%s169 + $0x308] sm:$0xff]
      %v276 = vld [vmem:[%s169 + $0x310] sm:$0xff]
      %v277 = vld [vmem:[%s169 + $0x318] sm:$0xff]
      %v278 = vld [vmem:[%s169 + $0x320] sm:$0xff]
      %v279 = vld [vmem:[%s169 + $0x328] sm:$0xff]
      %v280 = vld [vmem:[%s169 + $0x330] sm:$0xff]
      %v281 = vld [vmem:[%s169 + $0x338] sm:$0xff]
      %v282 = vld [vmem:[%s169 + $0x340] sm:$0xff]
      %v283 = vld [vmem:[%s169 + $0x348] sm:$0xff]
      %v284 = vld [vmem:[%s169 + $0x350] sm:$0xff]
      %v285 = vld [vmem:[%s169 + $0x358] sm:$0xff]
      %v286 = vld [vmem:[%s169 + $0x360] sm:$0xff]
      %v287 = vld [vmem:[%s169 + $0x368] sm:$0xff]
      %v288 = vld [vmem:[%s169 + $0x370] sm:$0xff]
      %v289 = vld [vmem:[%s169 + $0x378] sm:$0xff]
      %v290 = vld [vmem:[%s169 + $0x380] sm:$0xff]
      %v291 = vld [vmem:[%s169 + $0x388] sm:$0xff]
      %v292 = vld [vmem:[%s169 + $0x390] sm:$0xff]
      %v293 = vld [vmem:[%s169 + $0x398] sm:$0xff]
      %v294 = vld [vmem:[%s169 + $0x3a0] sm:$0xff]
      %v295 = vld [vmem:[%s169 + $0x3a8] sm:$0xff]
      %v296 = vld [vmem:[%s169 + $0x3b0] sm:$0xff]
      %v297 = vld [vmem:[%s169 + $0x3b8] sm:$0xff]
      %v298 = vld [vmem:[%s169 + $0x3c0] sm:$0xff]
      %v299 = vld [vmem:[%s169 + $0x3c8] sm:$0xff]
      %v300 = vld [vmem:[%s169 + $0x3d0] sm:$0xff]
      %v301 = vld [vmem:[%s169 + $0x3d8] sm:$0xff]
      %v302 = vld [vmem:[%s169 + $0x3e0] sm:$0xff]
      %v303 = vld [vmem:[%s169 + $0x3e8] sm:$0xff]
      %v304 = vld [vmem:[%s169 + $0x3f0] sm:$0xff]
      %v305 = vld [vmem:[%s169 + $0x3f8] sm:$0xff]
      %v306 = vld [vmem:[%s169 + $0x400] sm:$0xff]
      %v307 = vld [vmem:[%s169 + $0x408] sm:$0xff]
      %v308 = vld [vmem:[%s169 + $0x410] sm:$0xff]
      %v309 = vld [vmem:[%s169 + $0x418] sm:$0xff]
      %v310 = vld [vmem:[%s169 + $0x420] sm:$0xff]
      %v311 = vld [vmem:[%s169 + $0x428] sm:$0xff]
      %v312 = vld [vmem:[%s1] sm:$0xf]
      %v313 = vld [vmem:[%s1 + $0x4] sm:$0xf]
      %v314 = vld [vmem:[%s1 + $0x8] sm:$0xf]
      %v315 = vld [vmem:[%s1 + $0xc] sm:$0xf]
      %v316 = vld [vmem:[%s1 + $0x10] sm:$0xf]
      %v317 = vld [vmem:[%s1 + $0x14] sm:$0xf]
      %v318 = vld [vmem:[%s1 + $0x18] sm:$0xf]
      %v319 = vld [vmem:[%s1 + $0x1c] sm:$0xf]
      %v320 = vld [vmem:[%s1 + $0x20] sm:$0xf]
      %v321 = vld [vmem:[%s1 + $0x24] sm:$0xf]
      %v322 = vld [vmem:[%s1 + $0x28] sm:$0xf]
      %v323 = vld [vmem:[%s1 + $0x2c] sm:$0xf]
      %v324 = vld [vmem:[%s1 + $0x30] sm:$0xf]
      %v325 = vld [vmem:[%s1 + $0x34] sm:$0xf]
      %v326 = vld [vmem:[%s1 + $0x38] sm:$0xf]
      %v327 = vld [vmem:[%s1 + $0x3c] sm:$0xf]
      %v328 = vld [vmem:[%s1 + $0x40] sm:$0xf]
      %v329 = vld [vmem:[%s1 + $0x44] sm:$0xf]
      %v330 = vld [vmem:[%s1 + $0x48] sm:$0xf]
      %v331 = vld [vmem:[%s1 + $0x4c] sm:$0xf]
      %v332 = vld [vmem:[%s1 + $0x50] sm:$0xf]
      %v333 = vld [vmem:[%s1 + $0x54] sm:$0xf]
      %v334 = vld [vmem:[%s1 + $0x58] sm:$0xf]
      %v335 = vld [vmem:[%s1 + $0x5c] sm:$0xf]
      %v336 = vld [vmem:[%s1 + $0x60] sm:$0xf]
      %v337 = vld [vmem:[%s1 + $0x64] sm:$0xf]
      %v338 = vld [vmem:[%s1 + $0x68] sm:$0xf]
      %v339 = vld [vmem:[%s1 + $0x6c] sm:$0xf]
      %v340 = vld [vmem:[%s1 + $0x70] sm:$0xf]
      %v341 = vld [vmem:[%s1 + $0x74] sm:$0xf]
      %v342 = vld [vmem:[%s1 + $0x78] sm:$0xf]
      %v343 = vld [vmem:[%s1 + $0x7c] sm:$0xf]
      %v344 = vld [vmem:[%s1 + $0x80] sm:$0xf]
      %v345 = vld [vmem:[%s1 + $0x84] sm:$0xf]
      %v346 = vld [vmem:[%s1 + $0x88] sm:$0xf]
      %v347 = vld [vmem:[%s1 + $0x8c] sm:$0xf]
      %v348 = vld [vmem:[%s1 + $0x90] sm:$0xf]
      %v349 = vld [vmem:[%s1 + $0x94] sm:$0xf]
      %v350 = vld [vmem:[%s1 + $0x98] sm:$0xf]
      %v351 = vld [vmem:[%s1 + $0x9c] sm:$0xf]
      %v352 = vld [vmem:[%s1 + $0xa0] sm:$0xf]
      %v353 = vld [vmem:[%s1 + $0xa4] sm:$0xf]
      %v354 = vld [vmem:[%s1 + $0xa8] sm:$0xf]
      %v355 = vld [vmem:[%s1 + $0xac] sm:$0xf]
      %v356 = vld [vmem:[%s1 + $0xb0] sm:$0xf]
      %v357 = vld [vmem:[%s1 + $0xb4] sm:$0xf]
      %v358 = vld [vmem:[%s1 + $0xb8] sm:$0xf]
      %v359 = vld [vmem:[%s1 + $0xbc] sm:$0xf]
      %v360 = vld [vmem:[%s1 + $0xc0] sm:$0xf]
      %v361 = vld [vmem:[%s1 + $0xc4] sm:$0xf]
      %v362 = vld [vmem:[%s1 + $0xc8] sm:$0xf]
      %v363 = vld [vmem:[%s1 + $0xcc] sm:$0xf]
      %v364 = vld [vmem:[%s1 + $0xd0] sm:$0xf]
      %v365 = vld [vmem:[%s1 + $0xd4] sm:$0xf]
      %v366 = vld [vmem:[%s1 + $0xd8] sm:$0xf]
      %v367 = vld [vmem:[%s1 + $0xdc] sm:$0xf]
      %v368 = vld [vmem:[%s1 + $0xe0] sm:$0xf]
      %v369 = vld [vmem:[%s1 + $0xe4] sm:$0xf]
      %v370 = vld [vmem:[%s1 + $0xe8] sm:$0xf]
      %v371 = vld [vmem:[%s1 + $0xec] sm:$0xf]
      %v372 = vld [vmem:[%s1 + $0xf0] sm:$0xf]
      %v373 = vld [vmem:[%s1 + $0xf4] sm:$0xf]
      %v374 = vld [vmem:[%s1 + $0xf8] sm:$0xf]
      %v375 = vld [vmem:[%s1 + $0xfc] sm:$0xf]
      %v376 = vld [vmem:[%s2] sm:$0x1]
      %v378 = vlaneseq
      %v379 = vshrl.u32 %v378, 7
      %v380 = vsub.s32 0, %v379
      %v381 = vrot.slane %v376, %v380
      %v517 = vunpack.c.l.b16 %v178
      %v518 = vunpack.c.h.b16 %v178
      %v519 = vunpack.c.l.b16 %v179
      %v520 = vunpack.c.h.b16 %v179
      %v521 = vunpack.c.l.b16 %v180
      %v522 = vunpack.c.h.b16 %v180
      %v523 = vunpack.c.l.b16 %v181
      %v524 = vunpack.c.h.b16 %v181
      %v525 = vunpack.c.l.b16 %v182
      %v526 = vunpack.c.h.b16 %v182
      %v527 = vunpack.c.l.b16 %v183
      %v528 = vunpack.c.h.b16 %v183
      %v529 = vunpack.c.l.b16 %v184
      %v530 = vunpack.c.h.b16 %v184
      %v531 = vunpack.c.l.b16 %v185
      %v532 = vunpack.c.h.b16 %v185
      %v533 = vunpack.c.l.b16 %v186
      %v534 = vunpack.c.h.b16 %v186
      %v535 = vunpack.c.l.b16 %v187
      %v536 = vunpack.c.h.b16 %v187
      %v537 = vunpack.c.l.b16 %v188
      %v538 = vunpack.c.h.b16 %v188
      %v539 = vunpack.c.l.b16 %v189
      %v540 = vunpack.c.h.b16 %v189
      %v541 = vunpack.c.l.b16 %v190
      %v542 = vunpack.c.h.b16 %v190
      %v543 = vunpack.c.l.b16 %v191
      %v544 = vunpack.c.h.b16 %v191
      %v545 = vunpack.c.l.b16 %v192
      %v546 = vunpack.c.h.b16 %v192
      %v547 = vunpack.c.l.b16 %v193
      %v548 = vunpack.c.h.b16 %v193
      %v549 = vunpack.c.l.b16 %v194
      %v550 = vunpack.c.h.b16 %v194
      %v551 = vunpack.c.l.b16 %v195
      %v552 = vunpack.c.h.b16 %v195
      %v553 = vunpack.c.l.b16 %v196
      %v554 = vunpack.c.h.b16 %v196
      %v555 = vunpack.c.l.b16 %v197
      %v556 = vunpack.c.h.b16 %v197
      %v557 = vunpack.c.l.b16 %v198
      %v558 = vunpack.c.h.b16 %v198
      %v559 = vunpack.c.l.b16 %v199
      %v560 = vunpack.c.h.b16 %v199
      %v561 = vunpack.c.l.b16 %v200
      %v562 = vunpack.c.h.b16 %v200
      %v563 = vunpack.c.l.b16 %v201
      %v564 = vunpack.c.h.b16 %v201
      %v565 = vunpack.c.l.b16 %v202
      %v566 = vunpack.c.h.b16 %v202
      %v567 = vunpack.c.l.b16 %v203
      %v568 = vunpack.c.h.b16 %v203
      %v569 = vunpack.c.l.b16 %v204
      %v570 = vunpack.c.h.b16 %v204
      %v571 = vunpack.c.l.b16 %v205
      %v572 = vunpack.c.h.b16 %v205
      %v573 = vunpack.c.l.b16 %v206
      %v574 = vunpack.c.h.b16 %v206
      %v575 = vunpack.c.l.b16 %v207
      %v576 = vunpack.c.h.b16 %v207
      %v577 = vunpack.c.l.b16 %v208
      %v578 = vunpack.c.h.b16 %v208
      %v579 = vunpack.c.l.b16 %v209
      %v580 = vunpack.c.h.b16 %v209
      %v581 = vunpack.c.l.b16 %v210
      %v582 = vunpack.c.h.b16 %v210
      %v583 = vunpack.c.l.b16 %v211
      %v584 = vunpack.c.h.b16 %v211
      %v585 = vunpack.c.l.b16 %v212
      %v586 = vunpack.c.h.b16 %v212
      %v587 = vunpack.c.l.b16 %v213
      %v588 = vunpack.c.h.b16 %v213
      %v589 = vunpack.c.l.b16 %v214
      %v590 = vunpack.c.h.b16 %v214
      %v591 = vunpack.c.l.b16 %v215
      %v592 = vunpack.c.h.b16 %v215
      %v593 = vunpack.c.l.b16 %v216
      %v594 = vunpack.c.h.b16 %v216
      %v595 = vunpack.c.l.b16 %v217
      %v596 = vunpack.c.h.b16 %v217
      %v597 = vunpack.c.l.b16 %v218
      %v598 = vunpack.c.h.b16 %v218
      %v599 = vunpack.c.l.b16 %v219
      %v600 = vunpack.c.h.b16 %v219
      %v601 = vunpack.c.l.b16 %v220
      %v602 = vunpack.c.h.b16 %v220
      %v603 = vunpack.c.l.b16 %v221
      %v604 = vunpack.c.h.b16 %v221
      %v605 = vunpack.c.l.b16 %v222
      %v606 = vunpack.c.h.b16 %v222
      %v607 = vunpack.c.l.b16 %v223
      %v608 = vunpack.c.h.b16 %v223
      %v609 = vunpack.c.l.b16 %v224
      %v610 = vunpack.c.h.b16 %v224
      %v611 = vunpack.c.l.b16 %v225
      %v612 = vunpack.c.h.b16 %v225
      %v613 = vunpack.c.l.b16 %v226
      %v614 = vunpack.c.h.b16 %v226
      %v615 = vunpack.c.l.b16 %v227
      %v616 = vunpack.c.h.b16 %v227
      %v617 = vunpack.c.l.b16 %v228
      %v618 = vunpack.c.h.b16 %v228
      %v619 = vunpack.c.l.b16 %v229
      %v620 = vunpack.c.h.b16 %v229
      %v621 = vunpack.c.l.b16 %v230
      %v622 = vunpack.c.h.b16 %v230
      %v623 = vunpack.c.l.b16 %v231
      %v624 = vunpack.c.h.b16 %v231
      %v625 = vunpack.c.l.b16 %v232
      %v626 = vunpack.c.h.b16 %v232
      %v627 = vunpack.c.l.b16 %v233
      %v628 = vunpack.c.h.b16 %v233
      %v629 = vunpack.c.l.b16 %v234
      %v630 = vunpack.c.h.b16 %v234
      %v631 = vunpack.c.l.b16 %v235
      %v632 = vunpack.c.h.b16 %v235
      %v633 = vunpack.c.l.b16 %v236
      %v634 = vunpack.c.h.b16 %v236
      %v635 = vunpack.c.l.b16 %v237
      %v636 = vunpack.c.h.b16 %v237
      %v637 = vunpack.c.l.b16 %v238
      %v638 = vunpack.c.h.b16 %v238
      %v639 = vunpack.c.l.b16 %v239
      %v640 = vunpack.c.h.b16 %v239
      %v641 = vunpack.c.l.b16 %v240
      %v642 = vunpack.c.h.b16 %v240
      %v643 = vunpack.c.l.b16 %v241
      %v644 = vunpack.c.h.b16 %v241
      %v645 = vunpack.c.l.b16 %v242
      %v646 = vunpack.c.h.b16 %v242
      %v647 = vunpack.c.l.b16 %v243
      %v648 = vunpack.c.h.b16 %v243
      %v649 = vunpack.c.l.b16 %v244
      %v650 = vunpack.c.h.b16 %v244
      %v651 = vunpack.c.l.b16 %v245
      %v652 = vunpack.c.h.b16 %v245
      %v653 = vunpack.c.l.b16 %v246
      %v654 = vunpack.c.h.b16 %v246
      %v655 = vunpack.c.l.b16 %v247
      %v656 = vunpack.c.h.b16 %v247
      %v657 = vunpack.c.l.b16 %v248
      %v658 = vunpack.c.h.b16 %v248
      %v659 = vunpack.c.l.b16 %v249
      %v660 = vunpack.c.h.b16 %v249
      %v661 = vunpack.c.l.b16 %v250
      %v662 = vunpack.c.h.b16 %v250
      %v663 = vunpack.c.l.b16 %v251
      %v664 = vunpack.c.h.b16 %v251
      %v665 = vunpack.c.l.b16 %v252
      %v666 = vunpack.c.h.b16 %v252
      %v667 = vunpack.c.l.b16 %v253
      %v668 = vunpack.c.h.b16 %v253
      %v669 = vunpack.c.l.b16 %v254
      %v670 = vunpack.c.h.b16 %v254
      %v671 = vunpack.c.l.b16 %v255
      %v672 = vunpack.c.h.b16 %v255
      %v673 = vunpack.c.l.b16 %v256
      %v674 = vunpack.c.h.b16 %v256
      %v675 = vunpack.c.l.b16 %v257
      %v676 = vunpack.c.h.b16 %v257
      %v677 = vunpack.c.l.b16 %v258
      %v678 = vunpack.c.h.b16 %v258
      %v679 = vunpack.c.l.b16 %v259
      %v680 = vunpack.c.h.b16 %v259
      %v681 = vunpack.c.l.b16 %v260
      %v682 = vunpack.c.h.b16 %v260
      %v683 = vunpack.c.l.b16 %v261
      %v684 = vunpack.c.h.b16 %v261
      %v685 = vunpack.c.l.b16 %v262
      %v686 = vunpack.c.h.b16 %v262
      %v687 = vunpack.c.l.b16 %v263
      %v688 = vunpack.c.h.b16 %v263
      %v689 = vunpack.c.l.b16 %v264
      %v690 = vunpack.c.h.b16 %v264
      %v691 = vunpack.c.l.b16 %v265
      %v692 = vunpack.c.h.b16 %v265
      %v693 = vunpack.c.l.b16 %v266
      %v694 = vunpack.c.h.b16 %v266
      %v695 = vunpack.c.l.b16 %v267
      %v696 = vunpack.c.h.b16 %v267
      %v697 = vunpack.c.l.b16 %v268
      %v698 = vunpack.c.h.b16 %v268
      %v699 = vunpack.c.l.b16 %v269
      %v700 = vunpack.c.h.b16 %v269
      %v701 = vunpack.c.l.b16 %v270
      %v702 = vunpack.c.h.b16 %v270
      %v703 = vunpack.c.l.b16 %v271
      %v704 = vunpack.c.h.b16 %v271
      %v705 = vunpack.c.l.b16 %v272
      %v706 = vunpack.c.h.b16 %v272
      %v707 = vunpack.c.l.b16 %v273
      %v708 = vunpack.c.h.b16 %v273
      %v709 = vunpack.c.l.b16 %v274
      %v710 = vunpack.c.h.b16 %v274
      %v711 = vunpack.c.l.b16 %v275
      %v712 = vunpack.c.h.b16 %v275
      %v713 = vunpack.c.l.b16 %v276
      %v714 = vunpack.c.h.b16 %v276
      %v715 = vunpack.c.l.b16 %v277
      %v716 = vunpack.c.h.b16 %v277
      %v717 = vunpack.c.l.b16 %v278
      %v718 = vunpack.c.h.b16 %v278
      %v719 = vunpack.c.l.b16 %v279
      %v720 = vunpack.c.h.b16 %v279
      %v721 = vunpack.c.l.b16 %v280
      %v722 = vunpack.c.h.b16 %v280
      %v723 = vunpack.c.l.b16 %v281
      %v724 = vunpack.c.h.b16 %v281
      %v725 = vunpack.c.l.b16 %v282
      %v726 = vunpack.c.h.b16 %v282
      %v727 = vunpack.c.l.b16 %v283
      %v728 = vunpack.c.h.b16 %v283
      %v729 = vunpack.c.l.b16 %v284
      %v730 = vunpack.c.h.b16 %v284
      %v731 = vunpack.c.l.b16 %v285
      %v732 = vunpack.c.h.b16 %v285
      %v733 = vunpack.c.l.b16 %v286
      %v734 = vunpack.c.h.b16 %v286
      %v735 = vunpack.c.l.b16 %v287
      %v736 = vunpack.c.h.b16 %v287
      %v737 = vunpack.c.l.b16 %v288
      %v738 = vunpack.c.h.b16 %v288
      %v739 = vunpack.c.l.b16 %v289
      %v740 = vunpack.c.h.b16 %v289
      %v741 = vunpack.c.l.b16 %v290
      %v742 = vunpack.c.h.b16 %v290
      %v743 = vunpack.c.l.b16 %v291
      %v744 = vunpack.c.h.b16 %v291
      %v745 = vunpack.c.l.b16 %v292
      %v746 = vunpack.c.h.b16 %v292
      %v747 = vunpack.c.l.b16 %v293
      %v748 = vunpack.c.h.b16 %v293
      %v749 = vunpack.c.l.b16 %v294
      %v750 = vunpack.c.h.b16 %v294
      %v751 = vunpack.c.l.b16 %v295
      %v752 = vunpack.c.h.b16 %v295
      %v753 = vunpack.c.l.b16 %v296
      %v754 = vunpack.c.h.b16 %v296
      %v755 = vunpack.c.l.b16 %v297
      %v756 = vunpack.c.h.b16 %v297
      %v757 = vunpack.c.l.b16 %v298
      %v758 = vunpack.c.h.b16 %v298
      %v759 = vunpack.c.l.b16 %v299
      %v760 = vunpack.c.h.b16 %v299
      %v761 = vunpack.c.l.b16 %v300
      %v762 = vunpack.c.h.b16 %v300
      %v763 = vunpack.c.l.b16 %v301
      %v764 = vunpack.c.h.b16 %v301
      %v765 = vunpack.c.l.b16 %v302
      %v766 = vunpack.c.h.b16 %v302
      %v767 = vunpack.c.l.b16 %v303
      %v768 = vunpack.c.h.b16 %v303
      %v769 = vunpack.c.l.b16 %v304
      %v770 = vunpack.c.h.b16 %v304
      %v771 = vunpack.c.l.b16 %v305
      %v772 = vunpack.c.h.b16 %v305
      %v773 = vunpack.c.l.b16 %v306
      %v774 = vunpack.c.h.b16 %v306
      %v775 = vunpack.c.l.b16 %v307
      %v776 = vunpack.c.h.b16 %v307
      %v777 = vunpack.c.l.b16 %v308
      %v778 = vunpack.c.h.b16 %v308
      %v779 = vunpack.c.l.b16 %v309
      %v780 = vunpack.c.h.b16 %v309
      %v781 = vunpack.c.l.b16 %v310
      %v782 = vunpack.c.h.b16 %v310
      %v783 = vunpack.c.l.b16 %v311
      %v784 = vunpack.c.h.b16 %v311
      %v785 = vpack.c.b16 %v521, %v517
      %v786 = vpack.c.b16 %v522, %v518
      %v787 = vpack.c.b16 %v523, %v519
      %v788 = vpack.c.b16 %v524, %v520
      %v789 = vpack.c.b16 %v529, %v525
      %v790 = vpack.c.b16 %v530, %v526
      %v791 = vpack.c.b16 %v531, %v527
      %v792 = vpack.c.b16 %v532, %v528
      %v793 = vpack.c.b16 %v537, %v533
      %v794 = vpack.c.b16 %v538, %v534
      %v795 = vpack.c.b16 %v539, %v535
      %v796 = vpack.c.b16 %v540, %v536
      %v797 = vpack.c.b16 %v545, %v541
      %v798 = vpack.c.b16 %v546, %v542
      %v799 = vpack.c.b16 %v547, %v543
      %v800 = vpack.c.b16 %v548, %v544
      %v801 = vpack.c.b16 %v553, %v549
      %v802 = vpack.c.b16 %v554, %v550
      %v803 = vpack.c.b16 %v555, %v551
      %v804 = vpack.c.b16 %v556, %v552
      %v805 = vpack.c.b16 %v561, %v557
      %v806 = vpack.c.b16 %v562, %v558
      %v807 = vpack.c.b16 %v563, %v559
      %v808 = vpack.c.b16 %v564, %v560
      %v809 = vpack.c.b16 %v569, %v565
      %v810 = vpack.c.b16 %v570, %v566
      %v811 = vpack.c.b16 %v571, %v567
      %v812 = vpack.c.b16 %v572, %v568
      %v813 = vpack.c.b16 %v577, %v573
      %v814 = vpack.c.b16 %v578, %v574
      %v815 = vpack.c.b16 %v579, %v575
      %v816 = vpack.c.b16 %v580, %v576
      %v817 = vpack.c.b16 %v585, %v581
      %v818 = vpack.c.b16 %v586, %v582
      %v819 = vpack.c.b16 %v587, %v583
      %v820 = vpack.c.b16 %v588, %v584
      %v821 = vpack.c.b16 %v593, %v589
      %v822 = vpack.c.b16 %v594, %v590
      %v823 = vpack.c.b16 %v595, %v591
      %v824 = vpack.c.b16 %v596, %v592
      %v825 = vpack.c.b16 %v601, %v597
      %v826 = vpack.c.b16 %v602, %v598
      %v827 = vpack.c.b16 %v603, %v599
      %v828 = vpack.c.b16 %v604, %v600
      %v829 = vpack.c.b16 %v609, %v605
      %v830 = vpack.c.b16 %v610, %v606
      %v831 = vpack.c.b16 %v611, %v607
      %v832 = vpack.c.b16 %v612, %v608
      %v833 = vpack.c.b16 %v617, %v613
      %v834 = vpack.c.b16 %v618, %v614
      %v835 = vpack.c.b16 %v619, %v615
      %v836 = vpack.c.b16 %v620, %v616
      %v837 = vpack.c.b16 %v625, %v621
      %v838 = vpack.c.b16 %v626, %v622
      %v839 = vpack.c.b16 %v627, %v623
      %v840 = vpack.c.b16 %v628, %v624
      %v841 = vpack.c.b16 %v633, %v629
      %v842 = vpack.c.b16 %v634, %v630
      %v843 = vpack.c.b16 %v635, %v631
      %v844 = vpack.c.b16 %v636, %v632
      %v845 = vpack.c.b16 %v641, %v637
      %v846 = vpack.c.b16 %v642, %v638
      %v847 = vpack.c.b16 %v643, %v639
      %v848 = vpack.c.b16 %v644, %v640
      %v849 = vpack.c.b16 %v649, %v645
      %v850 = vpack.c.b16 %v650, %v646
      %v851 = vpack.c.b16 %v651, %v647
      %v852 = vpack.c.b16 %v652, %v648
      %v853 = vpack.c.b16 %v657, %v653
      %v854 = vpack.c.b16 %v658, %v654
      %v855 = vpack.c.b16 %v659, %v655
      %v856 = vpack.c.b16 %v660, %v656
      %v857 = vpack.c.b16 %v665, %v661
      %v858 = vpack.c.b16 %v666, %v662
      %v859 = vpack.c.b16 %v667, %v663
      %v860 = vpack.c.b16 %v668, %v664
      %v861 = vpack.c.b16 %v673, %v669
      %v862 = vpack.c.b16 %v674, %v670
      %v863 = vpack.c.b16 %v675, %v671
      %v864 = vpack.c.b16 %v676, %v672
      %v865 = vpack.c.b16 %v681, %v677
      %v866 = vpack.c.b16 %v682, %v678
      %v867 = vpack.c.b16 %v683, %v679
      %v868 = vpack.c.b16 %v684, %v680
      %v869 = vpack.c.b16 %v689, %v685
      %v870 = vpack.c.b16 %v690, %v686
      %v871 = vpack.c.b16 %v691, %v687
      %v872 = vpack.c.b16 %v692, %v688
      %v873 = vpack.c.b16 %v697, %v693
      %v874 = vpack.c.b16 %v698, %v694
      %v875 = vpack.c.b16 %v699, %v695
      %v876 = vpack.c.b16 %v700, %v696
      %v877 = vpack.c.b16 %v705, %v701
      %v878 = vpack.c.b16 %v706, %v702
      %v879 = vpack.c.b16 %v707, %v703
      %v880 = vpack.c.b16 %v708, %v704
      %v881 = vpack.c.b16 %v713, %v709
      %v882 = vpack.c.b16 %v714, %v710
      %v883 = vpack.c.b16 %v715, %v711
      %v884 = vpack.c.b16 %v716, %v712
      %v885 = vpack.c.b16 %v721, %v717
      %v886 = vpack.c.b16 %v722, %v718
      %v887 = vpack.c.b16 %v723, %v719
      %v888 = vpack.c.b16 %v724, %v720
      %v889 = vpack.c.b16 %v729, %v725
      %v890 = vpack.c.b16 %v730, %v726
      %v891 = vpack.c.b16 %v731, %v727
      %v892 = vpack.c.b16 %v732, %v728
      %v893 = vpack.c.b16 %v737, %v733
      %v894 = vpack.c.b16 %v738, %v734
      %v895 = vpack.c.b16 %v739, %v735
      %v896 = vpack.c.b16 %v740, %v736
      %v897 = vpack.c.b16 %v745, %v741
      %v898 = vpack.c.b16 %v746, %v742
      %v899 = vpack.c.b16 %v747, %v743
      %v900 = vpack.c.b16 %v748, %v744
      %v901 = vpack.c.b16 %v753, %v749
      %v902 = vpack.c.b16 %v754, %v750
      %v903 = vpack.c.b16 %v755, %v751
      %v904 = vpack.c.b16 %v756, %v752
      %v905 = vpack.c.b16 %v761, %v757
      %v906 = vpack.c.b16 %v762, %v758
      %v907 = vpack.c.b16 %v763, %v759
      %v908 = vpack.c.b16 %v764, %v760
      %v909 = vpack.c.b16 %v769, %v765
      %v910 = vpack.c.b16 %v770, %v766
      %v911 = vpack.c.b16 %v771, %v767
      %v912 = vpack.c.b16 %v772, %v768
      %v913 = vpack.c.b16 %v777, %v773
      %v914 = vpack.c.b16 %v778, %v774
      %v915 = vpack.c.b16 %v779, %v775
      %v916 = vpack.c.b16 %v780, %v776
      %v917 = vpack.c.b16 %v781, %v781
      %v918 = vpack.c.b16 %v782, %v782
      %v919 = vpack.c.b16 %v783, %v783
      %v920 = vpack.c.b16 %v784, %v784
      %v1121 = vunpack.c.l.b16 %v312
      %v1122 = vunpack.c.l.b16 %v313
      %v1123 = vunpack.c.l.b16 %v314
      %v1124 = vunpack.c.l.b16 %v315
      %v1125 = vunpack.c.l.b16 %v316
      %v1126 = vunpack.c.l.b16 %v317
      %v1127 = vunpack.c.l.b16 %v318
      %v1128 = vunpack.c.l.b16 %v319
      %v1129 = vunpack.c.l.b16 %v320
      %v1130 = vunpack.c.l.b16 %v321
      %v1131 = vunpack.c.l.b16 %v322
      %v1132 = vunpack.c.l.b16 %v323
      %v1133 = vunpack.c.l.b16 %v324
      %v1134 = vunpack.c.l.b16 %v325
      %v1135 = vunpack.c.l.b16 %v326
      %v1136 = vunpack.c.l.b16 %v327
      %v1137 = vunpack.c.l.b16 %v328
      %v1138 = vunpack.c.l.b16 %v329
      %v1139 = vunpack.c.l.b16 %v330
      %v1140 = vunpack.c.l.b16 %v331
      %v1141 = vunpack.c.l.b16 %v332
      %v1142 = vunpack.c.l.b16 %v333
      %v1143 = vunpack.c.l.b16 %v334
      %v1144 = vunpack.c.l.b16 %v335
      %v1145 = vunpack.c.l.b16 %v336
      %v1146 = vunpack.c.l.b16 %v337
      %v1147 = vunpack.c.l.b16 %v338
      %v1148 = vunpack.c.l.b16 %v339
      %v1149 = vunpack.c.l.b16 %v340
      %v1150 = vunpack.c.l.b16 %v341
      %v1151 = vunpack.c.l.b16 %v342
      %v1152 = vunpack.c.l.b16 %v343
      %v1153 = vunpack.c.l.b16 %v344
      %v1154 = vunpack.c.l.b16 %v345
      %v1155 = vunpack.c.l.b16 %v346
      %v1156 = vunpack.c.l.b16 %v347
      %v1157 = vunpack.c.l.b16 %v348
      %v1158 = vunpack.c.l.b16 %v349
      %v1159 = vunpack.c.l.b16 %v350
      %v1160 = vunpack.c.l.b16 %v351
      %v1161 = vunpack.c.l.b16 %v352
      %v1162 = vunpack.c.l.b16 %v353
      %v1163 = vunpack.c.l.b16 %v354
      %v1164 = vunpack.c.l.b16 %v355
      %v1165 = vunpack.c.l.b16 %v356
      %v1166 = vunpack.c.l.b16 %v357
      %v1167 = vunpack.c.l.b16 %v358
      %v1168 = vunpack.c.l.b16 %v359
      %v1169 = vunpack.c.l.b16 %v360
      %v1170 = vunpack.c.l.b16 %v361
      %v1171 = vunpack.c.l.b16 %v362
      %v1172 = vunpack.c.l.b16 %v363
      %v1173 = vunpack.c.l.b16 %v364
      %v1174 = vunpack.c.l.b16 %v365
      %v1175 = vunpack.c.l.b16 %v366
      %v1176 = vunpack.c.l.b16 %v367
      %v1177 = vunpack.c.l.b16 %v368
      %v1178 = vunpack.c.l.b16 %v369
      %v1179 = vunpack.c.l.b16 %v370
      %v1180 = vunpack.c.l.b16 %v371
      %v1181 = vunpack.c.l.b16 %v372
      %v1182 = vunpack.c.l.b16 %v373
      %v1183 = vunpack.c.l.b16 %v374
      %v1184 = vunpack.c.l.b16 %v375
      %v1185 = vpack.c.b16 %v1122, %v1121
      %v1186 = vpack.c.b16 %v1124, %v1123
      %v1187 = vpack.c.b16 %v1126, %v1125
      %v1188 = vpack.c.b16 %v1128, %v1127
      %v1189 = vpack.c.b16 %v1130, %v1129
      %v1190 = vpack.c.b16 %v1132, %v1131
      %v1191 = vpack.c.b16 %v1134, %v1133
      %v1192 = vpack.c.b16 %v1136, %v1135
      %v1193 = vpack.c.b16 %v1138, %v1137
      %v1194 = vpack.c.b16 %v1140, %v1139
      %v1195 = vpack.c.b16 %v1142, %v1141
      %v1196 = vpack.c.b16 %v1144, %v1143
      %v1197 = vpack.c.b16 %v1146, %v1145
      %v1198 = vpack.c.b16 %v1148, %v1147
      %v1199 = vpack.c.b16 %v1150, %v1149
      %v1200 = vpack.c.b16 %v1152, %v1151
      %v1201 = vpack.c.b16 %v1154, %v1153
      %v1202 = vpack.c.b16 %v1156, %v1155
      %v1203 = vpack.c.b16 %v1158, %v1157
      %v1204 = vpack.c.b16 %v1160, %v1159
      %v1205 = vpack.c.b16 %v1162, %v1161
      %v1206 = vpack.c.b16 %v1164, %v1163
      %v1207 = vpack.c.b16 %v1166, %v1165
      %v1208 = vpack.c.b16 %v1168, %v1167
      %v1209 = vpack.c.b16 %v1170, %v1169
      %v1210 = vpack.c.b16 %v1172, %v1171
      %v1211 = vpack.c.b16 %v1174, %v1173
      %v1212 = vpack.c.b16 %v1176, %v1175
      %v1213 = vpack.c.b16 %v1178, %v1177
      %v1214 = vpack.c.b16 %v1180, %v1179
      %v1215 = vpack.c.b16 %v1182, %v1181
      %v1216 = vpack.c.b16 %v1184, %v1183
      %1249 = vmatprep.subr.bf16.mxu0 0
      %1250 = vmatpush1.bf16.msra.mxu0 %v1192
      %1251 = vmatprep.subr.bf16.mxu0 0
      %1252 = vmatpush1.bf16.msra.mxu0 %v1191
      %1253 = vmatprep.subr.bf16.mxu0 0
      %1254 = vmatpush1.bf16.msra.mxu0 %v1190
      %1255 = vmatprep.subr.bf16.mxu0 0
      %1256 = vmatpush1.bf16.msra.mxu0 %v1189
      %1257 = vmatprep.subr.bf16.mxu0 0
      %1258 = vmatpush1.bf16.msra.mxu0 %v1188
      %1259 = vmatprep.subr.bf16.mxu0 0
      %1260 = vmatpush1.bf16.msra.mxu0 %v1187
      %1261 = vmatprep.subr.bf16.mxu0 0
      %1262 = vmatpush1.bf16.msra.mxu0 %v1186
      %1263 = vmatprep.subr.bf16.mxu0 0
      %1264 = vmatpush1.bf16.msra.mxu0 %v1185
      %1265 = vmatprep.subr.bf16.mxu0 0
      %1266 = vmatpush2.bf16.msra.mxu0 %v1200
      %1267 = vmatprep.subr.bf16.mxu0 0
      %1268 = vmatpush2.bf16.msra.mxu0 %v1199
      %1269 = vmatprep.subr.bf16.mxu0 0
      %1270 = vmatpush2.bf16.msra.mxu0 %v1198
      %1271 = vmatprep.subr.bf16.mxu0 0
      %1272 = vmatpush2.bf16.msra.mxu0 %v1197
      %1273 = vmatprep.subr.bf16.mxu0 0
      %1274 = vmatpush2.bf16.msra.mxu0 %v1196
      %1275 = vmatprep.subr.bf16.mxu0 0
      %1276 = vmatpush2.bf16.msra.mxu0 %v1195
      %1277 = vmatprep.subr.bf16.mxu0 0
      %1278 = vmatpush2.bf16.msra.mxu0 %v1194
      %1279 = vmatprep.subr.bf16.mxu0 0
      %1280 = vmatpush2.bf16.msra.mxu0 %v1193
      %1281 = vmatprep.mubr.bf16.mxu0 %v786
      %1282 = vmatmul.mubr.bf16.gmra.mxu0 %v785
      %v1283 = vpop.f32.mrf.mxu0
      %v1284 = vadd.f32 %v381, %v1283
      %v1285 = vpop.f32.mrf.mxu0
      %v1286 = vpop.f32.mrf.mxu0
      %v1287 = vadd.f32 %v381, %v1286
      %v1288 = vpop.f32.mrf.mxu0
      %1289 = vmatprep.mubr.bf16.mxu0 %v790
      %1290 = vmatmul.mubr.bf16.gmra.mxu0 %v789
      %v1291 = vpop.f32.mrf.mxu0
      %v1292 = vadd.f32 %v381, %v1291
      %v1293 = vpop.f32.mrf.mxu0
      %v1294 = vpop.f32.mrf.mxu0
      %v1295 = vadd.f32 %v381, %v1294
      %v1296 = vpop.f32.mrf.mxu0
      %1297 = vmatprep.mubr.bf16.mxu0 %v794
      %1298 = vmatmul.mubr.bf16.gmra.mxu0 %v793
      %v1299 = vpop.f32.mrf.mxu0
      %v1300 = vadd.f32 %v381, %v1299
      %v1301 = vpop.f32.mrf.mxu0
      %v1302 = vpop.f32.mrf.mxu0
      %v1303 = vadd.f32 %v381, %v1302
      %v1304 = vpop.f32.mrf.mxu0
      %1305 = vmatprep.mubr.bf16.mxu0 %v798
      %1306 = vmatmul.mubr.bf16.gmra.mxu0 %v797
      %v1307 = vpop.f32.mrf.mxu0
      %v1308 = vadd.f32 %v381, %v1307
      %v1309 = vpop.f32.mrf.mxu0
      %v1310 = vpop.f32.mrf.mxu0
      %v1311 = vadd.f32 %v381, %v1310
      %v1312 = vpop.f32.mrf.mxu0
      %1313 = vmatprep.mubr.bf16.mxu0 %v802
      %1314 = vmatmul.mubr.bf16.gmra.mxu0 %v801
      %v1315 = vpop.f32.mrf.mxu0
      %v1316 = vadd.f32 %v381, %v1315
      %v1317 = vpop.f32.mrf.mxu0
      %v1318 = vpop.f32.mrf.mxu0
      %v1319 = vadd.f32 %v381, %v1318
      %v1320 = vpop.f32.mrf.mxu0
      %1321 = vmatprep.mubr.bf16.mxu0 %v806
      %1322 = vmatmul.mubr.bf16.gmra.mxu0 %v805
      %v1323 = vpop.f32.mrf.mxu0
      %v1324 = vadd.f32 %v381, %v1323
      %v1325 = vpop.f32.mrf.mxu0
      %v1326 = vpop.f32.mrf.mxu0
      %v1327 = vadd.f32 %v381, %v1326
      %v1328 = vpop.f32.mrf.mxu0
      %1329 = vmatprep.mubr.bf16.mxu0 %v810
      %1330 = vmatmul.mubr.bf16.gmra.mxu0 %v809
      %v1331 = vpop.f32.mrf.mxu0
      %v1332 = vadd.f32 %v381, %v1331
      %v1333 = vpop.f32.mrf.mxu0
      %v1334 = vpop.f32.mrf.mxu0
      %v1335 = vadd.f32 %v381, %v1334
      %v1336 = vpop.f32.mrf.mxu0
      %1337 = vmatprep.mubr.bf16.mxu0 %v814
      %1338 = vmatmul.mubr.bf16.gmra.mxu0 %v813
      %v1339 = vpop.f32.mrf.mxu0
      %v1340 = vadd.f32 %v381, %v1339
      %v1341 = vpop.f32.mrf.mxu0
      %v1342 = vpop.f32.mrf.mxu0
      %v1343 = vadd.f32 %v381, %v1342
      %v1344 = vpop.f32.mrf.mxu0
      %1345 = vmatprep.mubr.bf16.mxu0 %v818
      %1346 = vmatmul.mubr.bf16.gmra.mxu0 %v817
      %v1347 = vpop.f32.mrf.mxu0
      %v1348 = vadd.f32 %v381, %v1347
      %v1349 = vpop.f32.mrf.mxu0
      %v1350 = vpop.f32.mrf.mxu0
      %v1351 = vadd.f32 %v381, %v1350
      %v1352 = vpop.f32.mrf.mxu0
      %1353 = vmatprep.mubr.bf16.mxu0 %v822
      %1354 = vmatmul.mubr.bf16.gmra.mxu0 %v821
      %v1355 = vpop.f32.mrf.mxu0
      %v1356 = vadd.f32 %v381, %v1355
      %v1357 = vpop.f32.mrf.mxu0
      %v1358 = vpop.f32.mrf.mxu0
      %v1359 = vadd.f32 %v381, %v1358
      %v1360 = vpop.f32.mrf.mxu0
      %1361 = vmatprep.mubr.bf16.mxu0 %v826
      %1362 = vmatmul.mubr.bf16.gmra.mxu0 %v825
      %v1363 = vpop.f32.mrf.mxu0
      %v1364 = vadd.f32 %v381, %v1363
      %v1365 = vpop.f32.mrf.mxu0
      %v1366 = vpop.f32.mrf.mxu0
      %v1367 = vadd.f32 %v381, %v1366
      %v1368 = vpop.f32.mrf.mxu0
      %1369 = vmatprep.mubr.bf16.mxu0 %v830
      %1370 = vmatmul.mubr.bf16.gmra.mxu0 %v829
      %v1371 = vpop.f32.mrf.mxu0
      %v1372 = vadd.f32 %v381, %v1371
      %v1373 = vpop.f32.mrf.mxu0
      %v1374 = vpop.f32.mrf.mxu0
      %v1375 = vadd.f32 %v381, %v1374
      %v1376 = vpop.f32.mrf.mxu0
      %1377 = vmatprep.mubr.bf16.mxu0 %v834
      %1378 = vmatmul.mubr.bf16.gmra.mxu0 %v833
      %v1379 = vpop.f32.mrf.mxu0
      %v1380 = vadd.f32 %v381, %v1379
      %v1381 = vpop.f32.mrf.mxu0
      %v1382 = vpop.f32.mrf.mxu0
      %v1383 = vadd.f32 %v381, %v1382
      %v1384 = vpop.f32.mrf.mxu0
      %1385 = vmatprep.mubr.bf16.mxu0 %v838
      %1386 = vmatmul.mubr.bf16.gmra.mxu0 %v837
      %v1387 = vpop.f32.mrf.mxu0
      %v1388 = vadd.f32 %v381, %v1387
      %v1389 = vpop.f32.mrf.mxu0
      %v1390 = vpop.f32.mrf.mxu0
      %v1391 = vadd.f32 %v381, %v1390
      %v1392 = vpop.f32.mrf.mxu0
      %1393 = vmatprep.mubr.bf16.mxu0 %v842
      %1394 = vmatmul.mubr.bf16.gmra.mxu0 %v841
      %v1395 = vpop.f32.mrf.mxu0
      %v1396 = vadd.f32 %v381, %v1395
      %v1397 = vpop.f32.mrf.mxu0
      %v1398 = vpop.f32.mrf.mxu0
      %v1399 = vadd.f32 %v381, %v1398
      %v1400 = vpop.f32.mrf.mxu0
      %1401 = vmatprep.mubr.bf16.mxu0 %v846
      %1402 = vmatmul.mubr.bf16.gmra.mxu0 %v845
      %v1403 = vpop.f32.mrf.mxu0
      %v1404 = vadd.f32 %v381, %v1403
      %v1405 = vpop.f32.mrf.mxu0
      %v1406 = vpop.f32.mrf.mxu0
      %v1407 = vadd.f32 %v381, %v1406
      %v1408 = vpop.f32.mrf.mxu0
      %1409 = vmatprep.mubr.bf16.mxu0 %v850
      %1410 = vmatmul.mubr.bf16.gmra.mxu0 %v849
      %v1411 = vpop.f32.mrf.mxu0
      %v1412 = vadd.f32 %v381, %v1411
      %v1413 = vpop.f32.mrf.mxu0
      %v1414 = vpop.f32.mrf.mxu0
      %v1415 = vadd.f32 %v381, %v1414
      %v1416 = vpop.f32.mrf.mxu0
      %1417 = vmatprep.mubr.bf16.mxu0 %v854
      %1418 = vmatmul.mubr.bf16.gmra.mxu0 %v853
      %v1419 = vpop.f32.mrf.mxu0
      %v1420 = vadd.f32 %v381, %v1419
      %v1421 = vpop.f32.mrf.mxu0
      %v1422 = vpop.f32.mrf.mxu0
      %v1423 = vadd.f32 %v381, %v1422
      %v1424 = vpop.f32.mrf.mxu0
      %1425 = vmatprep.mubr.bf16.mxu0 %v858
      %1426 = vmatmul.mubr.bf16.gmra.mxu0 %v857
      %v1427 = vpop.f32.mrf.mxu0
      %v1428 = vadd.f32 %v381, %v1427
      %v1429 = vpop.f32.mrf.mxu0
      %v1430 = vpop.f32.mrf.mxu0
      %v1431 = vadd.f32 %v381, %v1430
      %v1432 = vpop.f32.mrf.mxu0
      %1433 = vmatprep.mubr.bf16.mxu0 %v862
      %1434 = vmatmul.mubr.bf16.gmra.mxu0 %v861
      %v1435 = vpop.f32.mrf.mxu0
      %v1436 = vadd.f32 %v381, %v1435
      %v1437 = vpop.f32.mrf.mxu0
      %v1438 = vpop.f32.mrf.mxu0
      %v1439 = vadd.f32 %v381, %v1438
      %v1440 = vpop.f32.mrf.mxu0
      %1441 = vmatprep.mubr.bf16.mxu0 %v866
      %1442 = vmatmul.mubr.bf16.gmra.mxu0 %v865
      %v1443 = vpop.f32.mrf.mxu0
      %v1444 = vadd.f32 %v381, %v1443
      %v1445 = vpop.f32.mrf.mxu0
      %v1446 = vpop.f32.mrf.mxu0
      %v1447 = vadd.f32 %v381, %v1446
      %v1448 = vpop.f32.mrf.mxu0
      %1449 = vmatprep.mubr.bf16.mxu0 %v870
      %1450 = vmatmul.mubr.bf16.gmra.mxu0 %v869
      %v1451 = vpop.f32.mrf.mxu0
      %v1452 = vadd.f32 %v381, %v1451
      %v1453 = vpop.f32.mrf.mxu0
      %v1454 = vpop.f32.mrf.mxu0
      %v1455 = vadd.f32 %v381, %v1454
      %v1456 = vpop.f32.mrf.mxu0
      %1457 = vmatprep.mubr.bf16.mxu0 %v874
      %1458 = vmatmul.mubr.bf16.gmra.mxu0 %v873
      %v1459 = vpop.f32.mrf.mxu0
      %v1460 = vadd.f32 %v381, %v1459
      %v1461 = vpop.f32.mrf.mxu0
      %v1462 = vpop.f32.mrf.mxu0
      %v1463 = vadd.f32 %v381, %v1462
      %v1464 = vpop.f32.mrf.mxu0
      %1465 = vmatprep.mubr.bf16.mxu0 %v878
      %1466 = vmatmul.mubr.bf16.gmra.mxu0 %v877
      %v1467 = vpop.f32.mrf.mxu0
      %v1468 = vadd.f32 %v381, %v1467
      %v1469 = vpop.f32.mrf.mxu0
      %v1470 = vpop.f32.mrf.mxu0
      %v1471 = vadd.f32 %v381, %v1470
      %v1472 = vpop.f32.mrf.mxu0
      %1473 = vmatprep.mubr.bf16.mxu0 %v882
      %1474 = vmatmul.mubr.bf16.gmra.mxu0 %v881
      %v1475 = vpop.f32.mrf.mxu0
      %v1476 = vadd.f32 %v381, %v1475
      %v1477 = vpop.f32.mrf.mxu0
      %v1478 = vpop.f32.mrf.mxu0
      %v1479 = vadd.f32 %v381, %v1478
      %v1480 = vpop.f32.mrf.mxu0
      %1481 = vmatprep.mubr.bf16.mxu0 %v886
      %1482 = vmatmul.mubr.bf16.gmra.mxu0 %v885
      %v1483 = vpop.f32.mrf.mxu0
      %v1484 = vadd.f32 %v381, %v1483
      %v1485 = vpop.f32.mrf.mxu0
      %v1486 = vpop.f32.mrf.mxu0
      %v1487 = vadd.f32 %v381, %v1486
      %v1488 = vpop.f32.mrf.mxu0
      %1489 = vmatprep.mubr.bf16.mxu0 %v890
      %1490 = vmatmul.mubr.bf16.gmra.mxu0 %v889
      %v1491 = vpop.f32.mrf.mxu0
      %v1492 = vadd.f32 %v381, %v1491
      %v1493 = vpop.f32.mrf.mxu0
      %v1494 = vpop.f32.mrf.mxu0
      %v1495 = vadd.f32 %v381, %v1494
      %v1496 = vpop.f32.mrf.mxu0
      %1497 = vmatprep.mubr.bf16.mxu0 %v894
      %1498 = vmatmul.mubr.bf16.gmra.mxu0 %v893
      %v1499 = vpop.f32.mrf.mxu0
      %v1500 = vadd.f32 %v381, %v1499
      %v1501 = vpop.f32.mrf.mxu0
      %v1502 = vpop.f32.mrf.mxu0
      %v1503 = vadd.f32 %v381, %v1502
      %v1504 = vpop.f32.mrf.mxu0
      %1505 = vmatprep.mubr.bf16.mxu0 %v898
      %1506 = vmatmul.mubr.bf16.gmra.mxu0 %v897
      %v1507 = vpop.f32.mrf.mxu0
      %v1508 = vadd.f32 %v381, %v1507
      %v1509 = vpop.f32.mrf.mxu0
      %v1510 = vpop.f32.mrf.mxu0
      %v1511 = vadd.f32 %v381, %v1510
      %v1512 = vpop.f32.mrf.mxu0
      %1513 = vmatprep.mubr.bf16.mxu0 %v902
      %1514 = vmatmul.mubr.bf16.gmra.mxu0 %v901
      %v1515 = vpop.f32.mrf.mxu0
      %v1516 = vadd.f32 %v381, %v1515
      %v1517 = vpop.f32.mrf.mxu0
      %v1518 = vpop.f32.mrf.mxu0
      %v1519 = vadd.f32 %v381, %v1518
      %v1520 = vpop.f32.mrf.mxu0
      %1521 = vmatprep.mubr.bf16.mxu0 %v906
      %1522 = vmatmul.mubr.bf16.gmra.mxu0 %v905
      %v1523 = vpop.f32.mrf.mxu0
      %v1524 = vadd.f32 %v381, %v1523
      %v1525 = vpop.f32.mrf.mxu0
      %v1526 = vpop.f32.mrf.mxu0
      %v1527 = vadd.f32 %v381, %v1526
      %v1528 = vpop.f32.mrf.mxu0
      %1529 = vmatprep.mubr.bf16.mxu0 %v910
      %1530 = vmatmul.mubr.bf16.gmra.mxu0 %v909
      %v1531 = vpop.f32.mrf.mxu0
      %v1532 = vadd.f32 %v381, %v1531
      %v1533 = vpop.f32.mrf.mxu0
      %v1534 = vpop.f32.mrf.mxu0
      %v1535 = vadd.f32 %v381, %v1534
      %v1536 = vpop.f32.mrf.mxu0
      %1537 = vmatprep.mubr.bf16.mxu0 %v914
      %1538 = vmatmul.mubr.bf16.gmra.mxu0 %v913
      %v1539 = vpop.f32.mrf.mxu0
      %v1540 = vadd.f32 %v381, %v1539
      %v1541 = vpop.f32.mrf.mxu0
      %v1542 = vpop.f32.mrf.mxu0
      %v1543 = vadd.f32 %v381, %v1542
      %v1544 = vpop.f32.mrf.mxu0
      %1545 = vmatprep.mubr.bf16.mxu0 %v918
      %1546 = vmatmul.mubr.bf16.gmra.mxu0 %v917
      %v1547 = vpop.f32.mrf.mxu0
      %v1548 = vadd.f32 %v381, %v1547
      %v1549 = vpop.f32.mrf.mxu0
      %v1550 = vpop.f32.mrf.mxu0
      %v1551 = vpop.f32.mrf.mxu0
      %1552 = vdwg.mxu0
      %1553 = vmatprep.subr.bf16.mxu0 0
      %1554 = vmatpush1.bf16.msra.mxu0 %v1208
      %1555 = vmatprep.subr.bf16.mxu0 0
      %1556 = vmatpush1.bf16.msra.mxu0 %v1207
      %1557 = vmatprep.subr.bf16.mxu0 0
      %1558 = vmatpush1.bf16.msra.mxu0 %v1206
      %1559 = vmatprep.subr.bf16.mxu0 0
      %1560 = vmatpush1.bf16.msra.mxu0 %v1205
      %1561 = vmatprep.subr.bf16.mxu0 0
      %1562 = vmatpush1.bf16.msra.mxu0 %v1204
      %1563 = vmatprep.subr.bf16.mxu0 0
      %1564 = vmatpush1.bf16.msra.mxu0 %v1203
      %1565 = vmatprep.subr.bf16.mxu0 0
      %1566 = vmatpush1.bf16.msra.mxu0 %v1202
      %1567 = vmatprep.subr.bf16.mxu0 0
      %1568 = vmatpush1.bf16.msra.mxu0 %v1201
      %1569 = vmatprep.subr.bf16.mxu0 0
      %1570 = vmatpush2.bf16.msra.mxu0 %v1216
      %1571 = vmatprep.subr.bf16.mxu0 0
      %1572 = vmatpush2.bf16.msra.mxu0 %v1215
      %1573 = vmatprep.subr.bf16.mxu0 0
      %1574 = vmatpush2.bf16.msra.mxu0 %v1214
      %1575 = vmatprep.subr.bf16.mxu0 0
      %1576 = vmatpush2.bf16.msra.mxu0 %v1213
      %1577 = vmatprep.subr.bf16.mxu0 0
      %1578 = vmatpush2.bf16.msra.mxu0 %v1212
      %1579 = vmatprep.subr.bf16.mxu0 0
      %1580 = vmatpush2.bf16.msra.mxu0 %v1211
      %1581 = vmatprep.subr.bf16.mxu0 0
      %1582 = vmatpush2.bf16.msra.mxu0 %v1210
      %1583 = vmatprep.subr.bf16.mxu0 0
      %1584 = vmatpush2.bf16.msra.mxu0 %v1209
      %1585 = vmatprep.mubr.bf16.mxu0 %v788
      %1586 = vmatmul.mubr.bf16.gmra.mxu0 %v787
      %v1587 = vpop.f32.mrf.mxu0
      %v1588 = vadd.f32 %v1284, %v1587
      %v1589 = vpop.f32.mrf.mxu0
      %v1590 = vpop.f32.mrf.mxu0
      %v1591 = vadd.f32 %v1287, %v1590
      %v1592 = vpop.f32.mrf.mxu0
      %1593 = vmatprep.mubr.bf16.mxu0 %v792
      %1594 = vmatmul.mubr.bf16.gmra.mxu0 %v791
      %v1595 = vpop.f32.mrf.mxu0
      %v1596 = vadd.f32 %v1292, %v1595
      %v1597 = vpop.f32.mrf.mxu0
      %v1598 = vpop.f32.mrf.mxu0
      %v1599 = vadd.f32 %v1295, %v1598
      %v1600 = vpop.f32.mrf.mxu0
      %1601 = vmatprep.mubr.bf16.mxu0 %v796
      %1602 = vmatmul.mubr.bf16.gmra.mxu0 %v795
      %v1603 = vpop.f32.mrf.mxu0
      %v1604 = vadd.f32 %v1300, %v1603
      %v1605 = vpop.f32.mrf.mxu0
      %v1606 = vpop.f32.mrf.mxu0
      %v1607 = vadd.f32 %v1303, %v1606
      %v1608 = vpop.f32.mrf.mxu0
      %1609 = vmatprep.mubr.bf16.mxu0 %v800
      %1610 = vmatmul.mubr.bf16.gmra.mxu0 %v799
      %v1611 = vpop.f32.mrf.mxu0
      %v1612 = vadd.f32 %v1308, %v1611
      %v1613 = vpop.f32.mrf.mxu0
      %v1614 = vpop.f32.mrf.mxu0
      %v1615 = vadd.f32 %v1311, %v1614
      %v1616 = vpop.f32.mrf.mxu0
      %1617 = vmatprep.mubr.bf16.mxu0 %v804
      %1618 = vmatmul.mubr.bf16.gmra.mxu0 %v803
      %v1619 = vpop.f32.mrf.mxu0
      %v1620 = vadd.f32 %v1316, %v1619
      %v1621 = vpop.f32.mrf.mxu0
      %v1622 = vpop.f32.mrf.mxu0
      %v1623 = vadd.f32 %v1319, %v1622
      %v1624 = vpop.f32.mrf.mxu0
      %1625 = vmatprep.mubr.bf16.mxu0 %v808
      %1626 = vmatmul.mubr.bf16.gmra.mxu0 %v807
      %v1627 = vpop.f32.mrf.mxu0
      %v1628 = vadd.f32 %v1324, %v1627
      %v1629 = vpop.f32.mrf.mxu0
      %v1630 = vpop.f32.mrf.mxu0
      %v1631 = vadd.f32 %v1327, %v1630
      %v1632 = vpop.f32.mrf.mxu0
      %1633 = vmatprep.mubr.bf16.mxu0 %v812
      %1634 = vmatmul.mubr.bf16.gmra.mxu0 %v811
      %v1635 = vpop.f32.mrf.mxu0
      %v1636 = vadd.f32 %v1332, %v1635
      %v1637 = vpop.f32.mrf.mxu0
      %v1638 = vpop.f32.mrf.mxu0
      %v1639 = vadd.f32 %v1335, %v1638
      %v1640 = vpop.f32.mrf.mxu0
      %1641 = vmatprep.mubr.bf16.mxu0 %v816
      %1642 = vmatmul.mubr.bf16.gmra.mxu0 %v815
      %v1643 = vpop.f32.mrf.mxu0
      %v1644 = vadd.f32 %v1340, %v1643
      %v1645 = vpop.f32.mrf.mxu0
      %v1646 = vpop.f32.mrf.mxu0
      %v1647 = vadd.f32 %v1343, %v1646
      %v1648 = vpop.f32.mrf.mxu0
      %1649 = vmatprep.mubr.bf16.mxu0 %v820
      %1650 = vmatmul.mubr.bf16.gmra.mxu0 %v819
      %v1651 = vpop.f32.mrf.mxu0
      %v1652 = vadd.f32 %v1348, %v1651
      %v1653 = vpop.f32.mrf.mxu0
      %v1654 = vpop.f32.mrf.mxu0
      %v1655 = vadd.f32 %v1351, %v1654
      %v1656 = vpop.f32.mrf.mxu0
      %1657 = vmatprep.mubr.bf16.mxu0 %v824
      %1658 = vmatmul.mubr.bf16.gmra.mxu0 %v823
      %v1659 = vpop.f32.mrf.mxu0
      %v1660 = vadd.f32 %v1356, %v1659
      %v1661 = vpop.f32.mrf.mxu0
      %v1662 = vpop.f32.mrf.mxu0
      %v1663 = vadd.f32 %v1359, %v1662
      %v1664 = vpop.f32.mrf.mxu0
      %1665 = vmatprep.mubr.bf16.mxu0 %v828
      %1666 = vmatmul.mubr.bf16.gmra.mxu0 %v827
      %v1667 = vpop.f32.mrf.mxu0
      %v1668 = vadd.f32 %v1364, %v1667
      %v1669 = vpop.f32.mrf.mxu0
      %v1670 = vpop.f32.mrf.mxu0
      %v1671 = vadd.f32 %v1367, %v1670
      %v1672 = vpop.f32.mrf.mxu0
      %1673 = vmatprep.mubr.bf16.mxu0 %v832
      %1674 = vmatmul.mubr.bf16.gmra.mxu0 %v831
      %v1675 = vpop.f32.mrf.mxu0
      %v1676 = vadd.f32 %v1372, %v1675
      %v1677 = vpop.f32.mrf.mxu0
      %v1678 = vpop.f32.mrf.mxu0
      %v1679 = vadd.f32 %v1375, %v1678
      %v1680 = vpop.f32.mrf.mxu0
      %1681 = vmatprep.mubr.bf16.mxu0 %v836
      %1682 = vmatmul.mubr.bf16.gmra.mxu0 %v835
      %v1683 = vpop.f32.mrf.mxu0
      %v1684 = vadd.f32 %v1380, %v1683
      %v1685 = vpop.f32.mrf.mxu0
      %v1686 = vpop.f32.mrf.mxu0
      %v1687 = vadd.f32 %v1383, %v1686
      %v1688 = vpop.f32.mrf.mxu0
      %1689 = vmatprep.mubr.bf16.mxu0 %v840
      %1690 = vmatmul.mubr.bf16.gmra.mxu0 %v839
      %v1691 = vpop.f32.mrf.mxu0
      %v1692 = vadd.f32 %v1388, %v1691
      %v1693 = vpop.f32.mrf.mxu0
      %v1694 = vpop.f32.mrf.mxu0
      %v1695 = vadd.f32 %v1391, %v1694
      %v1696 = vpop.f32.mrf.mxu0
      %1697 = vmatprep.mubr.bf16.mxu0 %v844
      %1698 = vmatmul.mubr.bf16.gmra.mxu0 %v843
      %v1699 = vpop.f32.mrf.mxu0
      %v1700 = vadd.f32 %v1396, %v1699
      %v1701 = vpop.f32.mrf.mxu0
      %v1702 = vpop.f32.mrf.mxu0
      %v1703 = vadd.f32 %v1399, %v1702
      %v1704 = vpop.f32.mrf.mxu0
      %1705 = vmatprep.mubr.bf16.mxu0 %v848
      %1706 = vmatmul.mubr.bf16.gmra.mxu0 %v847
      %v1707 = vpop.f32.mrf.mxu0
      %v1708 = vadd.f32 %v1404, %v1707
      %v1709 = vpop.f32.mrf.mxu0
      %v1710 = vpop.f32.mrf.mxu0
      %v1711 = vadd.f32 %v1407, %v1710
      %v1712 = vpop.f32.mrf.mxu0
      %1713 = vmatprep.mubr.bf16.mxu0 %v852
      %1714 = vmatmul.mubr.bf16.gmra.mxu0 %v851
      %v1715 = vpop.f32.mrf.mxu0
      %v1716 = vadd.f32 %v1412, %v1715
      %v1717 = vpop.f32.mrf.mxu0
      %v1718 = vpop.f32.mrf.mxu0
      %v1719 = vadd.f32 %v1415, %v1718
      %v1720 = vpop.f32.mrf.mxu0
      %1721 = vmatprep.mubr.bf16.mxu0 %v856
      %1722 = vmatmul.mubr.bf16.gmra.mxu0 %v855
      %v1723 = vpop.f32.mrf.mxu0
      %v1724 = vadd.f32 %v1420, %v1723
      %v1725 = vpop.f32.mrf.mxu0
      %v1726 = vpop.f32.mrf.mxu0
      %v1727 = vadd.f32 %v1423, %v1726
      %v1728 = vpop.f32.mrf.mxu0
      %1729 = vmatprep.mubr.bf16.mxu0 %v860
      %1730 = vmatmul.mubr.bf16.gmra.mxu0 %v859
      %v1731 = vpop.f32.mrf.mxu0
      %v1732 = vadd.f32 %v1428, %v1731
      %v1733 = vpop.f32.mrf.mxu0
      %v1734 = vpop.f32.mrf.mxu0
      %v1735 = vadd.f32 %v1431, %v1734
      %v1736 = vpop.f32.mrf.mxu0
      %1737 = vmatprep.mubr.bf16.mxu0 %v864
      %1738 = vmatmul.mubr.bf16.gmra.mxu0 %v863
      %v1739 = vpop.f32.mrf.mxu0
      %v1740 = vadd.f32 %v1436, %v1739
      %v1741 = vpop.f32.mrf.mxu0
      %v1742 = vpop.f32.mrf.mxu0
      %v1743 = vadd.f32 %v1439, %v1742
      %v1744 = vpop.f32.mrf.mxu0
      %1745 = vmatprep.mubr.bf16.mxu0 %v868
      %1746 = vmatmul.mubr.bf16.gmra.mxu0 %v867
      %v1747 = vpop.f32.mrf.mxu0
      %v1748 = vadd.f32 %v1444, %v1747
      %v1749 = vpop.f32.mrf.mxu0
      %v1750 = vpop.f32.mrf.mxu0
      %v1751 = vadd.f32 %v1447, %v1750
      %v1752 = vpop.f32.mrf.mxu0
      %1753 = vmatprep.mubr.bf16.mxu0 %v872
      %1754 = vmatmul.mubr.bf16.gmra.mxu0 %v871
      %v1755 = vpop.f32.mrf.mxu0
      %v1756 = vadd.f32 %v1452, %v1755
      %v1757 = vpop.f32.mrf.mxu0
      %v1758 = vpop.f32.mrf.mxu0
      %v1759 = vadd.f32 %v1455, %v1758
      %v1760 = vpop.f32.mrf.mxu0
      %1761 = vmatprep.mubr.bf16.mxu0 %v876
      %1762 = vmatmul.mubr.bf16.gmra.mxu0 %v875
      %v1763 = vpop.f32.mrf.mxu0
      %v1764 = vadd.f32 %v1460, %v1763
      %v1765 = vpop.f32.mrf.mxu0
      %v1766 = vpop.f32.mrf.mxu0
      %v1767 = vadd.f32 %v1463, %v1766
      %v1768 = vpop.f32.mrf.mxu0
      %1769 = vmatprep.mubr.bf16.mxu0 %v880
      %1770 = vmatmul.mubr.bf16.gmra.mxu0 %v879
      %v1771 = vpop.f32.mrf.mxu0
      %v1772 = vadd.f32 %v1468, %v1771
      %v1773 = vpop.f32.mrf.mxu0
      %v1774 = vpop.f32.mrf.mxu0
      %v1775 = vadd.f32 %v1471, %v1774
      %v1776 = vpop.f32.mrf.mxu0
      %1777 = vmatprep.mubr.bf16.mxu0 %v884
      %1778 = vmatmul.mubr.bf16.gmra.mxu0 %v883
      %v1779 = vpop.f32.mrf.mxu0
      %v1780 = vadd.f32 %v1476, %v1779
      %v1781 = vpop.f32.mrf.mxu0
      %v1782 = vpop.f32.mrf.mxu0
      %v1783 = vadd.f32 %v1479, %v1782
      %v1784 = vpop.f32.mrf.mxu0
      %1785 = vmatprep.mubr.bf16.mxu0 %v888
      %1786 = vmatmul.mubr.bf16.gmra.mxu0 %v887
      %v1787 = vpop.f32.mrf.mxu0
      %v1788 = vadd.f32 %v1484, %v1787
      %v1789 = vpop.f32.mrf.mxu0
      %v1790 = vpop.f32.mrf.mxu0
      %v1791 = vadd.f32 %v1487, %v1790
      %v1792 = vpop.f32.mrf.mxu0
      %1793 = vmatprep.mubr.bf16.mxu0 %v892
      %1794 = vmatmul.mubr.bf16.gmra.mxu0 %v891
      %v1795 = vpop.f32.mrf.mxu0
      %v1796 = vadd.f32 %v1492, %v1795
      %v1797 = vpop.f32.mrf.mxu0
      %v1798 = vpop.f32.mrf.mxu0
      %v1799 = vadd.f32 %v1495, %v1798
      %v1800 = vpop.f32.mrf.mxu0
      %1801 = vmatprep.mubr.bf16.mxu0 %v896
      %1802 = vmatmul.mubr.bf16.gmra.mxu0 %v895
      %v1803 = vpop.f32.mrf.mxu0
      %v1804 = vadd.f32 %v1500, %v1803
      %v1805 = vpop.f32.mrf.mxu0
      %v1806 = vpop.f32.mrf.mxu0
      %v1807 = vadd.f32 %v1503, %v1806
      %v1808 = vpop.f32.mrf.mxu0
      %1809 = vmatprep.mubr.bf16.mxu0 %v900
      %1810 = vmatmul.mubr.bf16.gmra.mxu0 %v899
      %v1811 = vpop.f32.mrf.mxu0
      %v1812 = vadd.f32 %v1508, %v1811
      %v1813 = vpop.f32.mrf.mxu0
      %v1814 = vpop.f32.mrf.mxu0
      %v1815 = vadd.f32 %v1511, %v1814
      %v1816 = vpop.f32.mrf.mxu0
      %1817 = vmatprep.mubr.bf16.mxu0 %v904
      %1818 = vmatmul.mubr.bf16.gmra.mxu0 %v903
      %v1819 = vpop.f32.mrf.mxu0
      %v1820 = vadd.f32 %v1516, %v1819
      %v1821 = vpop.f32.mrf.mxu0
      %v1822 = vpop.f32.mrf.mxu0
      %v1823 = vadd.f32 %v1519, %v1822
      %v1824 = vpop.f32.mrf.mxu0
      %1825 = vmatprep.mubr.bf16.mxu0 %v908
      %1826 = vmatmul.mubr.bf16.gmra.mxu0 %v907
      %v1827 = vpop.f32.mrf.mxu0
      %v1828 = vadd.f32 %v1524, %v1827
      %v1829 = vpop.f32.mrf.mxu0
      %v1830 = vpop.f32.mrf.mxu0
      %v1831 = vadd.f32 %v1527, %v1830
      %v1832 = vpop.f32.mrf.mxu0
      %1833 = vmatprep.mubr.bf16.mxu0 %v912
      %1834 = vmatmul.mubr.bf16.gmra.mxu0 %v911
      %v1835 = vpop.f32.mrf.mxu0
      %v1836 = vadd.f32 %v1532, %v1835
      %v1837 = vpop.f32.mrf.mxu0
      %v1838 = vpop.f32.mrf.mxu0
      %v1839 = vadd.f32 %v1535, %v1838
      %v1840 = vpop.f32.mrf.mxu0
      %1841 = vmatprep.mubr.bf16.mxu0 %v916
      %1842 = vmatmul.mubr.bf16.gmra.mxu0 %v915
      %v1843 = vpop.f32.mrf.mxu0
      %v1844 = vadd.f32 %v1540, %v1843
      %v1845 = vpop.f32.mrf.mxu0
      %v1846 = vpop.f32.mrf.mxu0
      %v1847 = vadd.f32 %v1543, %v1846
      %v1848 = vpop.f32.mrf.mxu0
      %1849 = vmatprep.mubr.bf16.mxu0 %v920
      %1850 = vmatmul.mubr.bf16.gmra.mxu0 %v919
      %v1851 = vpop.f32.mrf.mxu0
      %v1852 = vadd.f32 %v1548, %v1851
      %v1853 = vpop.f32.mrf.mxu0
      %v1854 = vpop.f32.mrf.mxu0
      %v1855 = vpop.f32.mrf.mxu0
      %1856 = vdwg.mxu0
      %v1857 = vmax.f32 %v1588, 0.0
      %v1858 = vmax.f32 %v1591, 0.0
      %v1859 = vmax.f32 %v1596, 0.0
      %v1860 = vmax.f32 %v1599, 0.0
      %v1861 = vmax.f32 %v1604, 0.0
      %v1862 = vmax.f32 %v1607, 0.0
      %v1863 = vmax.f32 %v1612, 0.0
      %v1864 = vmax.f32 %v1615, 0.0
      %v1865 = vmax.f32 %v1620, 0.0
      %v1866 = vmax.f32 %v1623, 0.0
      %v1867 = vmax.f32 %v1628, 0.0
      %v1868 = vmax.f32 %v1631, 0.0
      %v1869 = vmax.f32 %v1636, 0.0
      %v1870 = vmax.f32 %v1639, 0.0
      %v1871 = vmax.f32 %v1644, 0.0
      %v1872 = vmax.f32 %v1647, 0.0
      %v1873 = vmax.f32 %v1652, 0.0
      %v1874 = vmax.f32 %v1655, 0.0
      %v1875 = vmax.f32 %v1660, 0.0
      %v1876 = vmax.f32 %v1663, 0.0
      %v1877 = vmax.f32 %v1668, 0.0
      %v1878 = vmax.f32 %v1671, 0.0
      %v1879 = vmax.f32 %v1676, 0.0
      %v1880 = vmax.f32 %v1679, 0.0
      %v1881 = vmax.f32 %v1684, 0.0
      %v1882 = vmax.f32 %v1687, 0.0
      %v1883 = vmax.f32 %v1692, 0.0
      %v1884 = vmax.f32 %v1695, 0.0
      %v1885 = vmax.f32 %v1700, 0.0
      %v1886 = vmax.f32 %v1703, 0.0
      %v1887 = vmax.f32 %v1708, 0.0
      %v1888 = vmax.f32 %v1711, 0.0
      %v1889 = vmax.f32 %v1716, 0.0
      %v1890 = vmax.f32 %v1719, 0.0
      %v1891 = vmax.f32 %v1724, 0.0
      %v1892 = vmax.f32 %v1727, 0.0
      %v1893 = vmax.f32 %v1732, 0.0
      %v1894 = vmax.f32 %v1735, 0.0
      %v1895 = vmax.f32 %v1740, 0.0
      %v1896 = vmax.f32 %v1743, 0.0
      %v1897 = vmax.f32 %v1748, 0.0
      %v1898 = vmax.f32 %v1751, 0.0
      %v1899 = vmax.f32 %v1756, 0.0
      %v1900 = vmax.f32 %v1759, 0.0
      %v1901 = vmax.f32 %v1764, 0.0
      %v1902 = vmax.f32 %v1767, 0.0
      %v1903 = vmax.f32 %v1772, 0.0
      %v1904 = vmax.f32 %v1775, 0.0
      %v1905 = vmax.f32 %v1780, 0.0
      %v1906 = vmax.f32 %v1783, 0.0
      %v1907 = vmax.f32 %v1788, 0.0
      %v1908 = vmax.f32 %v1791, 0.0
      %v1909 = vmax.f32 %v1796, 0.0
      %v1910 = vmax.f32 %v1799, 0.0
      %v1911 = vmax.f32 %v1804, 0.0
      %v1912 = vmax.f32 %v1807, 0.0
      %v1913 = vmax.f32 %v1812, 0.0
      %v1914 = vmax.f32 %v1815, 0.0
      %v1915 = vmax.f32 %v1820, 0.0
      %v1916 = vmax.f32 %v1823, 0.0
      %v1917 = vmax.f32 %v1828, 0.0
      %v1918 = vmax.f32 %v1831, 0.0
      %v1919 = vmax.f32 %v1836, 0.0
      %v1920 = vmax.f32 %v1839, 0.0
      %v1921 = vmax.f32 %v1844, 0.0
      %v1922 = vmax.f32 %v1847, 0.0
      %v1923 = vmax.f32 %v1852, 0.0
      %v1924 = vpack.c.bf16 %v1858, %v1857
      %v1925 = vpack.c.bf16 %v1860, %v1859
      %v1926 = vpack.c.bf16 %v1862, %v1861
      %v1927 = vpack.c.bf16 %v1864, %v1863
      %v1928 = vpack.c.bf16 %v1866, %v1865
      %v1929 = vpack.c.bf16 %v1868, %v1867
      %v1930 = vpack.c.bf16 %v1870, %v1869
      %v1931 = vpack.c.bf16 %v1872, %v1871
      %v1932 = vpack.c.bf16 %v1874, %v1873
      %v1933 = vpack.c.bf16 %v1876, %v1875
      %v1934 = vpack.c.bf16 %v1878, %v1877
      %v1935 = vpack.c.bf16 %v1880, %v1879
      %v1936 = vpack.c.bf16 %v1882, %v1881
      %v1937 = vpack.c.bf16 %v1884, %v1883
      %v1938 = vpack.c.bf16 %v1886, %v1885
      %v1939 = vpack.c.bf16 %v1888, %v1887
      %v1940 = vpack.c.bf16 %v1890, %v1889
      %v1941 = vpack.c.bf16 %v1892, %v1891
      %v1942 = vpack.c.bf16 %v1894, %v1893
      %v1943 = vpack.c.bf16 %v1896, %v1895
      %v1944 = vpack.c.bf16 %v1898, %v1897
      %v1945 = vpack.c.bf16 %v1900, %v1899
      %v1946 = vpack.c.bf16 %v1902, %v1901
      %v1947 = vpack.c.bf16 %v1904, %v1903
      %v1948 = vpack.c.bf16 %v1906, %v1905
      %v1949 = vpack.c.bf16 %v1908, %v1907
      %v1950 = vpack.c.bf16 %v1910, %v1909
      %v1951 = vpack.c.bf16 %v1912, %v1911
      %v1952 = vpack.c.bf16 %v1914, %v1913
      %v1953 = vpack.c.bf16 %v1916, %v1915
      %v1954 = vpack.c.bf16 %v1918, %v1917
      %v1955 = vpack.c.bf16 %v1920, %v1919
      %v1956 = vpack.c.bf16 %v1922, %v1921
      %v1957 = vpack.c.bf16 %v1923, %v1923
      %v1992 = vunpack.c.l.b16 %v1924
      %v1993 = vunpack.c.h.b16 %v1924
      %v1994 = vunpack.c.l.b16 %v1925
      %v1995 = vunpack.c.h.b16 %v1925
      %v1996 = vunpack.c.l.b16 %v1926
      %v1997 = vunpack.c.h.b16 %v1926
      %v1998 = vunpack.c.l.b16 %v1927
      %v1999 = vunpack.c.h.b16 %v1927
      %v2000 = vunpack.c.l.b16 %v1928
      %v2001 = vunpack.c.h.b16 %v1928
      %v2002 = vunpack.c.l.b16 %v1929
      %v2003 = vunpack.c.h.b16 %v1929
      %v2004 = vunpack.c.l.b16 %v1930
      %v2005 = vunpack.c.h.b16 %v1930
      %v2006 = vunpack.c.l.b16 %v1931
      %v2007 = vunpack.c.h.b16 %v1931
      %v2008 = vunpack.c.l.b16 %v1932
      %v2009 = vunpack.c.h.b16 %v1932
      %v2010 = vunpack.c.l.b16 %v1933
      %v2011 = vunpack.c.h.b16 %v1933
      %v2012 = vunpack.c.l.b16 %v1934
      %v2013 = vunpack.c.h.b16 %v1934
      %v2014 = vunpack.c.l.b16 %v1935
      %v2015 = vunpack.c.h.b16 %v1935
      %v2016 = vunpack.c.l.b16 %v1936
      %v2017 = vunpack.c.h.b16 %v1936
      %v2018 = vunpack.c.l.b16 %v1937
      %v2019 = vunpack.c.h.b16 %v1937
      %v2020 = vunpack.c.l.b16 %v1938
      %v2021 = vunpack.c.h.b16 %v1938
      %v2022 = vunpack.c.l.b16 %v1939
      %v2023 = vunpack.c.h.b16 %v1939
      %v2024 = vunpack.c.l.b16 %v1940
      %v2025 = vunpack.c.h.b16 %v1940
      %v2026 = vunpack.c.l.b16 %v1941
      %v2027 = vunpack.c.h.b16 %v1941
      %v2028 = vunpack.c.l.b16 %v1942
      %v2029 = vunpack.c.h.b16 %v1942
      %v2030 = vunpack.c.l.b16 %v1943
      %v2031 = vunpack.c.h.b16 %v1943
      %v2032 = vunpack.c.l.b16 %v1944
      %v2033 = vunpack.c.h.b16 %v1944
      %v2034 = vunpack.c.l.b16 %v1945
      %v2035 = vunpack.c.h.b16 %v1945
      %v2036 = vunpack.c.l.b16 %v1946
      %v2037 = vunpack.c.h.b16 %v1946
      %v2038 = vunpack.c.l.b16 %v1947
      %v2039 = vunpack.c.h.b16 %v1947
      %v2040 = vunpack.c.l.b16 %v1948
      %v2041 = vunpack.c.h.b16 %v1948
      %v2042 = vunpack.c.l.b16 %v1949
      %v2043 = vunpack.c.h.b16 %v1949
      %v2044 = vunpack.c.l.b16 %v1950
      %v2045 = vunpack.c.h.b16 %v1950
      %v2046 = vunpack.c.l.b16 %v1951
      %v2047 = vunpack.c.h.b16 %v1951
      %v2048 = vunpack.c.l.b16 %v1952
      %v2049 = vunpack.c.h.b16 %v1952
      %v2050 = vunpack.c.l.b16 %v1953
      %v2051 = vunpack.c.h.b16 %v1953
      %v2052 = vunpack.c.l.b16 %v1954
      %v2053 = vunpack.c.h.b16 %v1954
      %v2054 = vunpack.c.l.b16 %v1955
      %v2055 = vunpack.c.h.b16 %v1955
      %v2056 = vunpack.c.l.b16 %v1956
      %v2057 = vunpack.c.h.b16 %v1956
      %v2058 = vunpack.c.l.b16 %v1957
      %v2059 = vpack.c.b16 %v1992, %v1992
      %v2060 = vpack.c.b16 %v1993, %v1993
      %v2061 = vpack.c.b16 %v1994, %v1994
      %v2062 = vpack.c.b16 %v1995, %v1995
      %v2063 = vpack.c.b16 %v1996, %v1996
      %v2064 = vpack.c.b16 %v1997, %v1997
      %v2065 = vpack.c.b16 %v1998, %v1998
      %v2066 = vpack.c.b16 %v1999, %v1999
      %v2067 = vpack.c.b16 %v2000, %v2000
      %v2068 = vpack.c.b16 %v2001, %v2001
      %v2069 = vpack.c.b16 %v2002, %v2002
      %v2070 = vpack.c.b16 %v2003, %v2003
      %v2071 = vpack.c.b16 %v2004, %v2004
      %v2072 = vpack.c.b16 %v2005, %v2005
      %v2073 = vpack.c.b16 %v2006, %v2006
      %v2074 = vpack.c.b16 %v2007, %v2007
      %v2075 = vpack.c.b16 %v2008, %v2008
      %v2076 = vpack.c.b16 %v2009, %v2009
      %v2077 = vpack.c.b16 %v2010, %v2010
      %v2078 = vpack.c.b16 %v2011, %v2011
      %v2079 = vpack.c.b16 %v2012, %v2012
      %v2080 = vpack.c.b16 %v2013, %v2013
      %v2081 = vpack.c.b16 %v2014, %v2014
      %v2082 = vpack.c.b16 %v2015, %v2015
      %v2083 = vpack.c.b16 %v2016, %v2016
      %v2084 = vpack.c.b16 %v2017, %v2017
      %v2085 = vpack.c.b16 %v2018, %v2018
      %v2086 = vpack.c.b16 %v2019, %v2019
      %v2087 = vpack.c.b16 %v2020, %v2020
      %v2088 = vpack.c.b16 %v2021, %v2021
      %v2089 = vpack.c.b16 %v2022, %v2022
      %v2090 = vpack.c.b16 %v2023, %v2023
      %v2091 = vpack.c.b16 %v2024, %v2024
      %v2092 = vpack.c.b16 %v2025, %v2025
      %v2093 = vpack.c.b16 %v2026, %v2026
      %v2094 = vpack.c.b16 %v2027, %v2027
      %v2095 = vpack.c.b16 %v2028, %v2028
      %v2096 = vpack.c.b16 %v2029, %v2029
      %v2097 = vpack.c.b16 %v2030, %v2030
      %v2098 = vpack.c.b16 %v2031, %v2031
      %v2099 = vpack.c.b16 %v2032, %v2032
      %v2100 = vpack.c.b16 %v2033, %v2033
      %v2101 = vpack.c.b16 %v2034, %v2034
      %v2102 = vpack.c.b16 %v2035, %v2035
      %v2103 = vpack.c.b16 %v2036, %v2036
      %v2104 = vpack.c.b16 %v2037, %v2037
      %v2105 = vpack.c.b16 %v2038, %v2038
      %v2106 = vpack.c.b16 %v2039, %v2039
      %v2107 = vpack.c.b16 %v2040, %v2040
      %v2108 = vpack.c.b16 %v2041, %v2041
      %v2109 = vpack.c.b16 %v2042, %v2042
      %v2110 = vpack.c.b16 %v2043, %v2043
      %v2111 = vpack.c.b16 %v2044, %v2044
      %v2112 = vpack.c.b16 %v2045, %v2045
      %v2113 = vpack.c.b16 %v2046, %v2046
      %v2114 = vpack.c.b16 %v2047, %v2047
      %v2115 = vpack.c.b16 %v2048, %v2048
      %v2116 = vpack.c.b16 %v2049, %v2049
      %v2117 = vpack.c.b16 %v2050, %v2050
      %v2118 = vpack.c.b16 %v2051, %v2051
      %v2119 = vpack.c.b16 %v2052, %v2052
      %v2120 = vpack.c.b16 %v2053, %v2053
      %v2121 = vpack.c.b16 %v2054, %v2054
      %v2122 = vpack.c.b16 %v2055, %v2055
      %v2123 = vpack.c.b16 %v2056, %v2056
      %v2124 = vpack.c.b16 %v2057, %v2057
      %v2125 = vpack.c.b16 %v2058, %v2058
      %vm2193 = vcmask 519168
      %2194 = vst.msk [vmem:[%s175] sm:$0xf] %vm2193, %v2059
      %2195 = vst.msk [vmem:[%s175 + $0x4] sm:$0xf] %vm2193, %v2060
      %2196 = vst.msk [vmem:[%s175 + $0x8] sm:$0xf] %vm2193, %v2061
      %2197 = vst.msk [vmem:[%s175 + $0xc] sm:$0xf] %vm2193, %v2062
      %2198 = vst.msk [vmem:[%s175 + $0x10] sm:$0xf] %vm2193, %v2063
      %2199 = vst.msk [vmem:[%s175 + $0x14] sm:$0xf] %vm2193, %v2064
      %2200 = vst.msk [vmem:[%s175 + $0x18] sm:$0xf] %vm2193, %v2065
      %2201 = vst.msk [vmem:[%s175 + $0x1c] sm:$0xf] %vm2193, %v2066
      %2202 = vst.msk [vmem:[%s175 + $0x20] sm:$0xf] %vm2193, %v2067
      %2203 = vst.msk [vmem:[%s175 + $0x24] sm:$0xf] %vm2193, %v2068
      %2204 = vst.msk [vmem:[%s175 + $0x28] sm:$0xf] %vm2193, %v2069
      %2205 = vst.msk [vmem:[%s175 + $0x2c] sm:$0xf] %vm2193, %v2070
      %2206 = vst.msk [vmem:[%s175 + $0x30] sm:$0xf] %vm2193, %v2071
      %2207 = vst.msk [vmem:[%s175 + $0x34] sm:$0xf] %vm2193, %v2072
      %2208 = vst.msk [vmem:[%s175 + $0x38] sm:$0xf] %vm2193, %v2073
      %2209 = vst.msk [vmem:[%s175 + $0x3c] sm:$0xf] %vm2193, %v2074
      %2210 = vst.msk [vmem:[%s175 + $0x40] sm:$0xf] %vm2193, %v2075
      %2211 = vst.msk [vmem:[%s175 + $0x44] sm:$0xf] %vm2193, %v2076
      %2212 = vst.msk [vmem:[%s175 + $0x48] sm:$0xf] %vm2193, %v2077
      %2213 = vst.msk [vmem:[%s175 + $0x4c] sm:$0xf] %vm2193, %v2078
      %2214 = vst.msk [vmem:[%s175 + $0x50] sm:$0xf] %vm2193, %v2079
      %2215 = vst.msk [vmem:[%s175 + $0x54] sm:$0xf] %vm2193, %v2080
      %2216 = vst.msk [vmem:[%s175 + $0x58] sm:$0xf] %vm2193, %v2081
      %2217 = vst.msk [vmem:[%s175 + $0x5c] sm:$0xf] %vm2193, %v2082
      %2218 = vst.msk [vmem:[%s175 + $0x60] sm:$0xf] %vm2193, %v2083
      %2219 = vst.msk [vmem:[%s175 + $0x64] sm:$0xf] %vm2193, %v2084
      %2220 = vst.msk [vmem:[%s175 + $0x68] sm:$0xf] %vm2193, %v2085
      %2221 = vst.msk [vmem:[%s175 + $0x6c] sm:$0xf] %vm2193, %v2086
      %2222 = vst.msk [vmem:[%s175 + $0x70] sm:$0xf] %vm2193, %v2087
      %2223 = vst.msk [vmem:[%s175 + $0x74] sm:$0xf] %vm2193, %v2088
      %2224 = vst.msk [vmem:[%s175 + $0x78] sm:$0xf] %vm2193, %v2089
      %2225 = vst.msk [vmem:[%s175 + $0x7c] sm:$0xf] %vm2193, %v2090
      %2226 = vst.msk [vmem:[%s175 + $0x80] sm:$0xf] %vm2193, %v2091
      %2227 = vst.msk [vmem:[%s175 + $0x84] sm:$0xf] %vm2193, %v2092
      %2228 = vst.msk [vmem:[%s175 + $0x88] sm:$0xf] %vm2193, %v2093
      %2229 = vst.msk [vmem:[%s175 + $0x8c] sm:$0xf] %vm2193, %v2094
      %2230 = vst.msk [vmem:[%s175 + $0x90] sm:$0xf] %vm2193, %v2095
      %2231 = vst.msk [vmem:[%s175 + $0x94] sm:$0xf] %vm2193, %v2096
      %2232 = vst.msk [vmem:[%s175 + $0x98] sm:$0xf] %vm2193, %v2097
      %2233 = vst.msk [vmem:[%s175 + $0x9c] sm:$0xf] %vm2193, %v2098
      %2234 = vst.msk [vmem:[%s175 + $0xa0] sm:$0xf] %vm2193, %v2099
      %2235 = vst.msk [vmem:[%s175 + $0xa4] sm:$0xf] %vm2193, %v2100
      %2236 = vst.msk [vmem:[%s175 + $0xa8] sm:$0xf] %vm2193, %v2101
      %2237 = vst.msk [vmem:[%s175 + $0xac] sm:$0xf] %vm2193, %v2102
      %2238 = vst.msk [vmem:[%s175 + $0xb0] sm:$0xf] %vm2193, %v2103
      %2239 = vst.msk [vmem:[%s175 + $0xb4] sm:$0xf] %vm2193, %v2104
      %2240 = vst.msk [vmem:[%s175 + $0xb8] sm:$0xf] %vm2193, %v2105
      %2241 = vst.msk [vmem:[%s175 + $0xbc] sm:$0xf] %vm2193, %v2106
      %2242 = vst.msk [vmem:[%s175 + $0xc0] sm:$0xf] %vm2193, %v2107
      %2243 = vst.msk [vmem:[%s175 + $0xc4] sm:$0xf] %vm2193, %v2108
      %2244 = vst.msk [vmem:[%s175 + $0xc8] sm:$0xf] %vm2193, %v2109
      %2245 = vst.msk [vmem:[%s175 + $0xcc] sm:$0xf] %vm2193, %v2110
      %2246 = vst.msk [vmem:[%s175 + $0xd0] sm:$0xf] %vm2193, %v2111
      %2247 = vst.msk [vmem:[%s175 + $0xd4] sm:$0xf] %vm2193, %v2112
      %2248 = vst.msk [vmem:[%s175 + $0xd8] sm:$0xf] %vm2193, %v2113
      %2249 = vst.msk [vmem:[%s175 + $0xdc] sm:$0xf] %vm2193, %v2114
      %2250 = vst.msk [vmem:[%s175 + $0xe0] sm:$0xf] %vm2193, %v2115
      %2251 = vst.msk [vmem:[%s175 + $0xe4] sm:$0xf] %vm2193, %v2116
      %2252 = vst.msk [vmem:[%s175 + $0xe8] sm:$0xf] %vm2193, %v2117
      %2253 = vst.msk [vmem:[%s175 + $0xec] sm:$0xf] %vm2193, %v2118
      %2254 = vst.msk [vmem:[%s175 + $0xf0] sm:$0xf] %vm2193, %v2119
      %2255 = vst.msk [vmem:[%s175 + $0xf4] sm:$0xf] %vm2193, %v2120
      %2256 = vst.msk [vmem:[%s175 + $0xf8] sm:$0xf] %vm2193, %v2121
      %2257 = vst.msk [vmem:[%s175 + $0xfc] sm:$0xf] %vm2193, %v2122
      %2258 = vst.msk [vmem:[%s175 + $0x100] sm:$0xf] %vm2193, %v2123
      %2259 = vst.msk [vmem:[%s175 + $0x104] sm:$0xf] %vm2193, %v2124
      %2260 = vst.msk [vmem:[%s175 + $0x108] sm:$0xf] %vm2193, %v2125
      %s2261 = smul.u32 67, %s14
      %p2262 = scmp.lt.s32.totalorder %s2261, 133
      %s2263 = scalar_select %p2262, %s2261, 133
      %s2264 = smul.addr %s2263, 4
      %s2265 = scalar_lea.vmem %s3, %s2264
      // Predicated region
      $region33: #{dqn_forward.6} parent=31 // pred_check
        %p2266 = pneg %p100
      $region34: #{dqn_forward.6} parent=31 // pred_check_branch
        %2268 = sbr.rel (%p2266) target = $region36
      $region35: #{dqn_forward.6} parent=31 // pred_region
        %s2269 = smul.u32 67, %s14
      $region36: #{dqn_forward.6} parent=31 // pred_fallthru
        _
    $region32: #{dqn_forward.6} parent=5 // pred_fallthru
      _
    %p2270 = scmp.le.s32.totalorder 2, %s9
    // Predicated region
    $region37: #{dqn_forward.6} parent=5 // pred_check
      %p2271 = pneg %p2270
    $region38: #{dqn_forward.6} parent=5 // pred_check_branch
      %2273 = sbr.rel (%p2271) target = $region40
    $region39: #{dqn_forward.6} parent=5 // pred_region
      %s2274 = ssub.s32 %s9, 2
      // Predicated region
      $region41: #{dqn_forward.6} parent=39 // pred_check
        %p2275 = pneg %p106
      $region42: #{dqn_forward.6} parent=39 // pred_check_branch
        %2277 = sbr.rel (%p2275) target = $region44
      $region43: #{dqn_forward.6} parent=39 // pred_region
        %s2278 = smul.u32 67, %s15
        %p2279 = scmp.lt.s32.totalorder %s2278, 133
        %s2280 = scalar_select %p2279, %s2278, 133
        %s2281 = smul.addr %s2280, 4
        %s2282 = scalar_lea.vmem %s3, %s2281
      $region44: #{dqn_forward.6} parent=39 // pred_fallthru
        _
    $region40: #{dqn_forward.6} parent=5 // pred_fallthru
      _
  $region6: #{dqn_forward.6} parent=0 // loop_footer
    %s13 = sadd.s32 1, %s9
  $region7: #{dqn_forward.6} parent=0 // loop_footer_branch
    %8 = sbr.rel target = $region3
  $region8: #{dqn_forward.6} parent=0 // loop_exit
    _

// kernel: dqn_forward.7
$region0: #{dqn_forward.7}
  #allocation0 [shape = 'u32[]', space=smem, size = 0x4, offset = 0x4, fixed_abs, tag = 'smem constant byte address 0x4 - core index']
  #allocation1 [shape = 'u32[144,128]{1,0:T(1,128)}', space=vmem, size = 0x12000, scoped, tag = 'internal scratch']
  %s0 = inlined_call_operand.vmem [shape: bf16[256,640], index: 0, kind: input, shape index: {}]
  %s1 = inlined_call_operand.vmem [shape: bf16[640,128], index: 1, kind: input, shape index: {}]
  %s2 = inlined_call_operand.vmem [shape: f32[1,128], index: 2, kind: input, shape index: {}]
  %s3 = inlined_call_operand.vmem [shape: bf16[256,128], index: 3, kind: output, shape index: {}]
  %s4 = sld [smem:[#allocation0]]
  $region45: #{dqn_forward.7} parent=0
    _
  %s6 = ssub.s32 1, %s4
  %s7 = scalar_select 0, %s6, %s4
  loop: start=0, step=1, limit=4
  $region2: #{dqn_forward.7} parent=0 // loop_pre_header
    _
  $region3: #{dqn_forward.7} parent=0 // loop_header
    %s9 = sphi 0, %s13
    %p10 = scmp.ge.s32.totalorder %s9, 4
    %s19 = sphi 0, %s21
    %s22 = sphi 0, %s19
    %s23 = sphi 0, %s22
    %s39 = sphi 0, %s23
    %s43 = sphi 0, %s43
    %s45 = sphi 0, %s43
    %s46 = sphi 0, %s45
    %s60 = sphi 0, %s46
    %s64 = sphi 0, %s64
    %s66 = sphi 0, %s64
    %s67 = sphi 0, %s66
    %s81 = sphi 0, %s67
    %s87 = sphi 0, %s89
    %s90 = sphi 0, %s87
    %s91 = sphi 0, %s90
    %s107 = sphi 0, %s91
  $region4: #{dqn_forward.7} parent=0 // loop_header_branch
    %12 = sbr.rel (%p10) target = $region8
  $region5: #{dqn_forward.7} parent=0 // loop_body
    %s14 = ssub.s32 %s9, 1
    %s15 = ssub.s32 %s9, 2
    %s16 = sadd.s32 %s9, 1
    %s17 = ssub.s32 %s9, %s16
    %p18 = scmp.eq.s32.totalorder %s17, 0
    %s20 = sadd.s32 %s19, 1
    %s21 = scalar_select %p18, %s19, %s20
    %p24 = pneg %p18
    %p25 = scmp.eq.s32.totalorder %s9, 1
    %p26 = por %p24, %p25
    %p27 = scmp.ne.s32.totalorder %s19, %s22
    %p28 = scmp.eq.s32.totalorder %s9, 0
    %p29 = por %p27, %p28
    %p30 = scmp.ne.s32.totalorder %s19, %s22
    %p31 = scmp.eq.s32.totalorder %s14, 1
    %p32 = por %p30, %p31
    %p33 = scmp.ne.s32.totalorder %s22, %s23
    %p34 = scmp.eq.s32.totalorder %s14, 0
    %p35 = por %p33, %p34
    %p36 = scmp.ne.s32.totalorder %s22, %s23
    %p37 = scmp.eq.s32.totalorder %s15, 1
    %p38 = por %p36, %p37
    %p40 = scmp.ne.s32.totalorder %s23, %s39
    %p41 = scmp.eq.s32.totalorder %s15, 0
    %p42 = por %p40, %p41
    %s44 = sadd.s32 %s43, 1
    %p47 = scmp.eq.s32.totalorder %s9, 1
    %p48 = scmp.ne.s32.totalorder %s43, %s45
    %p49 = scmp.eq.s32.totalorder %s9, 0
    %p50 = por %p48, %p49
    %p51 = scmp.ne.s32.totalorder %s43, %s45
    %p52 = scmp.eq.s32.totalorder %s14, 1
    %p53 = por %p51, %p52
    %p54 = scmp.ne.s32.totalorder %s45, %s46
    %p55 = scmp.eq.s32.totalorder %s14, 0
    %p56 = por %p54, %p55
    %p57 = scmp.ne.s32.totalorder %s45, %s46
    %p58 = scmp.eq.s32.totalorder %s15, 1
    %p59 = por %p57, %p58
    %p61 = scmp.ne.s32.totalorder %s46, %s60
    %p62 = scmp.eq.s32.totalorder %s15, 0
    %p63 = por %p61, %p62
    %s65 = sadd.s32 %s64, 1
    %p68 = scmp.eq.s32.totalorder %s9, 1
    %p69 = scmp.ne.s32.totalorder %s64, %s66
    %p70 = scmp.eq.s32.totalorder %s9, 0
    %p71 = por %p69, %p70
    %p72 = scmp.ne.s32.totalorder %s64, %s66
    %p73 = scmp.eq.s32.totalorder %s14, 1
    %p74 = por %p72, %p73
    %p75 = scmp.ne.s32.totalorder %s66, %s67
    %p76 = scmp.eq.s32.totalorder %s14, 0
    %p77 = por %p75, %p76
    %p78 = scmp.ne.s32.totalorder %s66, %s67
    %p79 = scmp.eq.s32.totalorder %s15, 1
    %p80 = por %p78, %p79
    %p82 = scmp.ne.s32.totalorder %s67, %s81
    %p83 = scmp.eq.s32.totalorder %s15, 0
    %p84 = por %p82, %p83
    %s85 = ssub.s32 %s9, %s16
    %p86 = scmp.eq.s32.totalorder %s85, 0
    %s88 = sadd.s32 %s87, 1
    %s89 = scalar_select %p86, %s87, %s88
    %p92 = pneg %p86
    %p93 = scmp.eq.s32.totalorder %s9, 1
    %p94 = por %p92, %p93
    %p95 = scmp.ne.s32.totalorder %s87, %s90
    %p96 = scmp.eq.s32.totalorder %s9, 0
    %p97 = por %p95, %p96
    %p98 = scmp.ne.s32.totalorder %s87, %s90
    %p99 = scmp.eq.s32.totalorder %s14, 1
    %p100 = por %p98, %p99
    %p101 = scmp.ne.s32.totalorder %s90, %s91
    %p102 = scmp.eq.s32.totalorder %s14, 0
    %p103 = por %p101, %p102
    %p104 = scmp.ne.s32.totalorder %s90, %s91
    %p105 = scmp.eq.s32.totalorder %s15, 1
    %p106 = por %p104, %p105
    %p108 = scmp.ne.s32.totalorder %s91, %s107
    %p109 = scmp.eq.s32.totalorder %s15, 0
    %p110 = por %p108, %p109
    %p111 = scmp.le.s32.totalorder 1, %s9
    %p112 = scmp.lt.s32.totalorder %s9, 3
    %p113 = pnand %p111, %p112
    %p114 = pneg %p113
    // Predicated region
    $region9: #{dqn_forward.7} parent=5 // pred_check
      _
    $region10: #{dqn_forward.7} parent=5 // pred_check_branch
      %116 = sbr.rel (%p113) target = $region12
    $region11: #{dqn_forward.7} parent=5 // pred_region
      %s117 = ssub.s32 %s9, 1
      // Predicated region
      $region13: #{dqn_forward.7} parent=11 // pred_check
        %p118 = pneg %p56
      $region14: #{dqn_forward.7} parent=11 // pred_check_branch
        %120 = sbr.rel (%p118) target = $region16
      $region15: #{dqn_forward.7} parent=11 // pred_region
        _
      $region16: #{dqn_forward.7} parent=11 // pred_fallthru
        _
      // Predicated region
      $region17: #{dqn_forward.7} parent=11 // pred_check
        %p121 = pneg %p77
      $region18: #{dqn_forward.7} parent=11 // pred_check_branch
        %123 = sbr.rel (%p121) target = $region20
      $region19: #{dqn_forward.7} parent=11 // pred_region
        _
      $region20: #{dqn_forward.7} parent=11 // pred_fallthru
        _
    $region12: #{dqn_forward.7} parent=5 // pred_fallthru
      _
    %p124 = scmp.lt.s32.totalorder %s9, 2
    // Predicated region
    $region21: #{dqn_forward.7} parent=5 // pred_check
      %p125 = pneg %p124
    $region22: #{dqn_forward.7} parent=5 // pred_check_branch
      %127 = sbr.rel (%p125) target = $region24
    $region23: #{dqn_forward.7} parent=5 // pred_region
      // Predicated region
      $region25: #{dqn_forward.7} parent=23 // pred_check
        %p128 = pneg %p29
      $region26: #{dqn_forward.7} parent=23 // pred_check_branch
        %130 = sbr.rel (%p128) target = $region28
      $region27: #{dqn_forward.7} parent=23 // pred_region
        %s131 = smul.u32 16, %s9
        %p132 = scmp.lt.s32.totalorder %s131, 31
        %s133 = scalar_select %p132, %s131, 31
        %s134 = smul.addr %s133, 5
        %s135 = smul.addr %s134, 4
        %s136 = scalar_lea.vmem %s0, %s135
        %s137 = smul.u32 16, %s9
      $region28: #{dqn_forward.7} parent=23 // pred_fallthru
        _
    $region24: #{dqn_forward.7} parent=5 // pred_fallthru
      _
    %p138 = scmp.le.s32.totalorder 1, %s9
    %p139 = scmp.lt.s32.totalorder %s9, 3
    %p140 = pnand %p138, %p139
    %p141 = pneg %p140
    // Predicated region
    $region29: #{dqn_forward.7} parent=5 // pred_check
      _
    $region30: #{dqn_forward.7} parent=5 // pred_check_branch
      %143 = sbr.rel (%p140) target = $region32
    $region31: #{dqn_forward.7} parent=5 // pred_region
      %s144 = ssub.s32 %s9, 1
      %s145 = smul.u32 16, %s14
      %p146 = scmp.lt.s32.totalorder %s145, 31
      %s147 = scalar_select %p146, %s145, 31
      %s148 = smul.addr %s147, 5
      %s149 = smul.addr %s148, 4
      %s150 = scalar_lea.vmem %s0, %s149
      %p151 = pneg %p35
      %p152 = pneg %p32
      %p153 = pneg %p56
      %p154 = pneg %p53
      %p155 = pneg %p77
      %p156 = pneg %p74
      %p157 = pneg %p103
      %p158 = pneg %p100
      %s159 = smul.u32 16, %s14
      %p160 = scmp.lt.s32.totalorder %s159, 31
      %s161 = scalar_select %p160, %s159, 31
      %s162 = smul.addr %s161, 4
      %s163 = scalar_lea.vmem %s3, %s162
      %s164 = smul.u32 16, %s14
      %p165 = scmp.lt.s32.totalorder %s164, 31
      %s166 = scalar_select %p165, %s164, 31
      %s167 = smul.addr %s166, 5
      %s168 = smul.addr %s167, 4
      %s169 = scalar_lea.vmem %s0, %s168
      %s170 = smul.u32 16, %s14
      %s171 = smul.u32 16, %s14
      %p172 = scmp.lt.s32.totalorder %s171, 31
      %s173 = scalar_select %p172, %s171, 31
      %s174 = smul.addr %s173, 4
      %s175 = scalar_lea.vmem %s3, %s174
      %s176 = smul.u32 16, %s14
      %v178 = vld [vmem:[%s169] sm:$0xff]
      %v179 = vld [vmem:[%s169 + $0x8] sm:$0xff]
      %v180 = vld [vmem:[%s169 + $0x10] sm:$0xf]
      %v181 = vld [vmem:[%s169 + $0x14] sm:$0xff]
      %v182 = vld [vmem:[%s169 + $0x1c] sm:$0xff]
      %v183 = vld [vmem:[%s169 + $0x24] sm:$0xf]
      %v184 = vld [vmem:[%s169 + $0x28] sm:$0xff]
      %v185 = vld [vmem:[%s169 + $0x30] sm:$0xff]
      %v186 = vld [vmem:[%s169 + $0x38] sm:$0xf]
      %v187 = vld [vmem:[%s169 + $0x3c] sm:$0xff]
      %v188 = vld [vmem:[%s169 + $0x44] sm:$0xff]
      %v189 = vld [vmem:[%s169 + $0x4c] sm:$0xf]
      %v190 = vld [vmem:[%s169 + $0x50] sm:$0xff]
      %v191 = vld [vmem:[%s169 + $0x58] sm:$0xff]
      %v192 = vld [vmem:[%s169 + $0x60] sm:$0xf]
      %v193 = vld [vmem:[%s169 + $0x64] sm:$0xff]
      %v194 = vld [vmem:[%s169 + $0x6c] sm:$0xff]
      %v195 = vld [vmem:[%s169 + $0x74] sm:$0xf]
      %v196 = vld [vmem:[%s169 + $0x78] sm:$0xff]
      %v197 = vld [vmem:[%s169 + $0x80] sm:$0xff]
      %v198 = vld [vmem:[%s169 + $0x88] sm:$0xf]
      %v199 = vld [vmem:[%s169 + $0x8c] sm:$0xff]
      %v200 = vld [vmem:[%s169 + $0x94] sm:$0xff]
      %v201 = vld [vmem:[%s169 + $0x9c] sm:$0xf]
      %v202 = vld [vmem:[%s169 + $0xa0] sm:$0xff]
      %v203 = vld [vmem:[%s169 + $0xa8] sm:$0xff]
      %v204 = vld [vmem:[%s169 + $0xb0] sm:$0xf]
      %v205 = vld [vmem:[%s169 + $0xb4] sm:$0xff]
      %v206 = vld [vmem:[%s169 + $0xbc] sm:$0xff]
      %v207 = vld [vmem:[%s169 + $0xc4] sm:$0xf]
      %v208 = vld [vmem:[%s169 + $0xc8] sm:$0xff]
      %v209 = vld [vmem:[%s169 + $0xd0] sm:$0xff]
      %v210 = vld [vmem:[%s169 + $0xd8] sm:$0xf]
      %v211 = vld [vmem:[%s169 + $0xdc] sm:$0xff]
      %v212 = vld [vmem:[%s169 + $0xe4] sm:$0xff]
      %v213 = vld [vmem:[%s169 + $0xec] sm:$0xf]
      %v214 = vld [vmem:[%s169 + $0xf0] sm:$0xff]
      %v215 = vld [vmem:[%s169 + $0xf8] sm:$0xff]
      %v216 = vld [vmem:[%s169 + $0x100] sm:$0xf]
      %v217 = vld [vmem:[%s169 + $0x104] sm:$0xff]
      %v218 = vld [vmem:[%s169 + $0x10c] sm:$0xff]
      %v219 = vld [vmem:[%s169 + $0x114] sm:$0xf]
      %v220 = vld [vmem:[%s169 + $0x118] sm:$0xff]
      %v221 = vld [vmem:[%s169 + $0x120] sm:$0xff]
      %v222 = vld [vmem:[%s169 + $0x128] sm:$0xf]
      %v223 = vld [vmem:[%s169 + $0x12c] sm:$0xff]
      %v224 = vld [vmem:[%s169 + $0x134] sm:$0xff]
      %v225 = vld [vmem:[%s169 + $0x13c] sm:$0xf]
      %v226 = vld [vmem:[%s1] sm:$0xf]
      %v227 = vld [vmem:[%s1 + $0x4] sm:$0xf]
      %v228 = vld [vmem:[%s1 + $0x8] sm:$0xf]
      %v229 = vld [vmem:[%s1 + $0xc] sm:$0xf]
      %v230 = vld [vmem:[%s1 + $0x10] sm:$0xf]
      %v231 = vld [vmem:[%s1 + $0x14] sm:$0xf]
      %v232 = vld [vmem:[%s1 + $0x18] sm:$0xf]
      %v233 = vld [vmem:[%s1 + $0x1c] sm:$0xf]
      %v234 = vld [vmem:[%s1 + $0x20] sm:$0xf]
      %v235 = vld [vmem:[%s1 + $0x24] sm:$0xf]
      %v236 = vld [vmem:[%s1 + $0x28] sm:$0xf]
      %v237 = vld [vmem:[%s1 + $0x2c] sm:$0xf]
      %v238 = vld [vmem:[%s1 + $0x30] sm:$0xf]
      %v239 = vld [vmem:[%s1 + $0x34] sm:$0xf]
      %v240 = vld [vmem:[%s1 + $0x38] sm:$0xf]
      %v241 = vld [vmem:[%s1 + $0x3c] sm:$0xf]
      %v242 = vld [vmem:[%s1 + $0x40] sm:$0xf]
      %v243 = vld [vmem:[%s1 + $0x44] sm:$0xf]
      %v244 = vld [vmem:[%s1 + $0x48] sm:$0xf]
      %v245 = vld [vmem:[%s1 + $0x4c] sm:$0xf]
      %v246 = vld [vmem:[%s1 + $0x50] sm:$0xf]
      %v247 = vld [vmem:[%s1 + $0x54] sm:$0xf]
      %v248 = vld [vmem:[%s1 + $0x58] sm:$0xf]
      %v249 = vld [vmem:[%s1 + $0x5c] sm:$0xf]
      %v250 = vld [vmem:[%s1 + $0x60] sm:$0xf]
      %v251 = vld [vmem:[%s1 + $0x64] sm:$0xf]
      %v252 = vld [vmem:[%s1 + $0x68] sm:$0xf]
      %v253 = vld [vmem:[%s1 + $0x6c] sm:$0xf]
      %v254 = vld [vmem:[%s1 + $0x70] sm:$0xf]
      %v255 = vld [vmem:[%s1 + $0x74] sm:$0xf]
      %v256 = vld [vmem:[%s1 + $0x78] sm:$0xf]
      %v257 = vld [vmem:[%s1 + $0x7c] sm:$0xf]
      %v258 = vld [vmem:[%s1 + $0x80] sm:$0xf]
      %v259 = vld [vmem:[%s1 + $0x84] sm:$0xf]
      %v260 = vld [vmem:[%s1 + $0x88] sm:$0xf]
      %v261 = vld [vmem:[%s1 + $0x8c] sm:$0xf]
      %v262 = vld [vmem:[%s1 + $0x90] sm:$0xf]
      %v263 = vld [vmem:[%s1 + $0x94] sm:$0xf]
      %v264 = vld [vmem:[%s1 + $0x98] sm:$0xf]
      %v265 = vld [vmem:[%s1 + $0x9c] sm:$0xf]
      %v266 = vld [vmem:[%s1 + $0xa0] sm:$0xf]
      %v267 = vld [vmem:[%s1 + $0xa4] sm:$0xf]
      %v268 = vld [vmem:[%s1 + $0xa8] sm:$0xf]
      %v269 = vld [vmem:[%s1 + $0xac] sm:$0xf]
      %v270 = vld [vmem:[%s1 + $0xb0] sm:$0xf]
      %v271 = vld [vmem:[%s1 + $0xb4] sm:$0xf]
      %v272 = vld [vmem:[%s1 + $0xb8] sm:$0xf]
      %v273 = vld [vmem:[%s1 + $0xbc] sm:$0xf]
      %v274 = vld [vmem:[%s1 + $0xc0] sm:$0xf]
      %v275 = vld [vmem:[%s1 + $0xc4] sm:$0xf]
      %v276 = vld [vmem:[%s1 + $0xc8] sm:$0xf]
      %v277 = vld [vmem:[%s1 + $0xcc] sm:$0xf]
      %v278 = vld [vmem:[%s1 + $0xd0] sm:$0xf]
      %v279 = vld [vmem:[%s1 + $0xd4] sm:$0xf]
      %v280 = vld [vmem:[%s1 + $0xd8] sm:$0xf]
      %v281 = vld [vmem:[%s1 + $0xdc] sm:$0xf]
      %v282 = vld [vmem:[%s1 + $0xe0] sm:$0xf]
      %v283 = vld [vmem:[%s1 + $0xe4] sm:$0xf]
      %v284 = vld [vmem:[%s1 + $0xe8] sm:$0xf]
      %v285 = vld [vmem:[%s1 + $0xec] sm:$0xf]
      %v286 = vld [vmem:[%s1 + $0xf0] sm:$0xf]
      %v287 = vld [vmem:[%s1 + $0xf4] sm:$0xf]
      %v288 = vld [vmem:[%s1 + $0xf8] sm:$0xf]
      %v289 = vld [vmem:[%s1 + $0xfc] sm:$0xf]
      %v290 = vld [vmem:[%s1 + $0x100] sm:$0xf]
      %v291 = vld [vmem:[%s1 + $0x104] sm:$0xf]
      %v292 = vld [vmem:[%s1 + $0x108] sm:$0xf]
      %v293 = vld [vmem:[%s1 + $0x10c] sm:$0xf]
      %v294 = vld [vmem:[%s1 + $0x110] sm:$0xf]
      %v295 = vld [vmem:[%s1 + $0x114] sm:$0xf]
      %v296 = vld [vmem:[%s1 + $0x118] sm:$0xf]
      %v297 = vld [vmem:[%s1 + $0x11c] sm:$0xf]
      %v298 = vld [vmem:[%s1 + $0x120] sm:$0xf]
      %v299 = vld [vmem:[%s1 + $0x124] sm:$0xf]
      %v300 = vld [vmem:[%s1 + $0x128] sm:$0xf]
      %v301 = vld [vmem:[%s1 + $0x12c] sm:$0xf]
      %v302 = vld [vmem:[%s1 + $0x130] sm:$0xf]
      %v303 = vld [vmem:[%s1 + $0x134] sm:$0xf]
      %v304 = vld [vmem:[%s1 + $0x138] sm:$0xf]
      %v305 = vld [vmem:[%s1 + $0x13c] sm:$0xf]
      %v306 = vld [vmem:[%s2] sm:$0x1]
      %v308 = vlaneseq
      %v309 = vshrl.u32 %v308, 7
      %v310 = vsub.s32 0, %v309
      %v311 = vrot.slane %v306, %v310
      %v361 = vunpack.c.l.b16 %v178
      %v362 = vunpack.c.h.b16 %v178
      %v363 = vunpack.c.l.b16 %v179
      %v364 = vunpack.c.h.b16 %v179
      %v365 = vunpack.c.l.b16 %v180
      %v366 = vunpack.c.l.b16 %v181
      %v367 = vunpack.c.h.b16 %v181
      %v368 = vunpack.c.l.b16 %v182
      %v369 = vunpack.c.h.b16 %v182
      %v370 = vunpack.c.l.b16 %v183
      %v371 = vunpack.c.l.b16 %v184
      %v372 = vunpack.c.h.b16 %v184
      %v373 = vunpack.c.l.b16 %v185
      %v374 = vunpack.c.h.b16 %v185
      %v375 = vunpack.c.l.b16 %v186
      %v376 = vunpack.c.l.b16 %v187
      %v377 = vunpack.c.h.b16 %v187
      %v378 = vunpack.c.l.b16 %v188
      %v379 = vunpack.c.h.b16 %v188
      %v380 = vunpack.c.l.b16 %v189
      %v381 = vunpack.c.l.b16 %v190
      %v382 = vunpack.c.h.b16 %v190
      %v383 = vunpack.c.l.b16 %v191
      %v384 = vunpack.c.h.b16 %v191
      %v385 = vunpack.c.l.b16 %v192
      %v386 = vunpack.c.l.b16 %v193
      %v387 = vunpack.c.h.b16 %v193
      %v388 = vunpack.c.l.b16 %v194
      %v389 = vunpack.c.h.b16 %v194
      %v390 = vunpack.c.l.b16 %v195
      %v391 = vunpack.c.l.b16 %v196
      %v392 = vunpack.c.h.b16 %v196
      %v393 = vunpack.c.l.b16 %v197
      %v394 = vunpack.c.h.b16 %v197
      %v395 = vunpack.c.l.b16 %v198
      %v396 = vunpack.c.l.b16 %v199
      %v397 = vunpack.c.h.b16 %v199
      %v398 = vunpack.c.l.b16 %v200
      %v399 = vunpack.c.h.b16 %v200
      %v400 = vunpack.c.l.b16 %v201
      %v401 = vunpack.c.l.b16 %v202
      %v402 = vunpack.c.h.b16 %v202
      %v403 = vunpack.c.l.b16 %v203
      %v404 = vunpack.c.h.b16 %v203
      %v405 = vunpack.c.l.b16 %v204
      %v406 = vunpack.c.l.b16 %v205
      %v407 = vunpack.c.h.b16 %v205
      %v408 = vunpack.c.l.b16 %v206
      %v409 = vunpack.c.h.b16 %v206
      %v410 = vunpack.c.l.b16 %v207
      %v411 = vunpack.c.l.b16 %v208
      %v412 = vunpack.c.h.b16 %v208
      %v413 = vunpack.c.l.b16 %v209
      %v414 = vunpack.c.h.b16 %v209
      %v415 = vunpack.c.l.b16 %v210
      %v416 = vunpack.c.l.b16 %v211
      %v417 = vunpack.c.h.b16 %v211
      %v418 = vunpack.c.l.b16 %v212
      %v419 = vunpack.c.h.b16 %v212
      %v420 = vunpack.c.l.b16 %v213
      %v421 = vunpack.c.l.b16 %v214
      %v422 = vunpack.c.h.b16 %v214
      %v423 = vunpack.c.l.b16 %v215
      %v424 = vunpack.c.h.b16 %v215
      %v425 = vunpack.c.l.b16 %v216
      %v426 = vunpack.c.l.b16 %v217
      %v427 = vunpack.c.h.b16 %v217
      %v428 = vunpack.c.l.b16 %v218
      %v429 = vunpack.c.h.b16 %v218
      %v430 = vunpack.c.l.b16 %v219
      %v431 = vunpack.c.l.b16 %v220
      %v432 = vunpack.c.h.b16 %v220
      %v433 = vunpack.c.l.b16 %v221
      %v434 = vunpack.c.h.b16 %v221
      %v435 = vunpack.c.l.b16 %v222
      %v436 = vunpack.c.l.b16 %v223
      %v437 = vunpack.c.h.b16 %v223
      %v438 = vunpack.c.l.b16 %v224
      %v439 = vunpack.c.h.b16 %v224
      %v440 = vunpack.c.l.b16 %v225
      %v441 = vpack.c.b16 %v366, %v361
      %v442 = vpack.c.b16 %v367, %v362
      %v443 = vpack.c.b16 %v368, %v363
      %v444 = vpack.c.b16 %v369, %v364
      %v445 = vpack.c.b16 %v370, %v365
      %v446 = vpack.c.b16 %v376, %v371
      %v447 = vpack.c.b16 %v377, %v372
      %v448 = vpack.c.b16 %v378, %v373
      %v449 = vpack.c.b16 %v379, %v374
      %v450 = vpack.c.b16 %v380, %v375
      %v451 = vpack.c.b16 %v386, %v381
      %v452 = vpack.c.b16 %v387, %v382
      %v453 = vpack.c.b16 %v388, %v383
      %v454 = vpack.c.b16 %v389, %v384
      %v455 = vpack.c.b16 %v390, %v385
      %v456 = vpack.c.b16 %v396, %v391
      %v457 = vpack.c.b16 %v397, %v392
      %v458 = vpack.c.b16 %v398, %v393
      %v459 = vpack.c.b16 %v399, %v394
      %v460 = vpack.c.b16 %v400, %v395
      %v461 = vpack.c.b16 %v406, %v401
      %v462 = vpack.c.b16 %v407, %v402
      %v463 = vpack.c.b16 %v408, %v403
      %v464 = vpack.c.b16 %v409, %v404
      %v465 = vpack.c.b16 %v410, %v405
      %v466 = vpack.c.b16 %v416, %v411
      %v467 = vpack.c.b16 %v417, %v412
      %v468 = vpack.c.b16 %v418, %v413
      %v469 = vpack.c.b16 %v419, %v414
      %v470 = vpack.c.b16 %v420, %v415
      %v471 = vpack.c.b16 %v426, %v421
      %v472 = vpack.c.b16 %v427, %v422
      %v473 = vpack.c.b16 %v428, %v423
      %v474 = vpack.c.b16 %v429, %v424
      %v475 = vpack.c.b16 %v430, %v425
      %v476 = vpack.c.b16 %v436, %v431
      %v477 = vpack.c.b16 %v437, %v432
      %v478 = vpack.c.b16 %v438, %v433
      %v479 = vpack.c.b16 %v439, %v434
      %v480 = vpack.c.b16 %v440, %v435
      %v601 = vunpack.c.l.b16 %v226
      %v602 = vunpack.c.l.b16 %v227
      %v603 = vunpack.c.l.b16 %v228
      %v604 = vunpack.c.l.b16 %v229
      %v605 = vunpack.c.l.b16 %v230
      %v606 = vunpack.c.l.b16 %v231
      %v607 = vunpack.c.l.b16 %v232
      %v608 = vunpack.c.l.b16 %v233
      %v609 = vunpack.c.l.b16 %v234
      %v610 = vunpack.c.l.b16 %v235
      %v611 = vunpack.c.l.b16 %v236
      %v612 = vunpack.c.l.b16 %v237
      %v613 = vunpack.c.l.b16 %v238
      %v614 = vunpack.c.l.b16 %v239
      %v615 = vunpack.c.l.b16 %v240
      %v616 = vunpack.c.l.b16 %v241
      %v617 = vunpack.c.l.b16 %v242
      %v618 = vunpack.c.l.b16 %v243
      %v619 = vunpack.c.l.b16 %v244
      %v620 = vunpack.c.l.b16 %v245
      %v621 = vunpack.c.l.b16 %v246
      %v622 = vunpack.c.l.b16 %v247
      %v623 = vunpack.c.l.b16 %v248
      %v624 = vunpack.c.l.b16 %v249
      %v625 = vunpack.c.l.b16 %v250
      %v626 = vunpack.c.l.b16 %v251
      %v627 = vunpack.c.l.b16 %v252
      %v628 = vunpack.c.l.b16 %v253
      %v629 = vunpack.c.l.b16 %v254
      %v630 = vunpack.c.l.b16 %v255
      %v631 = vunpack.c.l.b16 %v256
      %v632 = vunpack.c.l.b16 %v257
      %v633 = vunpack.c.l.b16 %v258
      %v634 = vunpack.c.l.b16 %v259
      %v635 = vunpack.c.l.b16 %v260
      %v636 = vunpack.c.l.b16 %v261
      %v637 = vunpack.c.l.b16 %v262
      %v638 = vunpack.c.l.b16 %v263
      %v639 = vunpack.c.l.b16 %v264
      %v640 = vunpack.c.l.b16 %v265
      %v641 = vunpack.c.l.b16 %v266
      %v642 = vunpack.c.l.b16 %v267
      %v643 = vunpack.c.l.b16 %v268
      %v644 = vunpack.c.l.b16 %v269
      %v645 = vunpack.c.l.b16 %v270
      %v646 = vunpack.c.l.b16 %v271
      %v647 = vunpack.c.l.b16 %v272
      %v648 = vunpack.c.l.b16 %v273
      %v649 = vunpack.c.l.b16 %v274
      %v650 = vunpack.c.l.b16 %v275
      %v651 = vunpack.c.l.b16 %v276
      %v652 = vunpack.c.l.b16 %v277
      %v653 = vunpack.c.l.b16 %v278
      %v654 = vunpack.c.l.b16 %v279
      %v655 = vunpack.c.l.b16 %v280
      %v656 = vunpack.c.l.b16 %v281
      %v657 = vunpack.c.l.b16 %v282
      %v658 = vunpack.c.l.b16 %v283
      %v659 = vunpack.c.l.b16 %v284
      %v660 = vunpack.c.l.b16 %v285
      %v661 = vunpack.c.l.b16 %v286
      %v662 = vunpack.c.l.b16 %v287
      %v663 = vunpack.c.l.b16 %v288
      %v664 = vunpack.c.l.b16 %v289
      %v665 = vunpack.c.l.b16 %v290
      %v666 = vunpack.c.l.b16 %v291
      %v667 = vunpack.c.l.b16 %v292
      %v668 = vunpack.c.l.b16 %v293
      %v669 = vunpack.c.l.b16 %v294
      %v670 = vunpack.c.l.b16 %v295
      %v671 = vunpack.c.l.b16 %v296
      %v672 = vunpack.c.l.b16 %v297
      %v673 = vunpack.c.l.b16 %v298
      %v674 = vunpack.c.l.b16 %v299
      %v675 = vunpack.c.l.b16 %v300
      %v676 = vunpack.c.l.b16 %v301
      %v677 = vunpack.c.l.b16 %v302
      %v678 = vunpack.c.l.b16 %v303
      %v679 = vunpack.c.l.b16 %v304
      %v680 = vunpack.c.l.b16 %v305
      %v681 = vpack.c.b16 %v602, %v601
      %v682 = vpack.c.b16 %v604, %v603
      %v683 = vpack.c.b16 %v606, %v605
      %v684 = vpack.c.b16 %v608, %v607
      %v685 = vpack.c.b16 %v610, %v609
      %v686 = vpack.c.b16 %v612, %v611
      %v687 = vpack.c.b16 %v614, %v613
      %v688 = vpack.c.b16 %v616, %v615
      %v689 = vpack.c.b16 %v618, %v617
      %v690 = vpack.c.b16 %v620, %v619
      %v691 = vpack.c.b16 %v622, %v621
      %v692 = vpack.c.b16 %v624, %v623
      %v693 = vpack.c.b16 %v626, %v625
      %v694 = vpack.c.b16 %v628, %v627
      %v695 = vpack.c.b16 %v630, %v629
      %v696 = vpack.c.b16 %v632, %v631
      %v697 = vpack.c.b16 %v634, %v633
      %v698 = vpack.c.b16 %v636, %v635
      %v699 = vpack.c.b16 %v638, %v637
      %v700 = vpack.c.b16 %v640, %v639
      %v701 = vpack.c.b16 %v642, %v641
      %v702 = vpack.c.b16 %v644, %v643
      %v703 = vpack.c.b16 %v646, %v645
      %v704 = vpack.c.b16 %v648, %v647
      %v705 = vpack.c.b16 %v650, %v649
      %v706 = vpack.c.b16 %v652, %v651
      %v707 = vpack.c.b16 %v654, %v653
      %v708 = vpack.c.b16 %v656, %v655
      %v709 = vpack.c.b16 %v658, %v657
      %v710 = vpack.c.b16 %v660, %v659
      %v711 = vpack.c.b16 %v662, %v661
      %v712 = vpack.c.b16 %v664, %v663
      %v713 = vpack.c.b16 %v666, %v665
      %v714 = vpack.c.b16 %v668, %v667
      %v715 = vpack.c.b16 %v670, %v669
      %v716 = vpack.c.b16 %v672, %v671
      %v717 = vpack.c.b16 %v674, %v673
      %v718 = vpack.c.b16 %v676, %v675
      %v719 = vpack.c.b16 %v678, %v677
      %v720 = vpack.c.b16 %v680, %v679
      %761 = vmatprep.subr.bf16.mxu0 0
      %762 = vmatpush1.bf16.msra.mxu0 %v688
      %763 = vmatprep.subr.bf16.mxu0 0
      %764 = vmatpush1.bf16.msra.mxu0 %v687
      %765 = vmatprep.subr.bf16.mxu0 0
      %766 = vmatpush1.bf16.msra.mxu0 %v686
      %767 = vmatprep.subr.bf16.mxu0 0
      %768 = vmatpush1.bf16.msra.mxu0 %v685
      %769 = vmatprep.subr.bf16.mxu0 0
      %770 = vmatpush1.bf16.msra.mxu0 %v684
      %771 = vmatprep.subr.bf16.mxu0 0
      %772 = vmatpush1.bf16.msra.mxu0 %v683
      %773 = vmatprep.subr.bf16.mxu0 0
      %774 = vmatpush1.bf16.msra.mxu0 %v682
      %775 = vmatprep.subr.bf16.mxu0 0
      %776 = vmatpush1.bf16.msra.mxu0 %v681
      %777 = vmatprep.subr.bf16.mxu0 0
      %778 = vmatpush2.bf16.msra.mxu0 %v696
      %779 = vmatprep.subr.bf16.mxu0 0
      %780 = vmatpush2.bf16.msra.mxu0 %v695
      %781 = vmatprep.subr.bf16.mxu0 0
      %782 = vmatpush2.bf16.msra.mxu0 %v694
      %783 = vmatprep.subr.bf16.mxu0 0
      %784 = vmatpush2.bf16.msra.mxu0 %v693
      %785 = vmatprep.subr.bf16.mxu0 0
      %786 = vmatpush2.bf16.msra.mxu0 %v692
      %787 = vmatprep.subr.bf16.mxu0 0
      %788 = vmatpush2.bf16.msra.mxu0 %v691
      %789 = vmatprep.subr.bf16.mxu0 0
      %790 = vmatpush2.bf16.msra.mxu0 %v690
      %791 = vmatprep.subr.bf16.mxu0 0
      %792 = vmatpush2.bf16.msra.mxu0 %v689
      %793 = vmatprep.mubr.bf16.mxu0 %v442
      %794 = vmatmul.mubr.bf16.gmra.mxu0 %v441
      %v795 = vpop.f32.mrf.mxu0
      %v796 = vadd.f32 %v311, %v795
      %v797 = vpop.f32.mrf.mxu0
      %v798 = vpop.f32.mrf.mxu0
      %v799 = vadd.f32 %v311, %v798
      %v800 = vpop.f32.mrf.mxu0
      %801 = vmatprep.mubr.bf16.mxu0 %v447
      %802 = vmatmul.mubr.bf16.gmra.mxu0 %v446
      %v803 = vpop.f32.mrf.mxu0
      %v804 = vadd.f32 %v311, %v803
      %v805 = vpop.f32.mrf.mxu0
      %v806 = vpop.f32.mrf.mxu0
      %v807 = vadd.f32 %v311, %v806
      %v808 = vpop.f32.mrf.mxu0
      %809 = vmatprep.mubr.bf16.mxu0 %v452
      %810 = vmatmul.mubr.bf16.gmra.mxu0 %v451
      %v811 = vpop.f32.mrf.mxu0
      %v812 = vadd.f32 %v311, %v811
      %v813 = vpop.f32.mrf.mxu0
      %v814 = vpop.f32.mrf.mxu0
      %v815 = vadd.f32 %v311, %v814
      %v816 = vpop.f32.mrf.mxu0
      %817 = vmatprep.mubr.bf16.mxu0 %v457
      %818 = vmatmul.mubr.bf16.gmra.mxu0 %v456
      %v819 = vpop.f32.mrf.mxu0
      %v820 = vadd.f32 %v311, %v819
      %v821 = vpop.f32.mrf.mxu0
      %v822 = vpop.f32.mrf.mxu0
      %v823 = vadd.f32 %v311, %v822
      %v824 = vpop.f32.mrf.mxu0
      %825 = vmatprep.mubr.bf16.mxu0 %v462
      %826 = vmatmul.mubr.bf16.gmra.mxu0 %v461
      %v827 = vpop.f32.mrf.mxu0
      %v828 = vadd.f32 %v311, %v827
      %v829 = vpop.f32.mrf.mxu0
      %v830 = vpop.f32.mrf.mxu0
      %v831 = vadd.f32 %v311, %v830
      %v832 = vpop.f32.mrf.mxu0
      %833 = vmatprep.mubr.bf16.mxu0 %v467
      %834 = vmatmul.mubr.bf16.gmra.mxu0 %v466
      %v835 = vpop.f32.mrf.mxu0
      %v836 = vadd.f32 %v311, %v835
      %v837 = vpop.f32.mrf.mxu0
      %v838 = vpop.f32.mrf.mxu0
      %v839 = vadd.f32 %v311, %v838
      %v840 = vpop.f32.mrf.mxu0
      %841 = vmatprep.mubr.bf16.mxu0 %v472
      %842 = vmatmul.mubr.bf16.gmra.mxu0 %v471
      %v843 = vpop.f32.mrf.mxu0
      %v844 = vadd.f32 %v311, %v843
      %v845 = vpop.f32.mrf.mxu0
      %v846 = vpop.f32.mrf.mxu0
      %v847 = vadd.f32 %v311, %v846
      %v848 = vpop.f32.mrf.mxu0
      %849 = vmatprep.mubr.bf16.mxu0 %v477
      %850 = vmatmul.mubr.bf16.gmra.mxu0 %v476
      %v851 = vpop.f32.mrf.mxu0
      %v852 = vadd.f32 %v311, %v851
      %v853 = vpop.f32.mrf.mxu0
      %v854 = vpop.f32.mrf.mxu0
      %v855 = vadd.f32 %v311, %v854
      %v856 = vpop.f32.mrf.mxu0
      %857 = vdwg.mxu0
      %858 = vmatprep.subr.bf16.mxu0 0
      %859 = vmatpush1.bf16.msra.mxu0 %v704
      %860 = vmatprep.subr.bf16.mxu0 0
      %861 = vmatpush1.bf16.msra.mxu0 %v703
      %862 = vmatprep.subr.bf16.mxu0 0
      %863 = vmatpush1.bf16.msra.mxu0 %v702
      %864 = vmatprep.subr.bf16.mxu0 0
      %865 = vmatpush1.bf16.msra.mxu0 %v701
      %866 = vmatprep.subr.bf16.mxu0 0
      %867 = vmatpush1.bf16.msra.mxu0 %v700
      %868 = vmatprep.subr.bf16.mxu0 0
      %869 = vmatpush1.bf16.msra.mxu0 %v699
      %870 = vmatprep.subr.bf16.mxu0 0
      %871 = vmatpush1.bf16.msra.mxu0 %v698
      %872 = vmatprep.subr.bf16.mxu0 0
      %873 = vmatpush1.bf16.msra.mxu0 %v697
      %874 = vmatprep.subr.bf16.mxu0 0
      %875 = vmatpush2.bf16.msra.mxu0 %v712
      %876 = vmatprep.subr.bf16.mxu0 0
      %877 = vmatpush2.bf16.msra.mxu0 %v711
      %878 = vmatprep.subr.bf16.mxu0 0
      %879 = vmatpush2.bf16.msra.mxu0 %v710
      %880 = vmatprep.subr.bf16.mxu0 0
      %881 = vmatpush2.bf16.msra.mxu0 %v709
      %882 = vmatprep.subr.bf16.mxu0 0
      %883 = vmatpush2.bf16.msra.mxu0 %v708
      %884 = vmatprep.subr.bf16.mxu0 0
      %885 = vmatpush2.bf16.msra.mxu0 %v707
      %886 = vmatprep.subr.bf16.mxu0 0
      %887 = vmatpush2.bf16.msra.mxu0 %v706
      %888 = vmatprep.subr.bf16.mxu0 0
      %889 = vmatpush2.bf16.msra.mxu0 %v705
      %890 = vmatprep.mubr.bf16.mxu0 %v444
      %891 = vmatmul.mubr.bf16.gmra.mxu0 %v443
      %v892 = vpop.f32.mrf.mxu0
      %v893 = vadd.f32 %v796, %v892
      %v894 = vpop.f32.mrf.mxu0
      %v895 = vpop.f32.mrf.mxu0
      %v896 = vadd.f32 %v799, %v895
      %v897 = vpop.f32.mrf.mxu0
      %898 = vmatprep.mubr.bf16.mxu0 %v449
      %899 = vmatmul.mubr.bf16.gmra.mxu0 %v448
      %v900 = vpop.f32.mrf.mxu0
      %v901 = vadd.f32 %v804, %v900
      %v902 = vpop.f32.mrf.mxu0
      %v903 = vpop.f32.mrf.mxu0
      %v904 = vadd.f32 %v807, %v903
      %v905 = vpop.f32.mrf.mxu0
      %906 = vmatprep.mubr.bf16.mxu0 %v454
      %907 = vmatmul.mubr.bf16.gmra.mxu0 %v453
      %v908 = vpop.f32.mrf.mxu0
      %v909 = vadd.f32 %v812, %v908
      %v910 = vpop.f32.mrf.mxu0
      %v911 = vpop.f32.mrf.mxu0
      %v912 = vadd.f32 %v815, %v911
      %v913 = vpop.f32.mrf.mxu0
      %914 = vmatprep.mubr.bf16.mxu0 %v459
      %915 = vmatmul.mubr.bf16.gmra.mxu0 %v458
      %v916 = vpop.f32.mrf.mxu0
      %v917 = vadd.f32 %v820, %v916
      %v918 = vpop.f32.mrf.mxu0
      %v919 = vpop.f32.mrf.mxu0
      %v920 = vadd.f32 %v823, %v919
      %v921 = vpop.f32.mrf.mxu0
      %922 = vmatprep.mubr.bf16.mxu0 %v464
      %923 = vmatmul.mubr.bf16.gmra.mxu0 %v463
      %v924 = vpop.f32.mrf.mxu0
      %v925 = vadd.f32 %v828, %v924
      %v926 = vpop.f32.mrf.mxu0
      %v927 = vpop.f32.mrf.mxu0
      %v928 = vadd.f32 %v831, %v927
      %v929 = vpop.f32.mrf.mxu0
      %930 = vmatprep.mubr.bf16.mxu0 %v469
      %931 = vmatmul.mubr.bf16.gmra.mxu0 %v468
      %v932 = vpop.f32.mrf.mxu0
      %v933 = vadd.f32 %v836, %v932
      %v934 = vpop.f32.mrf.mxu0
      %v935 = vpop.f32.mrf.mxu0
      %v936 = vadd.f32 %v839, %v935
      %v937 = vpop.f32.mrf.mxu0
      %938 = vmatprep.mubr.bf16.mxu0 %v474
      %939 = vmatmul.mubr.bf16.gmra.mxu0 %v473
      %v940 = vpop.f32.mrf.mxu0
      %v941 = vadd.f32 %v844, %v940
      %v942 = vpop.f32.mrf.mxu0
      %v943 = vpop.f32.mrf.mxu0
      %v944 = vadd.f32 %v847, %v943
      %v945 = vpop.f32.mrf.mxu0
      %946 = vmatprep.mubr.bf16.mxu0 %v479
      %947 = vmatmul.mubr.bf16.gmra.mxu0 %v478
      %v948 = vpop.f32.mrf.mxu0
      %v949 = vadd.f32 %v852, %v948
      %v950 = vpop.f32.mrf.mxu0
      %v951 = vpop.f32.mrf.mxu0
      %v952 = vadd.f32 %v855, %v951
      %v953 = vpop.f32.mrf.mxu0
      %954 = vdwg.mxu0
      %955 = vmatprep.subr.bf16.mxu0 0
      %956 = vmatpush1.bf16.msra.mxu0 %v720
      %957 = vmatprep.subr.bf16.mxu0 0
      %958 = vmatpush1.bf16.msra.mxu0 %v719
      %959 = vmatprep.subr.bf16.mxu0 0
      %960 = vmatpush1.bf16.msra.mxu0 %v718
      %961 = vmatprep.subr.bf16.mxu0 0
      %962 = vmatpush1.bf16.msra.mxu0 %v717
      %963 = vmatprep.subr.bf16.mxu0 0
      %964 = vmatpush1.bf16.msra.mxu0 %v716
      %965 = vmatprep.subr.bf16.mxu0 0
      %966 = vmatpush1.bf16.msra.mxu0 %v715
      %967 = vmatprep.subr.bf16.mxu0 0
      %968 = vmatpush1.bf16.msra.mxu0 %v714
      %969 = vmatprep.subr.bf16.mxu0 0
      %970 = vmatpush1.bf16.msra.mxu0 %v713
      %971 = vmatprep.subr.bf16.mxu0 0
      %972 = vmatpush2.bf16.msra.mxu0 0
      %973 = vmatprep.subr.bf16.mxu0 0
      %974 = vmatpush2.bf16.msra.mxu0 0
      %975 = vmatprep.subr.bf16.mxu0 0
      %976 = vmatpush2.bf16.msra.mxu0 0
      %977 = vmatprep.subr.bf16.mxu0 0
      %978 = vmatpush2.bf16.msra.mxu0 0
      %979 = vmatprep.subr.bf16.mxu0 0
      %980 = vmatpush2.bf16.msra.mxu0 0
      %981 = vmatprep.subr.bf16.mxu0 0
      %982 = vmatpush2.bf16.msra.mxu0 0
      %983 = vmatprep.subr.bf16.mxu0 0
      %984 = vmatpush2.bf16.msra.mxu0 0
      %985 = vmatprep.subr.bf16.mxu0 0
      %986 = vmatpush2.bf16.msra.mxu0 0
      %987 = vmatprep.mubr.bf16.mxu0 0
      %988 = vmatmul.mubr.bf16.gmra.mxu0 %v445
      %v989 = vpop.f32.mrf.mxu0
      %v990 = vadd.f32 %v893, %v989
      %v991 = vpop.f32.mrf.mxu0
      %v992 = vpop.f32.mrf.mxu0
      %v993 = vadd.f32 %v896, %v992
      %v994 = vpop.f32.mrf.mxu0
      %995 = vmatprep.mubr.bf16.mxu0 0
      %996 = vmatmul.mubr.bf16.gmra.mxu0 %v450
      %v997 = vpop.f32.mrf.mxu0
      %v998 = vadd.f32 %v901, %v997
      %v999 = vpop.f32.mrf.mxu0
      %v1000 = vpop.f32.mrf.mxu0
      %v1001 = vadd.f32 %v904, %v1000
      %v1002 = vpop.f32.mrf.mxu0
      %1003 = vmatprep.mubr.bf16.mxu0 0
      %1004 = vmatmul.mubr.bf16.gmra.mxu0 %v455
      %v1005 = vpop.f32.mrf.mxu0
      %v1006 = vadd.f32 %v909, %v1005
      %v1007 = vpop.f32.mrf.mxu0
      %v1008 = vpop.f32.mrf.mxu0
      %v1009 = vadd.f32 %v912, %v1008
      %v1010 = vpop.f32.mrf.mxu0
      %1011 = vmatprep.mubr.bf16.mxu0 0
      %1012 = vmatmul.mubr.bf16.gmra.mxu0 %v460
      %v1013 = vpop.f32.mrf.mxu0
      %v1014 = vadd.f32 %v917, %v1013
      %v1015 = vpop.f32.mrf.mxu0
      %v1016 = vpop.f32.mrf.mxu0
      %v1017 = vadd.f32 %v920, %v1016
      %v1018 = vpop.f32.mrf.mxu0
      %1019 = vmatprep.mubr.bf16.mxu0 0
      %1020 = vmatmul.mubr.bf16.gmra.mxu0 %v465
      %v1021 = vpop.f32.mrf.mxu0
      %v1022 = vadd.f32 %v925, %v1021
      %v1023 = vpop.f32.mrf.mxu0
      %v1024 = vpop.f32.mrf.mxu0
      %v1025 = vadd.f32 %v928, %v1024
      %v1026 = vpop.f32.mrf.mxu0
      %1027 = vmatprep.mubr.bf16.mxu0 0
      %1028 = vmatmul.mubr.bf16.gmra.mxu0 %v470
      %v1029 = vpop.f32.mrf.mxu0
      %v1030 = vadd.f32 %v933, %v1029
      %v1031 = vpop.f32.mrf.mxu0
      %v1032 = vpop.f32.mrf.mxu0
      %v1033 = vadd.f32 %v936, %v1032
      %v1034 = vpop.f32.mrf.mxu0
      %1035 = vmatprep.mubr.bf16.mxu0 0
      %1036 = vmatmul.mubr.bf16.gmra.mxu0 %v475
      %v1037 = vpop.f32.mrf.mxu0
      %v1038 = vadd.f32 %v941, %v1037
      %v1039 = vpop.f32.mrf.mxu0
      %v1040 = vpop.f32.mrf.mxu0
      %v1041 = vadd.f32 %v944, %v1040
      %v1042 = vpop.f32.mrf.mxu0
      %1043 = vmatprep.mubr.bf16.mxu0 0
      %1044 = vmatmul.mubr.bf16.gmra.mxu0 %v480
      %v1045 = vpop.f32.mrf.mxu0
      %v1046 = vadd.f32 %v949, %v1045
      %v1047 = vpop.f32.mrf.mxu0
      %v1048 = vpop.f32.mrf.mxu0
      %v1049 = vadd.f32 %v952, %v1048
      %v1050 = vpop.f32.mrf.mxu0
      %1051 = vdwg.mxu0
      %v1052 = vmax.f32 %v990, 0.0
      %v1053 = vmax.f32 %v993, 0.0
      %v1054 = vmax.f32 %v998, 0.0
      %v1055 = vmax.f32 %v1001, 0.0
      %v1056 = vmax.f32 %v1006, 0.0
      %v1057 = vmax.f32 %v1009, 0.0
      %v1058 = vmax.f32 %v1014, 0.0
      %v1059 = vmax.f32 %v1017, 0.0
      %v1060 = vmax.f32 %v1022, 0.0
      %v1061 = vmax.f32 %v1025, 0.0
      %v1062 = vmax.f32 %v1030, 0.0
      %v1063 = vmax.f32 %v1033, 0.0
      %v1064 = vmax.f32 %v1038, 0.0
      %v1065 = vmax.f32 %v1041, 0.0
      %v1066 = vmax.f32 %v1046, 0.0
      %v1067 = vmax.f32 %v1049, 0.0
      %v1068 = vpack.c.bf16 %v1053, %v1052
      %v1069 = vpack.c.bf16 %v1055, %v1054
      %v1070 = vpack.c.bf16 %v1057, %v1056
      %v1071 = vpack.c.bf16 %v1059, %v1058
      %v1072 = vpack.c.bf16 %v1061, %v1060
      %v1073 = vpack.c.bf16 %v1063, %v1062
      %v1074 = vpack.c.bf16 %v1065, %v1064
      %v1075 = vpack.c.bf16 %v1067, %v1066
      %v1084 = vunpack.c.l.b16 %v1068
      %v1085 = vunpack.c.h.b16 %v1068
      %v1086 = vunpack.c.l.b16 %v1069
      %v1087 = vunpack.c.h.b16 %v1069
      %v1088 = vunpack.c.l.b16 %v1070
      %v1089 = vunpack.c.h.b16 %v1070
      %v1090 = vunpack.c.l.b16 %v1071
      %v1091 = vunpack.c.h.b16 %v1071
      %v1092 = vunpack.c.l.b16 %v1072
      %v1093 = vunpack.c.h.b16 %v1072
      %v1094 = vunpack.c.l.b16 %v1073
      %v1095 = vunpack.c.h.b16 %v1073
      %v1096 = vunpack.c.l.b16 %v1074
      %v1097 = vunpack.c.h.b16 %v1074
      %v1098 = vunpack.c.l.b16 %v1075
      %v1099 = vunpack.c.h.b16 %v1075
      %v1100 = vpack.c.b16 %v1084, %v1084
      %v1101 = vpack.c.b16 %v1085, %v1085
      %v1102 = vpack.c.b16 %v1086, %v1086
      %v1103 = vpack.c.b16 %v1087, %v1087
      %v1104 = vpack.c.b16 %v1088, %v1088
      %v1105 = vpack.c.b16 %v1089, %v1089
      %v1106 = vpack.c.b16 %v1090, %v1090
      %v1107 = vpack.c.b16 %v1091, %v1091
      %v1108 = vpack.c.b16 %v1092, %v1092
      %v1109 = vpack.c.b16 %v1093, %v1093
      %v1110 = vpack.c.b16 %v1094, %v1094
      %v1111 = vpack.c.b16 %v1095, %v1095
      %v1112 = vpack.c.b16 %v1096, %v1096
      %v1113 = vpack.c.b16 %v1097, %v1097
      %v1114 = vpack.c.b16 %v1098, %v1098
      %v1115 = vpack.c.b16 %v1099, %v1099
      %1132 = vst [vmem:[%s175] sm:$0xf] %v1100
      %1133 = vst [vmem:[%s175 + $0x4] sm:$0xf] %v1101
      %1134 = vst [vmem:[%s175 + $0x8] sm:$0xf] %v1102
      %1135 = vst [vmem:[%s175 + $0xc] sm:$0xf] %v1103
      %1136 = vst [vmem:[%s175 + $0x10] sm:$0xf] %v1104
      %1137 = vst [vmem:[%s175 + $0x14] sm:$0xf] %v1105
      %1138 = vst [vmem:[%s175 + $0x18] sm:$0xf] %v1106
      %1139 = vst [vmem:[%s175 + $0x1c] sm:$0xf] %v1107
      %1140 = vst [vmem:[%s175 + $0x20] sm:$0xf] %v1108
      %1141 = vst [vmem:[%s175 + $0x24] sm:$0xf] %v1109
      %1142 = vst [vmem:[%s175 + $0x28] sm:$0xf] %v1110
      %1143 = vst [vmem:[%s175 + $0x2c] sm:$0xf] %v1111
      %1144 = vst [vmem:[%s175 + $0x30] sm:$0xf] %v1112
      %1145 = vst [vmem:[%s175 + $0x34] sm:$0xf] %v1113
      %1146 = vst [vmem:[%s175 + $0x38] sm:$0xf] %v1114
      %1147 = vst [vmem:[%s175 + $0x3c] sm:$0xf] %v1115
      %s1148 = smul.u32 16, %s14
      %p1149 = scmp.lt.s32.totalorder %s1148, 31
      %s1150 = scalar_select %p1149, %s1148, 31
      %s1151 = smul.addr %s1150, 4
      %s1152 = scalar_lea.vmem %s3, %s1151
      // Predicated region
      $region33: #{dqn_forward.7} parent=31 // pred_check
        %p1153 = pneg %p100
      $region34: #{dqn_forward.7} parent=31 // pred_check_branch
        %1155 = sbr.rel (%p1153) target = $region36
      $region35: #{dqn_forward.7} parent=31 // pred_region
        %s1156 = smul.u32 16, %s14
      $region36: #{dqn_forward.7} parent=31 // pred_fallthru
        _
    $region32: #{dqn_forward.7} parent=5 // pred_fallthru
      _
    %p1157 = scmp.le.s32.totalorder 2, %s9
    // Predicated region
    $region37: #{dqn_forward.7} parent=5 // pred_check
      %p1158 = pneg %p1157
    $region38: #{dqn_forward.7} parent=5 // pred_check_branch
      %1160 = sbr.rel (%p1158) target = $region40
    $region39: #{dqn_forward.7} parent=5 // pred_region
      %s1161 = ssub.s32 %s9, 2
      // Predicated region
      $region41: #{dqn_forward.7} parent=39 // pred_check
        %p1162 = pneg %p106
      $region42: #{dqn_forward.7} parent=39 // pred_check_branch
        %1164 = sbr.rel (%p1162) target = $region44
      $region43: #{dqn_forward.7} parent=39 // pred_region
        %s1165 = smul.u32 16, %s15
        %p1166 = scmp.lt.s32.totalorder %s1165, 31
        %s1167 = scalar_select %p1166, %s1165, 31
        %s1168 = smul.addr %s1167, 4
        %s1169 = scalar_lea.vmem %s3, %s1168
      $region44: #{dqn_forward.7} parent=39 // pred_fallthru
        _
    $region40: #{dqn_forward.7} parent=5 // pred_fallthru
      _
  $region6: #{dqn_forward.7} parent=0 // loop_footer
    %s13 = sadd.s32 1, %s9
  $region7: #{dqn_forward.7} parent=0 // loop_footer_branch
    %8 = sbr.rel target = $region3
  $region8: #{dqn_forward.7} parent=0 // loop_exit
    _

// kernel: dqn_forward.8
$region0: #{dqn_forward.8}
  #allocation0 [shape = 'u32[]', space=smem, size = 0x4, offset = 0x4, fixed_abs, tag = 'smem constant byte address 0x4 - core index']
  #allocation1 [shape = 'u32[144,128]{1,0:T(1,128)}', space=vmem, size = 0x12000, scoped, tag = 'internal scratch']
  %s0 = inlined_call_operand.vmem [shape: bf16[56,1152], index: 0, kind: input, shape index: {}]
  %s1 = inlined_call_operand.vmem [shape: bf16[1152,128], index: 1, kind: input, shape index: {}]
  %s2 = inlined_call_operand.vmem [shape: f32[1,128], index: 2, kind: input, shape index: {}]
  %s3 = inlined_call_operand.vmem [shape: bf16[56,128], index: 3, kind: output, shape index: {}]
  %s4 = sld [smem:[#allocation0]]
  $region22: #{dqn_forward.8} parent=0
    _
  %s6 = ssub.s32 1, %s4
  %s7 = scalar_select 0, %s6, %s4
  // Predicated region
  $region2: #{dqn_forward.8} parent=0 // pred_check
    _
  $region3: #{dqn_forward.8} parent=0 // pred_check_branch
    %9 = sbr.rel (0) target = $region5
  $region4: #{dqn_forward.8} parent=0 // pred_region
    _
  $region5: #{dqn_forward.8} parent=0 // pred_fallthru
    _
  // Predicated region
  $region6: #{dqn_forward.8} parent=0 // pred_check
    _
  $region7: #{dqn_forward.8} parent=0 // pred_check_branch
    %11 = sbr.rel (0) target = $region9
  $region8: #{dqn_forward.8} parent=0 // pred_region
    _
  $region9: #{dqn_forward.8} parent=0 // pred_fallthru
    _
  // Predicated region
  $region10: #{dqn_forward.8} parent=0 // pred_check
    _
  $region11: #{dqn_forward.8} parent=0 // pred_check_branch
    %13 = sbr.rel (0) target = $region13
  $region12: #{dqn_forward.8} parent=0 // pred_region
    _
  $region13: #{dqn_forward.8} parent=0 // pred_fallthru
    _
  %v15 = vld [vmem:[%s0] sm:$0xff]
  %v16 = vld [vmem:[%s0 + $0x8] sm:$0xff]
  %v17 = vld [vmem:[%s0 + $0x10] sm:$0xff]
  %v18 = vld [vmem:[%s0 + $0x18] sm:$0xff]
  %v19 = vld [vmem:[%s0 + $0x20] sm:$0xf]
  %v20 = vld [vmem:[%s0 + $0x24] sm:$0xff]
  %v21 = vld [vmem:[%s0 + $0x2c] sm:$0xff]
  %v22 = vld [vmem:[%s0 + $0x34] sm:$0xff]
  %v23 = vld [vmem:[%s0 + $0x3c] sm:$0xff]
  %v24 = vld [vmem:[%s0 + $0x44] sm:$0xf]
  %v25 = vld [vmem:[%s0 + $0x48] sm:$0xff]
  %v26 = vld [vmem:[%s0 + $0x50] sm:$0xff]
  %v27 = vld [vmem:[%s0 + $0x58] sm:$0xff]
  %v28 = vld [vmem:[%s0 + $0x60] sm:$0xff]
  %v29 = vld [vmem:[%s0 + $0x68] sm:$0xf]
  %v30 = vld [vmem:[%s0 + $0x6c] sm:$0xff]
  %v31 = vld [vmem:[%s0 + $0x74] sm:$0xff]
  %v32 = vld [vmem:[%s0 + $0x7c] sm:$0xff]
  %v33 = vld [vmem:[%s0 + $0x84] sm:$0xff]
  %v34 = vld [vmem:[%s0 + $0x8c] sm:$0xf]
  %v35 = vld [vmem:[%s0 + $0x90] sm:$0xff]
  %v36 = vld [vmem:[%s0 + $0x98] sm:$0xff]
  %v37 = vld [vmem:[%s0 + $0xa0] sm:$0xff]
  %v38 = vld [vmem:[%s0 + $0xa8] sm:$0xff]
  %v39 = vld [vmem:[%s0 + $0xb0] sm:$0xf]
  %v40 = vld [vmem:[%s0 + $0xb4] sm:$0xff]
  %v41 = vld [vmem:[%s0 + $0xbc] sm:$0xff]
  %v42 = vld [vmem:[%s0 + $0xc4] sm:$0xff]
  %v43 = vld [vmem:[%s0 + $0xcc] sm:$0xff]
  %v44 = vld [vmem:[%s0 + $0xd4] sm:$0xf]
  %v45 = vld [vmem:[%s0 + $0xd8] sm:$0xff]
  %v46 = vld [vmem:[%s0 + $0xe0] sm:$0xff]
  %v47 = vld [vmem:[%s0 + $0xe8] sm:$0xff]
  %v48 = vld [vmem:[%s0 + $0xf0] sm:$0xff]
  %v49 = vld [vmem:[%s0 + $0xf8] sm:$0xf]
  %v50 = vld [vmem:[%s1] sm:$0xf]
  %v51 = vld [vmem:[%s1 + $0x4] sm:$0xf]
  %v52 = vld [vmem:[%s1 + $0x8] sm:$0xf]
  %v53 = vld [vmem:[%s1 + $0xc] sm:$0xf]
  %v54 = vld [vmem:[%s1 + $0x10] sm:$0xf]
  %v55 = vld [vmem:[%s1 + $0x14] sm:$0xf]
  %v56 = vld [vmem:[%s1 + $0x18] sm:$0xf]
  %v57 = vld [vmem:[%s1 + $0x1c] sm:$0xf]
  %v58 = vld [vmem:[%s1 + $0x20] sm:$0xf]
  %v59 = vld [vmem:[%s1 + $0x24] sm:$0xf]
  %v60 = vld [vmem:[%s1 + $0x28] sm:$0xf]
  %v61 = vld [vmem:[%s1 + $0x2c] sm:$0xf]
  %v62 = vld [vmem:[%s1 + $0x30] sm:$0xf]
  %v63 = vld [vmem:[%s1 + $0x34] sm:$0xf]
  %v64 = vld [vmem:[%s1 + $0x38] sm:$0xf]
  %v65 = vld [vmem:[%s1 + $0x3c] sm:$0xf]
  %v66 = vld [vmem:[%s1 + $0x40] sm:$0xf]
  %v67 = vld [vmem:[%s1 + $0x44] sm:$0xf]
  %v68 = vld [vmem:[%s1 + $0x48] sm:$0xf]
  %v69 = vld [vmem:[%s1 + $0x4c] sm:$0xf]
  %v70 = vld [vmem:[%s1 + $0x50] sm:$0xf]
  %v71 = vld [vmem:[%s1 + $0x54] sm:$0xf]
  %v72 = vld [vmem:[%s1 + $0x58] sm:$0xf]
  %v73 = vld [vmem:[%s1 + $0x5c] sm:$0xf]
  %v74 = vld [vmem:[%s1 + $0x60] sm:$0xf]
  %v75 = vld [vmem:[%s1 + $0x64] sm:$0xf]
  %v76 = vld [vmem:[%s1 + $0x68] sm:$0xf]
  %v77 = vld [vmem:[%s1 + $0x6c] sm:$0xf]
  %v78 = vld [vmem:[%s1 + $0x70] sm:$0xf]
  %v79 = vld [vmem:[%s1 + $0x74] sm:$0xf]
  %v80 = vld [vmem:[%s1 + $0x78] sm:$0xf]
  %v81 = vld [vmem:[%s1 + $0x7c] sm:$0xf]
  %v82 = vld [vmem:[%s1 + $0x80] sm:$0xf]
  %v83 = vld [vmem:[%s1 + $0x84] sm:$0xf]
  %v84 = vld [vmem:[%s1 + $0x88] sm:$0xf]
  %v85 = vld [vmem:[%s1 + $0x8c] sm:$0xf]
  %v86 = vld [vmem:[%s1 + $0x90] sm:$0xf]
  %v87 = vld [vmem:[%s1 + $0x94] sm:$0xf]
  %v88 = vld [vmem:[%s1 + $0x98] sm:$0xf]
  %v89 = vld [vmem:[%s1 + $0x9c] sm:$0xf]
  %v90 = vld [vmem:[%s1 + $0xa0] sm:$0xf]
  %v91 = vld [vmem:[%s1 + $0xa4] sm:$0xf]
  %v92 = vld [vmem:[%s1 + $0xa8] sm:$0xf]
  %v93 = vld [vmem:[%s1 + $0xac] sm:$0xf]
  %v94 = vld [vmem:[%s1 + $0xb0] sm:$0xf]
  %v95 = vld [vmem:[%s1 + $0xb4] sm:$0xf]
  %v96 = vld [vmem:[%s1 + $0xb8] sm:$0xf]
  %v97 = vld [vmem:[%s1 + $0xbc] sm:$0xf]
  %v98 = vld [vmem:[%s1 + $0xc0] sm:$0xf]
  %v99 = vld [vmem:[%s1 + $0xc4] sm:$0xf]
  %v100 = vld [vmem:[%s1 + $0xc8] sm:$0xf]
  %v101 = vld [vmem:[%s1 + $0xcc] sm:$0xf]
  %v102 = vld [vmem:[%s1 + $0xd0] sm:$0xf]
  %v103 = vld [vmem:[%s1 + $0xd4] sm:$0xf]
  %v104 = vld [vmem:[%s1 + $0xd8] sm:$0xf]
  %v105 = vld [vmem:[%s1 + $0xdc] sm:$0xf]
  %v106 = vld [vmem:[%s1 + $0xe0] sm:$0xf]
  %v107 = vld [vmem:[%s1 + $0xe4] sm:$0xf]
  %v108 = vld [vmem:[%s1 + $0xe8] sm:$0xf]
  %v109 = vld [vmem:[%s1 + $0xec] sm:$0xf]
  %v110 = vld [vmem:[%s1 + $0xf0] sm:$0xf]
  %v111 = vld [vmem:[%s1 + $0xf4] sm:$0xf]
  %v112 = vld [vmem:[%s1 + $0xf8] sm:$0xf]
  %v113 = vld [vmem:[%s1 + $0xfc] sm:$0xf]
  %v114 = vld [vmem:[%s1 + $0x100] sm:$0xf]
  %v115 = vld [vmem:[%s1 + $0x104] sm:$0xf]
  %v116 = vld [vmem:[%s1 + $0x108] sm:$0xf]
  %v117 = vld [vmem:[%s1 + $0x10c] sm:$0xf]
  %v118 = vld [vmem:[%s1 + $0x110] sm:$0xf]
  %v119 = vld [vmem:[%s1 + $0x114] sm:$0xf]
  %v120 = vld [vmem:[%s1 + $0x118] sm:$0xf]
  %v121 = vld [vmem:[%s1 + $0x11c] sm:$0xf]
  %v122 = vld [vmem:[%s1 + $0x120] sm:$0xf]
  %v123 = vld [vmem:[%s1 + $0x124] sm:$0xf]
  %v124 = vld [vmem:[%s1 + $0x128] sm:$0xf]
  %v125 = vld [vmem:[%s1 + $0x12c] sm:$0xf]
  %v126 = vld [vmem:[%s1 + $0x130] sm:$0xf]
  %v127 = vld [vmem:[%s1 + $0x134] sm:$0xf]
  %v128 = vld [vmem:[%s1 + $0x138] sm:$0xf]
  %v129 = vld [vmem:[%s1 + $0x13c] sm:$0xf]
  %v130 = vld [vmem:[%s1 + $0x140] sm:$0xf]
  %v131 = vld [vmem:[%s1 + $0x144] sm:$0xf]
  %v132 = vld [vmem:[%s1 + $0x148] sm:$0xf]
  %v133 = vld [vmem:[%s1 + $0x14c] sm:$0xf]
  %v134 = vld [vmem:[%s1 + $0x150] sm:$0xf]
  %v135 = vld [vmem:[%s1 + $0x154] sm:$0xf]
  %v136 = vld [vmem:[%s1 + $0x158] sm:$0xf]
  %v137 = vld [vmem:[%s1 + $0x15c] sm:$0xf]
  %v138 = vld [vmem:[%s1 + $0x160] sm:$0xf]
  %v139 = vld [vmem:[%s1 + $0x164] sm:$0xf]
  %v140 = vld [vmem:[%s1 + $0x168] sm:$0xf]
  %v141 = vld [vmem:[%s1 + $0x16c] sm:$0xf]
  %v142 = vld [vmem:[%s1 + $0x170] sm:$0xf]
  %v143 = vld [vmem:[%s1 + $0x174] sm:$0xf]
  %v144 = vld [vmem:[%s1 + $0x178] sm:$0xf]
  %v145 = vld [vmem:[%s1 + $0x17c] sm:$0xf]
  %v146 = vld [vmem:[%s1 + $0x180] sm:$0xf]
  %v147 = vld [vmem:[%s1 + $0x184] sm:$0xf]
  %v148 = vld [vmem:[%s1 + $0x188] sm:$0xf]
  %v149 = vld [vmem:[%s1 + $0x18c] sm:$0xf]
  %v150 = vld [vmem:[%s1 + $0x190] sm:$0xf]
  %v151 = vld [vmem:[%s1 + $0x194] sm:$0xf]
  %v152 = vld [vmem:[%s1 + $0x198] sm:$0xf]
  %v153 = vld [vmem:[%s1 + $0x19c] sm:$0xf]
  %v154 = vld [vmem:[%s1 + $0x1a0] sm:$0xf]
  %v155 = vld [vmem:[%s1 + $0x1a4] sm:$0xf]
  %v156 = vld [vmem:[%s1 + $0x1a8] sm:$0xf]
  %v157 = vld [vmem:[%s1 + $0x1ac] sm:$0xf]
  %v158 = vld [vmem:[%s1 + $0x1b0] sm:$0xf]
  %v159 = vld [vmem:[%s1 + $0x1b4] sm:$0xf]
  %v160 = vld [vmem:[%s1 + $0x1b8] sm:$0xf]
  %v161 = vld [vmem:[%s1 + $0x1bc] sm:$0xf]
  %v162 = vld [vmem:[%s1 + $0x1c0] sm:$0xf]
  %v163 = vld [vmem:[%s1 + $0x1c4] sm:$0xf]
  %v164 = vld [vmem:[%s1 + $0x1c8] sm:$0xf]
  %v165 = vld [vmem:[%s1 + $0x1cc] sm:$0xf]
  %v166 = vld [vmem:[%s1 + $0x1d0] sm:$0xf]
  %v167 = vld [vmem:[%s1 + $0x1d4] sm:$0xf]
  %v168 = vld [vmem:[%s1 + $0x1d8] sm:$0xf]
  %v169 = vld [vmem:[%s1 + $0x1dc] sm:$0xf]
  %v170 = vld [vmem:[%s1 + $0x1e0] sm:$0xf]
  %v171 = vld [vmem:[%s1 + $0x1e4] sm:$0xf]
  %v172 = vld [vmem:[%s1 + $0x1e8] sm:$0xf]
  %v173 = vld [vmem:[%s1 + $0x1ec] sm:$0xf]
  %v174 = vld [vmem:[%s1 + $0x1f0] sm:$0xf]
  %v175 = vld [vmem:[%s1 + $0x1f4] sm:$0xf]
  %v176 = vld [vmem:[%s1 + $0x1f8] sm:$0xf]
  %v177 = vld [vmem:[%s1 + $0x1fc] sm:$0xf]
  %v178 = vld [vmem:[%s1 + $0x200] sm:$0xf]
  %v179 = vld [vmem:[%s1 + $0x204] sm:$0xf]
  %v180 = vld [vmem:[%s1 + $0x208] sm:$0xf]
  %v181 = vld [vmem:[%s1 + $0x20c] sm:$0xf]
  %v182 = vld [vmem:[%s1 + $0x210] sm:$0xf]
  %v183 = vld [vmem:[%s1 + $0x214] sm:$0xf]
  %v184 = vld [vmem:[%s1 + $0x218] sm:$0xf]
  %v185 = vld [vmem:[%s1 + $0x21c] sm:$0xf]
  %v186 = vld [vmem:[%s1 + $0x220] sm:$0xf]
  %v187 = vld [vmem:[%s1 + $0x224] sm:$0xf]
  %v188 = vld [vmem:[%s1 + $0x228] sm:$0xf]
  %v189 = vld [vmem:[%s1 + $0x22c] sm:$0xf]
  %v190 = vld [vmem:[%s1 + $0x230] sm:$0xf]
  %v191 = vld [vmem:[%s1 + $0x234] sm:$0xf]
  %v192 = vld [vmem:[%s1 + $0x238] sm:$0xf]
  %v193 = vld [vmem:[%s1 + $0x23c] sm:$0xf]
  %v194 = vld [vmem:[%s2] sm:$0x1]
  %v196 = vlaneseq
  %v197 = vshrl.u32 %v196, 7
  %v198 = vsub.s32 0, %v197
  %v199 = vrot.slane %v194, %v198
  %v236 = vunpack.c.l.b16 %v15
  %v237 = vunpack.c.h.b16 %v15
  %v238 = vunpack.c.l.b16 %v16
  %v239 = vunpack.c.h.b16 %v16
  %v240 = vunpack.c.l.b16 %v17
  %v241 = vunpack.c.h.b16 %v17
  %v242 = vunpack.c.l.b16 %v18
  %v243 = vunpack.c.h.b16 %v18
  %v244 = vunpack.c.l.b16 %v19
  %v245 = vunpack.c.l.b16 %v20
  %v246 = vunpack.c.h.b16 %v20
  %v247 = vunpack.c.l.b16 %v21
  %v248 = vunpack.c.h.b16 %v21
  %v249 = vunpack.c.l.b16 %v22
  %v250 = vunpack.c.h.b16 %v22
  %v251 = vunpack.c.l.b16 %v23
  %v252 = vunpack.c.h.b16 %v23
  %v253 = vunpack.c.l.b16 %v24
  %v254 = vunpack.c.l.b16 %v25
  %v255 = vunpack.c.h.b16 %v25
  %v256 = vunpack.c.l.b16 %v26
  %v257 = vunpack.c.h.b16 %v26
  %v258 = vunpack.c.l.b16 %v27
  %v259 = vunpack.c.h.b16 %v27
  %v260 = vunpack.c.l.b16 %v28
  %v261 = vunpack.c.h.b16 %v28
  %v262 = vunpack.c.l.b16 %v29
  %v263 = vunpack.c.l.b16 %v30
  %v264 = vunpack.c.h.b16 %v30
  %v265 = vunpack.c.l.b16 %v31
  %v266 = vunpack.c.h.b16 %v31
  %v267 = vunpack.c.l.b16 %v32
  %v268 = vunpack.c.h.b16 %v32
  %v269 = vunpack.c.l.b16 %v33
  %v270 = vunpack.c.h.b16 %v33
  %v271 = vunpack.c.l.b16 %v34
  %v272 = vunpack.c.l.b16 %v35
  %v273 = vunpack.c.h.b16 %v35
  %v274 = vunpack.c.l.b16 %v36
  %v275 = vunpack.c.h.b16 %v36
  %v276 = vunpack.c.l.b16 %v37
  %v277 = vunpack.c.h.b16 %v37
  %v278 = vunpack.c.l.b16 %v38
  %v279 = vunpack.c.h.b16 %v38
  %v280 = vunpack.c.l.b16 %v39
  %v281 = vunpack.c.l.b16 %v40
  %v282 = vunpack.c.h.b16 %v40
  %v283 = vunpack.c.l.b16 %v41
  %v284 = vunpack.c.h.b16 %v41
  %v285 = vunpack.c.l.b16 %v42
  %v286 = vunpack.c.h.b16 %v42
  %v287 = vunpack.c.l.b16 %v43
  %v288 = vunpack.c.h.b16 %v43
  %v289 = vunpack.c.l.b16 %v44
  %v290 = vunpack.c.l.b16 %v45
  %v291 = vunpack.c.h.b16 %v45
  %v292 = vunpack.c.l.b16 %v46
  %v293 = vunpack.c.h.b16 %v46
  %v294 = vunpack.c.l.b16 %v47
  %v295 = vunpack.c.h.b16 %v47
  %v296 = vunpack.c.l.b16 %v48
  %v297 = vunpack.c.h.b16 %v48
  %v298 = vunpack.c.l.b16 %v49
  %v299 = vpack.c.b16 %v245, %v236
  %v300 = vpack.c.b16 %v246, %v237
  %v301 = vpack.c.b16 %v247, %v238
  %v302 = vpack.c.b16 %v248, %v239
  %v303 = vpack.c.b16 %v249, %v240
  %v304 = vpack.c.b16 %v250, %v241
  %v305 = vpack.c.b16 %v251, %v242
  %v306 = vpack.c.b16 %v252, %v243
  %v307 = vpack.c.b16 %v253, %v244
  %v308 = vpack.c.b16 %v263, %v254
  %v309 = vpack.c.b16 %v264, %v255
  %v310 = vpack.c.b16 %v265, %v256
  %v311 = vpack.c.b16 %v266, %v257
  %v312 = vpack.c.b16 %v267, %v258
  %v313 = vpack.c.b16 %v268, %v259
  %v314 = vpack.c.b16 %v269, %v260
  %v315 = vpack.c.b16 %v270, %v261
  %v316 = vpack.c.b16 %v271, %v262
  %v317 = vpack.c.b16 %v281, %v272
  %v318 = vpack.c.b16 %v282, %v273
  %v319 = vpack.c.b16 %v283, %v274
  %v320 = vpack.c.b16 %v284, %v275
  %v321 = vpack.c.b16 %v285, %v276
  %v322 = vpack.c.b16 %v286, %v277
  %v323 = vpack.c.b16 %v287, %v278
  %v324 = vpack.c.b16 %v288, %v279
  %v325 = vpack.c.b16 %v289, %v280
  %v326 = vpack.c.b16 %v290, %v290
  %v327 = vpack.c.b16 %v291, %v291
  %v328 = vpack.c.b16 %v292, %v292
  %v329 = vpack.c.b16 %v293, %v293
  %v330 = vpack.c.b16 %v294, %v294
  %v331 = vpack.c.b16 %v295, %v295
  %v332 = vpack.c.b16 %v296, %v296
  %v333 = vpack.c.b16 %v297, %v297
  %v334 = vpack.c.b16 %v298, %v298
  %v515 = vunpack.c.l.b16 %v50
  %v516 = vunpack.c.l.b16 %v51
  %v517 = vunpack.c.l.b16 %v52
  %v518 = vunpack.c.l.b16 %v53
  %v519 = vunpack.c.l.b16 %v54
  %v520 = vunpack.c.l.b16 %v55
  %v521 = vunpack.c.l.b16 %v56
  %v522 = vunpack.c.l.b16 %v57
  %v523 = vunpack.c.l.b16 %v58
  %v524 = vunpack.c.l.b16 %v59
  %v525 = vunpack.c.l.b16 %v60
  %v526 = vunpack.c.l.b16 %v61
  %v527 = vunpack.c.l.b16 %v62
  %v528 = vunpack.c.l.b16 %v63
  %v529 = vunpack.c.l.b16 %v64
  %v530 = vunpack.c.l.b16 %v65
  %v531 = vunpack.c.l.b16 %v66
  %v532 = vunpack.c.l.b16 %v67
  %v533 = vunpack.c.l.b16 %v68
  %v534 = vunpack.c.l.b16 %v69
  %v535 = vunpack.c.l.b16 %v70
  %v536 = vunpack.c.l.b16 %v71
  %v537 = vunpack.c.l.b16 %v72
  %v538 = vunpack.c.l.b16 %v73
  %v539 = vunpack.c.l.b16 %v74
  %v540 = vunpack.c.l.b16 %v75
  %v541 = vunpack.c.l.b16 %v76
  %v542 = vunpack.c.l.b16 %v77
  %v543 = vunpack.c.l.b16 %v78
  %v544 = vunpack.c.l.b16 %v79
  %v545 = vunpack.c.l.b16 %v80
  %v546 = vunpack.c.l.b16 %v81
  %v547 = vunpack.c.l.b16 %v82
  %v548 = vunpack.c.l.b16 %v83
  %v549 = vunpack.c.l.b16 %v84
  %v550 = vunpack.c.l.b16 %v85
  %v551 = vunpack.c.l.b16 %v86
  %v552 = vunpack.c.l.b16 %v87
  %v553 = vunpack.c.l.b16 %v88
  %v554 = vunpack.c.l.b16 %v89
  %v555 = vunpack.c.l.b16 %v90
  %v556 = vunpack.c.l.b16 %v91
  %v557 = vunpack.c.l.b16 %v92
  %v558 = vunpack.c.l.b16 %v93
  %v559 = vunpack.c.l.b16 %v94
  %v560 = vunpack.c.l.b16 %v95
  %v561 = vunpack.c.l.b16 %v96
  %v562 = vunpack.c.l.b16 %v97
  %v563 = vunpack.c.l.b16 %v98
  %v564 = vunpack.c.l.b16 %v99
  %v565 = vunpack.c.l.b16 %v100
  %v566 = vunpack.c.l.b16 %v101
  %v567 = vunpack.c.l.b16 %v102
  %v568 = vunpack.c.l.b16 %v103
  %v569 = vunpack.c.l.b16 %v104
  %v570 = vunpack.c.l.b16 %v105
  %v571 = vunpack.c.l.b16 %v106
  %v572 = vunpack.c.l.b16 %v107
  %v573 = vunpack.c.l.b16 %v108
  %v574 = vunpack.c.l.b16 %v109
  %v575 = vunpack.c.l.b16 %v110
  %v576 = vunpack.c.l.b16 %v111
  %v577 = vunpack.c.l.b16 %v112
  %v578 = vunpack.c.l.b16 %v113
  %v579 = vunpack.c.l.b16 %v114
  %v580 = vunpack.c.l.b16 %v115
  %v581 = vunpack.c.l.b16 %v116
  %v582 = vunpack.c.l.b16 %v117
  %v583 = vunpack.c.l.b16 %v118
  %v584 = vunpack.c.l.b16 %v119
  %v585 = vunpack.c.l.b16 %v120
  %v586 = vunpack.c.l.b16 %v121
  %v587 = vunpack.c.l.b16 %v122
  %v588 = vunpack.c.l.b16 %v123
  %v589 = vunpack.c.l.b16 %v124
  %v590 = vunpack.c.l.b16 %v125
  %v591 = vunpack.c.l.b16 %v126
  %v592 = vunpack.c.l.b16 %v127
  %v593 = vunpack.c.l.b16 %v128
  %v594 = vunpack.c.l.b16 %v129
  %v595 = vunpack.c.l.b16 %v130
  %v596 = vunpack.c.l.b16 %v131
  %v597 = vunpack.c.l.b16 %v132
  %v598 = vunpack.c.l.b16 %v133
  %v599 = vunpack.c.l.b16 %v134
  %v600 = vunpack.c.l.b16 %v135
  %v601 = vunpack.c.l.b16 %v136
  %v602 = vunpack.c.l.b16 %v137
  %v603 = vunpack.c.l.b16 %v138
  %v604 = vunpack.c.l.b16 %v139
  %v605 = vunpack.c.l.b16 %v140
  %v606 = vunpack.c.l.b16 %v141
  %v607 = vunpack.c.l.b16 %v142
  %v608 = vunpack.c.l.b16 %v143
  %v609 = vunpack.c.l.b16 %v144
  %v610 = vunpack.c.l.b16 %v145
  %v611 = vunpack.c.l.b16 %v146
  %v612 = vunpack.c.l.b16 %v147
  %v613 = vunpack.c.l.b16 %v148
  %v614 = vunpack.c.l.b16 %v149
  %v615 = vunpack.c.l.b16 %v150
  %v616 = vunpack.c.l.b16 %v151
  %v617 = vunpack.c.l.b16 %v152
  %v618 = vunpack.c.l.b16 %v153
  %v619 = vunpack.c.l.b16 %v154
  %v620 = vunpack.c.l.b16 %v155
  %v621 = vunpack.c.l.b16 %v156
  %v622 = vunpack.c.l.b16 %v157
  %v623 = vunpack.c.l.b16 %v158
  %v624 = vunpack.c.l.b16 %v159
  %v625 = vunpack.c.l.b16 %v160
  %v626 = vunpack.c.l.b16 %v161
  %v627 = vunpack.c.l.b16 %v162
  %v628 = vunpack.c.l.b16 %v163
  %v629 = vunpack.c.l.b16 %v164
  %v630 = vunpack.c.l.b16 %v165
  %v631 = vunpack.c.l.b16 %v166
  %v632 = vunpack.c.l.b16 %v167
  %v633 = vunpack.c.l.b16 %v168
  %v634 = vunpack.c.l.b16 %v169
  %v635 = vunpack.c.l.b16 %v170
  %v636 = vunpack.c.l.b16 %v171
  %v637 = vunpack.c.l.b16 %v172
  %v638 = vunpack.c.l.b16 %v173
  %v639 = vunpack.c.l.b16 %v174
  %v640 = vunpack.c.l.b16 %v175
  %v641 = vunpack.c.l.b16 %v176
  %v642 = vunpack.c.l.b16 %v177
  %v643 = vunpack.c.l.b16 %v178
  %v644 = vunpack.c.l.b16 %v179
  %v645 = vunpack.c.l.b16 %v180
  %v646 = vunpack.c.l.b16 %v181
  %v647 = vunpack.c.l.b16 %v182
  %v648 = vunpack.c.l.b16 %v183
  %v649 = vunpack.c.l.b16 %v184
  %v650 = vunpack.c.l.b16 %v185
  %v651 = vunpack.c.l.b16 %v186
  %v652 = vunpack.c.l.b16 %v187
  %v653 = vunpack.c.l.b16 %v188
  %v654 = vunpack.c.l.b16 %v189
  %v655 = vunpack.c.l.b16 %v190
  %v656 = vunpack.c.l.b16 %v191
  %v657 = vunpack.c.l.b16 %v192
  %v658 = vunpack.c.l.b16 %v193
  %v659 = vpack.c.b16 %v516, %v515
  %v660 = vpack.c.b16 %v518, %v517
  %v661 = vpack.c.b16 %v520, %v519
  %v662 = vpack.c.b16 %v522, %v521
  %v663 = vpack.c.b16 %v524, %v523
  %v664 = vpack.c.b16 %v526, %v525
  %v665 = vpack.c.b16 %v528, %v527
  %v666 = vpack.c.b16 %v530, %v529
  %v667 = vpack.c.b16 %v532, %v531
  %v668 = vpack.c.b16 %v534, %v533
  %v669 = vpack.c.b16 %v536, %v535
  %v670 = vpack.c.b16 %v538, %v537
  %v671 = vpack.c.b16 %v540, %v539
  %v672 = vpack.c.b16 %v542, %v541
  %v673 = vpack.c.b16 %v544, %v543
  %v674 = vpack.c.b16 %v546, %v545
  %v675 = vpack.c.b16 %v548, %v547
  %v676 = vpack.c.b16 %v550, %v549
  %v677 = vpack.c.b16 %v552, %v551
  %v678 = vpack.c.b16 %v554, %v553
  %v679 = vpack.c.b16 %v556, %v555
  %v680 = vpack.c.b16 %v558, %v557
  %v681 = vpack.c.b16 %v560, %v559
  %v682 = vpack.c.b16 %v562, %v561
  %v683 = vpack.c.b16 %v564, %v563
  %v684 = vpack.c.b16 %v566, %v565
  %v685 = vpack.c.b16 %v568, %v567
  %v686 = vpack.c.b16 %v570, %v569
  %v687 = vpack.c.b16 %v572, %v571
  %v688 = vpack.c.b16 %v574, %v573
  %v689 = vpack.c.b16 %v576, %v575
  %v690 = vpack.c.b16 %v578, %v577
  %v691 = vpack.c.b16 %v580, %v579
  %v692 = vpack.c.b16 %v582, %v581
  %v693 = vpack.c.b16 %v584, %v583
  %v694 = vpack.c.b16 %v586, %v585
  %v695 = vpack.c.b16 %v588, %v587
  %v696 = vpack.c.b16 %v590, %v589
  %v697 = vpack.c.b16 %v592, %v591
  %v698 = vpack.c.b16 %v594, %v593
  %v699 = vpack.c.b16 %v596, %v595
  %v700 = vpack.c.b16 %v598, %v597
  %v701 = vpack.c.b16 %v600, %v599
  %v702 = vpack.c.b16 %v602, %v601
  %v703 = vpack.c.b16 %v604, %v603
  %v704 = vpack.c.b16 %v606, %v605
  %v705 = vpack.c.b16 %v608, %v607
  %v706 = vpack.c.b16 %v610, %v609
  %v707 = vpack.c.b16 %v612, %v611
  %v708 = vpack.c.b16 %v614, %v613
  %v709 = vpack.c.b16 %v616, %v615
  %v710 = vpack.c.b16 %v618, %v617
  %v711 = vpack.c.b16 %v620, %v619
  %v712 = vpack.c.b16 %v622, %v621
  %v713 = vpack.c.b16 %v624, %v623
  %v714 = vpack.c.b16 %v626, %v625
  %v715 = vpack.c.b16 %v628, %v627
  %v716 = vpack.c.b16 %v630, %v629
  %v717 = vpack.c.b16 %v632, %v631
  %v718 = vpack.c.b16 %v634, %v633
  %v719 = vpack.c.b16 %v636, %v635
  %v720 = vpack.c.b16 %v638, %v637
  %v721 = vpack.c.b16 %v640, %v639
  %v722 = vpack.c.b16 %v642, %v641
  %v723 = vpack.c.b16 %v644, %v643
  %v724 = vpack.c.b16 %v646, %v645
  %v725 = vpack.c.b16 %v648, %v647
  %v726 = vpack.c.b16 %v650, %v649
  %v727 = vpack.c.b16 %v652, %v651
  %v728 = vpack.c.b16 %v654, %v653
  %v729 = vpack.c.b16 %v656, %v655
  %v730 = vpack.c.b16 %v658, %v657
  %803 = vmatprep.subr.bf16.mxu0 0
  %804 = vmatpush1.bf16.msra.mxu0 %v666
  %805 = vmatprep.subr.bf16.mxu0 0
  %806 = vmatpush1.bf16.msra.mxu0 %v665
  %807 = vmatprep.subr.bf16.mxu0 0
  %808 = vmatpush1.bf16.msra.mxu0 %v664
  %809 = vmatprep.subr.bf16.mxu0 0
  %810 = vmatpush1.bf16.msra.mxu0 %v663
  %811 = vmatprep.subr.bf16.mxu0 0
  %812 = vmatpush1.bf16.msra.mxu0 %v662
  %813 = vmatprep.subr.bf16.mxu0 0
  %814 = vmatpush1.bf16.msra.mxu0 %v661
  %815 = vmatprep.subr.bf16.mxu0 0
  %816 = vmatpush1.bf16.msra.mxu0 %v660
  %817 = vmatprep.subr.bf16.mxu0 0
  %818 = vmatpush1.bf16.msra.mxu0 %v659
  %819 = vmatprep.subr.bf16.mxu0 0
  %820 = vmatpush2.bf16.msra.mxu0 %v674
  %821 = vmatprep.subr.bf16.mxu0 0
  %822 = vmatpush2.bf16.msra.mxu0 %v673
  %823 = vmatprep.subr.bf16.mxu0 0
  %824 = vmatpush2.bf16.msra.mxu0 %v672
  %825 = vmatprep.subr.bf16.mxu0 0
  %826 = vmatpush2.bf16.msra.mxu0 %v671
  %827 = vmatprep.subr.bf16.mxu0 0
  %828 = vmatpush2.bf16.msra.mxu0 %v670
  %829 = vmatprep.subr.bf16.mxu0 0
  %830 = vmatpush2.bf16.msra.mxu0 %v669
  %831 = vmatprep.subr.bf16.mxu0 0
  %832 = vmatpush2.bf16.msra.mxu0 %v668
  %833 = vmatprep.subr.bf16.mxu0 0
  %834 = vmatpush2.bf16.msra.mxu0 %v667
  %835 = vmatprep.mubr.bf16.mxu0 %v300
  %836 = vmatmul.mubr.bf16.gmra.mxu0 %v299
  %v837 = vpop.f32.mrf.mxu0
  %v838 = vadd.f32 %v199, %v837
  %v839 = vpop.f32.mrf.mxu0
  %v840 = vpop.f32.mrf.mxu0
  %v841 = vadd.f32 %v199, %v840
  %v842 = vpop.f32.mrf.mxu0
  %843 = vmatprep.mubr.bf16.mxu0 %v309
  %844 = vmatmul.mubr.bf16.gmra.mxu0 %v308
  %v845 = vpop.f32.mrf.mxu0
  %v846 = vadd.f32 %v199, %v845
  %v847 = vpop.f32.mrf.mxu0
  %v848 = vpop.f32.mrf.mxu0
  %v849 = vadd.f32 %v199, %v848
  %v850 = vpop.f32.mrf.mxu0
  %851 = vmatprep.mubr.bf16.mxu0 %v318
  %852 = vmatmul.mubr.bf16.gmra.mxu0 %v317
  %v853 = vpop.f32.mrf.mxu0
  %v854 = vadd.f32 %v199, %v853
  %v855 = vpop.f32.mrf.mxu0
  %v856 = vpop.f32.mrf.mxu0
  %v857 = vadd.f32 %v199, %v856
  %v858 = vpop.f32.mrf.mxu0
  %859 = vmatprep.mubr.bf16.mxu0 %v327
  %860 = vmatmul.mubr.bf16.gmra.mxu0 %v326
  %v861 = vpop.f32.mrf.mxu0
  %v862 = vadd.f32 %v199, %v861
  %v863 = vpop.f32.mrf.mxu0
  %v864 = vpop.f32.mrf.mxu0
  %v865 = vpop.f32.mrf.mxu0
  %866 = vdwg.mxu0
  %867 = vmatprep.subr.bf16.mxu0 0
  %868 = vmatpush1.bf16.msra.mxu0 %v682
  %869 = vmatprep.subr.bf16.mxu0 0
  %870 = vmatpush1.bf16.msra.mxu0 %v681
  %871 = vmatprep.subr.bf16.mxu0 0
  %872 = vmatpush1.bf16.msra.mxu0 %v680
  %873 = vmatprep.subr.bf16.mxu0 0
  %874 = vmatpush1.bf16.msra.mxu0 %v679
  %875 = vmatprep.subr.bf16.mxu0 0
  %876 = vmatpush1.bf16.msra.mxu0 %v678
  %877 = vmatprep.subr.bf16.mxu0 0
  %878 = vmatpush1.bf16.msra.mxu0 %v677
  %879 = vmatprep.subr.bf16.mxu0 0
  %880 = vmatpush1.bf16.msra.mxu0 %v676
  %881 = vmatprep.subr.bf16.mxu0 0
  %882 = vmatpush1.bf16.msra.mxu0 %v675
  %883 = vmatprep.subr.bf16.mxu0 0
  %884 = vmatpush2.bf16.msra.mxu0 %v690
  %885 = vmatprep.subr.bf16.mxu0 0
  %886 = vmatpush2.bf16.msra.mxu0 %v689
  %887 = vmatprep.subr.bf16.mxu0 0
  %888 = vmatpush2.bf16.msra.mxu0 %v688
  %889 = vmatprep.subr.bf16.mxu0 0
  %890 = vmatpush2.bf16.msra.mxu0 %v687
  %891 = vmatprep.subr.bf16.mxu0 0
  %892 = vmatpush2.bf16.msra.mxu0 %v686
  %893 = vmatprep.subr.bf16.mxu0 0
  %894 = vmatpush2.bf16.msra.mxu0 %v685
  %895 = vmatprep.subr.bf16.mxu0 0
  %896 = vmatpush2.bf16.msra.mxu0 %v684
  %897 = vmatprep.subr.bf16.mxu0 0
  %898 = vmatpush2.bf16.msra.mxu0 %v683
  %899 = vmatprep.mubr.bf16.mxu0 %v302
  %900 = vmatmul.mubr.bf16.gmra.mxu0 %v301
  %v901 = vpop.f32.mrf.mxu0
  %v902 = vadd.f32 %v838, %v901
  %v903 = vpop.f32.mrf.mxu0
  %v904 = vpop.f32.mrf.mxu0
  %v905 = vadd.f32 %v841, %v904
  %v906 = vpop.f32.mrf.mxu0
  %907 = vmatprep.mubr.bf16.mxu0 %v311
  %908 = vmatmul.mubr.bf16.gmra.mxu0 %v310
  %v909 = vpop.f32.mrf.mxu0
  %v910 = vadd.f32 %v846, %v909
  %v911 = vpop.f32.mrf.mxu0
  %v912 = vpop.f32.mrf.mxu0
  %v913 = vadd.f32 %v849, %v912
  %v914 = vpop.f32.mrf.mxu0
  %915 = vmatprep.mubr.bf16.mxu0 %v320
  %916 = vmatmul.mubr.bf16.gmra.mxu0 %v319
  %v917 = vpop.f32.mrf.mxu0
  %v918 = vadd.f32 %v854, %v917
  %v919 = vpop.f32.mrf.mxu0
  %v920 = vpop.f32.mrf.mxu0
  %v921 = vadd.f32 %v857, %v920
  %v922 = vpop.f32.mrf.mxu0
  %923 = vmatprep.mubr.bf16.mxu0 %v329
  %924 = vmatmul.mubr.bf16.gmra.mxu0 %v328
  %v925 = vpop.f32.mrf.mxu0
  %v926 = vadd.f32 %v862, %v925
  %v927 = vpop.f32.mrf.mxu0
  %v928 = vpop.f32.mrf.mxu0
  %v929 = vpop.f32.mrf.mxu0
  %930 = vdwg.mxu0
  %931 = vmatprep.subr.bf16.mxu0 0
  %932 = vmatpush1.bf16.msra.mxu0 %v698
  %933 = vmatprep.subr.bf16.mxu0 0
  %934 = vmatpush1.bf16.msra.mxu0 %v697
  %935 = vmatprep.subr.bf16.mxu0 0
  %936 = vmatpush1.bf16.msra.mxu0 %v696
  %937 = vmatprep.subr.bf16.mxu0 0
  %938 = vmatpush1.bf16.msra.mxu0 %v695
  %939 = vmatprep.subr.bf16.mxu0 0
  %940 = vmatpush1.bf16.msra.mxu0 %v694
  %941 = vmatprep.subr.bf16.mxu0 0
  %942 = vmatpush1.bf16.msra.mxu0 %v693
  %943 = vmatprep.subr.bf16.mxu0 0
  %944 = vmatpush1.bf16.msra.mxu0 %v692
  %945 = vmatprep.subr.bf16.mxu0 0
  %946 = vmatpush1.bf16.msra.mxu0 %v691
  %947 = vmatprep.subr.bf16.mxu0 0
  %948 = vmatpush2.bf16.msra.mxu0 %v706
  %949 = vmatprep.subr.bf16.mxu0 0
  %950 = vmatpush2.bf16.msra.mxu0 %v705
  %951 = vmatprep.subr.bf16.mxu0 0
  %952 = vmatpush2.bf16.msra.mxu0 %v704
  %953 = vmatprep.subr.bf16.mxu0 0
  %954 = vmatpush2.bf16.msra.mxu0 %v703
  %955 = vmatprep.subr.bf16.mxu0 0
  %956 = vmatpush2.bf16.msra.mxu0 %v702
  %957 = vmatprep.subr.bf16.mxu0 0
  %958 = vmatpush2.bf16.msra.mxu0 %v701
  %959 = vmatprep.subr.bf16.mxu0 0
  %960 = vmatpush2.bf16.msra.mxu0 %v700
  %961 = vmatprep.subr.bf16.mxu0 0
  %962 = vmatpush2.bf16.msra.mxu0 %v699
  %963 = vmatprep.mubr.bf16.mxu0 %v304
  %964 = vmatmul.mubr.bf16.gmra.mxu0 %v303
  %v965 = vpop.f32.mrf.mxu0
  %v966 = vadd.f32 %v902, %v965
  %v967 = vpop.f32.mrf.mxu0
  %v968 = vpop.f32.mrf.mxu0
  %v969 = vadd.f32 %v905, %v968
  %v970 = vpop.f32.mrf.mxu0
  %971 = vmatprep.mubr.bf16.mxu0 %v313
  %972 = vmatmul.mubr.bf16.gmra.mxu0 %v312
  %v973 = vpop.f32.mrf.mxu0
  %v974 = vadd.f32 %v910, %v973
  %v975 = vpop.f32.mrf.mxu0
  %v976 = vpop.f32.mrf.mxu0
  %v977 = vadd.f32 %v913, %v976
  %v978 = vpop.f32.mrf.mxu0
  %979 = vmatprep.mubr.bf16.mxu0 %v322
  %980 = vmatmul.mubr.bf16.gmra.mxu0 %v321
  %v981 = vpop.f32.mrf.mxu0
  %v982 = vadd.f32 %v918, %v981
  %v983 = vpop.f32.mrf.mxu0
  %v984 = vpop.f32.mrf.mxu0
  %v985 = vadd.f32 %v921, %v984
  %v986 = vpop.f32.mrf.mxu0
  %987 = vmatprep.mubr.bf16.mxu0 %v331
  %988 = vmatmul.mubr.bf16.gmra.mxu0 %v330
  %v989 = vpop.f32.mrf.mxu0
  %v990 = vadd.f32 %v926, %v989
  %v991 = vpop.f32.mrf.mxu0
  %v992 = vpop.f32.mrf.mxu0
  %v993 = vpop.f32.mrf.mxu0
  %994 = vdwg.mxu0
  %995 = vmatprep.subr.bf16.mxu0 0
  %996 = vmatpush1.bf16.msra.mxu0 %v714
  %997 = vmatprep.subr.bf16.mxu0 0
  %998 = vmatpush1.bf16.msra.mxu0 %v713
  %999 = vmatprep.subr.bf16.mxu0 0
  %1000 = vmatpush1.bf16.msra.mxu0 %v712
  %1001 = vmatprep.subr.bf16.mxu0 0
  %1002 = vmatpush1.bf16.msra.mxu0 %v711
  %1003 = vmatprep.subr.bf16.mxu0 0
  %1004 = vmatpush1.bf16.msra.mxu0 %v710
  %1005 = vmatprep.subr.bf16.mxu0 0
  %1006 = vmatpush1.bf16.msra.mxu0 %v709
  %1007 = vmatprep.subr.bf16.mxu0 0
  %1008 = vmatpush1.bf16.msra.mxu0 %v708
  %1009 = vmatprep.subr.bf16.mxu0 0
  %1010 = vmatpush1.bf16.msra.mxu0 %v707
  %1011 = vmatprep.subr.bf16.mxu0 0
  %1012 = vmatpush2.bf16.msra.mxu0 %v722
  %1013 = vmatprep.subr.bf16.mxu0 0
  %1014 = vmatpush2.bf16.msra.mxu0 %v721
  %1015 = vmatprep.subr.bf16.mxu0 0
  %1016 = vmatpush2.bf16.msra.mxu0 %v720
  %1017 = vmatprep.subr.bf16.mxu0 0
  %1018 = vmatpush2.bf16.msra.mxu0 %v719
  %1019 = vmatprep.subr.bf16.mxu0 0
  %1020 = vmatpush2.bf16.msra.mxu0 %v718
  %1021 = vmatprep.subr.bf16.mxu0 0
  %1022 = vmatpush2.bf16.msra.mxu0 %v717
  %1023 = vmatprep.subr.bf16.mxu0 0
  %1024 = vmatpush2.bf16.msra.mxu0 %v716
  %1025 = vmatprep.subr.bf16.mxu0 0
  %1026 = vmatpush2.bf16.msra.mxu0 %v715
  %1027 = vmatprep.mubr.bf16.mxu0 %v306
  %1028 = vmatmul.mubr.bf16.gmra.mxu0 %v305
  %v1029 = vpop.f32.mrf.mxu0
  %v1030 = vadd.f32 %v966, %v1029
  %v1031 = vpop.f32.mrf.mxu0
  %v1032 = vpop.f32.mrf.mxu0
  %v1033 = vadd.f32 %v969, %v1032
  %v1034 = vpop.f32.mrf.mxu0
  %1035 = vmatprep.mubr.bf16.mxu0 %v315
  %1036 = vmatmul.mubr.bf16.gmra.mxu0 %v314
  %v1037 = vpop.f32.mrf.mxu0
  %v1038 = vadd.f32 %v974, %v1037
  %v1039 = vpop.f32.mrf.mxu0
  %v1040 = vpop.f32.mrf.mxu0
  %v1041 = vadd.f32 %v977, %v1040
  %v1042 = vpop.f32.mrf.mxu0
  %1043 = vmatprep.mubr.bf16.mxu0 %v324
  %1044 = vmatmul.mubr.bf16.gmra.mxu0 %v323
  %v1045 = vpop.f32.mrf.mxu0
  %v1046 = vadd.f32 %v982, %v1045
  %v1047 = vpop.f32.mrf.mxu0
  %v1048 = vpop.f32.mrf.mxu0
  %v1049 = vadd.f32 %v985, %v1048
  %v1050 = vpop.f32.mrf.mxu0
  %1051 = vmatprep.mubr.bf16.mxu0 %v333
  %1052 = vmatmul.mubr.bf16.gmra.mxu0 %v332
  %v1053 = vpop.f32.mrf.mxu0
  %v1054 = vadd.f32 %v990, %v1053
  %v1055 = vpop.f32.mrf.mxu0
  %v1056 = vpop.f32.mrf.mxu0
  %v1057 = vpop.f32.mrf.mxu0
  %1058 = vdwg.mxu0
  %1059 = vmatprep.subr.bf16.mxu0 0
  %1060 = vmatpush1.bf16.msra.mxu0 %v730
  %1061 = vmatprep.subr.bf16.mxu0 0
  %1062 = vmatpush1.bf16.msra.mxu0 %v729
  %1063 = vmatprep.subr.bf16.mxu0 0
  %1064 = vmatpush1.bf16.msra.mxu0 %v728
  %1065 = vmatprep.subr.bf16.mxu0 0
  %1066 = vmatpush1.bf16.msra.mxu0 %v727
  %1067 = vmatprep.subr.bf16.mxu0 0
  %1068 = vmatpush1.bf16.msra.mxu0 %v726
  %1069 = vmatprep.subr.bf16.mxu0 0
  %1070 = vmatpush1.bf16.msra.mxu0 %v725
  %1071 = vmatprep.subr.bf16.mxu0 0
  %1072 = vmatpush1.bf16.msra.mxu0 %v724
  %1073 = vmatprep.subr.bf16.mxu0 0
  %1074 = vmatpush1.bf16.msra.mxu0 %v723
  %1075 = vmatprep.subr.bf16.mxu0 0
  %1076 = vmatpush2.bf16.msra.mxu0 0
  %1077 = vmatprep.subr.bf16.mxu0 0
  %1078 = vmatpush2.bf16.msra.mxu0 0
  %1079 = vmatprep.subr.bf16.mxu0 0
  %1080 = vmatpush2.bf16.msra.mxu0 0
  %1081 = vmatprep.subr.bf16.mxu0 0
  %1082 = vmatpush2.bf16.msra.mxu0 0
  %1083 = vmatprep.subr.bf16.mxu0 0
  %1084 = vmatpush2.bf16.msra.mxu0 0
  %1085 = vmatprep.subr.bf16.mxu0 0
  %1086 = vmatpush2.bf16.msra.mxu0 0
  %1087 = vmatprep.subr.bf16.mxu0 0
  %1088 = vmatpush2.bf16.msra.mxu0 0
  %1089 = vmatprep.subr.bf16.mxu0 0
  %1090 = vmatpush2.bf16.msra.mxu0 0
  %1091 = vmatprep.mubr.bf16.mxu0 0
  %1092 = vmatmul.mubr.bf16.gmra.mxu0 %v307
  %v1093 = vpop.f32.mrf.mxu0
  %v1094 = vadd.f32 %v1030, %v1093
  %v1095 = vpop.f32.mrf.mxu0
  %v1096 = vpop.f32.mrf.mxu0
  %v1097 = vadd.f32 %v1033, %v1096
  %v1098 = vpop.f32.mrf.mxu0
  %1099 = vmatprep.mubr.bf16.mxu0 0
  %1100 = vmatmul.mubr.bf16.gmra.mxu0 %v316
  %v1101 = vpop.f32.mrf.mxu0
  %v1102 = vadd.f32 %v1038, %v1101
  %v1103 = vpop.f32.mrf.mxu0
  %v1104 = vpop.f32.mrf.mxu0
  %v1105 = vadd.f32 %v1041, %v1104
  %v1106 = vpop.f32.mrf.mxu0
  %1107 = vmatprep.mubr.bf16.mxu0 0
  %1108 = vmatmul.mubr.bf16.gmra.mxu0 %v325
  %v1109 = vpop.f32.mrf.mxu0
  %v1110 = vadd.f32 %v1046, %v1109
  %v1111 = vpop.f32.mrf.mxu0
  %v1112 = vpop.f32.mrf.mxu0
  %v1113 = vadd.f32 %v1049, %v1112
  %v1114 = vpop.f32.mrf.mxu0
  %1115 = vmatprep.mubr.bf16.mxu0 0
  %1116 = vmatmul.mubr.bf16.gmra.mxu0 %v334
  %v1117 = vpop.f32.mrf.mxu0
  %v1118 = vadd.f32 %v1054, %v1117
  %v1119 = vpop.f32.mrf.mxu0
  %v1120 = vpop.f32.mrf.mxu0
  %v1121 = vpop.f32.mrf.mxu0
  %1122 = vdwg.mxu0
  %v1123 = vmax.f32 %v1094, 0.0
  %v1124 = vmax.f32 %v1097, 0.0
  %v1125 = vmax.f32 %v1102, 0.0
  %v1126 = vmax.f32 %v1105, 0.0
  %v1127 = vmax.f32 %v1110, 0.0
  %v1128 = vmax.f32 %v1113, 0.0
  %v1129 = vmax.f32 %v1118, 0.0
  %v1130 = vpack.c.bf16 %v1124, %v1123
  %v1131 = vpack.c.bf16 %v1126, %v1125
  %v1132 = vpack.c.bf16 %v1128, %v1127
  %v1133 = vpack.c.bf16 %v1129, %v1129
  %v1138 = vunpack.c.l.b16 %v1130
  %v1139 = vunpack.c.h.b16 %v1130
  %v1140 = vunpack.c.l.b16 %v1131
  %v1141 = vunpack.c.h.b16 %v1131
  %v1142 = vunpack.c.l.b16 %v1132
  %v1143 = vunpack.c.h.b16 %v1132
  %v1144 = vunpack.c.l.b16 %v1133
  %v1145 = vpack.c.b16 %v1138, %v1138
  %v1146 = vpack.c.b16 %v1139, %v1139
  %v1147 = vpack.c.b16 %v1140, %v1140
  %v1148 = vpack.c.b16 %v1141, %v1141
  %v1149 = vpack.c.b16 %v1142, %v1142
  %v1150 = vpack.c.b16 %v1143, %v1143
  %v1151 = vpack.c.b16 %v1144, %v1144
  %1159 = vst [vmem:[%s3] sm:$0xf] %v1145
  %1160 = vst [vmem:[%s3 + $0x4] sm:$0xf] %v1146
  %1161 = vst [vmem:[%s3 + $0x8] sm:$0xf] %v1147
  %1162 = vst [vmem:[%s3 + $0xc] sm:$0xf] %v1148
  %1163 = vst [vmem:[%s3 + $0x10] sm:$0xf] %v1149
  %1164 = vst [vmem:[%s3 + $0x14] sm:$0xf] %v1150
  %1165 = vst [vmem:[%s3 + $0x18] sm:$0xf] %v1151
  // Predicated region
  $region14: #{dqn_forward.8} parent=0 // pred_check
    _
  $region15: #{dqn_forward.8} parent=0 // pred_check_branch
    %1167 = sbr.rel (0) target = $region17
  $region16: #{dqn_forward.8} parent=0 // pred_region
    _
  $region17: #{dqn_forward.8} parent=0 // pred_fallthru
    _
  // Predicated region
  $region18: #{dqn_forward.8} parent=0 // pred_check
    _
  $region19: #{dqn_forward.8} parent=0 // pred_check_branch
    %1169 = sbr.rel (0) target = $region21
  $region20: #{dqn_forward.8} parent=0 // pred_region
    _
  $region21: #{dqn_forward.8} parent=0 // pred_fallthru
    _

// kernel: dqn_forward.9
$region0: #{dqn_forward.9}
  #allocation0 [shape = 'u32[]', space=smem, size = 0x4, offset = 0x4, fixed_abs, tag = 'smem constant byte address 0x4 - core index']
  #allocation1 [shape = 'u32[144,128]{1,0:T(1,128)}', space=vmem, size = 0x12000, scoped, tag = 'internal scratch']
  %s0 = inlined_call_operand.vmem [shape: bf16[8,3200], index: 0, kind: input, shape index: {}]
  %s1 = inlined_call_operand.vmem [shape: bf16[3200,512], index: 1, kind: input, shape index: {}]
  %s2 = inlined_call_operand.vmem [shape: f32[1,512], index: 2, kind: input, shape index: {}]
  %s3 = inlined_call_operand.vmem [shape: bf16[512,6], index: 3, kind: input, shape index: {}]
  %s4 = inlined_call_operand.vmem [shape: f32[1,6], index: 4, kind: input, shape index: {}]
  %s5 = inlined_call_operand.vmem [shape: f32[8,6], index: 5, kind: output, shape index: {}]
  %s6 = sld [smem:[#allocation0]]
  $region30: #{dqn_forward.9} parent=0
    _
  %s8 = ssub.s32 1, %s6
  %s9 = scalar_select 0, %s8, %s6
  // Predicated region
  $region2: #{dqn_forward.9} parent=0 // pred_check
    _
  $region3: #{dqn_forward.9} parent=0 // pred_check_branch
    %11 = sbr.rel (0) target = $region5
  $region4: #{dqn_forward.9} parent=0 // pred_region
    _
  $region5: #{dqn_forward.9} parent=0 // pred_fallthru
    _
  // Predicated region
  $region6: #{dqn_forward.9} parent=0 // pred_check
    _
  $region7: #{dqn_forward.9} parent=0 // pred_check_branch
    %13 = sbr.rel (0) target = $region9
  $region8: #{dqn_forward.9} parent=0 // pred_region
    _
  $region9: #{dqn_forward.9} parent=0 // pred_fallthru
    _
  // Predicated region
  $region10: #{dqn_forward.9} parent=0 // pred_check
    _
  $region11: #{dqn_forward.9} parent=0 // pred_check_branch
    %15 = sbr.rel (0) target = $region13
  $region12: #{dqn_forward.9} parent=0 // pred_region
    _
  $region13: #{dqn_forward.9} parent=0 // pred_fallthru
    _
  // Predicated region
  $region14: #{dqn_forward.9} parent=0 // pred_check
    _
  $region15: #{dqn_forward.9} parent=0 // pred_check_branch
    %17 = sbr.rel (0) target = $region17
  $region16: #{dqn_forward.9} parent=0 // pred_region
    _
  $region17: #{dqn_forward.9} parent=0 // pred_fallthru
    _
  // Predicated region
  $region18: #{dqn_forward.9} parent=0 // pred_check
    _
  $region19: #{dqn_forward.9} parent=0 // pred_check_branch
    %19 = sbr.rel (0) target = $region21
  $region20: #{dqn_forward.9} parent=0 // pred_region
    _
  $region21: #{dqn_forward.9} parent=0 // pred_fallthru
    _
  %v21 = vld [vmem:[%s0] sm:$0xff]
  %v22 = vld [vmem:[%s0 + $0x8] sm:$0xff]
  %v23 = vld [vmem:[%s0 + $0x10] sm:$0xff]
  %v24 = vld [vmem:[%s0 + $0x18] sm:$0xff]
  %v25 = vld [vmem:[%s0 + $0x20] sm:$0xff]
  %v26 = vld [vmem:[%s0 + $0x28] sm:$0xff]
  %v27 = vld [vmem:[%s0 + $0x30] sm:$0xff]
  %v28 = vld [vmem:[%s0 + $0x38] sm:$0xff]
  %v29 = vld [vmem:[%s0 + $0x40] sm:$0xff]
  %v30 = vld [vmem:[%s0 + $0x48] sm:$0xff]
  %v31 = vld [vmem:[%s0 + $0x50] sm:$0xff]
  %v32 = vld [vmem:[%s0 + $0x58] sm:$0xff]
  %v33 = vld [vmem:[%s0 + $0x60] sm:$0xf]
  %v34 = vld [vmem:[%s1] sm:$0xff]
  %v35 = vld [vmem:[%s1 + $0x8] sm:$0xff]
  %v36 = vld [vmem:[%s1 + $0x10] sm:$0xff]
  %v37 = vld [vmem:[%s1 + $0x18] sm:$0xff]
  %v38 = vld [vmem:[%s1 + $0x20] sm:$0xff]
  %v39 = vld [vmem:[%s1 + $0x28] sm:$0xff]
  %v40 = vld [vmem:[%s1 + $0x30] sm:$0xff]
  %v41 = vld [vmem:[%s1 + $0x38] sm:$0xff]
  %v42 = vld [vmem:[%s1 + $0x40] sm:$0xff]
  %v43 = vld [vmem:[%s1 + $0x48] sm:$0xff]
  %v44 = vld [vmem:[%s1 + $0x50] sm:$0xff]
  %v45 = vld [vmem:[%s1 + $0x58] sm:$0xff]
  %v46 = vld [vmem:[%s1 + $0x60] sm:$0xff]
  %v47 = vld [vmem:[%s1 + $0x68] sm:$0xff]
  %v48 = vld [vmem:[%s1 + $0x70] sm:$0xff]
  %v49 = vld [vmem:[%s1 + $0x78] sm:$0xff]
  %v50 = vld [vmem:[%s1 + $0x80] sm:$0xff]
  %v51 = vld [vmem:[%s1 + $0x88] sm:$0xff]
  %v52 = vld [vmem:[%s1 + $0x90] sm:$0xff]
  %v53 = vld [vmem:[%s1 + $0x98] sm:$0xff]
  %v54 = vld [vmem:[%s1 + $0xa0] sm:$0xff]
  %v55 = vld [vmem:[%s1 + $0xa8] sm:$0xff]
  %v56 = vld [vmem:[%s1 + $0xb0] sm:$0xff]
  %v57 = vld [vmem:[%s1 + $0xb8] sm:$0xff]
  %v58 = vld [vmem:[%s1 + $0xc0] sm:$0xff]
  %v59 = vld [vmem:[%s1 + $0xc8] sm:$0xff]
  %v60 = vld [vmem:[%s1 + $0xd0] sm:$0xff]
  %v61 = vld [vmem:[%s1 + $0xd8] sm:$0xff]
  %v62 = vld [vmem:[%s1 + $0xe0] sm:$0xff]
  %v63 = vld [vmem:[%s1 + $0xe8] sm:$0xff]
  %v64 = vld [vmem:[%s1 + $0xf0] sm:$0xff]
  %v65 = vld [vmem:[%s1 + $0xf8] sm:$0xff]
  %v66 = vld [vmem:[%s1 + $0x100] sm:$0xff]
  %v67 = vld [vmem:[%s1 + $0x108] sm:$0xff]
  %v68 = vld [vmem:[%s1 + $0x110] sm:$0xff]
  %v69 = vld [vmem:[%s1 + $0x118] sm:$0xff]
  %v70 = vld [vmem:[%s1 + $0x120] sm:$0xff]
  %v71 = vld [vmem:[%s1 + $0x128] sm:$0xff]
  %v72 = vld [vmem:[%s1 + $0x130] sm:$0xff]
  %v73 = vld [vmem:[%s1 + $0x138] sm:$0xff]
  %v74 = vld [vmem:[%s1 + $0x140] sm:$0xff]
  %v75 = vld [vmem:[%s1 + $0x148] sm:$0xff]
  %v76 = vld [vmem:[%s1 + $0x150] sm:$0xff]
  %v77 = vld [vmem:[%s1 + $0x158] sm:$0xff]
  %v78 = vld [vmem:[%s1 + $0x160] sm:$0xff]
  %v79 = vld [vmem:[%s1 + $0x168] sm:$0xff]
  %v80 = vld [vmem:[%s1 + $0x170] sm:$0xff]
  %v81 = vld [vmem:[%s1 + $0x178] sm:$0xff]
  %v82 = vld [vmem:[%s1 + $0x180] sm:$0xff]
  %v83 = vld [vmem:[%s1 + $0x188] sm:$0xff]
  %v84 = vld [vmem:[%s1 + $0x190] sm:$0xff]
  %v85 = vld [vmem:[%s1 + $0x198] sm:$0xff]
  %v86 = vld [vmem:[%s1 + $0x1a0] sm:$0xff]
  %v87 = vld [vmem:[%s1 + $0x1a8] sm:$0xff]
  %v88 = vld [vmem:[%s1 + $0x1b0] sm:$0xff]
  %v89 = vld [vmem:[%s1 + $0x1b8] sm:$0xff]
  %v90 = vld [vmem:[%s1 + $0x1c0] sm:$0xff]
  %v91 = vld [vmem:[%s1 + $0x1c8] sm:$0xff]
  %v92 = vld [vmem:[%s1 + $0x1d0] sm:$0xff]
  %v93 = vld [vmem:[%s1 + $0x1d8] sm:$0xff]
  %v94 = vld [vmem:[%s1 + $0x1e0] sm:$0xff]
  %v95 = vld [vmem:[%s1 + $0x1e8] sm:$0xff]
  %v96 = vld [vmem:[%s1 + $0x1f0] sm:$0xff]
  %v97 = vld [vmem:[%s1 + $0x1f8] sm:$0xff]
  %v98 = vld [vmem:[%s1 + $0x200] sm:$0xff]
  %v99 = vld [vmem:[%s1 + $0x208] sm:$0xff]
  %v100 = vld [vmem:[%s1 + $0x210] sm:$0xff]
  %v101 = vld [vmem:[%s1 + $0x218] sm:$0xff]
  %v102 = vld [vmem:[%s1 + $0x220] sm:$0xff]
  %v103 = vld [vmem:[%s1 + $0x228] sm:$0xff]
  %v104 = vld [vmem:[%s1 + $0x230] sm:$0xff]
  %v105 = vld [vmem:[%s1 + $0x238] sm:$0xff]
  %v106 = vld [vmem:[%s1 + $0x240] sm:$0xff]
  %v107 = vld [vmem:[%s1 + $0x248] sm:$0xff]
  %v108 = vld [vmem:[%s1 + $0x250] sm:$0xff]
  %v109 = vld [vmem:[%s1 + $0x258] sm:$0xff]
  %v110 = vld [vmem:[%s1 + $0x260] sm:$0xff]
  %v111 = vld [vmem:[%s1 + $0x268] sm:$0xff]
  %v112 = vld [vmem:[%s1 + $0x270] sm:$0xff]
  %v113 = vld [vmem:[%s1 + $0x278] sm:$0xff]
  %v114 = vld [vmem:[%s1 + $0x280] sm:$0xff]
  %v115 = vld [vmem:[%s1 + $0x288] sm:$0xff]
  %v116 = vld [vmem:[%s1 + $0x290] sm:$0xff]
  %v117 = vld [vmem:[%s1 + $0x298] sm:$0xff]
  %v118 = vld [vmem:[%s1 + $0x2a0] sm:$0xff]
  %v119 = vld [vmem:[%s1 + $0x2a8] sm:$0xff]
  %v120 = vld [vmem:[%s1 + $0x2b0] sm:$0xff]
  %v121 = vld [vmem:[%s1 + $0x2b8] sm:$0xff]
  %v122 = vld [vmem:[%s1 + $0x2c0] sm:$0xff]
  %v123 = vld [vmem:[%s1 + $0x2c8] sm:$0xff]
  %v124 = vld [vmem:[%s1 + $0x2d0] sm:$0xff]
  %v125 = vld [vmem:[%s1 + $0x2d8] sm:$0xff]
  %v126 = vld [vmem:[%s1 + $0x2e0] sm:$0xff]
  %v127 = vld [vmem:[%s1 + $0x2e8] sm:$0xff]
  %v128 = vld [vmem:[%s1 + $0x2f0] sm:$0xff]
  %v129 = vld [vmem:[%s1 + $0x2f8] sm:$0xff]
  %v130 = vld [vmem:[%s1 + $0x300] sm:$0xff]
  %v131 = vld [vmem:[%s1 + $0x308] sm:$0xff]
  %v132 = vld [vmem:[%s1 + $0x310] sm:$0xff]
  %v133 = vld [vmem:[%s1 + $0x318] sm:$0xff]
  %v134 = vld [vmem:[%s1 + $0x320] sm:$0xff]
  %v135 = vld [vmem:[%s1 + $0x328] sm:$0xff]
  %v136 = vld [vmem:[%s1 + $0x330] sm:$0xff]
  %v137 = vld [vmem:[%s1 + $0x338] sm:$0xff]
  %v138 = vld [vmem:[%s1 + $0x340] sm:$0xff]
  %v139 = vld [vmem:[%s1 + $0x348] sm:$0xff]
  %v140 = vld [vmem:[%s1 + $0x350] sm:$0xff]
  %v141 = vld [vmem:[%s1 + $0x358] sm:$0xff]
  %v142 = vld [vmem:[%s1 + $0x360] sm:$0xff]
  %v143 = vld [vmem:[%s1 + $0x368] sm:$0xff]
  %v144 = vld [vmem:[%s1 + $0x370] sm:$0xff]
  %v145 = vld [vmem:[%s1 + $0x378] sm:$0xff]
  %v146 = vld [vmem:[%s1 + $0x380] sm:$0xff]
  %v147 = vld [vmem:[%s1 + $0x388] sm:$0xff]
  %v148 = vld [vmem:[%s1 + $0x390] sm:$0xff]
  %v149 = vld [vmem:[%s1 + $0x398] sm:$0xff]
  %v150 = vld [vmem:[%s1 + $0x3a0] sm:$0xff]
  %v151 = vld [vmem:[%s1 + $0x3a8] sm:$0xff]
  %v152 = vld [vmem:[%s1 + $0x3b0] sm:$0xff]
  %v153 = vld [vmem:[%s1 + $0x3b8] sm:$0xff]
  %v154 = vld [vmem:[%s1 + $0x3c0] sm:$0xff]
  %v155 = vld [vmem:[%s1 + $0x3c8] sm:$0xff]
  %v156 = vld [vmem:[%s1 + $0x3d0] sm:$0xff]
  %v157 = vld [vmem:[%s1 + $0x3d8] sm:$0xff]
  %v158 = vld [vmem:[%s1 + $0x3e0] sm:$0xff]
  %v159 = vld [vmem:[%s1 + $0x3e8] sm:$0xff]
  %v160 = vld [vmem:[%s1 + $0x3f0] sm:$0xff]
  %v161 = vld [vmem:[%s1 + $0x3f8] sm:$0xff]
  %v162 = vld [vmem:[%s1 + $0x400] sm:$0xff]
  %v163 = vld [vmem:[%s1 + $0x408] sm:$0xff]
  %v164 = vld [vmem:[%s1 + $0x410] sm:$0xff]
  %v165 = vld [vmem:[%s1 + $0x418] sm:$0xff]
  %v166 = vld [vmem:[%s1 + $0x420] sm:$0xff]
  %v167 = vld [vmem:[%s1 + $0x428] sm:$0xff]
  %v168 = vld [vmem:[%s1 + $0x430] sm:$0xff]
  %v169 = vld [vmem:[%s1 + $0x438] sm:$0xff]
  %v170 = vld [vmem:[%s1 + $0x440] sm:$0xff]
  %v171 = vld [vmem:[%s1 + $0x448] sm:$0xff]
  %v172 = vld [vmem:[%s1 + $0x450] sm:$0xff]
  %v173 = vld [vmem:[%s1 + $0x458] sm:$0xff]
  %v174 = vld [vmem:[%s1 + $0x460] sm:$0xff]
  %v175 = vld [vmem:[%s1 + $0x468] sm:$0xff]
  %v176 = vld [vmem:[%s1 + $0x470] sm:$0xff]
  %v177 = vld [vmem:[%s1 + $0x478] sm:$0xff]
  %v178 = vld [vmem:[%s1 + $0x480] sm:$0xff]
  %v179 = vld [vmem:[%s1 + $0x488] sm:$0xff]
  %v180 = vld [vmem:[%s1 + $0x490] sm:$0xff]
  %v181 = vld [vmem:[%s1 + $0x498] sm:$0xff]
  %v182 = vld [vmem:[%s1 + $0x4a0] sm:$0xff]
  %v183 = vld [vmem:[%s1 + $0x4a8] sm:$0xff]
  %v184 = vld [vmem:[%s1 + $0x4b0] sm:$0xff]
  %v185 = vld [vmem:[%s1 + $0x4b8] sm:$0xff]
  %v186 = vld [vmem:[%s1 + $0x4c0] sm:$0xff]
  %v187 = vld [vmem:[%s1 + $0x4c8] sm:$0xff]
  %v188 = vld [vmem:[%s1 + $0x4d0] sm:$0xff]
  %v189 = vld [vmem:[%s1 + $0x4d8] sm:$0xff]
  %v190 = vld [vmem:[%s1 + $0x4e0] sm:$0xff]
  %v191 = vld [vmem:[%s1 + $0x4e8] sm:$0xff]
  %v192 = vld [vmem:[%s1 + $0x4f0] sm:$0xff]
  %v193 = vld [vmem:[%s1 + $0x4f8] sm:$0xff]
  %v194 = vld [vmem:[%s1 + $0x500] sm:$0xff]
  %v195 = vld [vmem:[%s1 + $0x508] sm:$0xff]
  %v196 = vld [vmem:[%s1 + $0x510] sm:$0xff]
  %v197 = vld [vmem:[%s1 + $0x518] sm:$0xff]
  %v198 = vld [vmem:[%s1 + $0x520] sm:$0xff]
  %v199 = vld [vmem:[%s1 + $0x528] sm:$0xff]
  %v200 = vld [vmem:[%s1 + $0x530] sm:$0xff]
  %v201 = vld [vmem:[%s1 + $0x538] sm:$0xff]
  %v202 = vld [vmem:[%s1 + $0x540] sm:$0xff]
  %v203 = vld [vmem:[%s1 + $0x548] sm:$0xff]
  %v204 = vld [vmem:[%s1 + $0x550] sm:$0xff]
  %v205 = vld [vmem:[%s1 + $0x558] sm:$0xff]
  %v206 = vld [vmem:[%s1 + $0x560] sm:$0xff]
  %v207 = vld [vmem:[%s1 + $0x568] sm:$0xff]
  %v208 = vld [vmem:[%s1 + $0x570] sm:$0xff]
  %v209 = vld [vmem:[%s1 + $0x578] sm:$0xff]
  %v210 = vld [vmem:[%s1 + $0x580] sm:$0xff]
  %v211 = vld [vmem:[%s1 + $0x588] sm:$0xff]
  %v212 = vld [vmem:[%s1 + $0x590] sm:$0xff]
  %v213 = vld [vmem:[%s1 + $0x598] sm:$0xff]
  %v214 = vld [vmem:[%s1 + $0x5a0] sm:$0xff]
  %v215 = vld [vmem:[%s1 + $0x5a8] sm:$0xff]
  %v216 = vld [vmem:[%s1 + $0x5b0] sm:$0xff]
  %v217 = vld [vmem:[%s1 + $0x5b8] sm:$0xff]
  %v218 = vld [vmem:[%s1 + $0x5c0] sm:$0xff]
  %v219 = vld [vmem:[%s1 + $0x5c8] sm:$0xff]
  %v220 = vld [vmem:[%s1 + $0x5d0] sm:$0xff]
  %v221 = vld [vmem:[%s1 + $0x5d8] sm:$0xff]
  %v222 = vld [vmem:[%s1 + $0x5e0] sm:$0xff]
  %v223 = vld [vmem:[%s1 + $0x5e8] sm:$0xff]
  %v224 = vld [vmem:[%s1 + $0x5f0] sm:$0xff]
  %v225 = vld [vmem:[%s1 + $0x5f8] sm:$0xff]
  %v226 = vld [vmem:[%s1 + $0x600] sm:$0xff]
  %v227 = vld [vmem:[%s1 + $0x608] sm:$0xff]
  %v228 = vld [vmem:[%s1 + $0x610] sm:$0xff]
  %v229 = vld [vmem:[%s1 + $0x618] sm:$0xff]
  %v230 = vld [vmem:[%s1 + $0x620] sm:$0xff]
  %v231 = vld [vmem:[%s1 + $0x628] sm:$0xff]
  %v232 = vld [vmem:[%s1 + $0x630] sm:$0xff]
  %v233 = vld [vmem:[%s1 + $0x638] sm:$0xff]
  %v234 = vld [vmem:[%s1 + $0x640] sm:$0xff]
  %v235 = vld [vmem:[%s1 + $0x648] sm:$0xff]
  %v236 = vld [vmem:[%s1 + $0x650] sm:$0xff]
  %v237 = vld [vmem:[%s1 + $0x658] sm:$0xff]
  %v238 = vld [vmem:[%s1 + $0x660] sm:$0xff]
  %v239 = vld [vmem:[%s1 + $0x668] sm:$0xff]
  %v240 = vld [vmem:[%s1 + $0x670] sm:$0xff]
  %v241 = vld [vmem:[%s1 + $0x678] sm:$0xff]
  %v242 = vld [vmem:[%s1 + $0x680] sm:$0xff]
  %v243 = vld [vmem:[%s1 + $0x688] sm:$0xff]
  %v244 = vld [vmem:[%s1 + $0x690] sm:$0xff]
  %v245 = vld [vmem:[%s1 + $0x698] sm:$0xff]
  %v246 = vld [vmem:[%s1 + $0x6a0] sm:$0xff]
  %v247 = vld [vmem:[%s1 + $0x6a8] sm:$0xff]
  %v248 = vld [vmem:[%s1 + $0x6b0] sm:$0xff]
  %v249 = vld [vmem:[%s1 + $0x6b8] sm:$0xff]
  %v250 = vld [vmem:[%s1 + $0x6c0] sm:$0xff]
  %v251 = vld [vmem:[%s1 + $0x6c8] sm:$0xff]
  %v252 = vld [vmem:[%s1 + $0x6d0] sm:$0xff]
  %v253 = vld [vmem:[%s1 + $0x6d8] sm:$0xff]
  %v254 = vld [vmem:[%s1 + $0x6e0] sm:$0xff]
  %v255 = vld [vmem:[%s1 + $0x6e8] sm:$0xff]
  %v256 = vld [vmem:[%s1 + $0x6f0] sm:$0xff]
  %v257 = vld [vmem:[%s1 + $0x6f8] sm:$0xff]
  %v258 = vld [vmem:[%s1 + $0x700] sm:$0xff]
  %v259 = vld [vmem:[%s1 + $0x708] sm:$0xff]
  %v260 = vld [vmem:[%s1 + $0x710] sm:$0xff]
  %v261 = vld [vmem:[%s1 + $0x718] sm:$0xff]
  %v262 = vld [vmem:[%s1 + $0x720] sm:$0xff]
  %v263 = vld [vmem:[%s1 + $0x728] sm:$0xff]
  %v264 = vld [vmem:[%s1 + $0x730] sm:$0xff]
  %v265 = vld [vmem:[%s1 + $0x738] sm:$0xff]
  %v266 = vld [vmem:[%s1 + $0x740] sm:$0xff]
  %v267 = vld [vmem:[%s1 + $0x748] sm:$0xff]
  %v268 = vld [vmem:[%s1 + $0x750] sm:$0xff]
  %v269 = vld [vmem:[%s1 + $0x758] sm:$0xff]
  %v270 = vld [vmem:[%s1 + $0x760] sm:$0xff]
  %v271 = vld [vmem:[%s1 + $0x768] sm:$0xff]
  %v272 = vld [vmem:[%s1 + $0x770] sm:$0xff]
  %v273 = vld [vmem:[%s1 + $0x778] sm:$0xff]
  %v274 = vld [vmem:[%s1 + $0x780] sm:$0xff]
  %v275 = vld [vmem:[%s1 + $0x788] sm:$0xff]
  %v276 = vld [vmem:[%s1 + $0x790] sm:$0xff]
  %v277 = vld [vmem:[%s1 + $0x798] sm:$0xff]
  %v278 = vld [vmem:[%s1 + $0x7a0] sm:$0xff]
  %v279 = vld [vmem:[%s1 + $0x7a8] sm:$0xff]
  %v280 = vld [vmem:[%s1 + $0x7b0] sm:$0xff]
  %v281 = vld [vmem:[%s1 + $0x7b8] sm:$0xff]
  %v282 = vld [vmem:[%s1 + $0x7c0] sm:$0xff]
  %v283 = vld [vmem:[%s1 + $0x7c8] sm:$0xff]
  %v284 = vld [vmem:[%s1 + $0x7d0] sm:$0xff]
  %v285 = vld [vmem:[%s1 + $0x7d8] sm:$0xff]
  %v286 = vld [vmem:[%s1 + $0x7e0] sm:$0xff]
  %v287 = vld [vmem:[%s1 + $0x7e8] sm:$0xff]
  %v288 = vld [vmem:[%s1 + $0x7f0] sm:$0xff]
  %v289 = vld [vmem:[%s1 + $0x7f8] sm:$0xff]
  %v290 = vld [vmem:[%s1 + $0x800] sm:$0xff]
  %v291 = vld [vmem:[%s1 + $0x808] sm:$0xff]
  %v292 = vld [vmem:[%s1 + $0x810] sm:$0xff]
  %v293 = vld [vmem:[%s1 + $0x818] sm:$0xff]
  %v294 = vld [vmem:[%s1 + $0x820] sm:$0xff]
  %v295 = vld [vmem:[%s1 + $0x828] sm:$0xff]
  %v296 = vld [vmem:[%s1 + $0x830] sm:$0xff]
  %v297 = vld [vmem:[%s1 + $0x838] sm:$0xff]
  %v298 = vld [vmem:[%s1 + $0x840] sm:$0xff]
  %v299 = vld [vmem:[%s1 + $0x848] sm:$0xff]
  %v300 = vld [vmem:[%s1 + $0x850] sm:$0xff]
  %v301 = vld [vmem:[%s1 + $0x858] sm:$0xff]
  %v302 = vld [vmem:[%s1 + $0x860] sm:$0xff]
  %v303 = vld [vmem:[%s1 + $0x868] sm:$0xff]
  %v304 = vld [vmem:[%s1 + $0x870] sm:$0xff]
  %v305 = vld [vmem:[%s1 + $0x878] sm:$0xff]
  %v306 = vld [vmem:[%s1 + $0x880] sm:$0xff]
  %v307 = vld [vmem:[%s1 + $0x888] sm:$0xff]
  %v308 = vld [vmem:[%s1 + $0x890] sm:$0xff]
  %v309 = vld [vmem:[%s1 + $0x898] sm:$0xff]
  %v310 = vld [vmem:[%s1 + $0x8a0] sm:$0xff]
  %v311 = vld [vmem:[%s1 + $0x8a8] sm:$0xff]
  %v312 = vld [vmem:[%s1 + $0x8b0] sm:$0xff]
  %v313 = vld [vmem:[%s1 + $0x8b8] sm:$0xff]
  %v314 = vld [vmem:[%s1 + $0x8c0] sm:$0xff]
  %v315 = vld [vmem:[%s1 + $0x8c8] sm:$0xff]
  %v316 = vld [vmem:[%s1 + $0x8d0] sm:$0xff]
  %v317 = vld [vmem:[%s1 + $0x8d8] sm:$0xff]
  %v318 = vld [vmem:[%s1 + $0x8e0] sm:$0xff]
  %v319 = vld [vmem:[%s1 + $0x8e8] sm:$0xff]
  %v320 = vld [vmem:[%s1 + $0x8f0] sm:$0xff]
  %v321 = vld [vmem:[%s1 + $0x8f8] sm:$0xff]
  %v322 = vld [vmem:[%s1 + $0x900] sm:$0xff]
  %v323 = vld [vmem:[%s1 + $0x908] sm:$0xff]
  %v324 = vld [vmem:[%s1 + $0x910] sm:$0xff]
  %v325 = vld [vmem:[%s1 + $0x918] sm:$0xff]
  %v326 = vld [vmem:[%s1 + $0x920] sm:$0xff]
  %v327 = vld [vmem:[%s1 + $0x928] sm:$0xff]
  %v328 = vld [vmem:[%s1 + $0x930] sm:$0xff]
  %v329 = vld [vmem:[%s1 + $0x938] sm:$0xff]
  %v330 = vld [vmem:[%s1 + $0x940] sm:$0xff]
  %v331 = vld [vmem:[%s1 + $0x948] sm:$0xff]
  %v332 = vld [vmem:[%s1 + $0x950] sm:$0xff]
  %v333 = vld [vmem:[%s1 + $0x958] sm:$0xff]
  %v334 = vld [vmem:[%s1 + $0x960] sm:$0xff]
  %v335 = vld [vmem:[%s1 + $0x968] sm:$0xff]
  %v336 = vld [vmem:[%s1 + $0x970] sm:$0xff]
  %v337 = vld [vmem:[%s1 + $0x978] sm:$0xff]
  %v338 = vld [vmem:[%s1 + $0x980] sm:$0xff]
  %v339 = vld [vmem:[%s1 + $0x988] sm:$0xff]
  %v340 = vld [vmem:[%s1 + $0x990] sm:$0xff]
  %v341 = vld [vmem:[%s1 + $0x998] sm:$0xff]
  %v342 = vld [vmem:[%s1 + $0x9a0] sm:$0xff]
  %v343 = vld [vmem:[%s1 + $0x9a8] sm:$0xff]
  %v344 = vld [vmem:[%s1 + $0x9b0] sm:$0xff]
  %v345 = vld [vmem:[%s1 + $0x9b8] sm:$0xff]
  %v346 = vld [vmem:[%s1 + $0x9c0] sm:$0xff]
  %v347 = vld [vmem:[%s1 + $0x9c8] sm:$0xff]
  %v348 = vld [vmem:[%s1 + $0x9d0] sm:$0xff]
  %v349 = vld [vmem:[%s1 + $0x9d8] sm:$0xff]
  %v350 = vld [vmem:[%s1 + $0x9e0] sm:$0xff]
  %v351 = vld [vmem:[%s1 + $0x9e8] sm:$0xff]
  %v352 = vld [vmem:[%s1 + $0x9f0] sm:$0xff]
  %v353 = vld [vmem:[%s1 + $0x9f8] sm:$0xff]
  %v354 = vld [vmem:[%s1 + $0xa00] sm:$0xff]
  %v355 = vld [vmem:[%s1 + $0xa08] sm:$0xff]
  %v356 = vld [vmem:[%s1 + $0xa10] sm:$0xff]
  %v357 = vld [vmem:[%s1 + $0xa18] sm:$0xff]
  %v358 = vld [vmem:[%s1 + $0xa20] sm:$0xff]
  %v359 = vld [vmem:[%s1 + $0xa28] sm:$0xff]
  %v360 = vld [vmem:[%s1 + $0xa30] sm:$0xff]
  %v361 = vld [vmem:[%s1 + $0xa38] sm:$0xff]
  %v362 = vld [vmem:[%s1 + $0xa40] sm:$0xff]
  %v363 = vld [vmem:[%s1 + $0xa48] sm:$0xff]
  %v364 = vld [vmem:[%s1 + $0xa50] sm:$0xff]
  %v365 = vld [vmem:[%s1 + $0xa58] sm:$0xff]
  %v366 = vld [vmem:[%s1 + $0xa60] sm:$0xff]
  %v367 = vld [vmem:[%s1 + $0xa68] sm:$0xff]
  %v368 = vld [vmem:[%s1 + $0xa70] sm:$0xff]
  %v369 = vld [vmem:[%s1 + $0xa78] sm:$0xff]
  %v370 = vld [vmem:[%s1 + $0xa80] sm:$0xff]
  %v371 = vld [vmem:[%s1 + $0xa88] sm:$0xff]
  %v372 = vld [vmem:[%s1 + $0xa90] sm:$0xff]
  %v373 = vld [vmem:[%s1 + $0xa98] sm:$0xff]
  %v374 = vld [vmem:[%s1 + $0xaa0] sm:$0xff]
  %v375 = vld [vmem:[%s1 + $0xaa8] sm:$0xff]
  %v376 = vld [vmem:[%s1 + $0xab0] sm:$0xff]
  %v377 = vld [vmem:[%s1 + $0xab8] sm:$0xff]
  %v378 = vld [vmem:[%s1 + $0xac0] sm:$0xff]
  %v379 = vld [vmem:[%s1 + $0xac8] sm:$0xff]
  %v380 = vld [vmem:[%s1 + $0xad0] sm:$0xff]
  %v381 = vld [vmem:[%s1 + $0xad8] sm:$0xff]
  %v382 = vld [vmem:[%s1 + $0xae0] sm:$0xff]
  %v383 = vld [vmem:[%s1 + $0xae8] sm:$0xff]
  %v384 = vld [vmem:[%s1 + $0xaf0] sm:$0xff]
  %v385 = vld [vmem:[%s1 + $0xaf8] sm:$0xff]
  %v386 = vld [vmem:[%s1 + $0xb00] sm:$0xff]
  %v387 = vld [vmem:[%s1 + $0xb08] sm:$0xff]
  %v388 = vld [vmem:[%s1 + $0xb10] sm:$0xff]
  %v389 = vld [vmem:[%s1 + $0xb18] sm:$0xff]
  %v390 = vld [vmem:[%s1 + $0xb20] sm:$0xff]
  %v391 = vld [vmem:[%s1 + $0xb28] sm:$0xff]
  %v392 = vld [vmem:[%s1 + $0xb30] sm:$0xff]
  %v393 = vld [vmem:[%s1 + $0xb38] sm:$0xff]
  %v394 = vld [vmem:[%s1 + $0xb40] sm:$0xff]
  %v395 = vld [vmem:[%s1 + $0xb48] sm:$0xff]
  %v396 = vld [vmem:[%s1 + $0xb50] sm:$0xff]
  %v397 = vld [vmem:[%s1 + $0xb58] sm:$0xff]
  %v398 = vld [vmem:[%s1 + $0xb60] sm:$0xff]
  %v399 = vld [vmem:[%s1 + $0xb68] sm:$0xff]
  %v400 = vld [vmem:[%s1 + $0xb70] sm:$0xff]
  %v401 = vld [vmem:[%s1 + $0xb78] sm:$0xff]
  %v402 = vld [vmem:[%s1 + $0xb80] sm:$0xff]
  %v403 = vld [vmem:[%s1 + $0xb88] sm:$0xff]
  %v404 = vld [vmem:[%s1 + $0xb90] sm:$0xff]
  %v405 = vld [vmem:[%s1 + $0xb98] sm:$0xff]
  %v406 = vld [vmem:[%s1 + $0xba0] sm:$0xff]
  %v407 = vld [vmem:[%s1 + $0xba8] sm:$0xff]
  %v408 = vld [vmem:[%s1 + $0xbb0] sm:$0xff]
  %v409 = vld [vmem:[%s1 + $0xbb8] sm:$0xff]
  %v410 = vld [vmem:[%s1 + $0xbc0] sm:$0xff]
  %v411 = vld [vmem:[%s1 + $0xbc8] sm:$0xff]
  %v412 = vld [vmem:[%s1 + $0xbd0] sm:$0xff]
  %v413 = vld [vmem:[%s1 + $0xbd8] sm:$0xff]
  %v414 = vld [vmem:[%s1 + $0xbe0] sm:$0xff]
  %v415 = vld [vmem:[%s1 + $0xbe8] sm:$0xff]
  %v416 = vld [vmem:[%s1 + $0xbf0] sm:$0xff]
  %v417 = vld [vmem:[%s1 + $0xbf8] sm:$0xff]
  %v418 = vld [vmem:[%s1 + $0xc00] sm:$0xff]
  %v419 = vld [vmem:[%s1 + $0xc08] sm:$0xff]
  %v420 = vld [vmem:[%s1 + $0xc10] sm:$0xff]
  %v421 = vld [vmem:[%s1 + $0xc18] sm:$0xff]
  %v422 = vld [vmem:[%s1 + $0xc20] sm:$0xff]
  %v423 = vld [vmem:[%s1 + $0xc28] sm:$0xff]
  %v424 = vld [vmem:[%s1 + $0xc30] sm:$0xff]
  %v425 = vld [vmem:[%s1 + $0xc38] sm:$0xff]
  %v426 = vld [vmem:[%s1 + $0xc40] sm:$0xff]
  %v427 = vld [vmem:[%s1 + $0xc48] sm:$0xff]
  %v428 = vld [vmem:[%s1 + $0xc50] sm:$0xff]
  %v429 = vld [vmem:[%s1 + $0xc58] sm:$0xff]
  %v430 = vld [vmem:[%s1 + $0xc60] sm:$0xff]
  %v431 = vld [vmem:[%s1 + $0xc68] sm:$0xff]
  %v432 = vld [vmem:[%s1 + $0xc70] sm:$0xff]
  %v433 = vld [vmem:[%s1 + $0xc78] sm:$0xff]
  %v434 = vld [vmem:[%s1 + $0xc80] sm:$0xff]
  %v435 = vld [vmem:[%s1 + $0xc88] sm:$0xff]
  %v436 = vld [vmem:[%s1 + $0xc90] sm:$0xff]
  %v437 = vld [vmem:[%s1 + $0xc98] sm:$0xff]
  %v438 = vld [vmem:[%s1 + $0xca0] sm:$0xff]
  %v439 = vld [vmem:[%s1 + $0xca8] sm:$0xff]
  %v440 = vld [vmem:[%s1 + $0xcb0] sm:$0xff]
  %v441 = vld [vmem:[%s1 + $0xcb8] sm:$0xff]
  %v442 = vld [vmem:[%s1 + $0xcc0] sm:$0xff]
  %v443 = vld [vmem:[%s1 + $0xcc8] sm:$0xff]
  %v444 = vld [vmem:[%s1 + $0xcd0] sm:$0xff]
  %v445 = vld [vmem:[%s1 + $0xcd8] sm:$0xff]
  %v446 = vld [vmem:[%s1 + $0xce0] sm:$0xff]
  %v447 = vld [vmem:[%s1 + $0xce8] sm:$0xff]
  %v448 = vld [vmem:[%s1 + $0xcf0] sm:$0xff]
  %v449 = vld [vmem:[%s1 + $0xcf8] sm:$0xff]
  %v450 = vld [vmem:[%s1 + $0xd00] sm:$0xff]
  %v451 = vld [vmem:[%s1 + $0xd08] sm:$0xff]
  %v452 = vld [vmem:[%s1 + $0xd10] sm:$0xff]
  %v453 = vld [vmem:[%s1 + $0xd18] sm:$0xff]
  %v454 = vld [vmem:[%s1 + $0xd20] sm:$0xff]
  %v455 = vld [vmem:[%s1 + $0xd28] sm:$0xff]
  %v456 = vld [vmem:[%s1 + $0xd30] sm:$0xff]
  %v457 = vld [vmem:[%s1 + $0xd38] sm:$0xff]
  %v458 = vld [vmem:[%s1 + $0xd40] sm:$0xff]
  %v459 = vld [vmem:[%s1 + $0xd48] sm:$0xff]
  %v460 = vld [vmem:[%s1 + $0xd50] sm:$0xff]
  %v461 = vld [vmem:[%s1 + $0xd58] sm:$0xff]
  %v462 = vld [vmem:[%s1 + $0xd60] sm:$0xff]
  %v463 = vld [vmem:[%s1 + $0xd68] sm:$0xff]
  %v464 = vld [vmem:[%s1 + $0xd70] sm:$0xff]
  %v465 = vld [vmem:[%s1 + $0xd78] sm:$0xff]
  %v466 = vld [vmem:[%s1 + $0xd80] sm:$0xff]
  %v467 = vld [vmem:[%s1 + $0xd88] sm:$0xff]
  %v468 = vld [vmem:[%s1 + $0xd90] sm:$0xff]
  %v469 = vld [vmem:[%s1 + $0xd98] sm:$0xff]
  %v470 = vld [vmem:[%s1 + $0xda0] sm:$0xff]
  %v471 = vld [vmem:[%s1 + $0xda8] sm:$0xff]
  %v472 = vld [vmem:[%s1 + $0xdb0] sm:$0xff]
  %v473 = vld [vmem:[%s1 + $0xdb8] sm:$0xff]
  %v474 = vld [vmem:[%s1 + $0xdc0] sm:$0xff]
  %v475 = vld [vmem:[%s1 + $0xdc8] sm:$0xff]
  %v476 = vld [vmem:[%s1 + $0xdd0] sm:$0xff]
  %v477 = vld [vmem:[%s1 + $0xdd8] sm:$0xff]
  %v478 = vld [vmem:[%s1 + $0xde0] sm:$0xff]
  %v479 = vld [vmem:[%s1 + $0xde8] sm:$0xff]
  %v480 = vld [vmem:[%s1 + $0xdf0] sm:$0xff]
  %v481 = vld [vmem:[%s1 + $0xdf8] sm:$0xff]
  %v482 = vld [vmem:[%s1 + $0xe00] sm:$0xff]
  %v483 = vld [vmem:[%s1 + $0xe08] sm:$0xff]
  %v484 = vld [vmem:[%s1 + $0xe10] sm:$0xff]
  %v485 = vld [vmem:[%s1 + $0xe18] sm:$0xff]
  %v486 = vld [vmem:[%s1 + $0xe20] sm:$0xff]
  %v487 = vld [vmem:[%s1 + $0xe28] sm:$0xff]
  %v488 = vld [vmem:[%s1 + $0xe30] sm:$0xff]
  %v489 = vld [vmem:[%s1 + $0xe38] sm:$0xff]
  %v490 = vld [vmem:[%s1 + $0xe40] sm:$0xff]
  %v491 = vld [vmem:[%s1 + $0xe48] sm:$0xff]
  %v492 = vld [vmem:[%s1 + $0xe50] sm:$0xff]
  %v493 = vld [vmem:[%s1 + $0xe58] sm:$0xff]
  %v494 = vld [vmem:[%s1 + $0xe60] sm:$0xff]
  %v495 = vld [vmem:[%s1 + $0xe68] sm:$0xff]
  %v496 = vld [vmem:[%s1 + $0xe70] sm:$0xff]
  %v497 = vld [vmem:[%s1 + $0xe78] sm:$0xff]
  %v498 = vld [vmem:[%s1 + $0xe80] sm:$0xff]
  %v499 = vld [vmem:[%s1 + $0xe88] sm:$0xff]
  %v500 = vld [vmem:[%s1 + $0xe90] sm:$0xff]
  %v501 = vld [vmem:[%s1 + $0xe98] sm:$0xff]
  %v502 = vld [vmem:[%s1 + $0xea0] sm:$0xff]
  %v503 = vld [vmem:[%s1 + $0xea8] sm:$0xff]
  %v504 = vld [vmem:[%s1 + $0xeb0] sm:$0xff]
  %v505 = vld [vmem:[%s1 + $0xeb8] sm:$0xff]
  %v506 = vld [vmem:[%s1 + $0xec0] sm:$0xff]
  %v507 = vld [vmem:[%s1 + $0xec8] sm:$0xff]
  %v508 = vld [vmem:[%s1 + $0xed0] sm:$0xff]
  %v509 = vld [vmem:[%s1 + $0xed8] sm:$0xff]
  %v510 = vld [vmem:[%s1 + $0xee0] sm:$0xff]
  %v511 = vld [vmem:[%s1 + $0xee8] sm:$0xff]
  %v512 = vld [vmem:[%s1 + $0xef0] sm:$0xff]
  %v513 = vld [vmem:[%s1 + $0xef8] sm:$0xff]
  %v514 = vld [vmem:[%s1 + $0xf00] sm:$0xff]
  %v515 = vld [vmem:[%s1 + $0xf08] sm:$0xff]
  %v516 = vld [vmem:[%s1 + $0xf10] sm:$0xff]
  %v517 = vld [vmem:[%s1 + $0xf18] sm:$0xff]
  %v518 = vld [vmem:[%s1 + $0xf20] sm:$0xff]
  %v519 = vld [vmem:[%s1 + $0xf28] sm:$0xff]
  %v520 = vld [vmem:[%s1 + $0xf30] sm:$0xff]
  %v521 = vld [vmem:[%s1 + $0xf38] sm:$0xff]
  %v522 = vld [vmem:[%s1 + $0xf40] sm:$0xff]
  %v523 = vld [vmem:[%s1 + $0xf48] sm:$0xff]
  %v524 = vld [vmem:[%s1 + $0xf50] sm:$0xff]
  %v525 = vld [vmem:[%s1 + $0xf58] sm:$0xff]
  %v526 = vld [vmem:[%s1 + $0xf60] sm:$0xff]
  %v527 = vld [vmem:[%s1 + $0xf68] sm:$0xff]
  %v528 = vld [vmem:[%s1 + $0xf70] sm:$0xff]
  %v529 = vld [vmem:[%s1 + $0xf78] sm:$0xff]
  %v530 = vld [vmem:[%s1 + $0xf80] sm:$0xff]
  %v531 = vld [vmem:[%s1 + $0xf88] sm:$0xff]
  %v532 = vld [vmem:[%s1 + $0xf90] sm:$0xff]
  %v533 = vld [vmem:[%s1 + $0xf98] sm:$0xff]
  %v534 = vld [vmem:[%s1 + $0xfa0] sm:$0xff]
  %v535 = vld [vmem:[%s1 + $0xfa8] sm:$0xff]
  %v536 = vld [vmem:[%s1 + $0xfb0] sm:$0xff]
  %v537 = vld [vmem:[%s1 + $0xfb8] sm:$0xff]
  %v538 = vld [vmem:[%s1 + $0xfc0] sm:$0xff]
  %v539 = vld [vmem:[%s1 + $0xfc8] sm:$0xff]
  %v540 = vld [vmem:[%s1 + $0xfd0] sm:$0xff]
  %v541 = vld [vmem:[%s1 + $0xfd8] sm:$0xff]
  %v542 = vld [vmem:[%s1 + $0xfe0] sm:$0xff]
  %v543 = vld [vmem:[%s1 + $0xfe8] sm:$0xff]
  %v544 = vld [vmem:[%s1 + $0xff0] sm:$0xff]
  %v545 = vld [vmem:[%s1 + $0xff8] sm:$0xff]
  %v546 = vld [vmem:[%s1 + $0x1000] sm:$0xff]
  %v547 = vld [vmem:[%s1 + $0x1008] sm:$0xff]
  %v548 = vld [vmem:[%s1 + $0x1010] sm:$0xff]
  %v549 = vld [vmem:[%s1 + $0x1018] sm:$0xff]
  %v550 = vld [vmem:[%s1 + $0x1020] sm:$0xff]
  %v551 = vld [vmem:[%s1 + $0x1028] sm:$0xff]
  %v552 = vld [vmem:[%s1 + $0x1030] sm:$0xff]
  %v553 = vld [vmem:[%s1 + $0x1038] sm:$0xff]
  %v554 = vld [vmem:[%s1 + $0x1040] sm:$0xff]
  %v555 = vld [vmem:[%s1 + $0x1048] sm:$0xff]
  %v556 = vld [vmem:[%s1 + $0x1050] sm:$0xff]
  %v557 = vld [vmem:[%s1 + $0x1058] sm:$0xff]
  %v558 = vld [vmem:[%s1 + $0x1060] sm:$0xff]
  %v559 = vld [vmem:[%s1 + $0x1068] sm:$0xff]
  %v560 = vld [vmem:[%s1 + $0x1070] sm:$0xff]
  %v561 = vld [vmem:[%s1 + $0x1078] sm:$0xff]
  %v562 = vld [vmem:[%s1 + $0x1080] sm:$0xff]
  %v563 = vld [vmem:[%s1 + $0x1088] sm:$0xff]
  %v564 = vld [vmem:[%s1 + $0x1090] sm:$0xff]
  %v565 = vld [vmem:[%s1 + $0x1098] sm:$0xff]
  %v566 = vld [vmem:[%s1 + $0x10a0] sm:$0xff]
  %v567 = vld [vmem:[%s1 + $0x10a8] sm:$0xff]
  %v568 = vld [vmem:[%s1 + $0x10b0] sm:$0xff]
  %v569 = vld [vmem:[%s1 + $0x10b8] sm:$0xff]
  %v570 = vld [vmem:[%s1 + $0x10c0] sm:$0xff]
  %v571 = vld [vmem:[%s1 + $0x10c8] sm:$0xff]
  %v572 = vld [vmem:[%s1 + $0x10d0] sm:$0xff]
  %v573 = vld [vmem:[%s1 + $0x10d8] sm:$0xff]
  %v574 = vld [vmem:[%s1 + $0x10e0] sm:$0xff]
  %v575 = vld [vmem:[%s1 + $0x10e8] sm:$0xff]
  %v576 = vld [vmem:[%s1 + $0x10f0] sm:$0xff]
  %v577 = vld [vmem:[%s1 + $0x10f8] sm:$0xff]
  %v578 = vld [vmem:[%s1 + $0x1100] sm:$0xff]
  %v579 = vld [vmem:[%s1 + $0x1108] sm:$0xff]
  %v580 = vld [vmem:[%s1 + $0x1110] sm:$0xff]
  %v581 = vld [vmem:[%s1 + $0x1118] sm:$0xff]
  %v582 = vld [vmem:[%s1 + $0x1120] sm:$0xff]
  %v583 = vld [vmem:[%s1 + $0x1128] sm:$0xff]
  %v584 = vld [vmem:[%s1 + $0x1130] sm:$0xff]
  %v585 = vld [vmem:[%s1 + $0x1138] sm:$0xff]
  %v586 = vld [vmem:[%s1 + $0x1140] sm:$0xff]
  %v587 = vld [vmem:[%s1 + $0x1148] sm:$0xff]
  %v588 = vld [vmem:[%s1 + $0x1150] sm:$0xff]
  %v589 = vld [vmem:[%s1 + $0x1158] sm:$0xff]
  %v590 = vld [vmem:[%s1 + $0x1160] sm:$0xff]
  %v591 = vld [vmem:[%s1 + $0x1168] sm:$0xff]
  %v592 = vld [vmem:[%s1 + $0x1170] sm:$0xff]
  %v593 = vld [vmem:[%s1 + $0x1178] sm:$0xff]
  %v594 = vld [vmem:[%s1 + $0x1180] sm:$0xff]
  %v595 = vld [vmem:[%s1 + $0x1188] sm:$0xff]
  %v596 = vld [vmem:[%s1 + $0x1190] sm:$0xff]
  %v597 = vld [vmem:[%s1 + $0x1198] sm:$0xff]
  %v598 = vld [vmem:[%s1 + $0x11a0] sm:$0xff]
  %v599 = vld [vmem:[%s1 + $0x11a8] sm:$0xff]
  %v600 = vld [vmem:[%s1 + $0x11b0] sm:$0xff]
  %v601 = vld [vmem:[%s1 + $0x11b8] sm:$0xff]
  %v602 = vld [vmem:[%s1 + $0x11c0] sm:$0xff]
  %v603 = vld [vmem:[%s1 + $0x11c8] sm:$0xff]
  %v604 = vld [vmem:[%s1 + $0x11d0] sm:$0xff]
  %v605 = vld [vmem:[%s1 + $0x11d8] sm:$0xff]
  %v606 = vld [vmem:[%s1 + $0x11e0] sm:$0xff]
  %v607 = vld [vmem:[%s1 + $0x11e8] sm:$0xff]
  %v608 = vld [vmem:[%s1 + $0x11f0] sm:$0xff]
  %v609 = vld [vmem:[%s1 + $0x11f8] sm:$0xff]
  %v610 = vld [vmem:[%s1 + $0x1200] sm:$0xff]
  %v611 = vld [vmem:[%s1 + $0x1208] sm:$0xff]
  %v612 = vld [vmem:[%s1 + $0x1210] sm:$0xff]
  %v613 = vld [vmem:[%s1 + $0x1218] sm:$0xff]
  %v614 = vld [vmem:[%s1 + $0x1220] sm:$0xff]
  %v615 = vld [vmem:[%s1 + $0x1228] sm:$0xff]
  %v616 = vld [vmem:[%s1 + $0x1230] sm:$0xff]
  %v617 = vld [vmem:[%s1 + $0x1238] sm:$0xff]
  %v618 = vld [vmem:[%s1 + $0x1240] sm:$0xff]
  %v619 = vld [vmem:[%s1 + $0x1248] sm:$0xff]
  %v620 = vld [vmem:[%s1 + $0x1250] sm:$0xff]
  %v621 = vld [vmem:[%s1 + $0x1258] sm:$0xff]
  %v622 = vld [vmem:[%s1 + $0x1260] sm:$0xff]
  %v623 = vld [vmem:[%s1 + $0x1268] sm:$0xff]
  %v624 = vld [vmem:[%s1 + $0x1270] sm:$0xff]
  %v625 = vld [vmem:[%s1 + $0x1278] sm:$0xff]
  %v626 = vld [vmem:[%s1 + $0x1280] sm:$0xff]
  %v627 = vld [vmem:[%s1 + $0x1288] sm:$0xff]
  %v628 = vld [vmem:[%s1 + $0x1290] sm:$0xff]
  %v629 = vld [vmem:[%s1 + $0x1298] sm:$0xff]
  %v630 = vld [vmem:[%s1 + $0x12a0] sm:$0xff]
  %v631 = vld [vmem:[%s1 + $0x12a8] sm:$0xff]
  %v632 = vld [vmem:[%s1 + $0x12b0] sm:$0xff]
  %v633 = vld [vmem:[%s1 + $0x12b8] sm:$0xff]
  %v634 = vld [vmem:[%s1 + $0x12c0] sm:$0xff]
  %v635 = vld [vmem:[%s1 + $0x12c8] sm:$0xff]
  %v636 = vld [vmem:[%s1 + $0x12d0] sm:$0xff]
  %v637 = vld [vmem:[%s1 + $0x12d8] sm:$0xff]
  %v638 = vld [vmem:[%s1 + $0x12e0] sm:$0xff]
  %v639 = vld [vmem:[%s1 + $0x12e8] sm:$0xff]
  %v640 = vld [vmem:[%s1 + $0x12f0] sm:$0xff]
  %v641 = vld [vmem:[%s1 + $0x12f8] sm:$0xff]
  %v642 = vld [vmem:[%s1 + $0x1300] sm:$0xff]
  %v643 = vld [vmem:[%s1 + $0x1308] sm:$0xff]
  %v644 = vld [vmem:[%s1 + $0x1310] sm:$0xff]
  %v645 = vld [vmem:[%s1 + $0x1318] sm:$0xff]
  %v646 = vld [vmem:[%s1 + $0x1320] sm:$0xff]
  %v647 = vld [vmem:[%s1 + $0x1328] sm:$0xff]
  %v648 = vld [vmem:[%s1 + $0x1330] sm:$0xff]
  %v649 = vld [vmem:[%s1 + $0x1338] sm:$0xff]
  %v650 = vld [vmem:[%s1 + $0x1340] sm:$0xff]
  %v651 = vld [vmem:[%s1 + $0x1348] sm:$0xff]
  %v652 = vld [vmem:[%s1 + $0x1350] sm:$0xff]
  %v653 = vld [vmem:[%s1 + $0x1358] sm:$0xff]
  %v654 = vld [vmem:[%s1 + $0x1360] sm:$0xff]
  %v655 = vld [vmem:[%s1 + $0x1368] sm:$0xff]
  %v656 = vld [vmem:[%s1 + $0x1370] sm:$0xff]
  %v657 = vld [vmem:[%s1 + $0x1378] sm:$0xff]
  %v658 = vld [vmem:[%s1 + $0x1380] sm:$0xff]
  %v659 = vld [vmem:[%s1 + $0x1388] sm:$0xff]
  %v660 = vld [vmem:[%s1 + $0x1390] sm:$0xff]
  %v661 = vld [vmem:[%s1 + $0x1398] sm:$0xff]
  %v662 = vld [vmem:[%s1 + $0x13a0] sm:$0xff]
  %v663 = vld [vmem:[%s1 + $0x13a8] sm:$0xff]
  %v664 = vld [vmem:[%s1 + $0x13b0] sm:$0xff]
  %v665 = vld [vmem:[%s1 + $0x13b8] sm:$0xff]
  %v666 = vld [vmem:[%s1 + $0x13c0] sm:$0xff]
  %v667 = vld [vmem:[%s1 + $0x13c8] sm:$0xff]
  %v668 = vld [vmem:[%s1 + $0x13d0] sm:$0xff]
  %v669 = vld [vmem:[%s1 + $0x13d8] sm:$0xff]
  %v670 = vld [vmem:[%s1 + $0x13e0] sm:$0xff]
  %v671 = vld [vmem:[%s1 + $0x13e8] sm:$0xff]
  %v672 = vld [vmem:[%s1 + $0x13f0] sm:$0xff]
  %v673 = vld [vmem:[%s1 + $0x13f8] sm:$0xff]
  %v674 = vld [vmem:[%s1 + $0x1400] sm:$0xff]
  %v675 = vld [vmem:[%s1 + $0x1408] sm:$0xff]
  %v676 = vld [vmem:[%s1 + $0x1410] sm:$0xff]
  %v677 = vld [vmem:[%s1 + $0x1418] sm:$0xff]
  %v678 = vld [vmem:[%s1 + $0x1420] sm:$0xff]
  %v679 = vld [vmem:[%s1 + $0x1428] sm:$0xff]
  %v680 = vld [vmem:[%s1 + $0x1430] sm:$0xff]
  %v681 = vld [vmem:[%s1 + $0x1438] sm:$0xff]
  %v682 = vld [vmem:[%s1 + $0x1440] sm:$0xff]
  %v683 = vld [vmem:[%s1 + $0x1448] sm:$0xff]
  %v684 = vld [vmem:[%s1 + $0x1450] sm:$0xff]
  %v685 = vld [vmem:[%s1 + $0x1458] sm:$0xff]
  %v686 = vld [vmem:[%s1 + $0x1460] sm:$0xff]
  %v687 = vld [vmem:[%s1 + $0x1468] sm:$0xff]
  %v688 = vld [vmem:[%s1 + $0x1470] sm:$0xff]
  %v689 = vld [vmem:[%s1 + $0x1478] sm:$0xff]
  %v690 = vld [vmem:[%s1 + $0x1480] sm:$0xff]
  %v691 = vld [vmem:[%s1 + $0x1488] sm:$0xff]
  %v692 = vld [vmem:[%s1 + $0x1490] sm:$0xff]
  %v693 = vld [vmem:[%s1 + $0x1498] sm:$0xff]
  %v694 = vld [vmem:[%s1 + $0x14a0] sm:$0xff]
  %v695 = vld [vmem:[%s1 + $0x14a8] sm:$0xff]
  %v696 = vld [vmem:[%s1 + $0x14b0] sm:$0xff]
  %v697 = vld [vmem:[%s1 + $0x14b8] sm:$0xff]
  %v698 = vld [vmem:[%s1 + $0x14c0] sm:$0xff]
  %v699 = vld [vmem:[%s1 + $0x14c8] sm:$0xff]
  %v700 = vld [vmem:[%s1 + $0x14d0] sm:$0xff]
  %v701 = vld [vmem:[%s1 + $0x14d8] sm:$0xff]
  %v702 = vld [vmem:[%s1 + $0x14e0] sm:$0xff]
  %v703 = vld [vmem:[%s1 + $0x14e8] sm:$0xff]
  %v704 = vld [vmem:[%s1 + $0x14f0] sm:$0xff]
  %v705 = vld [vmem:[%s1 + $0x14f8] sm:$0xff]
  %v706 = vld [vmem:[%s1 + $0x1500] sm:$0xff]
  %v707 = vld [vmem:[%s1 + $0x1508] sm:$0xff]
  %v708 = vld [vmem:[%s1 + $0x1510] sm:$0xff]
  %v709 = vld [vmem:[%s1 + $0x1518] sm:$0xff]
  %v710 = vld [vmem:[%s1 + $0x1520] sm:$0xff]
  %v711 = vld [vmem:[%s1 + $0x1528] sm:$0xff]
  %v712 = vld [vmem:[%s1 + $0x1530] sm:$0xff]
  %v713 = vld [vmem:[%s1 + $0x1538] sm:$0xff]
  %v714 = vld [vmem:[%s1 + $0x1540] sm:$0xff]
  %v715 = vld [vmem:[%s1 + $0x1548] sm:$0xff]
  %v716 = vld [vmem:[%s1 + $0x1550] sm:$0xff]
  %v717 = vld [vmem:[%s1 + $0x1558] sm:$0xff]
  %v718 = vld [vmem:[%s1 + $0x1560] sm:$0xff]
  %v719 = vld [vmem:[%s1 + $0x1568] sm:$0xff]
  %v720 = vld [vmem:[%s1 + $0x1570] sm:$0xff]
  %v721 = vld [vmem:[%s1 + $0x1578] sm:$0xff]
  %v722 = vld [vmem:[%s1 + $0x1580] sm:$0xff]
  %v723 = vld [vmem:[%s1 + $0x1588] sm:$0xff]
  %v724 = vld [vmem:[%s1 + $0x1590] sm:$0xff]
  %v725 = vld [vmem:[%s1 + $0x1598] sm:$0xff]
  %v726 = vld [vmem:[%s1 + $0x15a0] sm:$0xff]
  %v727 = vld [vmem:[%s1 + $0x15a8] sm:$0xff]
  %v728 = vld [vmem:[%s1 + $0x15b0] sm:$0xff]
  %v729 = vld [vmem:[%s1 + $0x15b8] sm:$0xff]
  %v730 = vld [vmem:[%s1 + $0x15c0] sm:$0xff]
  %v731 = vld [vmem:[%s1 + $0x15c8] sm:$0xff]
  %v732 = vld [vmem:[%s1 + $0x15d0] sm:$0xff]
  %v733 = vld [vmem:[%s1 + $0x15d8] sm:$0xff]
  %v734 = vld [vmem:[%s1 + $0x15e0] sm:$0xff]
  %v735 = vld [vmem:[%s1 + $0x15e8] sm:$0xff]
  %v736 = vld [vmem:[%s1 + $0x15f0] sm:$0xff]
  %v737 = vld [vmem:[%s1 + $0x15f8] sm:$0xff]
  %v738 = vld [vmem:[%s1 + $0x1600] sm:$0xff]
  %v739 = vld [vmem:[%s1 + $0x1608] sm:$0xff]
  %v740 = vld [vmem:[%s1 + $0x1610] sm:$0xff]
  %v741 = vld [vmem:[%s1 + $0x1618] sm:$0xff]
  %v742 = vld [vmem:[%s1 + $0x1620] sm:$0xff]
  %v743 = vld [vmem:[%s1 + $0x1628] sm:$0xff]
  %v744 = vld [vmem:[%s1 + $0x1630] sm:$0xff]
  %v745 = vld [vmem:[%s1 + $0x1638] sm:$0xff]
  %v746 = vld [vmem:[%s1 + $0x1640] sm:$0xff]
  %v747 = vld [vmem:[%s1 + $0x1648] sm:$0xff]
  %v748 = vld [vmem:[%s1 + $0x1650] sm:$0xff]
  %v749 = vld [vmem:[%s1 + $0x1658] sm:$0xff]
  %v750 = vld [vmem:[%s1 + $0x1660] sm:$0xff]
  %v751 = vld [vmem:[%s1 + $0x1668] sm:$0xff]
  %v752 = vld [vmem:[%s1 + $0x1670] sm:$0xff]
  %v753 = vld [vmem:[%s1 + $0x1678] sm:$0xff]
  %v754 = vld [vmem:[%s1 + $0x1680] sm:$0xff]
  %v755 = vld [vmem:[%s1 + $0x1688] sm:$0xff]
  %v756 = vld [vmem:[%s1 + $0x1690] sm:$0xff]
  %v757 = vld [vmem:[%s1 + $0x1698] sm:$0xff]
  %v758 = vld [vmem:[%s1 + $0x16a0] sm:$0xff]
  %v759 = vld [vmem:[%s1 + $0x16a8] sm:$0xff]
  %v760 = vld [vmem:[%s1 + $0x16b0] sm:$0xff]
  %v761 = vld [vmem:[%s1 + $0x16b8] sm:$0xff]
  %v762 = vld [vmem:[%s1 + $0x16c0] sm:$0xff]
  %v763 = vld [vmem:[%s1 + $0x16c8] sm:$0xff]
  %v764 = vld [vmem:[%s1 + $0x16d0] sm:$0xff]
  %v765 = vld [vmem:[%s1 + $0x16d8] sm:$0xff]
  %v766 = vld [vmem:[%s1 + $0x16e0] sm:$0xff]
  %v767 = vld [vmem:[%s1 + $0x16e8] sm:$0xff]
  %v768 = vld [vmem:[%s1 + $0x16f0] sm:$0xff]
  %v769 = vld [vmem:[%s1 + $0x16f8] sm:$0xff]
  %v770 = vld [vmem:[%s1 + $0x1700] sm:$0xff]
  %v771 = vld [vmem:[%s1 + $0x1708] sm:$0xff]
  %v772 = vld [vmem:[%s1 + $0x1710] sm:$0xff]
  %v773 = vld [vmem:[%s1 + $0x1718] sm:$0xff]
  %v774 = vld [vmem:[%s1 + $0x1720] sm:$0xff]
  %v775 = vld [vmem:[%s1 + $0x1728] sm:$0xff]
  %v776 = vld [vmem:[%s1 + $0x1730] sm:$0xff]
  %v777 = vld [vmem:[%s1 + $0x1738] sm:$0xff]
  %v778 = vld [vmem:[%s1 + $0x1740] sm:$0xff]
  %v779 = vld [vmem:[%s1 + $0x1748] sm:$0xff]
  %v780 = vld [vmem:[%s1 + $0x1750] sm:$0xff]
  %v781 = vld [vmem:[%s1 + $0x1758] sm:$0xff]
  %v782 = vld [vmem:[%s1 + $0x1760] sm:$0xff]
  %v783 = vld [vmem:[%s1 + $0x1768] sm:$0xff]
  %v784 = vld [vmem:[%s1 + $0x1770] sm:$0xff]
  %v785 = vld [vmem:[%s1 + $0x1778] sm:$0xff]
  %v786 = vld [vmem:[%s1 + $0x1780] sm:$0xff]
  %v787 = vld [vmem:[%s1 + $0x1788] sm:$0xff]
  %v788 = vld [vmem:[%s1 + $0x1790] sm:$0xff]
  %v789 = vld [vmem:[%s1 + $0x1798] sm:$0xff]
  %v790 = vld [vmem:[%s1 + $0x17a0] sm:$0xff]
  %v791 = vld [vmem:[%s1 + $0x17a8] sm:$0xff]
  %v792 = vld [vmem:[%s1 + $0x17b0] sm:$0xff]
  %v793 = vld [vmem:[%s1 + $0x17b8] sm:$0xff]
  %v794 = vld [vmem:[%s1 + $0x17c0] sm:$0xff]
  %v795 = vld [vmem:[%s1 + $0x17c8] sm:$0xff]
  %v796 = vld [vmem:[%s1 + $0x17d0] sm:$0xff]
  %v797 = vld [vmem:[%s1 + $0x17d8] sm:$0xff]
  %v798 = vld [vmem:[%s1 + $0x17e0] sm:$0xff]
  %v799 = vld [vmem:[%s1 + $0x17e8] sm:$0xff]
  %v800 = vld [vmem:[%s1 + $0x17f0] sm:$0xff]
  %v801 = vld [vmem:[%s1 + $0x17f8] sm:$0xff]
  %v802 = vld [vmem:[%s1 + $0x1800] sm:$0xff]
  %v803 = vld [vmem:[%s1 + $0x1808] sm:$0xff]
  %v804 = vld [vmem:[%s1 + $0x1810] sm:$0xff]
  %v805 = vld [vmem:[%s1 + $0x1818] sm:$0xff]
  %v806 = vld [vmem:[%s1 + $0x1820] sm:$0xff]
  %v807 = vld [vmem:[%s1 + $0x1828] sm:$0xff]
  %v808 = vld [vmem:[%s1 + $0x1830] sm:$0xff]
  %v809 = vld [vmem:[%s1 + $0x1838] sm:$0xff]
  %v810 = vld [vmem:[%s1 + $0x1840] sm:$0xff]
  %v811 = vld [vmem:[%s1 + $0x1848] sm:$0xff]
  %v812 = vld [vmem:[%s1 + $0x1850] sm:$0xff]
  %v813 = vld [vmem:[%s1 + $0x1858] sm:$0xff]
  %v814 = vld [vmem:[%s1 + $0x1860] sm:$0xff]
  %v815 = vld [vmem:[%s1 + $0x1868] sm:$0xff]
  %v816 = vld [vmem:[%s1 + $0x1870] sm:$0xff]
  %v817 = vld [vmem:[%s1 + $0x1878] sm:$0xff]
  %v818 = vld [vmem:[%s1 + $0x1880] sm:$0xff]
  %v819 = vld [vmem:[%s1 + $0x1888] sm:$0xff]
  %v820 = vld [vmem:[%s1 + $0x1890] sm:$0xff]
  %v821 = vld [vmem:[%s1 + $0x1898] sm:$0xff]
  %v822 = vld [vmem:[%s1 + $0x18a0] sm:$0xff]
  %v823 = vld [vmem:[%s1 + $0x18a8] sm:$0xff]
  %v824 = vld [vmem:[%s1 + $0x18b0] sm:$0xff]
  %v825 = vld [vmem:[%s1 + $0x18b8] sm:$0xff]
  %v826 = vld [vmem:[%s1 + $0x18c0] sm:$0xff]
  %v827 = vld [vmem:[%s1 + $0x18c8] sm:$0xff]
  %v828 = vld [vmem:[%s1 + $0x18d0] sm:$0xff]
  %v829 = vld [vmem:[%s1 + $0x18d8] sm:$0xff]
  %v830 = vld [vmem:[%s1 + $0x18e0] sm:$0xff]
  %v831 = vld [vmem:[%s1 + $0x18e8] sm:$0xff]
  %v832 = vld [vmem:[%s1 + $0x18f0] sm:$0xff]
  %v833 = vld [vmem:[%s1 + $0x18f8] sm:$0xff]
  %v834 = vld [vmem:[%s2] sm:$0xf]
  %v836 = vlaneseq
  %v837 = vshrl.u32 %v836, 7
  %v838 = vsub.s32 0, %v837
  %v839 = vrot.slane %v834, %v838
  %v840 = vlaneseq
  %v841 = vshrl.u32 %v840, 7
  %v842 = vsub.s32 1, %v841
  %v843 = vrot.slane %v834, %v842
  %v844 = vlaneseq
  %v845 = vshrl.u32 %v844, 7
  %v846 = vsub.s32 2, %v845
  %v847 = vrot.slane %v834, %v846
  %v848 = vlaneseq
  %v849 = vshrl.u32 %v848, 7
  %v850 = vsub.s32 3, %v849
  %v851 = vrot.slane %v834, %v850
  %v869 = vunpack.c.l.b16 %v21
  %v870 = vunpack.c.h.b16 %v21
  %v871 = vunpack.c.l.b16 %v22
  %v872 = vunpack.c.h.b16 %v22
  %v873 = vunpack.c.l.b16 %v23
  %v874 = vunpack.c.h.b16 %v23
  %v875 = vunpack.c.l.b16 %v24
  %v876 = vunpack.c.h.b16 %v24
  %v877 = vunpack.c.l.b16 %v25
  %v878 = vunpack.c.h.b16 %v25
  %v879 = vunpack.c.l.b16 %v26
  %v880 = vunpack.c.h.b16 %v26
  %v881 = vunpack.c.l.b16 %v27
  %v882 = vunpack.c.h.b16 %v27
  %v883 = vunpack.c.l.b16 %v28
  %v884 = vunpack.c.h.b16 %v28
  %v885 = vunpack.c.l.b16 %v29
  %v886 = vunpack.c.h.b16 %v29
  %v887 = vunpack.c.l.b16 %v30
  %v888 = vunpack.c.h.b16 %v30
  %v889 = vunpack.c.l.b16 %v31
  %v890 = vunpack.c.h.b16 %v31
  %v891 = vunpack.c.l.b16 %v32
  %v892 = vunpack.c.h.b16 %v32
  %v893 = vunpack.c.l.b16 %v33
  %v894 = vpack.c.b16 %v869, %v869
  %v895 = vpack.c.b16 %v870, %v870
  %v896 = vpack.c.b16 %v871, %v871
  %v897 = vpack.c.b16 %v872, %v872
  %v898 = vpack.c.b16 %v873, %v873
  %v899 = vpack.c.b16 %v874, %v874
  %v900 = vpack.c.b16 %v875, %v875
  %v901 = vpack.c.b16 %v876, %v876
  %v902 = vpack.c.b16 %v877, %v877
  %v903 = vpack.c.b16 %v878, %v878
  %v904 = vpack.c.b16 %v879, %v879
  %v905 = vpack.c.b16 %v880, %v880
  %v906 = vpack.c.b16 %v881, %v881
  %v907 = vpack.c.b16 %v882, %v882
  %v908 = vpack.c.b16 %v883, %v883
  %v909 = vpack.c.b16 %v884, %v884
  %v910 = vpack.c.b16 %v885, %v885
  %v911 = vpack.c.b16 %v886, %v886
  %v912 = vpack.c.b16 %v887, %v887
  %v913 = vpack.c.b16 %v888, %v888
  %v914 = vpack.c.b16 %v889, %v889
  %v915 = vpack.c.b16 %v890, %v890
  %v916 = vpack.c.b16 %v891, %v891
  %v917 = vpack.c.b16 %v892, %v892
  %v918 = vpack.c.b16 %v893, %v893
  %v1744 = vunpack.c.l.b16 %v34
  %v1745 = vunpack.c.h.b16 %v34
  %v1746 = vunpack.c.l.b16 %v35
  %v1747 = vunpack.c.h.b16 %v35
  %v1748 = vunpack.c.l.b16 %v36
  %v1749 = vunpack.c.h.b16 %v36
  %v1750 = vunpack.c.l.b16 %v37
  %v1751 = vunpack.c.h.b16 %v37
  %v1752 = vunpack.c.l.b16 %v38
  %v1753 = vunpack.c.h.b16 %v38
  %v1754 = vunpack.c.l.b16 %v39
  %v1755 = vunpack.c.h.b16 %v39
  %v1756 = vunpack.c.l.b16 %v40
  %v1757 = vunpack.c.h.b16 %v40
  %v1758 = vunpack.c.l.b16 %v41
  %v1759 = vunpack.c.h.b16 %v41
  %v1760 = vunpack.c.l.b16 %v42
  %v1761 = vunpack.c.h.b16 %v42
  %v1762 = vunpack.c.l.b16 %v43
  %v1763 = vunpack.c.h.b16 %v43
  %v1764 = vunpack.c.l.b16 %v44
  %v1765 = vunpack.c.h.b16 %v44
  %v1766 = vunpack.c.l.b16 %v45
  %v1767 = vunpack.c.h.b16 %v45
  %v1768 = vunpack.c.l.b16 %v46
  %v1769 = vunpack.c.h.b16 %v46
  %v1770 = vunpack.c.l.b16 %v47
  %v1771 = vunpack.c.h.b16 %v47
  %v1772 = vunpack.c.l.b16 %v48
  %v1773 = vunpack.c.h.b16 %v48
  %v1774 = vunpack.c.l.b16 %v49
  %v1775 = vunpack.c.h.b16 %v49
  %v1776 = vunpack.c.l.b16 %v50
  %v1777 = vunpack.c.h.b16 %v50
  %v1778 = vunpack.c.l.b16 %v51
  %v1779 = vunpack.c.h.b16 %v51
  %v1780 = vunpack.c.l.b16 %v52
  %v1781 = vunpack.c.h.b16 %v52
  %v1782 = vunpack.c.l.b16 %v53
  %v1783 = vunpack.c.h.b16 %v53
  %v1784 = vunpack.c.l.b16 %v54
  %v1785 = vunpack.c.h.b16 %v54
  %v1786 = vunpack.c.l.b16 %v55
  %v1787 = vunpack.c.h.b16 %v55
  %v1788 = vunpack.c.l.b16 %v56
  %v1789 = vunpack.c.h.b16 %v56
  %v1790 = vunpack.c.l.b16 %v57
  %v1791 = vunpack.c.h.b16 %v57
  %v1792 = vunpack.c.l.b16 %v58
  %v1793 = vunpack.c.h.b16 %v58
  %v1794 = vunpack.c.l.b16 %v59
  %v1795 = vunpack.c.h.b16 %v59
  %v1796 = vunpack.c.l.b16 %v60
  %v1797 = vunpack.c.h.b16 %v60
  %v1798 = vunpack.c.l.b16 %v61
  %v1799 = vunpack.c.h.b16 %v61
  %v1800 = vunpack.c.l.b16 %v62
  %v1801 = vunpack.c.h.b16 %v62
  %v1802 = vunpack.c.l.b16 %v63
  %v1803 = vunpack.c.h.b16 %v63
  %v1804 = vunpack.c.l.b16 %v64
  %v1805 = vunpack.c.h.b16 %v64
  %v1806 = vunpack.c.l.b16 %v65
  %v1807 = vunpack.c.h.b16 %v65
  %v1808 = vunpack.c.l.b16 %v66
  %v1809 = vunpack.c.h.b16 %v66
  %v1810 = vunpack.c.l.b16 %v67
  %v1811 = vunpack.c.h.b16 %v67
  %v1812 = vunpack.c.l.b16 %v68
  %v1813 = vunpack.c.h.b16 %v68
  %v1814 = vunpack.c.l.b16 %v69
  %v1815 = vunpack.c.h.b16 %v69
  %v1816 = vunpack.c.l.b16 %v70
  %v1817 = vunpack.c.h.b16 %v70
  %v1818 = vunpack.c.l.b16 %v71
  %v1819 = vunpack.c.h.b16 %v71
  %v1820 = vunpack.c.l.b16 %v72
  %v1821 = vunpack.c.h.b16 %v72
  %v1822 = vunpack.c.l.b16 %v73
  %v1823 = vunpack.c.h.b16 %v73
  %v1824 = vunpack.c.l.b16 %v74
  %v1825 = vunpack.c.h.b16 %v74
  %v1826 = vunpack.c.l.b16 %v75
  %v1827 = vunpack.c.h.b16 %v75
  %v1828 = vunpack.c.l.b16 %v76
  %v1829 = vunpack.c.h.b16 %v76
  %v1830 = vunpack.c.l.b16 %v77
  %v1831 = vunpack.c.h.b16 %v77
  %v1832 = vunpack.c.l.b16 %v78
  %v1833 = vunpack.c.h.b16 %v78
  %v1834 = vunpack.c.l.b16 %v79
  %v1835 = vunpack.c.h.b16 %v79
  %v1836 = vunpack.c.l.b16 %v80
  %v1837 = vunpack.c.h.b16 %v80
  %v1838 = vunpack.c.l.b16 %v81
  %v1839 = vunpack.c.h.b16 %v81
  %v1840 = vunpack.c.l.b16 %v82
  %v1841 = vunpack.c.h.b16 %v82
  %v1842 = vunpack.c.l.b16 %v83
  %v1843 = vunpack.c.h.b16 %v83
  %v1844 = vunpack.c.l.b16 %v84
  %v1845 = vunpack.c.h.b16 %v84
  %v1846 = vunpack.c.l.b16 %v85
  %v1847 = vunpack.c.h.b16 %v85
  %v1848 = vunpack.c.l.b16 %v86
  %v1849 = vunpack.c.h.b16 %v86
  %v1850 = vunpack.c.l.b16 %v87
  %v1851 = vunpack.c.h.b16 %v87
  %v1852 = vunpack.c.l.b16 %v88
  %v1853 = vunpack.c.h.b16 %v88
  %v1854 = vunpack.c.l.b16 %v89
  %v1855 = vunpack.c.h.b16 %v89
  %v1856 = vunpack.c.l.b16 %v90
  %v1857 = vunpack.c.h.b16 %v90
  %v1858 = vunpack.c.l.b16 %v91
  %v1859 = vunpack.c.h.b16 %v91
  %v1860 = vunpack.c.l.b16 %v92
  %v1861 = vunpack.c.h.b16 %v92
  %v1862 = vunpack.c.l.b16 %v93
  %v1863 = vunpack.c.h.b16 %v93
  %v1864 = vunpack.c.l.b16 %v94
  %v1865 = vunpack.c.h.b16 %v94
  %v1866 = vunpack.c.l.b16 %v95
  %v1867 = vunpack.c.h.b16 %v95
  %v1868 = vunpack.c.l.b16 %v96
  %v1869 = vunpack.c.h.b16 %v96
  %v1870 = vunpack.c.l.b16 %v97
  %v1871 = vunpack.c.h.b16 %v97
  %v1872 = vunpack.c.l.b16 %v98
  %v1873 = vunpack.c.h.b16 %v98
  %v1874 = vunpack.c.l.b16 %v99
  %v1875 = vunpack.c.h.b16 %v99
  %v1876 = vunpack.c.l.b16 %v100
  %v1877 = vunpack.c.h.b16 %v100
  %v1878 = vunpack.c.l.b16 %v101
  %v1879 = vunpack.c.h.b16 %v101
  %v1880 = vunpack.c.l.b16 %v102
  %v1881 = vunpack.c.h.b16 %v102
  %v1882 = vunpack.c.l.b16 %v103
  %v1883 = vunpack.c.h.b16 %v103
  %v1884 = vunpack.c.l.b16 %v104
  %v1885 = vunpack.c.h.b16 %v104
  %v1886 = vunpack.c.l.b16 %v105
  %v1887 = vunpack.c.h.b16 %v105
  %v1888 = vunpack.c.l.b16 %v106
  %v1889 = vunpack.c.h.b16 %v106
  %v1890 = vunpack.c.l.b16 %v107
  %v1891 = vunpack.c.h.b16 %v107
  %v1892 = vunpack.c.l.b16 %v108
  %v1893 = vunpack.c.h.b16 %v108
  %v1894 = vunpack.c.l.b16 %v109
  %v1895 = vunpack.c.h.b16 %v109
  %v1896 = vunpack.c.l.b16 %v110
  %v1897 = vunpack.c.h.b16 %v110
  %v1898 = vunpack.c.l.b16 %v111
  %v1899 = vunpack.c.h.b16 %v111
  %v1900 = vunpack.c.l.b16 %v112
  %v1901 = vunpack.c.h.b16 %v112
  %v1902 = vunpack.c.l.b16 %v113
  %v1903 = vunpack.c.h.b16 %v113
  %v1904 = vunpack.c.l.b16 %v114
  %v1905 = vunpack.c.h.b16 %v114
  %v1906 = vunpack.c.l.b16 %v115
  %v1907 = vunpack.c.h.b16 %v115
  %v1908 = vunpack.c.l.b16 %v116
  %v1909 = vunpack.c.h.b16 %v116
  %v1910 = vunpack.c.l.b16 %v117
  %v1911 = vunpack.c.h.b16 %v117
  %v1912 = vunpack.c.l.b16 %v118
  %v1913 = vunpack.c.h.b16 %v118
  %v1914 = vunpack.c.l.b16 %v119
  %v1915 = vunpack.c.h.b16 %v119
  %v1916 = vunpack.c.l.b16 %v120
  %v1917 = vunpack.c.h.b16 %v120
  %v1918 = vunpack.c.l.b16 %v121
  %v1919 = vunpack.c.h.b16 %v121
  %v1920 = vunpack.c.l.b16 %v122
  %v1921 = vunpack.c.h.b16 %v122
  %v1922 = vunpack.c.l.b16 %v123
  %v1923 = vunpack.c.h.b16 %v123
  %v1924 = vunpack.c.l.b16 %v124
  %v1925 = vunpack.c.h.b16 %v124
  %v1926 = vunpack.c.l.b16 %v125
  %v1927 = vunpack.c.h.b16 %v125
  %v1928 = vunpack.c.l.b16 %v126
  %v1929 = vunpack.c.h.b16 %v126
  %v1930 = vunpack.c.l.b16 %v127
  %v1931 = vunpack.c.h.b16 %v127
  %v1932 = vunpack.c.l.b16 %v128
  %v1933 = vunpack.c.h.b16 %v128
  %v1934 = vunpack.c.l.b16 %v129
  %v1935 = vunpack.c.h.b16 %v129
  %v1936 = vunpack.c.l.b16 %v130
  %v1937 = vunpack.c.h.b16 %v130
  %v1938 = vunpack.c.l.b16 %v131
  %v1939 = vunpack.c.h.b16 %v131
  %v1940 = vunpack.c.l.b16 %v132
  %v1941 = vunpack.c.h.b16 %v132
  %v1942 = vunpack.c.l.b16 %v133
  %v1943 = vunpack.c.h.b16 %v133
  %v1944 = vunpack.c.l.b16 %v134
  %v1945 = vunpack.c.h.b16 %v134
  %v1946 = vunpack.c.l.b16 %v135
  %v1947 = vunpack.c.h.b16 %v135
  %v1948 = vunpack.c.l.b16 %v136
  %v1949 = vunpack.c.h.b16 %v136
  %v1950 = vunpack.c.l.b16 %v137
  %v1951 = vunpack.c.h.b16 %v137
  %v1952 = vunpack.c.l.b16 %v138
  %v1953 = vunpack.c.h.b16 %v138
  %v1954 = vunpack.c.l.b16 %v139
  %v1955 = vunpack.c.h.b16 %v139
  %v1956 = vunpack.c.l.b16 %v140
  %v1957 = vunpack.c.h.b16 %v140
  %v1958 = vunpack.c.l.b16 %v141
  %v1959 = vunpack.c.h.b16 %v141
  %v1960 = vunpack.c.l.b16 %v142
  %v1961 = vunpack.c.h.b16 %v142
  %v1962 = vunpack.c.l.b16 %v143
  %v1963 = vunpack.c.h.b16 %v143
  %v1964 = vunpack.c.l.b16 %v144
  %v1965 = vunpack.c.h.b16 %v144
  %v1966 = vunpack.c.l.b16 %v145
  %v1967 = vunpack.c.h.b16 %v145
  %v1968 = vunpack.c.l.b16 %v146
  %v1969 = vunpack.c.h.b16 %v146
  %v1970 = vunpack.c.l.b16 %v147
  %v1971 = vunpack.c.h.b16 %v147
  %v1972 = vunpack.c.l.b16 %v148
  %v1973 = vunpack.c.h.b16 %v148
  %v1974 = vunpack.c.l.b16 %v149
  %v1975 = vunpack.c.h.b16 %v149
  %v1976 = vunpack.c.l.b16 %v150
  %v1977 = vunpack.c.h.b16 %v150
  %v1978 = vunpack.c.l.b16 %v151
  %v1979 = vunpack.c.h.b16 %v151
  %v1980 = vunpack.c.l.b16 %v152
  %v1981 = vunpack.c.h.b16 %v152
  %v1982 = vunpack.c.l.b16 %v153
  %v1983 = vunpack.c.h.b16 %v153
  %v1984 = vunpack.c.l.b16 %v154
  %v1985 = vunpack.c.h.b16 %v154
  %v1986 = vunpack.c.l.b16 %v155
  %v1987 = vunpack.c.h.b16 %v155
  %v1988 = vunpack.c.l.b16 %v156
  %v1989 = vunpack.c.h.b16 %v156
  %v1990 = vunpack.c.l.b16 %v157
  %v1991 = vunpack.c.h.b16 %v157
  %v1992 = vunpack.c.l.b16 %v158
  %v1993 = vunpack.c.h.b16 %v158
  %v1994 = vunpack.c.l.b16 %v159
  %v1995 = vunpack.c.h.b16 %v159
  %v1996 = vunpack.c.l.b16 %v160
  %v1997 = vunpack.c.h.b16 %v160
  %v1998 = vunpack.c.l.b16 %v161
  %v1999 = vunpack.c.h.b16 %v161
  %v2000 = vunpack.c.l.b16 %v162
  %v2001 = vunpack.c.h.b16 %v162
  %v2002 = vunpack.c.l.b16 %v163
  %v2003 = vunpack.c.h.b16 %v163
  %v2004 = vunpack.c.l.b16 %v164
  %v2005 = vunpack.c.h.b16 %v164
  %v2006 = vunpack.c.l.b16 %v165
  %v2007 = vunpack.c.h.b16 %v165
  %v2008 = vunpack.c.l.b16 %v166
  %v2009 = vunpack.c.h.b16 %v166
  %v2010 = vunpack.c.l.b16 %v167
  %v2011 = vunpack.c.h.b16 %v167
  %v2012 = vunpack.c.l.b16 %v168
  %v2013 = vunpack.c.h.b16 %v168
  %v2014 = vunpack.c.l.b16 %v169
  %v2015 = vunpack.c.h.b16 %v169
  %v2016 = vunpack.c.l.b16 %v170
  %v2017 = vunpack.c.h.b16 %v170
  %v2018 = vunpack.c.l.b16 %v171
  %v2019 = vunpack.c.h.b16 %v171
  %v2020 = vunpack.c.l.b16 %v172
  %v2021 = vunpack.c.h.b16 %v172
  %v2022 = vunpack.c.l.b16 %v173
  %v2023 = vunpack.c.h.b16 %v173
  %v2024 = vunpack.c.l.b16 %v174
  %v2025 = vunpack.c.h.b16 %v174
  %v2026 = vunpack.c.l.b16 %v175
  %v2027 = vunpack.c.h.b16 %v175
  %v2028 = vunpack.c.l.b16 %v176
  %v2029 = vunpack.c.h.b16 %v176
  %v2030 = vunpack.c.l.b16 %v177
  %v2031 = vunpack.c.h.b16 %v177
  %v2032 = vunpack.c.l.b16 %v178
  %v2033 = vunpack.c.h.b16 %v178
  %v2034 = vunpack.c.l.b16 %v179
  %v2035 = vunpack.c.h.b16 %v179
  %v2036 = vunpack.c.l.b16 %v180
  %v2037 = vunpack.c.h.b16 %v180
  %v2038 = vunpack.c.l.b16 %v181
  %v2039 = vunpack.c.h.b16 %v181
  %v2040 = vunpack.c.l.b16 %v182
  %v2041 = vunpack.c.h.b16 %v182
  %v2042 = vunpack.c.l.b16 %v183
  %v2043 = vunpack.c.h.b16 %v183
  %v2044 = vunpack.c.l.b16 %v184
  %v2045 = vunpack.c.h.b16 %v184
  %v2046 = vunpack.c.l.b16 %v185
  %v2047 = vunpack.c.h.b16 %v185
  %v2048 = vunpack.c.l.b16 %v186
  %v2049 = vunpack.c.h.b16 %v186
  %v2050 = vunpack.c.l.b16 %v187
  %v2051 = vunpack.c.h.b16 %v187
  %v2052 = vunpack.c.l.b16 %v188
  %v2053 = vunpack.c.h.b16 %v188
  %v2054 = vunpack.c.l.b16 %v189
  %v2055 = vunpack.c.h.b16 %v189
  %v2056 = vunpack.c.l.b16 %v190
  %v2057 = vunpack.c.h.b16 %v190
  %v2058 = vunpack.c.l.b16 %v191
  %v2059 = vunpack.c.h.b16 %v191
  %v2060 = vunpack.c.l.b16 %v192
  %v2061 = vunpack.c.h.b16 %v192
  %v2062 = vunpack.c.l.b16 %v193
  %v2063 = vunpack.c.h.b16 %v193
  %v2064 = vunpack.c.l.b16 %v194
  %v2065 = vunpack.c.h.b16 %v194
  %v2066 = vunpack.c.l.b16 %v195
  %v2067 = vunpack.c.h.b16 %v195
  %v2068 = vunpack.c.l.b16 %v196
  %v2069 = vunpack.c.h.b16 %v196
  %v2070 = vunpack.c.l.b16 %v197
  %v2071 = vunpack.c.h.b16 %v197
  %v2072 = vunpack.c.l.b16 %v198
  %v2073 = vunpack.c.h.b16 %v198
  %v2074 = vunpack.c.l.b16 %v199
  %v2075 = vunpack.c.h.b16 %v199
  %v2076 = vunpack.c.l.b16 %v200
  %v2077 = vunpack.c.h.b16 %v200
  %v2078 = vunpack.c.l.b16 %v201
  %v2079 = vunpack.c.h.b16 %v201
  %v2080 = vunpack.c.l.b16 %v202
  %v2081 = vunpack.c.h.b16 %v202
  %v2082 = vunpack.c.l.b16 %v203
  %v2083 = vunpack.c.h.b16 %v203
  %v2084 = vunpack.c.l.b16 %v204
  %v2085 = vunpack.c.h.b16 %v204
  %v2086 = vunpack.c.l.b16 %v205
  %v2087 = vunpack.c.h.b16 %v205
  %v2088 = vunpack.c.l.b16 %v206
  %v2089 = vunpack.c.h.b16 %v206
  %v2090 = vunpack.c.l.b16 %v207
  %v2091 = vunpack.c.h.b16 %v207
  %v2092 = vunpack.c.l.b16 %v208
  %v2093 = vunpack.c.h.b16 %v208
  %v2094 = vunpack.c.l.b16 %v209
  %v2095 = vunpack.c.h.b16 %v209
  %v2096 = vunpack.c.l.b16 %v210
  %v2097 = vunpack.c.h.b16 %v210
  %v2098 = vunpack.c.l.b16 %v211
  %v2099 = vunpack.c.h.b16 %v211
  %v2100 = vunpack.c.l.b16 %v212
  %v2101 = vunpack.c.h.b16 %v212
  %v2102 = vunpack.c.l.b16 %v213
  %v2103 = vunpack.c.h.b16 %v213
  %v2104 = vunpack.c.l.b16 %v214
  %v2105 = vunpack.c.h.b16 %v214
  %v2106 = vunpack.c.l.b16 %v215
  %v2107 = vunpack.c.h.b16 %v215
  %v2108 = vunpack.c.l.b16 %v216
  %v2109 = vunpack.c.h.b16 %v216
  %v2110 = vunpack.c.l.b16 %v217
  %v2111 = vunpack.c.h.b16 %v217
  %v2112 = vunpack.c.l.b16 %v218
  %v2113 = vunpack.c.h.b16 %v218
  %v2114 = vunpack.c.l.b16 %v219
  %v2115 = vunpack.c.h.b16 %v219
  %v2116 = vunpack.c.l.b16 %v220
  %v2117 = vunpack.c.h.b16 %v220
  %v2118 = vunpack.c.l.b16 %v221
  %v2119 = vunpack.c.h.b16 %v221
  %v2120 = vunpack.c.l.b16 %v222
  %v2121 = vunpack.c.h.b16 %v222
  %v2122 = vunpack.c.l.b16 %v223
  %v2123 = vunpack.c.h.b16 %v223
  %v2124 = vunpack.c.l.b16 %v224
  %v2125 = vunpack.c.h.b16 %v224
  %v2126 = vunpack.c.l.b16 %v225
  %v2127 = vunpack.c.h.b16 %v225
  %v2128 = vunpack.c.l.b16 %v226
  %v2129 = vunpack.c.h.b16 %v226
  %v2130 = vunpack.c.l.b16 %v227
  %v2131 = vunpack.c.h.b16 %v227
  %v2132 = vunpack.c.l.b16 %v228
  %v2133 = vunpack.c.h.b16 %v228
  %v2134 = vunpack.c.l.b16 %v229
  %v2135 = vunpack.c.h.b16 %v229
  %v2136 = vunpack.c.l.b16 %v230
  %v2137 = vunpack.c.h.b16 %v230
  %v2138 = vunpack.c.l.b16 %v231
  %v2139 = vunpack.c.h.b16 %v231
  %v2140 = vunpack.c.l.b16 %v232
  %v2141 = vunpack.c.h.b16 %v232
  %v2142 = vunpack.c.l.b16 %v233
  %v2143 = vunpack.c.h.b16 %v233
  %v2144 = vunpack.c.l.b16 %v234
  %v2145 = vunpack.c.h.b16 %v234
  %v2146 = vunpack.c.l.b16 %v235
  %v2147 = vunpack.c.h.b16 %v235
  %v2148 = vunpack.c.l.b16 %v236
  %v2149 = vunpack.c.h.b16 %v236
  %v2150 = vunpack.c.l.b16 %v237
  %v2151 = vunpack.c.h.b16 %v237
  %v2152 = vunpack.c.l.b16 %v238
  %v2153 = vunpack.c.h.b16 %v238
  %v2154 = vunpack.c.l.b16 %v239
  %v2155 = vunpack.c.h.b16 %v239
  %v2156 = vunpack.c.l.b16 %v240
  %v2157 = vunpack.c.h.b16 %v240
  %v2158 = vunpack.c.l.b16 %v241
  %v2159 = vunpack.c.h.b16 %v241
  %v2160 = vunpack.c.l.b16 %v242
  %v2161 = vunpack.c.h.b16 %v242
  %v2162 = vunpack.c.l.b16 %v243
  %v2163 = vunpack.c.h.b16 %v243
  %v2164 = vunpack.c.l.b16 %v244
  %v2165 = vunpack.c.h.b16 %v244
  %v2166 = vunpack.c.l.b16 %v245
  %v2167 = vunpack.c.h.b16 %v245
  %v2168 = vunpack.c.l.b16 %v246
  %v2169 = vunpack.c.h.b16 %v246
  %v2170 = vunpack.c.l.b16 %v247
  %v2171 = vunpack.c.h.b16 %v247
  %v2172 = vunpack.c.l.b16 %v248
  %v2173 = vunpack.c.h.b16 %v248
  %v2174 = vunpack.c.l.b16 %v249
  %v2175 = vunpack.c.h.b16 %v249
  %v2176 = vunpack.c.l.b16 %v250
  %v2177 = vunpack.c.h.b16 %v250
  %v2178 = vunpack.c.l.b16 %v251
  %v2179 = vunpack.c.h.b16 %v251
  %v2180 = vunpack.c.l.b16 %v252
  %v2181 = vunpack.c.h.b16 %v252
  %v2182 = vunpack.c.l.b16 %v253
  %v2183 = vunpack.c.h.b16 %v253
  %v2184 = vunpack.c.l.b16 %v254
  %v2185 = vunpack.c.h.b16 %v254
  %v2186 = vunpack.c.l.b16 %v255
  %v2187 = vunpack.c.h.b16 %v255
  %v2188 = vunpack.c.l.b16 %v256
  %v2189 = vunpack.c.h.b16 %v256
  %v2190 = vunpack.c.l.b16 %v257
  %v2191 = vunpack.c.h.b16 %v257
  %v2192 = vunpack.c.l.b16 %v258
  %v2193 = vunpack.c.h.b16 %v258
  %v2194 = vunpack.c.l.b16 %v259
  %v2195 = vunpack.c.h.b16 %v259
  %v2196 = vunpack.c.l.b16 %v260
  %v2197 = vunpack.c.h.b16 %v260
  %v2198 = vunpack.c.l.b16 %v261
  %v2199 = vunpack.c.h.b16 %v261
  %v2200 = vunpack.c.l.b16 %v262
  %v2201 = vunpack.c.h.b16 %v262
  %v2202 = vunpack.c.l.b16 %v263
  %v2203 = vunpack.c.h.b16 %v263
  %v2204 = vunpack.c.l.b16 %v264
  %v2205 = vunpack.c.h.b16 %v264
  %v2206 = vunpack.c.l.b16 %v265
  %v2207 = vunpack.c.h.b16 %v265
  %v2208 = vunpack.c.l.b16 %v266
  %v2209 = vunpack.c.h.b16 %v266
  %v2210 = vunpack.c.l.b16 %v267
  %v2211 = vunpack.c.h.b16 %v267
  %v2212 = vunpack.c.l.b16 %v268
  %v2213 = vunpack.c.h.b16 %v268
  %v2214 = vunpack.c.l.b16 %v269
  %v2215 = vunpack.c.h.b16 %v269
  %v2216 = vunpack.c.l.b16 %v270
  %v2217 = vunpack.c.h.b16 %v270
  %v2218 = vunpack.c.l.b16 %v271
  %v2219 = vunpack.c.h.b16 %v271
  %v2220 = vunpack.c.l.b16 %v272
  %v2221 = vunpack.c.h.b16 %v272
  %v2222 = vunpack.c.l.b16 %v273
  %v2223 = vunpack.c.h.b16 %v273
  %v2224 = vunpack.c.l.b16 %v274
  %v2225 = vunpack.c.h.b16 %v274
  %v2226 = vunpack.c.l.b16 %v275
  %v2227 = vunpack.c.h.b16 %v275
  %v2228 = vunpack.c.l.b16 %v276
  %v2229 = vunpack.c.h.b16 %v276
  %v2230 = vunpack.c.l.b16 %v277
  %v2231 = vunpack.c.h.b16 %v277
  %v2232 = vunpack.c.l.b16 %v278
  %v2233 = vunpack.c.h.b16 %v278
  %v2234 = vunpack.c.l.b16 %v279
  %v2235 = vunpack.c.h.b16 %v279
  %v2236 = vunpack.c.l.b16 %v280
  %v2237 = vunpack.c.h.b16 %v280
  %v2238 = vunpack.c.l.b16 %v281
  %v2239 = vunpack.c.h.b16 %v281
  %v2240 = vunpack.c.l.b16 %v282
  %v2241 = vunpack.c.h.b16 %v282
  %v2242 = vunpack.c.l.b16 %v283
  %v2243 = vunpack.c.h.b16 %v283
  %v2244 = vunpack.c.l.b16 %v284
  %v2245 = vunpack.c.h.b16 %v284
  %v2246 = vunpack.c.l.b16 %v285
  %v2247 = vunpack.c.h.b16 %v285
  %v2248 = vunpack.c.l.b16 %v286
  %v2249 = vunpack.c.h.b16 %v286
  %v2250 = vunpack.c.l.b16 %v287
  %v2251 = vunpack.c.h.b16 %v287
  %v2252 = vunpack.c.l.b16 %v288
  %v2253 = vunpack.c.h.b16 %v288
  %v2254 = vunpack.c.l.b16 %v289
  %v2255 = vunpack.c.h.b16 %v289
  %v2256 = vunpack.c.l.b16 %v290
  %v2257 = vunpack.c.h.b16 %v290
  %v2258 = vunpack.c.l.b16 %v291
  %v2259 = vunpack.c.h.b16 %v291
  %v2260 = vunpack.c.l.b16 %v292
  %v2261 = vunpack.c.h.b16 %v292
  %v2262 = vunpack.c.l.b16 %v293
  %v2263 = vunpack.c.h.b16 %v293
  %v2264 = vunpack.c.l.b16 %v294
  %v2265 = vunpack.c.h.b16 %v294
  %v2266 = vunpack.c.l.b16 %v295
  %v2267 = vunpack.c.h.b16 %v295
  %v2268 = vunpack.c.l.b16 %v296
  %v2269 = vunpack.c.h.b16 %v296
  %v2270 = vunpack.c.l.b16 %v297
  %v2271 = vunpack.c.h.b16 %v297
  %v2272 = vunpack.c.l.b16 %v298
  %v2273 = vunpack.c.h.b16 %v298
  %v2274 = vunpack.c.l.b16 %v299
  %v2275 = vunpack.c.h.b16 %v299
  %v2276 = vunpack.c.l.b16 %v300
  %v2277 = vunpack.c.h.b16 %v300
  %v2278 = vunpack.c.l.b16 %v301
  %v2279 = vunpack.c.h.b16 %v301
  %v2280 = vunpack.c.l.b16 %v302
  %v2281 = vunpack.c.h.b16 %v302
  %v2282 = vunpack.c.l.b16 %v303
  %v2283 = vunpack.c.h.b16 %v303
  %v2284 = vunpack.c.l.b16 %v304
  %v2285 = vunpack.c.h.b16 %v304
  %v2286 = vunpack.c.l.b16 %v305
  %v2287 = vunpack.c.h.b16 %v305
  %v2288 = vunpack.c.l.b16 %v306
  %v2289 = vunpack.c.h.b16 %v306
  %v2290 = vunpack.c.l.b16 %v307
  %v2291 = vunpack.c.h.b16 %v307
  %v2292 = vunpack.c.l.b16 %v308
  %v2293 = vunpack.c.h.b16 %v308
  %v2294 = vunpack.c.l.b16 %v309
  %v2295 = vunpack.c.h.b16 %v309
  %v2296 = vunpack.c.l.b16 %v310
  %v2297 = vunpack.c.h.b16 %v310
  %v2298 = vunpack.c.l.b16 %v311
  %v2299 = vunpack.c.h.b16 %v311
  %v2300 = vunpack.c.l.b16 %v312
  %v2301 = vunpack.c.h.b16 %v312
  %v2302 = vunpack.c.l.b16 %v313
  %v2303 = vunpack.c.h.b16 %v313
  %v2304 = vunpack.c.l.b16 %v314
  %v2305 = vunpack.c.h.b16 %v314
  %v2306 = vunpack.c.l.b16 %v315
  %v2307 = vunpack.c.h.b16 %v315
  %v2308 = vunpack.c.l.b16 %v316
  %v2309 = vunpack.c.h.b16 %v316
  %v2310 = vunpack.c.l.b16 %v317
  %v2311 = vunpack.c.h.b16 %v317
  %v2312 = vunpack.c.l.b16 %v318
  %v2313 = vunpack.c.h.b16 %v318
  %v2314 = vunpack.c.l.b16 %v319
  %v2315 = vunpack.c.h.b16 %v319
  %v2316 = vunpack.c.l.b16 %v320
  %v2317 = vunpack.c.h.b16 %v320
  %v2318 = vunpack.c.l.b16 %v321
  %v2319 = vunpack.c.h.b16 %v321
  %v2320 = vunpack.c.l.b16 %v322
  %v2321 = vunpack.c.h.b16 %v322
  %v2322 = vunpack.c.l.b16 %v323
  %v2323 = vunpack.c.h.b16 %v323
  %v2324 = vunpack.c.l.b16 %v324
  %v2325 = vunpack.c.h.b16 %v324
  %v2326 = vunpack.c.l.b16 %v325
  %v2327 = vunpack.c.h.b16 %v325
  %v2328 = vunpack.c.l.b16 %v326
  %v2329 = vunpack.c.h.b16 %v326
  %v2330 = vunpack.c.l.b16 %v327
  %v2331 = vunpack.c.h.b16 %v327
  %v2332 = vunpack.c.l.b16 %v328
  %v2333 = vunpack.c.h.b16 %v328
  %v2334 = vunpack.c.l.b16 %v329
  %v2335 = vunpack.c.h.b16 %v329
  %v2336 = vunpack.c.l.b16 %v330
  %v2337 = vunpack.c.h.b16 %v330
  %v2338 = vunpack.c.l.b16 %v331
  %v2339 = vunpack.c.h.b16 %v331
  %v2340 = vunpack.c.l.b16 %v332
  %v2341 = vunpack.c.h.b16 %v332
  %v2342 = vunpack.c.l.b16 %v333
  %v2343 = vunpack.c.h.b16 %v333
  %v2344 = vunpack.c.l.b16 %v334
  %v2345 = vunpack.c.h.b16 %v334
  %v2346 = vunpack.c.l.b16 %v335
  %v2347 = vunpack.c.h.b16 %v335
  %v2348 = vunpack.c.l.b16 %v336
  %v2349 = vunpack.c.h.b16 %v336
  %v2350 = vunpack.c.l.b16 %v337
  %v2351 = vunpack.c.h.b16 %v337
  %v2352 = vunpack.c.l.b16 %v338
  %v2353 = vunpack.c.h.b16 %v338
  %v2354 = vunpack.c.l.b16 %v339
  %v2355 = vunpack.c.h.b16 %v339
  %v2356 = vunpack.c.l.b16 %v340
  %v2357 = vunpack.c.h.b16 %v340
  %v2358 = vunpack.c.l.b16 %v341
  %v2359 = vunpack.c.h.b16 %v341
  %v2360 = vunpack.c.l.b16 %v342
  %v2361 = vunpack.c.h.b16 %v342
  %v2362 = vunpack.c.l.b16 %v343
  %v2363 = vunpack.c.h.b16 %v343
  %v2364 = vunpack.c.l.b16 %v344
  %v2365 = vunpack.c.h.b16 %v344
  %v2366 = vunpack.c.l.b16 %v345
  %v2367 = vunpack.c.h.b16 %v345
  %v2368 = vunpack.c.l.b16 %v346
  %v2369 = vunpack.c.h.b16 %v346
  %v2370 = vunpack.c.l.b16 %v347
  %v2371 = vunpack.c.h.b16 %v347
  %v2372 = vunpack.c.l.b16 %v348
  %v2373 = vunpack.c.h.b16 %v348
  %v2374 = vunpack.c.l.b16 %v349
  %v2375 = vunpack.c.h.b16 %v349
  %v2376 = vunpack.c.l.b16 %v350
  %v2377 = vunpack.c.h.b16 %v350
  %v2378 = vunpack.c.l.b16 %v351
  %v2379 = vunpack.c.h.b16 %v351
  %v2380 = vunpack.c.l.b16 %v352
  %v2381 = vunpack.c.h.b16 %v352
  %v2382 = vunpack.c.l.b16 %v353
  %v2383 = vunpack.c.h.b16 %v353
  %v2384 = vunpack.c.l.b16 %v354
  %v2385 = vunpack.c.h.b16 %v354
  %v2386 = vunpack.c.l.b16 %v355
  %v2387 = vunpack.c.h.b16 %v355
  %v2388 = vunpack.c.l.b16 %v356
  %v2389 = vunpack.c.h.b16 %v356
  %v2390 = vunpack.c.l.b16 %v357
  %v2391 = vunpack.c.h.b16 %v357
  %v2392 = vunpack.c.l.b16 %v358
  %v2393 = vunpack.c.h.b16 %v358
  %v2394 = vunpack.c.l.b16 %v359
  %v2395 = vunpack.c.h.b16 %v359
  %v2396 = vunpack.c.l.b16 %v360
  %v2397 = vunpack.c.h.b16 %v360
  %v2398 = vunpack.c.l.b16 %v361
  %v2399 = vunpack.c.h.b16 %v361
  %v2400 = vunpack.c.l.b16 %v362
  %v2401 = vunpack.c.h.b16 %v362
  %v2402 = vunpack.c.l.b16 %v363
  %v2403 = vunpack.c.h.b16 %v363
  %v2404 = vunpack.c.l.b16 %v364
  %v2405 = vunpack.c.h.b16 %v364
  %v2406 = vunpack.c.l.b16 %v365
  %v2407 = vunpack.c.h.b16 %v365
  %v2408 = vunpack.c.l.b16 %v366
  %v2409 = vunpack.c.h.b16 %v366
  %v2410 = vunpack.c.l.b16 %v367
  %v2411 = vunpack.c.h.b16 %v367
  %v2412 = vunpack.c.l.b16 %v368
  %v2413 = vunpack.c.h.b16 %v368
  %v2414 = vunpack.c.l.b16 %v369
  %v2415 = vunpack.c.h.b16 %v369
  %v2416 = vunpack.c.l.b16 %v370
  %v2417 = vunpack.c.h.b16 %v370
  %v2418 = vunpack.c.l.b16 %v371
  %v2419 = vunpack.c.h.b16 %v371
  %v2420 = vunpack.c.l.b16 %v372
  %v2421 = vunpack.c.h.b16 %v372
  %v2422 = vunpack.c.l.b16 %v373
  %v2423 = vunpack.c.h.b16 %v373
  %v2424 = vunpack.c.l.b16 %v374
  %v2425 = vunpack.c.h.b16 %v374
  %v2426 = vunpack.c.l.b16 %v375
  %v2427 = vunpack.c.h.b16 %v375
  %v2428 = vunpack.c.l.b16 %v376
  %v2429 = vunpack.c.h.b16 %v376
  %v2430 = vunpack.c.l.b16 %v377
  %v2431 = vunpack.c.h.b16 %v377
  %v2432 = vunpack.c.l.b16 %v378
  %v2433 = vunpack.c.h.b16 %v378
  %v2434 = vunpack.c.l.b16 %v379
  %v2435 = vunpack.c.h.b16 %v379
  %v2436 = vunpack.c.l.b16 %v380
  %v2437 = vunpack.c.h.b16 %v380
  %v2438 = vunpack.c.l.b16 %v381
  %v2439 = vunpack.c.h.b16 %v381
  %v2440 = vunpack.c.l.b16 %v382
  %v2441 = vunpack.c.h.b16 %v382
  %v2442 = vunpack.c.l.b16 %v383
  %v2443 = vunpack.c.h.b16 %v383
  %v2444 = vunpack.c.l.b16 %v384
  %v2445 = vunpack.c.h.b16 %v384
  %v2446 = vunpack.c.l.b16 %v385
  %v2447 = vunpack.c.h.b16 %v385
  %v2448 = vunpack.c.l.b16 %v386
  %v2449 = vunpack.c.h.b16 %v386
  %v2450 = vunpack.c.l.b16 %v387
  %v2451 = vunpack.c.h.b16 %v387
  %v2452 = vunpack.c.l.b16 %v388
  %v2453 = vunpack.c.h.b16 %v388
  %v2454 = vunpack.c.l.b16 %v389
  %v2455 = vunpack.c.h.b16 %v389
  %v2456 = vunpack.c.l.b16 %v390
  %v2457 = vunpack.c.h.b16 %v390
  %v2458 = vunpack.c.l.b16 %v391
  %v2459 = vunpack.c.h.b16 %v391
  %v2460 = vunpack.c.l.b16 %v392
  %v2461 = vunpack.c.h.b16 %v392
  %v2462 = vunpack.c.l.b16 %v393
  %v2463 = vunpack.c.h.b16 %v393
  %v2464 = vunpack.c.l.b16 %v394
  %v2465 = vunpack.c.h.b16 %v394
  %v2466 = vunpack.c.l.b16 %v395
  %v2467 = vunpack.c.h.b16 %v395
  %v2468 = vunpack.c.l.b16 %v396
  %v2469 = vunpack.c.h.b16 %v396
  %v2470 = vunpack.c.l.b16 %v397
  %v2471 = vunpack.c.h.b16 %v397
  %v2472 = vunpack.c.l.b16 %v398
  %v2473 = vunpack.c.h.b16 %v398
  %v2474 = vunpack.c.l.b16 %v399
  %v2475 = vunpack.c.h.b16 %v399
  %v2476 = vunpack.c.l.b16 %v400
  %v2477 = vunpack.c.h.b16 %v400
  %v2478 = vunpack.c.l.b16 %v401
  %v2479 = vunpack.c.h.b16 %v401
  %v2480 = vunpack.c.l.b16 %v402
  %v2481 = vunpack.c.h.b16 %v402
  %v2482 = vunpack.c.l.b16 %v403
  %v2483 = vunpack.c.h.b16 %v403
  %v2484 = vunpack.c.l.b16 %v404
  %v2485 = vunpack.c.h.b16 %v404
  %v2486 = vunpack.c.l.b16 %v405
  %v2487 = vunpack.c.h.b16 %v405
  %v2488 = vunpack.c.l.b16 %v406
  %v2489 = vunpack.c.h.b16 %v406
  %v2490 = vunpack.c.l.b16 %v407
  %v2491 = vunpack.c.h.b16 %v407
  %v2492 = vunpack.c.l.b16 %v408
  %v2493 = vunpack.c.h.b16 %v408
  %v2494 = vunpack.c.l.b16 %v409
  %v2495 = vunpack.c.h.b16 %v409
  %v2496 = vunpack.c.l.b16 %v410
  %v2497 = vunpack.c.h.b16 %v410
  %v2498 = vunpack.c.l.b16 %v411
  %v2499 = vunpack.c.h.b16 %v411
  %v2500 = vunpack.c.l.b16 %v412
  %v2501 = vunpack.c.h.b16 %v412
  %v2502 = vunpack.c.l.b16 %v413
  %v2503 = vunpack.c.h.b16 %v413
  %v2504 = vunpack.c.l.b16 %v414
  %v2505 = vunpack.c.h.b16 %v414
  %v2506 = vunpack.c.l.b16 %v415
  %v2507 = vunpack.c.h.b16 %v415
  %v2508 = vunpack.c.l.b16 %v416
  %v2509 = vunpack.c.h.b16 %v416
  %v2510 = vunpack.c.l.b16 %v417
  %v2511 = vunpack.c.h.b16 %v417
  %v2512 = vunpack.c.l.b16 %v418
  %v2513 = vunpack.c.h.b16 %v418
  %v2514 = vunpack.c.l.b16 %v419
  %v2515 = vunpack.c.h.b16 %v419
  %v2516 = vunpack.c.l.b16 %v420
  %v2517 = vunpack.c.h.b16 %v420
  %v2518 = vunpack.c.l.b16 %v421
  %v2519 = vunpack.c.h.b16 %v421
  %v2520 = vunpack.c.l.b16 %v422
  %v2521 = vunpack.c.h.b16 %v422
  %v2522 = vunpack.c.l.b16 %v423
  %v2523 = vunpack.c.h.b16 %v423
  %v2524 = vunpack.c.l.b16 %v424
  %v2525 = vunpack.c.h.b16 %v424
  %v2526 = vunpack.c.l.b16 %v425
  %v2527 = vunpack.c.h.b16 %v425
  %v2528 = vunpack.c.l.b16 %v426
  %v2529 = vunpack.c.h.b16 %v426
  %v2530 = vunpack.c.l.b16 %v427
  %v2531 = vunpack.c.h.b16 %v427
  %v2532 = vunpack.c.l.b16 %v428
  %v2533 = vunpack.c.h.b16 %v428
  %v2534 = vunpack.c.l.b16 %v429
  %v2535 = vunpack.c.h.b16 %v429
  %v2536 = vunpack.c.l.b16 %v430
  %v2537 = vunpack.c.h.b16 %v430
  %v2538 = vunpack.c.l.b16 %v431
  %v2539 = vunpack.c.h.b16 %v431
  %v2540 = vunpack.c.l.b16 %v432
  %v2541 = vunpack.c.h.b16 %v432
  %v2542 = vunpack.c.l.b16 %v433
  %v2543 = vunpack.c.h.b16 %v433
  %v2544 = vunpack.c.l.b16 %v434
  %v2545 = vunpack.c.h.b16 %v434
  %v2546 = vunpack.c.l.b16 %v435
  %v2547 = vunpack.c.h.b16 %v435
  %v2548 = vunpack.c.l.b16 %v436
  %v2549 = vunpack.c.h.b16 %v436
  %v2550 = vunpack.c.l.b16 %v437
  %v2551 = vunpack.c.h.b16 %v437
  %v2552 = vunpack.c.l.b16 %v438
  %v2553 = vunpack.c.h.b16 %v438
  %v2554 = vunpack.c.l.b16 %v439
  %v2555 = vunpack.c.h.b16 %v439
  %v2556 = vunpack.c.l.b16 %v440
  %v2557 = vunpack.c.h.b16 %v440
  %v2558 = vunpack.c.l.b16 %v441
  %v2559 = vunpack.c.h.b16 %v441
  %v2560 = vunpack.c.l.b16 %v442
  %v2561 = vunpack.c.h.b16 %v442
  %v2562 = vunpack.c.l.b16 %v443
  %v2563 = vunpack.c.h.b16 %v443
  %v2564 = vunpack.c.l.b16 %v444
  %v2565 = vunpack.c.h.b16 %v444
  %v2566 = vunpack.c.l.b16 %v445
  %v2567 = vunpack.c.h.b16 %v445
  %v2568 = vunpack.c.l.b16 %v446
  %v2569 = vunpack.c.h.b16 %v446
  %v2570 = vunpack.c.l.b16 %v447
  %v2571 = vunpack.c.h.b16 %v447
  %v2572 = vunpack.c.l.b16 %v448
  %v2573 = vunpack.c.h.b16 %v448
  %v2574 = vunpack.c.l.b16 %v449
  %v2575 = vunpack.c.h.b16 %v449
  %v2576 = vunpack.c.l.b16 %v450
  %v2577 = vunpack.c.h.b16 %v450
  %v2578 = vunpack.c.l.b16 %v451
  %v2579 = vunpack.c.h.b16 %v451
  %v2580 = vunpack.c.l.b16 %v452
  %v2581 = vunpack.c.h.b16 %v452
  %v2582 = vunpack.c.l.b16 %v453
  %v2583 = vunpack.c.h.b16 %v453
  %v2584 = vunpack.c.l.b16 %v454
  %v2585 = vunpack.c.h.b16 %v454
  %v2586 = vunpack.c.l.b16 %v455
  %v2587 = vunpack.c.h.b16 %v455
  %v2588 = vunpack.c.l.b16 %v456
  %v2589 = vunpack.c.h.b16 %v456
  %v2590 = vunpack.c.l.b16 %v457
  %v2591 = vunpack.c.h.b16 %v457
  %v2592 = vunpack.c.l.b16 %v458
  %v2593 = vunpack.c.h.b16 %v458
  %v2594 = vunpack.c.l.b16 %v459
  %v2595 = vunpack.c.h.b16 %v459
  %v2596 = vunpack.c.l.b16 %v460
  %v2597 = vunpack.c.h.b16 %v460
  %v2598 = vunpack.c.l.b16 %v461
  %v2599 = vunpack.c.h.b16 %v461
  %v2600 = vunpack.c.l.b16 %v462
  %v2601 = vunpack.c.h.b16 %v462
  %v2602 = vunpack.c.l.b16 %v463
  %v2603 = vunpack.c.h.b16 %v463
  %v2604 = vunpack.c.l.b16 %v464
  %v2605 = vunpack.c.h.b16 %v464
  %v2606 = vunpack.c.l.b16 %v465
  %v2607 = vunpack.c.h.b16 %v465
  %v2608 = vunpack.c.l.b16 %v466
  %v2609 = vunpack.c.h.b16 %v466
  %v2610 = vunpack.c.l.b16 %v467
  %v2611 = vunpack.c.h.b16 %v467
  %v2612 = vunpack.c.l.b16 %v468
  %v2613 = vunpack.c.h.b16 %v468
  %v2614 = vunpack.c.l.b16 %v469
  %v2615 = vunpack.c.h.b16 %v469
  %v2616 = vunpack.c.l.b16 %v470
  %v2617 = vunpack.c.h.b16 %v470
  %v2618 = vunpack.c.l.b16 %v471
  %v2619 = vunpack.c.h.b16 %v471
  %v2620 = vunpack.c.l.b16 %v472
  %v2621 = vunpack.c.h.b16 %v472
  %v2622 = vunpack.c.l.b16 %v473
  %v2623 = vunpack.c.h.b16 %v473
  %v2624 = vunpack.c.l.b16 %v474
  %v2625 = vunpack.c.h.b16 %v474
  %v2626 = vunpack.c.l.b16 %v475
  %v2627 = vunpack.c.h.b16 %v475
  %v2628 = vunpack.c.l.b16 %v476
  %v2629 = vunpack.c.h.b16 %v476
  %v2630 = vunpack.c.l.b16 %v477
  %v2631 = vunpack.c.h.b16 %v477
  %v2632 = vunpack.c.l.b16 %v478
  %v2633 = vunpack.c.h.b16 %v478
  %v2634 = vunpack.c.l.b16 %v479
  %v2635 = vunpack.c.h.b16 %v479
  %v2636 = vunpack.c.l.b16 %v480
  %v2637 = vunpack.c.h.b16 %v480
  %v2638 = vunpack.c.l.b16 %v481
  %v2639 = vunpack.c.h.b16 %v481
  %v2640 = vunpack.c.l.b16 %v482
  %v2641 = vunpack.c.h.b16 %v482
  %v2642 = vunpack.c.l.b16 %v483
  %v2643 = vunpack.c.h.b16 %v483
  %v2644 = vunpack.c.l.b16 %v484
  %v2645 = vunpack.c.h.b16 %v484
  %v2646 = vunpack.c.l.b16 %v485
  %v2647 = vunpack.c.h.b16 %v485
  %v2648 = vunpack.c.l.b16 %v486
  %v2649 = vunpack.c.h.b16 %v486
  %v2650 = vunpack.c.l.b16 %v487
  %v2651 = vunpack.c.h.b16 %v487
  %v2652 = vunpack.c.l.b16 %v488
  %v2653 = vunpack.c.h.b16 %v488
  %v2654 = vunpack.c.l.b16 %v489
  %v2655 = vunpack.c.h.b16 %v489
  %v2656 = vunpack.c.l.b16 %v490
  %v2657 = vunpack.c.h.b16 %v490
  %v2658 = vunpack.c.l.b16 %v491
  %v2659 = vunpack.c.h.b16 %v491
  %v2660 = vunpack.c.l.b16 %v492
  %v2661 = vunpack.c.h.b16 %v492
  %v2662 = vunpack.c.l.b16 %v493
  %v2663 = vunpack.c.h.b16 %v493
  %v2664 = vunpack.c.l.b16 %v494
  %v2665 = vunpack.c.h.b16 %v494
  %v2666 = vunpack.c.l.b16 %v495
  %v2667 = vunpack.c.h.b16 %v495
  %v2668 = vunpack.c.l.b16 %v496
  %v2669 = vunpack.c.h.b16 %v496
  %v2670 = vunpack.c.l.b16 %v497
  %v2671 = vunpack.c.h.b16 %v497
  %v2672 = vunpack.c.l.b16 %v498
  %v2673 = vunpack.c.h.b16 %v498
  %v2674 = vunpack.c.l.b16 %v499
  %v2675 = vunpack.c.h.b16 %v499
  %v2676 = vunpack.c.l.b16 %v500
  %v2677 = vunpack.c.h.b16 %v500
  %v2678 = vunpack.c.l.b16 %v501
  %v2679 = vunpack.c.h.b16 %v501
  %v2680 = vunpack.c.l.b16 %v502
  %v2681 = vunpack.c.h.b16 %v502
  %v2682 = vunpack.c.l.b16 %v503
  %v2683 = vunpack.c.h.b16 %v503
  %v2684 = vunpack.c.l.b16 %v504
  %v2685 = vunpack.c.h.b16 %v504
  %v2686 = vunpack.c.l.b16 %v505
  %v2687 = vunpack.c.h.b16 %v505
  %v2688 = vunpack.c.l.b16 %v506
  %v2689 = vunpack.c.h.b16 %v506
  %v2690 = vunpack.c.l.b16 %v507
  %v2691 = vunpack.c.h.b16 %v507
  %v2692 = vunpack.c.l.b16 %v508
  %v2693 = vunpack.c.h.b16 %v508
  %v2694 = vunpack.c.l.b16 %v509
  %v2695 = vunpack.c.h.b16 %v509
  %v2696 = vunpack.c.l.b16 %v510
  %v2697 = vunpack.c.h.b16 %v510
  %v2698 = vunpack.c.l.b16 %v511
  %v2699 = vunpack.c.h.b16 %v511
  %v2700 = vunpack.c.l.b16 %v512
  %v2701 = vunpack.c.h.b16 %v512
  %v2702 = vunpack.c.l.b16 %v513
  %v2703 = vunpack.c.h.b16 %v513
  %v2704 = vunpack.c.l.b16 %v514
  %v2705 = vunpack.c.h.b16 %v514
  %v2706 = vunpack.c.l.b16 %v515
  %v2707 = vunpack.c.h.b16 %v515
  %v2708 = vunpack.c.l.b16 %v516
  %v2709 = vunpack.c.h.b16 %v516
  %v2710 = vunpack.c.l.b16 %v517
  %v2711 = vunpack.c.h.b16 %v517
  %v2712 = vunpack.c.l.b16 %v518
  %v2713 = vunpack.c.h.b16 %v518
  %v2714 = vunpack.c.l.b16 %v519
  %v2715 = vunpack.c.h.b16 %v519
  %v2716 = vunpack.c.l.b16 %v520
  %v2717 = vunpack.c.h.b16 %v520
  %v2718 = vunpack.c.l.b16 %v521
  %v2719 = vunpack.c.h.b16 %v521
  %v2720 = vunpack.c.l.b16 %v522
  %v2721 = vunpack.c.h.b16 %v522
  %v2722 = vunpack.c.l.b16 %v523
  %v2723 = vunpack.c.h.b16 %v523
  %v2724 = vunpack.c.l.b16 %v524
  %v2725 = vunpack.c.h.b16 %v524
  %v2726 = vunpack.c.l.b16 %v525
  %v2727 = vunpack.c.h.b16 %v525
  %v2728 = vunpack.c.l.b16 %v526
  %v2729 = vunpack.c.h.b16 %v526
  %v2730 = vunpack.c.l.b16 %v527
  %v2731 = vunpack.c.h.b16 %v527
  %v2732 = vunpack.c.l.b16 %v528
  %v2733 = vunpack.c.h.b16 %v528
  %v2734 = vunpack.c.l.b16 %v529
  %v2735 = vunpack.c.h.b16 %v529
  %v2736 = vunpack.c.l.b16 %v530
  %v2737 = vunpack.c.h.b16 %v530
  %v2738 = vunpack.c.l.b16 %v531
  %v2739 = vunpack.c.h.b16 %v531
  %v2740 = vunpack.c.l.b16 %v532
  %v2741 = vunpack.c.h.b16 %v532
  %v2742 = vunpack.c.l.b16 %v533
  %v2743 = vunpack.c.h.b16 %v533
  %v2744 = vunpack.c.l.b16 %v534
  %v2745 = vunpack.c.h.b16 %v534
  %v2746 = vunpack.c.l.b16 %v535
  %v2747 = vunpack.c.h.b16 %v535
  %v2748 = vunpack.c.l.b16 %v536
  %v2749 = vunpack.c.h.b16 %v536
  %v2750 = vunpack.c.l.b16 %v537
  %v2751 = vunpack.c.h.b16 %v537
  %v2752 = vunpack.c.l.b16 %v538
  %v2753 = vunpack.c.h.b16 %v538
  %v2754 = vunpack.c.l.b16 %v539
  %v2755 = vunpack.c.h.b16 %v539
  %v2756 = vunpack.c.l.b16 %v540
  %v2757 = vunpack.c.h.b16 %v540
  %v2758 = vunpack.c.l.b16 %v541
  %v2759 = vunpack.c.h.b16 %v541
  %v2760 = vunpack.c.l.b16 %v542
  %v2761 = vunpack.c.h.b16 %v542
  %v2762 = vunpack.c.l.b16 %v543
  %v2763 = vunpack.c.h.b16 %v543
  %v2764 = vunpack.c.l.b16 %v544
  %v2765 = vunpack.c.h.b16 %v544
  %v2766 = vunpack.c.l.b16 %v545
  %v2767 = vunpack.c.h.b16 %v545
  %v2768 = vunpack.c.l.b16 %v546
  %v2769 = vunpack.c.h.b16 %v546
  %v2770 = vunpack.c.l.b16 %v547
  %v2771 = vunpack.c.h.b16 %v547
  %v2772 = vunpack.c.l.b16 %v548
  %v2773 = vunpack.c.h.b16 %v548
  %v2774 = vunpack.c.l.b16 %v549
  %v2775 = vunpack.c.h.b16 %v549
  %v2776 = vunpack.c.l.b16 %v550
  %v2777 = vunpack.c.h.b16 %v550
  %v2778 = vunpack.c.l.b16 %v551
  %v2779 = vunpack.c.h.b16 %v551
  %v2780 = vunpack.c.l.b16 %v552
  %v2781 = vunpack.c.h.b16 %v552
  %v2782 = vunpack.c.l.b16 %v553
  %v2783 = vunpack.c.h.b16 %v553
  %v2784 = vunpack.c.l.b16 %v554
  %v2785 = vunpack.c.h.b16 %v554
  %v2786 = vunpack.c.l.b16 %v555
  %v2787 = vunpack.c.h.b16 %v555
  %v2788 = vunpack.c.l.b16 %v556
  %v2789 = vunpack.c.h.b16 %v556
  %v2790 = vunpack.c.l.b16 %v557
  %v2791 = vunpack.c.h.b16 %v557
  %v2792 = vunpack.c.l.b16 %v558
  %v2793 = vunpack.c.h.b16 %v558
  %v2794 = vunpack.c.l.b16 %v559
  %v2795 = vunpack.c.h.b16 %v559
  %v2796 = vunpack.c.l.b16 %v560
  %v2797 = vunpack.c.h.b16 %v560
  %v2798 = vunpack.c.l.b16 %v561
  %v2799 = vunpack.c.h.b16 %v561
  %v2800 = vunpack.c.l.b16 %v562
  %v2801 = vunpack.c.h.b16 %v562
  %v2802 = vunpack.c.l.b16 %v563
  %v2803 = vunpack.c.h.b16 %v563
  %v2804 = vunpack.c.l.b16 %v564
  %v2805 = vunpack.c.h.b16 %v564
  %v2806 = vunpack.c.l.b16 %v565
  %v2807 = vunpack.c.h.b16 %v565
  %v2808 = vunpack.c.l.b16 %v566
  %v2809 = vunpack.c.h.b16 %v566
  %v2810 = vunpack.c.l.b16 %v567
  %v2811 = vunpack.c.h.b16 %v567
  %v2812 = vunpack.c.l.b16 %v568
  %v2813 = vunpack.c.h.b16 %v568
  %v2814 = vunpack.c.l.b16 %v569
  %v2815 = vunpack.c.h.b16 %v569
  %v2816 = vunpack.c.l.b16 %v570
  %v2817 = vunpack.c.h.b16 %v570
  %v2818 = vunpack.c.l.b16 %v571
  %v2819 = vunpack.c.h.b16 %v571
  %v2820 = vunpack.c.l.b16 %v572
  %v2821 = vunpack.c.h.b16 %v572
  %v2822 = vunpack.c.l.b16 %v573
  %v2823 = vunpack.c.h.b16 %v573
  %v2824 = vunpack.c.l.b16 %v574
  %v2825 = vunpack.c.h.b16 %v574
  %v2826 = vunpack.c.l.b16 %v575
  %v2827 = vunpack.c.h.b16 %v575
  %v2828 = vunpack.c.l.b16 %v576
  %v2829 = vunpack.c.h.b16 %v576
  %v2830 = vunpack.c.l.b16 %v577
  %v2831 = vunpack.c.h.b16 %v577
  %v2832 = vunpack.c.l.b16 %v578
  %v2833 = vunpack.c.h.b16 %v578
  %v2834 = vunpack.c.l.b16 %v579
  %v2835 = vunpack.c.h.b16 %v579
  %v2836 = vunpack.c.l.b16 %v580
  %v2837 = vunpack.c.h.b16 %v580
  %v2838 = vunpack.c.l.b16 %v581
  %v2839 = vunpack.c.h.b16 %v581
  %v2840 = vunpack.c.l.b16 %v582
  %v2841 = vunpack.c.h.b16 %v582
  %v2842 = vunpack.c.l.b16 %v583
  %v2843 = vunpack.c.h.b16 %v583
  %v2844 = vunpack.c.l.b16 %v584
  %v2845 = vunpack.c.h.b16 %v584
  %v2846 = vunpack.c.l.b16 %v585
  %v2847 = vunpack.c.h.b16 %v585
  %v2848 = vunpack.c.l.b16 %v586
  %v2849 = vunpack.c.h.b16 %v586
  %v2850 = vunpack.c.l.b16 %v587
  %v2851 = vunpack.c.h.b16 %v587
  %v2852 = vunpack.c.l.b16 %v588
  %v2853 = vunpack.c.h.b16 %v588
  %v2854 = vunpack.c.l.b16 %v589
  %v2855 = vunpack.c.h.b16 %v589
  %v2856 = vunpack.c.l.b16 %v590
  %v2857 = vunpack.c.h.b16 %v590
  %v2858 = vunpack.c.l.b16 %v591
  %v2859 = vunpack.c.h.b16 %v591
  %v2860 = vunpack.c.l.b16 %v592
  %v2861 = vunpack.c.h.b16 %v592
  %v2862 = vunpack.c.l.b16 %v593
  %v2863 = vunpack.c.h.b16 %v593
  %v2864 = vunpack.c.l.b16 %v594
  %v2865 = vunpack.c.h.b16 %v594
  %v2866 = vunpack.c.l.b16 %v595
  %v2867 = vunpack.c.h.b16 %v595
  %v2868 = vunpack.c.l.b16 %v596
  %v2869 = vunpack.c.h.b16 %v596
  %v2870 = vunpack.c.l.b16 %v597
  %v2871 = vunpack.c.h.b16 %v597
  %v2872 = vunpack.c.l.b16 %v598
  %v2873 = vunpack.c.h.b16 %v598
  %v2874 = vunpack.c.l.b16 %v599
  %v2875 = vunpack.c.h.b16 %v599
  %v2876 = vunpack.c.l.b16 %v600
  %v2877 = vunpack.c.h.b16 %v600
  %v2878 = vunpack.c.l.b16 %v601
  %v2879 = vunpack.c.h.b16 %v601
  %v2880 = vunpack.c.l.b16 %v602
  %v2881 = vunpack.c.h.b16 %v602
  %v2882 = vunpack.c.l.b16 %v603
  %v2883 = vunpack.c.h.b16 %v603
  %v2884 = vunpack.c.l.b16 %v604
  %v2885 = vunpack.c.h.b16 %v604
  %v2886 = vunpack.c.l.b16 %v605
  %v2887 = vunpack.c.h.b16 %v605
  %v2888 = vunpack.c.l.b16 %v606
  %v2889 = vunpack.c.h.b16 %v606
  %v2890 = vunpack.c.l.b16 %v607
  %v2891 = vunpack.c.h.b16 %v607
  %v2892 = vunpack.c.l.b16 %v608
  %v2893 = vunpack.c.h.b16 %v608
  %v2894 = vunpack.c.l.b16 %v609
  %v2895 = vunpack.c.h.b16 %v609
  %v2896 = vunpack.c.l.b16 %v610
  %v2897 = vunpack.c.h.b16 %v610
  %v2898 = vunpack.c.l.b16 %v611
  %v2899 = vunpack.c.h.b16 %v611
  %v2900 = vunpack.c.l.b16 %v612
  %v2901 = vunpack.c.h.b16 %v612
  %v2902 = vunpack.c.l.b16 %v613
  %v2903 = vunpack.c.h.b16 %v613
  %v2904 = vunpack.c.l.b16 %v614
  %v2905 = vunpack.c.h.b16 %v614
  %v2906 = vunpack.c.l.b16 %v615
  %v2907 = vunpack.c.h.b16 %v615
  %v2908 = vunpack.c.l.b16 %v616
  %v2909 = vunpack.c.h.b16 %v616
  %v2910 = vunpack.c.l.b16 %v617
  %v2911 = vunpack.c.h.b16 %v617
  %v2912 = vunpack.c.l.b16 %v618
  %v2913 = vunpack.c.h.b16 %v618
  %v2914 = vunpack.c.l.b16 %v619
  %v2915 = vunpack.c.h.b16 %v619
  %v2916 = vunpack.c.l.b16 %v620
  %v2917 = vunpack.c.h.b16 %v620
  %v2918 = vunpack.c.l.b16 %v621
  %v2919 = vunpack.c.h.b16 %v621
  %v2920 = vunpack.c.l.b16 %v622
  %v2921 = vunpack.c.h.b16 %v622
  %v2922 = vunpack.c.l.b16 %v623
  %v2923 = vunpack.c.h.b16 %v623
  %v2924 = vunpack.c.l.b16 %v624
  %v2925 = vunpack.c.h.b16 %v624
  %v2926 = vunpack.c.l.b16 %v625
  %v2927 = vunpack.c.h.b16 %v625
  %v2928 = vunpack.c.l.b16 %v626
  %v2929 = vunpack.c.h.b16 %v626
  %v2930 = vunpack.c.l.b16 %v627
  %v2931 = vunpack.c.h.b16 %v627
  %v2932 = vunpack.c.l.b16 %v628
  %v2933 = vunpack.c.h.b16 %v628
  %v2934 = vunpack.c.l.b16 %v629
  %v2935 = vunpack.c.h.b16 %v629
  %v2936 = vunpack.c.l.b16 %v630
  %v2937 = vunpack.c.h.b16 %v630
  %v2938 = vunpack.c.l.b16 %v631
  %v2939 = vunpack.c.h.b16 %v631
  %v2940 = vunpack.c.l.b16 %v632
  %v2941 = vunpack.c.h.b16 %v632
  %v2942 = vunpack.c.l.b16 %v633
  %v2943 = vunpack.c.h.b16 %v633
  %v2944 = vunpack.c.l.b16 %v634
  %v2945 = vunpack.c.h.b16 %v634
  %v2946 = vunpack.c.l.b16 %v635
  %v2947 = vunpack.c.h.b16 %v635
  %v2948 = vunpack.c.l.b16 %v636
  %v2949 = vunpack.c.h.b16 %v636
  %v2950 = vunpack.c.l.b16 %v637
  %v2951 = vunpack.c.h.b16 %v637
  %v2952 = vunpack.c.l.b16 %v638
  %v2953 = vunpack.c.h.b16 %v638
  %v2954 = vunpack.c.l.b16 %v639
  %v2955 = vunpack.c.h.b16 %v639
  %v2956 = vunpack.c.l.b16 %v640
  %v2957 = vunpack.c.h.b16 %v640
  %v2958 = vunpack.c.l.b16 %v641
  %v2959 = vunpack.c.h.b16 %v641
  %v2960 = vunpack.c.l.b16 %v642
  %v2961 = vunpack.c.h.b16 %v642
  %v2962 = vunpack.c.l.b16 %v643
  %v2963 = vunpack.c.h.b16 %v643
  %v2964 = vunpack.c.l.b16 %v644
  %v2965 = vunpack.c.h.b16 %v644
  %v2966 = vunpack.c.l.b16 %v645
  %v2967 = vunpack.c.h.b16 %v645
  %v2968 = vunpack.c.l.b16 %v646
  %v2969 = vunpack.c.h.b16 %v646
  %v2970 = vunpack.c.l.b16 %v647
  %v2971 = vunpack.c.h.b16 %v647
  %v2972 = vunpack.c.l.b16 %v648
  %v2973 = vunpack.c.h.b16 %v648
  %v2974 = vunpack.c.l.b16 %v649
  %v2975 = vunpack.c.h.b16 %v649
  %v2976 = vunpack.c.l.b16 %v650
  %v2977 = vunpack.c.h.b16 %v650
  %v2978 = vunpack.c.l.b16 %v651
  %v2979 = vunpack.c.h.b16 %v651
  %v2980 = vunpack.c.l.b16 %v652
  %v2981 = vunpack.c.h.b16 %v652
  %v2982 = vunpack.c.l.b16 %v653
  %v2983 = vunpack.c.h.b16 %v653
  %v2984 = vunpack.c.l.b16 %v654
  %v2985 = vunpack.c.h.b16 %v654
  %v2986 = vunpack.c.l.b16 %v655
  %v2987 = vunpack.c.h.b16 %v655
  %v2988 = vunpack.c.l.b16 %v656
  %v2989 = vunpack.c.h.b16 %v656
  %v2990 = vunpack.c.l.b16 %v657
  %v2991 = vunpack.c.h.b16 %v657
  %v2992 = vunpack.c.l.b16 %v658
  %v2993 = vunpack.c.h.b16 %v658
  %v2994 = vunpack.c.l.b16 %v659
  %v2995 = vunpack.c.h.b16 %v659
  %v2996 = vunpack.c.l.b16 %v660
  %v2997 = vunpack.c.h.b16 %v660
  %v2998 = vunpack.c.l.b16 %v661
  %v2999 = vunpack.c.h.b16 %v661
  %v3000 = vunpack.c.l.b16 %v662
  %v3001 = vunpack.c.h.b16 %v662
  %v3002 = vunpack.c.l.b16 %v663
  %v3003 = vunpack.c.h.b16 %v663
  %v3004 = vunpack.c.l.b16 %v664
  %v3005 = vunpack.c.h.b16 %v664
  %v3006 = vunpack.c.l.b16 %v665
  %v3007 = vunpack.c.h.b16 %v665
  %v3008 = vunpack.c.l.b16 %v666
  %v3009 = vunpack.c.h.b16 %v666
  %v3010 = vunpack.c.l.b16 %v667
  %v3011 = vunpack.c.h.b16 %v667
  %v3012 = vunpack.c.l.b16 %v668
  %v3013 = vunpack.c.h.b16 %v668
  %v3014 = vunpack.c.l.b16 %v669
  %v3015 = vunpack.c.h.b16 %v669
  %v3016 = vunpack.c.l.b16 %v670
  %v3017 = vunpack.c.h.b16 %v670
  %v3018 = vunpack.c.l.b16 %v671
  %v3019 = vunpack.c.h.b16 %v671
  %v3020 = vunpack.c.l.b16 %v672
  %v3021 = vunpack.c.h.b16 %v672
  %v3022 = vunpack.c.l.b16 %v673
  %v3023 = vunpack.c.h.b16 %v673
  %v3024 = vunpack.c.l.b16 %v674
  %v3025 = vunpack.c.h.b16 %v674
  %v3026 = vunpack.c.l.b16 %v675
  %v3027 = vunpack.c.h.b16 %v675
  %v3028 = vunpack.c.l.b16 %v676
  %v3029 = vunpack.c.h.b16 %v676
  %v3030 = vunpack.c.l.b16 %v677
  %v3031 = vunpack.c.h.b16 %v677
  %v3032 = vunpack.c.l.b16 %v678
  %v3033 = vunpack.c.h.b16 %v678
  %v3034 = vunpack.c.l.b16 %v679
  %v3035 = vunpack.c.h.b16 %v679
  %v3036 = vunpack.c.l.b16 %v680
  %v3037 = vunpack.c.h.b16 %v680
  %v3038 = vunpack.c.l.b16 %v681
  %v3039 = vunpack.c.h.b16 %v681
  %v3040 = vunpack.c.l.b16 %v682
  %v3041 = vunpack.c.h.b16 %v682
  %v3042 = vunpack.c.l.b16 %v683
  %v3043 = vunpack.c.h.b16 %v683
  %v3044 = vunpack.c.l.b16 %v684
  %v3045 = vunpack.c.h.b16 %v684
  %v3046 = vunpack.c.l.b16 %v685
  %v3047 = vunpack.c.h.b16 %v685
  %v3048 = vunpack.c.l.b16 %v686
  %v3049 = vunpack.c.h.b16 %v686
  %v3050 = vunpack.c.l.b16 %v687
  %v3051 = vunpack.c.h.b16 %v687
  %v3052 = vunpack.c.l.b16 %v688
  %v3053 = vunpack.c.h.b16 %v688
  %v3054 = vunpack.c.l.b16 %v689
  %v3055 = vunpack.c.h.b16 %v689
  %v3056 = vunpack.c.l.b16 %v690
  %v3057 = vunpack.c.h.b16 %v690
  %v3058 = vunpack.c.l.b16 %v691
  %v3059 = vunpack.c.h.b16 %v691
  %v3060 = vunpack.c.l.b16 %v692
  %v3061 = vunpack.c.h.b16 %v692
  %v3062 = vunpack.c.l.b16 %v693
  %v3063 = vunpack.c.h.b16 %v693
  %v3064 = vunpack.c.l.b16 %v694
  %v3065 = vunpack.c.h.b16 %v694
  %v3066 = vunpack.c.l.b16 %v695
  %v3067 = vunpack.c.h.b16 %v695
  %v3068 = vunpack.c.l.b16 %v696
  %v3069 = vunpack.c.h.b16 %v696
  %v3070 = vunpack.c.l.b16 %v697
  %v3071 = vunpack.c.h.b16 %v697
  %v3072 = vunpack.c.l.b16 %v698
  %v3073 = vunpack.c.h.b16 %v698
  %v3074 = vunpack.c.l.b16 %v699
  %v3075 = vunpack.c.h.b16 %v699
  %v3076 = vunpack.c.l.b16 %v700
  %v3077 = vunpack.c.h.b16 %v700
  %v3078 = vunpack.c.l.b16 %v701
  %v3079 = vunpack.c.h.b16 %v701
  %v3080 = vunpack.c.l.b16 %v702
  %v3081 = vunpack.c.h.b16 %v702
  %v3082 = vunpack.c.l.b16 %v703
  %v3083 = vunpack.c.h.b16 %v703
  %v3084 = vunpack.c.l.b16 %v704
  %v3085 = vunpack.c.h.b16 %v704
  %v3086 = vunpack.c.l.b16 %v705
  %v3087 = vunpack.c.h.b16 %v705
  %v3088 = vunpack.c.l.b16 %v706
  %v3089 = vunpack.c.h.b16 %v706
  %v3090 = vunpack.c.l.b16 %v707
  %v3091 = vunpack.c.h.b16 %v707
  %v3092 = vunpack.c.l.b16 %v708
  %v3093 = vunpack.c.h.b16 %v708
  %v3094 = vunpack.c.l.b16 %v709
  %v3095 = vunpack.c.h.b16 %v709
  %v3096 = vunpack.c.l.b16 %v710
  %v3097 = vunpack.c.h.b16 %v710
  %v3098 = vunpack.c.l.b16 %v711
  %v3099 = vunpack.c.h.b16 %v711
  %v3100 = vunpack.c.l.b16 %v712
  %v3101 = vunpack.c.h.b16 %v712
  %v3102 = vunpack.c.l.b16 %v713
  %v3103 = vunpack.c.h.b16 %v713
  %v3104 = vunpack.c.l.b16 %v714
  %v3105 = vunpack.c.h.b16 %v714
  %v3106 = vunpack.c.l.b16 %v715
  %v3107 = vunpack.c.h.b16 %v715
  %v3108 = vunpack.c.l.b16 %v716
  %v3109 = vunpack.c.h.b16 %v716
  %v3110 = vunpack.c.l.b16 %v717
  %v3111 = vunpack.c.h.b16 %v717
  %v3112 = vunpack.c.l.b16 %v718
  %v3113 = vunpack.c.h.b16 %v718
  %v3114 = vunpack.c.l.b16 %v719
  %v3115 = vunpack.c.h.b16 %v719
  %v3116 = vunpack.c.l.b16 %v720
  %v3117 = vunpack.c.h.b16 %v720
  %v3118 = vunpack.c.l.b16 %v721
  %v3119 = vunpack.c.h.b16 %v721
  %v3120 = vunpack.c.l.b16 %v722
  %v3121 = vunpack.c.h.b16 %v722
  %v3122 = vunpack.c.l.b16 %v723
  %v3123 = vunpack.c.h.b16 %v723
  %v3124 = vunpack.c.l.b16 %v724
  %v3125 = vunpack.c.h.b16 %v724
  %v3126 = vunpack.c.l.b16 %v725
  %v3127 = vunpack.c.h.b16 %v725
  %v3128 = vunpack.c.l.b16 %v726
  %v3129 = vunpack.c.h.b16 %v726
  %v3130 = vunpack.c.l.b16 %v727
  %v3131 = vunpack.c.h.b16 %v727
  %v3132 = vunpack.c.l.b16 %v728
  %v3133 = vunpack.c.h.b16 %v728
  %v3134 = vunpack.c.l.b16 %v729
  %v3135 = vunpack.c.h.b16 %v729
  %v3136 = vunpack.c.l.b16 %v730
  %v3137 = vunpack.c.h.b16 %v730
  %v3138 = vunpack.c.l.b16 %v731
  %v3139 = vunpack.c.h.b16 %v731
  %v3140 = vunpack.c.l.b16 %v732
  %v3141 = vunpack.c.h.b16 %v732
  %v3142 = vunpack.c.l.b16 %v733
  %v3143 = vunpack.c.h.b16 %v733
  %v3144 = vunpack.c.l.b16 %v734
  %v3145 = vunpack.c.h.b16 %v734
  %v3146 = vunpack.c.l.b16 %v735
  %v3147 = vunpack.c.h.b16 %v735
  %v3148 = vunpack.c.l.b16 %v736
  %v3149 = vunpack.c.h.b16 %v736
  %v3150 = vunpack.c.l.b16 %v737
  %v3151 = vunpack.c.h.b16 %v737
  %v3152 = vunpack.c.l.b16 %v738
  %v3153 = vunpack.c.h.b16 %v738
  %v3154 = vunpack.c.l.b16 %v739
  %v3155 = vunpack.c.h.b16 %v739
  %v3156 = vunpack.c.l.b16 %v740
  %v3157 = vunpack.c.h.b16 %v740
  %v3158 = vunpack.c.l.b16 %v741
  %v3159 = vunpack.c.h.b16 %v741
  %v3160 = vunpack.c.l.b16 %v742
  %v3161 = vunpack.c.h.b16 %v742
  %v3162 = vunpack.c.l.b16 %v743
  %v3163 = vunpack.c.h.b16 %v743
  %v3164 = vunpack.c.l.b16 %v744
  %v3165 = vunpack.c.h.b16 %v744
  %v3166 = vunpack.c.l.b16 %v745
  %v3167 = vunpack.c.h.b16 %v745
  %v3168 = vunpack.c.l.b16 %v746
  %v3169 = vunpack.c.h.b16 %v746
  %v3170 = vunpack.c.l.b16 %v747
  %v3171 = vunpack.c.h.b16 %v747
  %v3172 = vunpack.c.l.b16 %v748
  %v3173 = vunpack.c.h.b16 %v748
  %v3174 = vunpack.c.l.b16 %v749
  %v3175 = vunpack.c.h.b16 %v749
  %v3176 = vunpack.c.l.b16 %v750
  %v3177 = vunpack.c.h.b16 %v750
  %v3178 = vunpack.c.l.b16 %v751
  %v3179 = vunpack.c.h.b16 %v751
  %v3180 = vunpack.c.l.b16 %v752
  %v3181 = vunpack.c.h.b16 %v752
  %v3182 = vunpack.c.l.b16 %v753
  %v3183 = vunpack.c.h.b16 %v753
  %v3184 = vunpack.c.l.b16 %v754
  %v3185 = vunpack.c.h.b16 %v754
  %v3186 = vunpack.c.l.b16 %v755
  %v3187 = vunpack.c.h.b16 %v755
  %v3188 = vunpack.c.l.b16 %v756
  %v3189 = vunpack.c.h.b16 %v756
  %v3190 = vunpack.c.l.b16 %v757
  %v3191 = vunpack.c.h.b16 %v757
  %v3192 = vunpack.c.l.b16 %v758
  %v3193 = vunpack.c.h.b16 %v758
  %v3194 = vunpack.c.l.b16 %v759
  %v3195 = vunpack.c.h.b16 %v759
  %v3196 = vunpack.c.l.b16 %v760
  %v3197 = vunpack.c.h.b16 %v760
  %v3198 = vunpack.c.l.b16 %v761
  %v3199 = vunpack.c.h.b16 %v761
  %v3200 = vunpack.c.l.b16 %v762
  %v3201 = vunpack.c.h.b16 %v762
  %v3202 = vunpack.c.l.b16 %v763
  %v3203 = vunpack.c.h.b16 %v763
  %v3204 = vunpack.c.l.b16 %v764
  %v3205 = vunpack.c.h.b16 %v764
  %v3206 = vunpack.c.l.b16 %v765
  %v3207 = vunpack.c.h.b16 %v765
  %v3208 = vunpack.c.l.b16 %v766
  %v3209 = vunpack.c.h.b16 %v766
  %v3210 = vunpack.c.l.b16 %v767
  %v3211 = vunpack.c.h.b16 %v767
  %v3212 = vunpack.c.l.b16 %v768
  %v3213 = vunpack.c.h.b16 %v768
  %v3214 = vunpack.c.l.b16 %v769
  %v3215 = vunpack.c.h.b16 %v769
  %v3216 = vunpack.c.l.b16 %v770
  %v3217 = vunpack.c.h.b16 %v770
  %v3218 = vunpack.c.l.b16 %v771
  %v3219 = vunpack.c.h.b16 %v771
  %v3220 = vunpack.c.l.b16 %v772
  %v3221 = vunpack.c.h.b16 %v772
  %v3222 = vunpack.c.l.b16 %v773
  %v3223 = vunpack.c.h.b16 %v773
  %v3224 = vunpack.c.l.b16 %v774
  %v3225 = vunpack.c.h.b16 %v774
  %v3226 = vunpack.c.l.b16 %v775
  %v3227 = vunpack.c.h.b16 %v775
  %v3228 = vunpack.c.l.b16 %v776
  %v3229 = vunpack.c.h.b16 %v776
  %v3230 = vunpack.c.l.b16 %v777
  %v3231 = vunpack.c.h.b16 %v777
  %v3232 = vunpack.c.l.b16 %v778
  %v3233 = vunpack.c.h.b16 %v778
  %v3234 = vunpack.c.l.b16 %v779
  %v3235 = vunpack.c.h.b16 %v779
  %v3236 = vunpack.c.l.b16 %v780
  %v3237 = vunpack.c.h.b16 %v780
  %v3238 = vunpack.c.l.b16 %v781
  %v3239 = vunpack.c.h.b16 %v781
  %v3240 = vunpack.c.l.b16 %v782
  %v3241 = vunpack.c.h.b16 %v782
  %v3242 = vunpack.c.l.b16 %v783
  %v3243 = vunpack.c.h.b16 %v783
  %v3244 = vunpack.c.l.b16 %v784
  %v3245 = vunpack.c.h.b16 %v784
  %v3246 = vunpack.c.l.b16 %v785
  %v3247 = vunpack.c.h.b16 %v785
  %v3248 = vunpack.c.l.b16 %v786
  %v3249 = vunpack.c.h.b16 %v786
  %v3250 = vunpack.c.l.b16 %v787
  %v3251 = vunpack.c.h.b16 %v787
  %v3252 = vunpack.c.l.b16 %v788
  %v3253 = vunpack.c.h.b16 %v788
  %v3254 = vunpack.c.l.b16 %v789
  %v3255 = vunpack.c.h.b16 %v789
  %v3256 = vunpack.c.l.b16 %v790
  %v3257 = vunpack.c.h.b16 %v790
  %v3258 = vunpack.c.l.b16 %v791
  %v3259 = vunpack.c.h.b16 %v791
  %v3260 = vunpack.c.l.b16 %v792
  %v3261 = vunpack.c.h.b16 %v792
  %v3262 = vunpack.c.l.b16 %v793
  %v3263 = vunpack.c.h.b16 %v793
  %v3264 = vunpack.c.l.b16 %v794
  %v3265 = vunpack.c.h.b16 %v794
  %v3266 = vunpack.c.l.b16 %v795
  %v3267 = vunpack.c.h.b16 %v795
  %v3268 = vunpack.c.l.b16 %v796
  %v3269 = vunpack.c.h.b16 %v796
  %v3270 = vunpack.c.l.b16 %v797
  %v3271 = vunpack.c.h.b16 %v797
  %v3272 = vunpack.c.l.b16 %v798
  %v3273 = vunpack.c.h.b16 %v798
  %v3274 = vunpack.c.l.b16 %v799
  %v3275 = vunpack.c.h.b16 %v799
  %v3276 = vunpack.c.l.b16 %v800
  %v3277 = vunpack.c.h.b16 %v800
  %v3278 = vunpack.c.l.b16 %v801
  %v3279 = vunpack.c.h.b16 %v801
  %v3280 = vunpack.c.l.b16 %v802
  %v3281 = vunpack.c.h.b16 %v802
  %v3282 = vunpack.c.l.b16 %v803
  %v3283 = vunpack.c.h.b16 %v803
  %v3284 = vunpack.c.l.b16 %v804
  %v3285 = vunpack.c.h.b16 %v804
  %v3286 = vunpack.c.l.b16 %v805
  %v3287 = vunpack.c.h.b16 %v805
  %v3288 = vunpack.c.l.b16 %v806
  %v3289 = vunpack.c.h.b16 %v806
  %v3290 = vunpack.c.l.b16 %v807
  %v3291 = vunpack.c.h.b16 %v807
  %v3292 = vunpack.c.l.b16 %v808
  %v3293 = vunpack.c.h.b16 %v808
  %v3294 = vunpack.c.l.b16 %v809
  %v3295 = vunpack.c.h.b16 %v809
  %v3296 = vunpack.c.l.b16 %v810
  %v3297 = vunpack.c.h.b16 %v810
  %v3298 = vunpack.c.l.b16 %v811
  %v3299 = vunpack.c.h.b16 %v811
  %v3300 = vunpack.c.l.b16 %v812
  %v3301 = vunpack.c.h.b16 %v812
  %v3302 = vunpack.c.l.b16 %v813
  %v3303 = vunpack.c.h.b16 %v813
  %v3304 = vunpack.c.l.b16 %v814
  %v3305 = vunpack.c.h.b16 %v814
  %v3306 = vunpack.c.l.b16 %v815
  %v3307 = vunpack.c.h.b16 %v815
  %v3308 = vunpack.c.l.b16 %v816
  %v3309 = vunpack.c.h.b16 %v816
  %v3310 = vunpack.c.l.b16 %v817
  %v3311 = vunpack.c.h.b16 %v817
  %v3312 = vunpack.c.l.b16 %v818
  %v3313 = vunpack.c.h.b16 %v818
  %v3314 = vunpack.c.l.b16 %v819
  %v3315 = vunpack.c.h.b16 %v819
  %v3316 = vunpack.c.l.b16 %v820
  %v3317 = vunpack.c.h.b16 %v820
  %v3318 = vunpack.c.l.b16 %v821
  %v3319 = vunpack.c.h.b16 %v821
  %v3320 = vunpack.c.l.b16 %v822
  %v3321 = vunpack.c.h.b16 %v822
  %v3322 = vunpack.c.l.b16 %v823
  %v3323 = vunpack.c.h.b16 %v823
  %v3324 = vunpack.c.l.b16 %v824
  %v3325 = vunpack.c.h.b16 %v824
  %v3326 = vunpack.c.l.b16 %v825
  %v3327 = vunpack.c.h.b16 %v825
  %v3328 = vunpack.c.l.b16 %v826
  %v3329 = vunpack.c.h.b16 %v826
  %v3330 = vunpack.c.l.b16 %v827
  %v3331 = vunpack.c.h.b16 %v827
  %v3332 = vunpack.c.l.b16 %v828
  %v3333 = vunpack.c.h.b16 %v828
  %v3334 = vunpack.c.l.b16 %v829
  %v3335 = vunpack.c.h.b16 %v829
  %v3336 = vunpack.c.l.b16 %v830
  %v3337 = vunpack.c.h.b16 %v830
  %v3338 = vunpack.c.l.b16 %v831
  %v3339 = vunpack.c.h.b16 %v831
  %v3340 = vunpack.c.l.b16 %v832
  %v3341 = vunpack.c.h.b16 %v832
  %v3342 = vunpack.c.l.b16 %v833
  %v3343 = vunpack.c.h.b16 %v833
  %v3344 = vpack.c.b16 %v1748, %v1744
  %v3345 = vpack.c.b16 %v1749, %v1745
  %v3346 = vpack.c.b16 %v1750, %v1746
  %v3347 = vpack.c.b16 %v1751, %v1747
  %v3348 = vpack.c.b16 %v1756, %v1752
  %v3349 = vpack.c.b16 %v1757, %v1753
  %v3350 = vpack.c.b16 %v1758, %v1754
  %v3351 = vpack.c.b16 %v1759, %v1755
  %v3352 = vpack.c.b16 %v1764, %v1760
  %v3353 = vpack.c.b16 %v1765, %v1761
  %v3354 = vpack.c.b16 %v1766, %v1762
  %v3355 = vpack.c.b16 %v1767, %v1763
  %v3356 = vpack.c.b16 %v1772, %v1768
  %v3357 = vpack.c.b16 %v1773, %v1769
  %v3358 = vpack.c.b16 %v1774, %v1770
  %v3359 = vpack.c.b16 %v1775, %v1771
  %v3360 = vpack.c.b16 %v1780, %v1776
  %v3361 = vpack.c.b16 %v1781, %v1777
  %v3362 = vpack.c.b16 %v1782, %v1778
  %v3363 = vpack.c.b16 %v1783, %v1779
  %v3364 = vpack.c.b16 %v1788, %v1784
  %v3365 = vpack.c.b16 %v1789, %v1785
  %v3366 = vpack.c.b16 %v1790, %v1786
  %v3367 = vpack.c.b16 %v1791, %v1787
  %v3368 = vpack.c.b16 %v1796, %v1792
  %v3369 = vpack.c.b16 %v1797, %v1793
  %v3370 = vpack.c.b16 %v1798, %v1794
  %v3371 = vpack.c.b16 %v1799, %v1795
  %v3372 = vpack.c.b16 %v1804, %v1800
  %v3373 = vpack.c.b16 %v1805, %v1801
  %v3374 = vpack.c.b16 %v1806, %v1802
  %v3375 = vpack.c.b16 %v1807, %v1803
  %v3376 = vpack.c.b16 %v1812, %v1808
  %v3377 = vpack.c.b16 %v1813, %v1809
  %v3378 = vpack.c.b16 %v1814, %v1810
  %v3379 = vpack.c.b16 %v1815, %v1811
  %v3380 = vpack.c.b16 %v1820, %v1816
  %v3381 = vpack.c.b16 %v1821, %v1817
  %v3382 = vpack.c.b16 %v1822, %v1818
  %v3383 = vpack.c.b16 %v1823, %v1819
  %v3384 = vpack.c.b16 %v1828, %v1824
  %v3385 = vpack.c.b16 %v1829, %v1825
  %v3386 = vpack.c.b16 %v1830, %v1826
  %v3387 = vpack.c.b16 %v1831, %v1827
  %v3388 = vpack.c.b16 %v1836, %v1832
  %v3389 = vpack.c.b16 %v1837, %v1833
  %v3390 = vpack.c.b16 %v1838, %v1834
  %v3391 = vpack.c.b16 %v1839, %v1835
  %v3392 = vpack.c.b16 %v1844, %v1840
  %v3393 = vpack.c.b16 %v1845, %v1841
  %v3394 = vpack.c.b16 %v1846, %v1842
  %v3395 = vpack.c.b16 %v1847, %v1843
  %v3396 = vpack.c.b16 %v1852, %v1848
  %v3397 = vpack.c.b16 %v1853, %v1849
  %v3398 = vpack.c.b16 %v1854, %v1850
  %v3399 = vpack.c.b16 %v1855, %v1851
  %v3400 = vpack.c.b16 %v1860, %v1856
  %v3401 = vpack.c.b16 %v1861, %v1857
  %v3402 = vpack.c.b16 %v1862, %v1858
  %v3403 = vpack.c.b16 %v1863, %v1859
  %v3404 = vpack.c.b16 %v1868, %v1864
  %v3405 = vpack.c.b16 %v1869, %v1865
  %v3406 = vpack.c.b16 %v1870, %v1866
  %v3407 = vpack.c.b16 %v1871, %v1867
  %v3408 = vpack.c.b16 %v1876, %v1872
  %v3409 = vpack.c.b16 %v1877, %v1873
  %v3410 = vpack.c.b16 %v1878, %v1874
  %v3411 = vpack.c.b16 %v1879, %v1875
  %v3412 = vpack.c.b16 %v1884, %v1880
  %v3413 = vpack.c.b16 %v1885, %v1881
  %v3414 = vpack.c.b16 %v1886, %v1882
  %v3415 = vpack.c.b16 %v1887, %v1883
  %v3416 = vpack.c.b16 %v1892, %v1888
  %v3417 = vpack.c.b16 %v1893, %v1889
  %v3418 = vpack.c.b16 %v1894, %v1890
  %v3419 = vpack.c.b16 %v1895, %v1891
  %v3420 = vpack.c.b16 %v1900, %v1896
  %v3421 = vpack.c.b16 %v1901, %v1897
  %v3422 = vpack.c.b16 %v1902, %v1898
  %v3423 = vpack.c.b16 %v1903, %v1899
  %v3424 = vpack.c.b16 %v1908, %v1904
  %v3425 = vpack.c.b16 %v1909, %v1905
  %v3426 = vpack.c.b16 %v1910, %v1906
  %v3427 = vpack.c.b16 %v1911, %v1907
  %v3428 = vpack.c.b16 %v1916, %v1912
  %v3429 = vpack.c.b16 %v1917, %v1913
  %v3430 = vpack.c.b16 %v1918, %v1914
  %v3431 = vpack.c.b16 %v1919, %v1915
  %v3432 = vpack.c.b16 %v1924, %v1920
  %v3433 = vpack.c.b16 %v1925, %v1921
  %v3434 = vpack.c.b16 %v1926, %v1922
  %v3435 = vpack.c.b16 %v1927, %v1923
  %v3436 = vpack.c.b16 %v1932, %v1928
  %v3437 = vpack.c.b16 %v1933, %v1929
  %v3438 = vpack.c.b16 %v1934, %v1930
  %v3439 = vpack.c.b16 %v1935, %v1931
  %v3440 = vpack.c.b16 %v1940, %v1936
  %v3441 = vpack.c.b16 %v1941, %v1937
  %v3442 = vpack.c.b16 %v1942, %v1938
  %v3443 = vpack.c.b16 %v1943, %v1939
  %v3444 = vpack.c.b16 %v1948, %v1944
  %v3445 = vpack.c.b16 %v1949, %v1945
  %v3446 = vpack.c.b16 %v1950, %v1946
  %v3447 = vpack.c.b16 %v1951, %v1947
  %v3448 = vpack.c.b16 %v1956, %v1952
  %v3449 = vpack.c.b16 %v1957, %v1953
  %v3450 = vpack.c.b16 %v1958, %v1954
  %v3451 = vpack.c.b16 %v1959, %v1955
  %v3452 = vpack.c.b16 %v1964, %v1960
  %v3453 = vpack.c.b16 %v1965, %v1961
  %v3454 = vpack.c.b16 %v1966, %v1962
  %v3455 = vpack.c.b16 %v1967, %v1963
  %v3456 = vpack.c.b16 %v1972, %v1968
  %v3457 = vpack.c.b16 %v1973, %v1969
  %v3458 = vpack.c.b16 %v1974, %v1970
  %v3459 = vpack.c.b16 %v1975, %v1971
  %v3460 = vpack.c.b16 %v1980, %v1976
  %v3461 = vpack.c.b16 %v1981, %v1977
  %v3462 = vpack.c.b16 %v1982, %v1978
  %v3463 = vpack.c.b16 %v1983, %v1979
  %v3464 = vpack.c.b16 %v1988, %v1984
  %v3465 = vpack.c.b16 %v1989, %v1985
  %v3466 = vpack.c.b16 %v1990, %v1986
  %v3467 = vpack.c.b16 %v1991, %v1987
  %v3468 = vpack.c.b16 %v1996, %v1992
  %v3469 = vpack.c.b16 %v1997, %v1993
  %v3470 = vpack.c.b16 %v1998, %v1994
  %v3471 = vpack.c.b16 %v1999, %v1995
  %v3472 = vpack.c.b16 %v2004, %v2000
  %v3473 = vpack.c.b16 %v2005, %v2001
  %v3474 = vpack.c.b16 %v2006, %v2002
  %v3475 = vpack.c.b16 %v2007, %v2003
  %v3476 = vpack.c.b16 %v2012, %v2008
  %v3477 = vpack.c.b16 %v2013, %v2009
  %v3478 = vpack.c.b16 %v2014, %v2010
  %v3479 = vpack.c.b16 %v2015, %v2011
  %v3480 = vpack.c.b16 %v2020, %v2016
  %v3481 = vpack.c.b16 %v2021, %v2017
  %v3482 = vpack.c.b16 %v2022, %v2018
  %v3483 = vpack.c.b16 %v2023, %v2019
  %v3484 = vpack.c.b16 %v2028, %v2024
  %v3485 = vpack.c.b16 %v2029, %v2025
  %v3486 = vpack.c.b16 %v2030, %v2026
  %v3487 = vpack.c.b16 %v2031, %v2027
  %v3488 = vpack.c.b16 %v2036, %v2032
  %v3489 = vpack.c.b16 %v2037, %v2033
  %v3490 = vpack.c.b16 %v2038, %v2034
  %v3491 = vpack.c.b16 %v2039, %v2035
  %v3492 = vpack.c.b16 %v2044, %v2040
  %v3493 = vpack.c.b16 %v2045, %v2041
  %v3494 = vpack.c.b16 %v2046, %v2042
  %v3495 = vpack.c.b16 %v2047, %v2043
  %v3496 = vpack.c.b16 %v2052, %v2048
  %v3497 = vpack.c.b16 %v2053, %v2049
  %v3498 = vpack.c.b16 %v2054, %v2050
  %v3499 = vpack.c.b16 %v2055, %v2051
  %v3500 = vpack.c.b16 %v2060, %v2056
  %v3501 = vpack.c.b16 %v2061, %v2057
  %v3502 = vpack.c.b16 %v2062, %v2058
  %v3503 = vpack.c.b16 %v2063, %v2059
  %v3504 = vpack.c.b16 %v2068, %v2064
  %v3505 = vpack.c.b16 %v2069, %v2065
  %v3506 = vpack.c.b16 %v2070, %v2066
  %v3507 = vpack.c.b16 %v2071, %v2067
  %v3508 = vpack.c.b16 %v2076, %v2072
  %v3509 = vpack.c.b16 %v2077, %v2073
  %v3510 = vpack.c.b16 %v2078, %v2074
  %v3511 = vpack.c.b16 %v2079, %v2075
  %v3512 = vpack.c.b16 %v2084, %v2080
  %v3513 = vpack.c.b16 %v2085, %v2081
  %v3514 = vpack.c.b16 %v2086, %v2082
  %v3515 = vpack.c.b16 %v2087, %v2083
  %v3516 = vpack.c.b16 %v2092, %v2088
  %v3517 = vpack.c.b16 %v2093, %v2089
  %v3518 = vpack.c.b16 %v2094, %v2090
  %v3519 = vpack.c.b16 %v2095, %v2091
  %v3520 = vpack.c.b16 %v2100, %v2096
  %v3521 = vpack.c.b16 %v2101, %v2097
  %v3522 = vpack.c.b16 %v2102, %v2098
  %v3523 = vpack.c.b16 %v2103, %v2099
  %v3524 = vpack.c.b16 %v2108, %v2104
  %v3525 = vpack.c.b16 %v2109, %v2105
  %v3526 = vpack.c.b16 %v2110, %v2106
  %v3527 = vpack.c.b16 %v2111, %v2107
  %v3528 = vpack.c.b16 %v2116, %v2112
  %v3529 = vpack.c.b16 %v2117, %v2113
  %v3530 = vpack.c.b16 %v2118, %v2114
  %v3531 = vpack.c.b16 %v2119, %v2115
  %v3532 = vpack.c.b16 %v2124, %v2120
  %v3533 = vpack.c.b16 %v2125, %v2121
  %v3534 = vpack.c.b16 %v2126, %v2122
  %v3535 = vpack.c.b16 %v2127, %v2123
  %v3536 = vpack.c.b16 %v2132, %v2128
  %v3537 = vpack.c.b16 %v2133, %v2129
  %v3538 = vpack.c.b16 %v2134, %v2130
  %v3539 = vpack.c.b16 %v2135, %v2131
  %v3540 = vpack.c.b16 %v2140, %v2136
  %v3541 = vpack.c.b16 %v2141, %v2137
  %v3542 = vpack.c.b16 %v2142, %v2138
  %v3543 = vpack.c.b16 %v2143, %v2139
  %v3544 = vpack.c.b16 %v2148, %v2144
  %v3545 = vpack.c.b16 %v2149, %v2145
  %v3546 = vpack.c.b16 %v2150, %v2146
  %v3547 = vpack.c.b16 %v2151, %v2147
  %v3548 = vpack.c.b16 %v2156, %v2152
  %v3549 = vpack.c.b16 %v2157, %v2153
  %v3550 = vpack.c.b16 %v2158, %v2154
  %v3551 = vpack.c.b16 %v2159, %v2155
  %v3552 = vpack.c.b16 %v2164, %v2160
  %v3553 = vpack.c.b16 %v2165, %v2161
  %v3554 = vpack.c.b16 %v2166, %v2162
  %v3555 = vpack.c.b16 %v2167, %v2163
  %v3556 = vpack.c.b16 %v2172, %v2168
  %v3557 = vpack.c.b16 %v2173, %v2169
  %v3558 = vpack.c.b16 %v2174, %v2170
  %v3559 = vpack.c.b16 %v2175, %v2171
  %v3560 = vpack.c.b16 %v2180, %v2176
  %v3561 = vpack.c.b16 %v2181, %v2177
  %v3562 = vpack.c.b16 %v2182, %v2178
  %v3563 = vpack.c.b16 %v2183, %v2179
  %v3564 = vpack.c.b16 %v2188, %v2184
  %v3565 = vpack.c.b16 %v2189, %v2185
  %v3566 = vpack.c.b16 %v2190, %v2186
  %v3567 = vpack.c.b16 %v2191, %v2187
  %v3568 = vpack.c.b16 %v2196, %v2192
  %v3569 = vpack.c.b16 %v2197, %v2193
  %v3570 = vpack.c.b16 %v2198, %v2194
  %v3571 = vpack.c.b16 %v2199, %v2195
  %v3572 = vpack.c.b16 %v2204, %v2200
  %v3573 = vpack.c.b16 %v2205, %v2201
  %v3574 = vpack.c.b16 %v2206, %v2202
  %v3575 = vpack.c.b16 %v2207, %v2203
  %v3576 = vpack.c.b16 %v2212, %v2208
  %v3577 = vpack.c.b16 %v2213, %v2209
  %v3578 = vpack.c.b16 %v2214, %v2210
  %v3579 = vpack.c.b16 %v2215, %v2211
  %v3580 = vpack.c.b16 %v2220, %v2216
  %v3581 = vpack.c.b16 %v2221, %v2217
  %v3582 = vpack.c.b16 %v2222, %v2218
  %v3583 = vpack.c.b16 %v2223, %v2219
  %v3584 = vpack.c.b16 %v2228, %v2224
  %v3585 = vpack.c.b16 %v2229, %v2225
  %v3586 = vpack.c.b16 %v2230, %v2226
  %v3587 = vpack.c.b16 %v2231, %v2227
  %v3588 = vpack.c.b16 %v2236, %v2232
  %v3589 = vpack.c.b16 %v2237, %v2233
  %v3590 = vpack.c.b16 %v2238, %v2234
  %v3591 = vpack.c.b16 %v2239, %v2235
  %v3592 = vpack.c.b16 %v2244, %v2240
  %v3593 = vpack.c.b16 %v2245, %v2241
  %v3594 = vpack.c.b16 %v2246, %v2242
  %v3595 = vpack.c.b16 %v2247, %v2243
  %v3596 = vpack.c.b16 %v2252, %v2248
  %v3597 = vpack.c.b16 %v2253, %v2249
  %v3598 = vpack.c.b16 %v2254, %v2250
  %v3599 = vpack.c.b16 %v2255, %v2251
  %v3600 = vpack.c.b16 %v2260, %v2256
  %v3601 = vpack.c.b16 %v2261, %v2257
  %v3602 = vpack.c.b16 %v2262, %v2258
  %v3603 = vpack.c.b16 %v2263, %v2259
  %v3604 = vpack.c.b16 %v2268, %v2264
  %v3605 = vpack.c.b16 %v2269, %v2265
  %v3606 = vpack.c.b16 %v2270, %v2266
  %v3607 = vpack.c.b16 %v2271, %v2267
  %v3608 = vpack.c.b16 %v2276, %v2272
  %v3609 = vpack.c.b16 %v2277, %v2273
  %v3610 = vpack.c.b16 %v2278, %v2274
  %v3611 = vpack.c.b16 %v2279, %v2275
  %v3612 = vpack.c.b16 %v2284, %v2280
  %v3613 = vpack.c.b16 %v2285, %v2281
  %v3614 = vpack.c.b16 %v2286, %v2282
  %v3615 = vpack.c.b16 %v2287, %v2283
  %v3616 = vpack.c.b16 %v2292, %v2288
  %v3617 = vpack.c.b16 %v2293, %v2289
  %v3618 = vpack.c.b16 %v2294, %v2290
  %v3619 = vpack.c.b16 %v2295, %v2291
  %v3620 = vpack.c.b16 %v2300, %v2296
  %v3621 = vpack.c.b16 %v2301, %v2297
  %v3622 = vpack.c.b16 %v2302, %v2298
  %v3623 = vpack.c.b16 %v2303, %v2299
  %v3624 = vpack.c.b16 %v2308, %v2304
  %v3625 = vpack.c.b16 %v2309, %v2305
  %v3626 = vpack.c.b16 %v2310, %v2306
  %v3627 = vpack.c.b16 %v2311, %v2307
  %v3628 = vpack.c.b16 %v2316, %v2312
  %v3629 = vpack.c.b16 %v2317, %v2313
  %v3630 = vpack.c.b16 %v2318, %v2314
  %v3631 = vpack.c.b16 %v2319, %v2315
  %v3632 = vpack.c.b16 %v2324, %v2320
  %v3633 = vpack.c.b16 %v2325, %v2321
  %v3634 = vpack.c.b16 %v2326, %v2322
  %v3635 = vpack.c.b16 %v2327, %v2323
  %v3636 = vpack.c.b16 %v2332, %v2328
  %v3637 = vpack.c.b16 %v2333, %v2329
  %v3638 = vpack.c.b16 %v2334, %v2330
  %v3639 = vpack.c.b16 %v2335, %v2331
  %v3640 = vpack.c.b16 %v2340, %v2336
  %v3641 = vpack.c.b16 %v2341, %v2337
  %v3642 = vpack.c.b16 %v2342, %v2338
  %v3643 = vpack.c.b16 %v2343, %v2339
  %v3644 = vpack.c.b16 %v2348, %v2344
  %v3645 = vpack.c.b16 %v2349, %v2345
  %v3646 = vpack.c.b16 %v2350, %v2346
  %v3647 = vpack.c.b16 %v2351, %v2347
  %v3648 = vpack.c.b16 %v2356, %v2352
  %v3649 = vpack.c.b16 %v2357, %v2353
  %v3650 = vpack.c.b16 %v2358, %v2354
  %v3651 = vpack.c.b16 %v2359, %v2355
  %v3652 = vpack.c.b16 %v2364, %v2360
  %v3653 = vpack.c.b16 %v2365, %v2361
  %v3654 = vpack.c.b16 %v2366, %v2362
  %v3655 = vpack.c.b16 %v2367, %v2363
  %v3656 = vpack.c.b16 %v2372, %v2368
  %v3657 = vpack.c.b16 %v2373, %v2369
  %v3658 = vpack.c.b16 %v2374, %v2370
  %v3659 = vpack.c.b16 %v2375, %v2371
  %v3660 = vpack.c.b16 %v2380, %v2376
  %v3661 = vpack.c.b16 %v2381, %v2377
  %v3662 = vpack.c.b16 %v2382, %v2378
  %v3663 = vpack.c.b16 %v2383, %v2379
  %v3664 = vpack.c.b16 %v2388, %v2384
  %v3665 = vpack.c.b16 %v2389, %v2385
  %v3666 = vpack.c.b16 %v2390, %v2386
  %v3667 = vpack.c.b16 %v2391, %v2387
  %v3668 = vpack.c.b16 %v2396, %v2392
  %v3669 = vpack.c.b16 %v2397, %v2393
  %v3670 = vpack.c.b16 %v2398, %v2394
  %v3671 = vpack.c.b16 %v2399, %v2395
  %v3672 = vpack.c.b16 %v2404, %v2400
  %v3673 = vpack.c.b16 %v2405, %v2401
  %v3674 = vpack.c.b16 %v2406, %v2402
  %v3675 = vpack.c.b16 %v2407, %v2403
  %v3676 = vpack.c.b16 %v2412, %v2408
  %v3677 = vpack.c.b16 %v2413, %v2409
  %v3678 = vpack.c.b16 %v2414, %v2410
  %v3679 = vpack.c.b16 %v2415, %v2411
  %v3680 = vpack.c.b16 %v2420, %v2416
  %v3681 = vpack.c.b16 %v2421, %v2417
  %v3682 = vpack.c.b16 %v2422, %v2418
  %v3683 = vpack.c.b16 %v2423, %v2419
  %v3684 = vpack.c.b16 %v2428, %v2424
  %v3685 = vpack.c.b16 %v2429, %v2425
  %v3686 = vpack.c.b16 %v2430, %v2426
  %v3687 = vpack.c.b16 %v2431, %v2427
  %v3688 = vpack.c.b16 %v2436, %v2432
  %v3689 = vpack.c.b16 %v2437, %v2433
  %v3690 = vpack.c.b16 %v2438, %v2434
  %v3691 = vpack.c.b16 %v2439, %v2435
  %v3692 = vpack.c.b16 %v2444, %v2440
  %v3693 = vpack.c.b16 %v2445, %v2441
  %v3694 = vpack.c.b16 %v2446, %v2442
  %v3695 = vpack.c.b16 %v2447, %v2443
  %v3696 = vpack.c.b16 %v2452, %v2448
  %v3697 = vpack.c.b16 %v2453, %v2449
  %v3698 = vpack.c.b16 %v2454, %v2450
  %v3699 = vpack.c.b16 %v2455, %v2451
  %v3700 = vpack.c.b16 %v2460, %v2456
  %v3701 = vpack.c.b16 %v2461, %v2457
  %v3702 = vpack.c.b16 %v2462, %v2458
  %v3703 = vpack.c.b16 %v2463, %v2459
  %v3704 = vpack.c.b16 %v2468, %v2464
  %v3705 = vpack.c.b16 %v2469, %v2465
  %v3706 = vpack.c.b16 %v2470, %v2466
  %v3707 = vpack.c.b16 %v2471, %v2467
  %v3708 = vpack.c.b16 %v2476, %v2472
  %v3709 = vpack.c.b16 %v2477, %v2473
  %v3710 = vpack.c.b16 %v2478, %v2474
  %v3711 = vpack.c.b16 %v2479, %v2475
  %v3712 = vpack.c.b16 %v2484, %v2480
  %v3713 = vpack.c.b16 %v2485, %v2481
  %v3714 = vpack.c.b16 %v2486, %v2482
  %v3715 = vpack.c.b16 %v2487, %v2483
  %v3716 = vpack.c.b16 %v2492, %v2488
  %v3717 = vpack.c.b16 %v2493, %v2489
  %v3718 = vpack.c.b16 %v2494, %v2490
  %v3719 = vpack.c.b16 %v2495, %v2491
  %v3720 = vpack.c.b16 %v2500, %v2496
  %v3721 = vpack.c.b16 %v2501, %v2497
  %v3722 = vpack.c.b16 %v2502, %v2498
  %v3723 = vpack.c.b16 %v2503, %v2499
  %v3724 = vpack.c.b16 %v2508, %v2504
  %v3725 = vpack.c.b16 %v2509, %v2505
  %v3726 = vpack.c.b16 %v2510, %v2506
  %v3727 = vpack.c.b16 %v2511, %v2507
  %v3728 = vpack.c.b16 %v2516, %v2512
  %v3729 = vpack.c.b16 %v2517, %v2513
  %v3730 = vpack.c.b16 %v2518, %v2514
  %v3731 = vpack.c.b16 %v2519, %v2515
  %v3732 = vpack.c.b16 %v2524, %v2520
  %v3733 = vpack.c.b16 %v2525, %v2521
  %v3734 = vpack.c.b16 %v2526, %v2522
  %v3735 = vpack.c.b16 %v2527, %v2523
  %v3736 = vpack.c.b16 %v2532, %v2528
  %v3737 = vpack.c.b16 %v2533, %v2529
  %v3738 = vpack.c.b16 %v2534, %v2530
  %v3739 = vpack.c.b16 %v2535, %v2531
  %v3740 = vpack.c.b16 %v2540, %v2536
  %v3741 = vpack.c.b16 %v2541, %v2537
  %v3742 = vpack.c.b16 %v2542, %v2538
  %v3743 = vpack.c.b16 %v2543, %v2539
  %v3744 = vpack.c.b16 %v2548, %v2544
  %v3745 = vpack.c.b16 %v2549, %v2545
  %v3746 = vpack.c.b16 %v2550, %v2546
  %v3747 = vpack.c.b16 %v2551, %v2547
  %v3748 = vpack.c.b16 %v2556, %v2552
  %v3749 = vpack.c.b16 %v2557, %v2553
  %v3750 = vpack.c.b16 %v2558, %v2554
  %v3751 = vpack.c.b16 %v2559, %v2555
  %v3752 = vpack.c.b16 %v2564, %v2560
  %v3753 = vpack.c.b16 %v2565, %v2561
  %v3754 = vpack.c.b16 %v2566, %v2562
  %v3755 = vpack.c.b16 %v2567, %v2563
  %v3756 = vpack.c.b16 %v2572, %v2568
  %v3757 = vpack.c.b16 %v2573, %v2569
  %v3758 = vpack.c.b16 %v2574, %v2570
  %v3759 = vpack.c.b16 %v2575, %v2571
  %v3760 = vpack.c.b16 %v2580, %v2576
  %v3761 = vpack.c.b16 %v2581, %v2577
  %v3762 = vpack.c.b16 %v2582, %v2578
  %v3763 = vpack.c.b16 %v2583, %v2579
  %v3764 = vpack.c.b16 %v2588, %v2584
  %v3765 = vpack.c.b16 %v2589, %v2585
  %v3766 = vpack.c.b16 %v2590, %v2586
  %v3767 = vpack.c.b16 %v2591, %v2587
  %v3768 = vpack.c.b16 %v2596, %v2592
  %v3769 = vpack.c.b16 %v2597, %v2593
  %v3770 = vpack.c.b16 %v2598, %v2594
  %v3771 = vpack.c.b16 %v2599, %v2595
  %v3772 = vpack.c.b16 %v2604, %v2600
  %v3773 = vpack.c.b16 %v2605, %v2601
  %v3774 = vpack.c.b16 %v2606, %v2602
  %v3775 = vpack.c.b16 %v2607, %v2603
  %v3776 = vpack.c.b16 %v2612, %v2608
  %v3777 = vpack.c.b16 %v2613, %v2609
  %v3778 = vpack.c.b16 %v2614, %v2610
  %v3779 = vpack.c.b16 %v2615, %v2611
  %v3780 = vpack.c.b16 %v2620, %v2616
  %v3781 = vpack.c.b16 %v2621, %v2617
  %v3782 = vpack.c.b16 %v2622, %v2618
  %v3783 = vpack.c.b16 %v2623, %v2619
  %v3784 = vpack.c.b16 %v2628, %v2624
  %v3785 = vpack.c.b16 %v2629, %v2625
  %v3786 = vpack.c.b16 %v2630, %v2626
  %v3787 = vpack.c.b16 %v2631, %v2627
  %v3788 = vpack.c.b16 %v2636, %v2632
  %v3789 = vpack.c.b16 %v2637, %v2633
  %v3790 = vpack.c.b16 %v2638, %v2634
  %v3791 = vpack.c.b16 %v2639, %v2635
  %v3792 = vpack.c.b16 %v2644, %v2640
  %v3793 = vpack.c.b16 %v2645, %v2641
  %v3794 = vpack.c.b16 %v2646, %v2642
  %v3795 = vpack.c.b16 %v2647, %v2643
  %v3796 = vpack.c.b16 %v2652, %v2648
  %v3797 = vpack.c.b16 %v2653, %v2649
  %v3798 = vpack.c.b16 %v2654, %v2650
  %v3799 = vpack.c.b16 %v2655, %v2651
  %v3800 = vpack.c.b16 %v2660, %v2656
  %v3801 = vpack.c.b16 %v2661, %v2657
  %v3802 = vpack.c.b16 %v2662, %v2658
  %v3803 = vpack.c.b16 %v2663, %v2659
  %v3804 = vpack.c.b16 %v2668, %v2664
  %v3805 = vpack.c.b16 %v2669, %v2665
  %v3806 = vpack.c.b16 %v2670, %v2666
  %v3807 = vpack.c.b16 %v2671, %v2667
  %v3808 = vpack.c.b16 %v2676, %v2672
  %v3809 = vpack.c.b16 %v2677, %v2673
  %v3810 = vpack.c.b16 %v2678, %v2674
  %v3811 = vpack.c.b16 %v2679, %v2675
  %v3812 = vpack.c.b16 %v2684, %v2680
  %v3813 = vpack.c.b16 %v2685, %v2681
  %v3814 = vpack.c.b16 %v2686, %v2682
  %v3815 = vpack.c.b16 %v2687, %v2683
  %v3816 = vpack.c.b16 %v2692, %v2688
  %v3817 = vpack.c.b16 %v2693, %v2689
  %v3818 = vpack.c.b16 %v2694, %v2690
  %v3819 = vpack.c.b16 %v2695, %v2691
  %v3820 = vpack.c.b16 %v2700, %v2696
  %v3821 = vpack.c.b16 %v2701, %v2697
  %v3822 = vpack.c.b16 %v2702, %v2698
  %v3823 = vpack.c.b16 %v2703, %v2699
  %v3824 = vpack.c.b16 %v2708, %v2704
  %v3825 = vpack.c.b16 %v2709, %v2705
  %v3826 = vpack.c.b16 %v2710, %v2706
  %v3827 = vpack.c.b16 %v2711, %v2707
  %v3828 = vpack.c.b16 %v2716, %v2712
  %v3829 = vpack.c.b16 %v2717, %v2713
  %v3830 = vpack.c.b16 %v2718, %v2714
  %v3831 = vpack.c.b16 %v2719, %v2715
  %v3832 = vpack.c.b16 %v2724, %v2720
  %v3833 = vpack.c.b16 %v2725, %v2721
  %v3834 = vpack.c.b16 %v2726, %v2722
  %v3835 = vpack.c.b16 %v2727, %v2723
  %v3836 = vpack.c.b16 %v2732, %v2728
  %v3837 = vpack.c.b16 %v2733, %v2729
  %v3838 = vpack.c.b16 %v2734, %v2730
  %v3839 = vpack.c.b16 %v2735, %v2731
  %v3840 = vpack.c.b16 %v2740, %v2736
  %v3841 = vpack.c.b16 %v2741, %v2737
  %v3842 = vpack.c.b16 %v2742, %v2738
  %v3843 = vpack.c.b16 %v2743, %v2739
  %v3844 = vpack.c.b16 %v2748, %v2744
  %v3845 = vpack.c.b16 %v2749, %v2745
  %v3846 = vpack.c.b16 %v2750, %v2746
  %v3847 = vpack.c.b16 %v2751, %v2747
  %v3848 = vpack.c.b16 %v2756, %v2752
  %v3849 = vpack.c.b16 %v2757, %v2753
  %v3850 = vpack.c.b16 %v2758, %v2754
  %v3851 = vpack.c.b16 %v2759, %v2755
  %v3852 = vpack.c.b16 %v2764, %v2760
  %v3853 = vpack.c.b16 %v2765, %v2761
  %v3854 = vpack.c.b16 %v2766, %v2762
  %v3855 = vpack.c.b16 %v2767, %v2763
  %v3856 = vpack.c.b16 %v2772, %v2768
  %v3857 = vpack.c.b16 %v2773, %v2769
  %v3858 = vpack.c.b16 %v2774, %v2770
  %v3859 = vpack.c.b16 %v2775, %v2771
  %v3860 = vpack.c.b16 %v2780, %v2776
  %v3861 = vpack.c.b16 %v2781, %v2777
  %v3862 = vpack.c.b16 %v2782, %v2778
  %v3863 = vpack.c.b16 %v2783, %v2779
  %v3864 = vpack.c.b16 %v2788, %v2784
  %v3865 = vpack.c.b16 %v2789, %v2785
  %v3866 = vpack.c.b16 %v2790, %v2786
  %v3867 = vpack.c.b16 %v2791, %v2787
  %v3868 = vpack.c.b16 %v2796, %v2792
  %v3869 = vpack.c.b16 %v2797, %v2793
  %v3870 = vpack.c.b16 %v2798, %v2794
  %v3871 = vpack.c.b16 %v2799, %v2795
  %v3872 = vpack.c.b16 %v2804, %v2800
  %v3873 = vpack.c.b16 %v2805, %v2801
  %v3874 = vpack.c.b16 %v2806, %v2802
  %v3875 = vpack.c.b16 %v2807, %v2803
  %v3876 = vpack.c.b16 %v2812, %v2808
  %v3877 = vpack.c.b16 %v2813, %v2809
  %v3878 = vpack.c.b16 %v2814, %v2810
  %v3879 = vpack.c.b16 %v2815, %v2811
  %v3880 = vpack.c.b16 %v2820, %v2816
  %v3881 = vpack.c.b16 %v2821, %v2817
  %v3882 = vpack.c.b16 %v2822, %v2818
  %v3883 = vpack.c.b16 %v2823, %v2819
  %v3884 = vpack.c.b16 %v2828, %v2824
  %v3885 = vpack.c.b16 %v2829, %v2825
  %v3886 = vpack.c.b16 %v2830, %v2826
  %v3887 = vpack.c.b16 %v2831, %v2827
  %v3888 = vpack.c.b16 %v2836, %v2832
  %v3889 = vpack.c.b16 %v2837, %v2833
  %v3890 = vpack.c.b16 %v2838, %v2834
  %v3891 = vpack.c.b16 %v2839, %v2835
  %v3892 = vpack.c.b16 %v2844, %v2840
  %v3893 = vpack.c.b16 %v2845, %v2841
  %v3894 = vpack.c.b16 %v2846, %v2842
  %v3895 = vpack.c.b16 %v2847, %v2843
  %v3896 = vpack.c.b16 %v2852, %v2848
  %v3897 = vpack.c.b16 %v2853, %v2849
  %v3898 = vpack.c.b16 %v2854, %v2850
  %v3899 = vpack.c.b16 %v2855, %v2851
  %v3900 = vpack.c.b16 %v2860, %v2856
  %v3901 = vpack.c.b16 %v2861, %v2857
  %v3902 = vpack.c.b16 %v2862, %v2858
  %v3903 = vpack.c.b16 %v2863, %v2859
  %v3904 = vpack.c.b16 %v2868, %v2864
  %v3905 = vpack.c.b16 %v2869, %v2865
  %v3906 = vpack.c.b16 %v2870, %v2866
  %v3907 = vpack.c.b16 %v2871, %v2867
  %v3908 = vpack.c.b16 %v2876, %v2872
  %v3909 = vpack.c.b16 %v2877, %v2873
  %v3910 = vpack.c.b16 %v2878, %v2874
  %v3911 = vpack.c.b16 %v2879, %v2875
  %v3912 = vpack.c.b16 %v2884, %v2880
  %v3913 = vpack.c.b16 %v2885, %v2881
  %v3914 = vpack.c.b16 %v2886, %v2882
  %v3915 = vpack.c.b16 %v2887, %v2883
  %v3916 = vpack.c.b16 %v2892, %v2888
  %v3917 = vpack.c.b16 %v2893, %v2889
  %v3918 = vpack.c.b16 %v2894, %v2890
  %v3919 = vpack.c.b16 %v2895, %v2891
  %v3920 = vpack.c.b16 %v2900, %v2896
  %v3921 = vpack.c.b16 %v2901, %v2897
  %v3922 = vpack.c.b16 %v2902, %v2898
  %v3923 = vpack.c.b16 %v2903, %v2899
  %v3924 = vpack.c.b16 %v2908, %v2904
  %v3925 = vpack.c.b16 %v2909, %v2905
  %v3926 = vpack.c.b16 %v2910, %v2906
  %v3927 = vpack.c.b16 %v2911, %v2907
  %v3928 = vpack.c.b16 %v2916, %v2912
  %v3929 = vpack.c.b16 %v2917, %v2913
  %v3930 = vpack.c.b16 %v2918, %v2914
  %v3931 = vpack.c.b16 %v2919, %v2915
  %v3932 = vpack.c.b16 %v2924, %v2920
  %v3933 = vpack.c.b16 %v2925, %v2921
  %v3934 = vpack.c.b16 %v2926, %v2922
  %v3935 = vpack.c.b16 %v2927, %v2923
  %v3936 = vpack.c.b16 %v2932, %v2928
  %v3937 = vpack.c.b16 %v2933, %v2929
  %v3938 = vpack.c.b16 %v2934, %v2930
  %v3939 = vpack.c.b16 %v2935, %v2931
  %v3940 = vpack.c.b16 %v2940, %v2936
  %v3941 = vpack.c.b16 %v2941, %v2937
  %v3942 = vpack.c.b16 %v2942, %v2938
  %v3943 = vpack.c.b16 %v2943, %v2939
  %v3944 = vpack.c.b16 %v2948, %v2944
  %v3945 = vpack.c.b16 %v2949, %v2945
  %v3946 = vpack.c.b16 %v2950, %v2946
  %v3947 = vpack.c.b16 %v2951, %v2947
  %v3948 = vpack.c.b16 %v2956, %v2952
  %v3949 = vpack.c.b16 %v2957, %v2953
  %v3950 = vpack.c.b16 %v2958, %v2954
  %v3951 = vpack.c.b16 %v2959, %v2955
  %v3952 = vpack.c.b16 %v2964, %v2960
  %v3953 = vpack.c.b16 %v2965, %v2961
  %v3954 = vpack.c.b16 %v2966, %v2962
  %v3955 = vpack.c.b16 %v2967, %v2963
  %v3956 = vpack.c.b16 %v2972, %v2968
  %v3957 = vpack.c.b16 %v2973, %v2969
  %v3958 = vpack.c.b16 %v2974, %v2970
  %v3959 = vpack.c.b16 %v2975, %v2971
  %v3960 = vpack.c.b16 %v2980, %v2976
  %v3961 = vpack.c.b16 %v2981, %v2977
  %v3962 = vpack.c.b16 %v2982, %v2978
  %v3963 = vpack.c.b16 %v2983, %v2979
  %v3964 = vpack.c.b16 %v2988, %v2984
  %v3965 = vpack.c.b16 %v2989, %v2985
  %v3966 = vpack.c.b16 %v2990, %v2986
  %v3967 = vpack.c.b16 %v2991, %v2987
  %v3968 = vpack.c.b16 %v2996, %v2992
  %v3969 = vpack.c.b16 %v2997, %v2993
  %v3970 = vpack.c.b16 %v2998, %v2994
  %v3971 = vpack.c.b16 %v2999, %v2995
  %v3972 = vpack.c.b16 %v3004, %v3000
  %v3973 = vpack.c.b16 %v3005, %v3001
  %v3974 = vpack.c.b16 %v3006, %v3002
  %v3975 = vpack.c.b16 %v3007, %v3003
  %v3976 = vpack.c.b16 %v3012, %v3008
  %v3977 = vpack.c.b16 %v3013, %v3009
  %v3978 = vpack.c.b16 %v3014, %v3010
  %v3979 = vpack.c.b16 %v3015, %v3011
  %v3980 = vpack.c.b16 %v3020, %v3016
  %v3981 = vpack.c.b16 %v3021, %v3017
  %v3982 = vpack.c.b16 %v3022, %v3018
  %v3983 = vpack.c.b16 %v3023, %v3019
  %v3984 = vpack.c.b16 %v3028, %v3024
  %v3985 = vpack.c.b16 %v3029, %v3025
  %v3986 = vpack.c.b16 %v3030, %v3026
  %v3987 = vpack.c.b16 %v3031, %v3027
  %v3988 = vpack.c.b16 %v3036, %v3032
  %v3989 = vpack.c.b16 %v3037, %v3033
  %v3990 = vpack.c.b16 %v3038, %v3034
  %v3991 = vpack.c.b16 %v3039, %v3035
  %v3992 = vpack.c.b16 %v3044, %v3040
  %v3993 = vpack.c.b16 %v3045, %v3041
  %v3994 = vpack.c.b16 %v3046, %v3042
  %v3995 = vpack.c.b16 %v3047, %v3043
  %v3996 = vpack.c.b16 %v3052, %v3048
  %v3997 = vpack.c.b16 %v3053, %v3049
  %v3998 = vpack.c.b16 %v3054, %v3050
  %v3999 = vpack.c.b16 %v3055, %v3051
  %v4000 = vpack.c.b16 %v3060, %v3056
  %v4001 = vpack.c.b16 %v3061, %v3057
  %v4002 = vpack.c.b16 %v3062, %v3058
  %v4003 = vpack.c.b16 %v3063, %v3059
  %v4004 = vpack.c.b16 %v3068, %v3064
  %v4005 = vpack.c.b16 %v3069, %v3065
  %v4006 = vpack.c.b16 %v3070, %v3066
  %v4007 = vpack.c.b16 %v3071, %v3067
  %v4008 = vpack.c.b16 %v3076, %v3072
  %v4009 = vpack.c.b16 %v3077, %v3073
  %v4010 = vpack.c.b16 %v3078, %v3074
  %v4011 = vpack.c.b16 %v3079, %v3075
  %v4012 = vpack.c.b16 %v3084, %v3080
  %v4013 = vpack.c.b16 %v3085, %v3081
  %v4014 = vpack.c.b16 %v3086, %v3082
  %v4015 = vpack.c.b16 %v3087, %v3083
  %v4016 = vpack.c.b16 %v3092, %v3088
  %v4017 = vpack.c.b16 %v3093, %v3089
  %v4018 = vpack.c.b16 %v3094, %v3090
  %v4019 = vpack.c.b16 %v3095, %v3091
  %v4020 = vpack.c.b16 %v3100, %v3096
  %v4021 = vpack.c.b16 %v3101, %v3097
  %v4022 = vpack.c.b16 %v3102, %v3098
  %v4023 = vpack.c.b16 %v3103, %v3099
  %v4024 = vpack.c.b16 %v3108, %v3104
  %v4025 = vpack.c.b16 %v3109, %v3105
  %v4026 = vpack.c.b16 %v3110, %v3106
  %v4027 = vpack.c.b16 %v3111, %v3107
  %v4028 = vpack.c.b16 %v3116, %v3112
  %v4029 = vpack.c.b16 %v3117, %v3113
  %v4030 = vpack.c.b16 %v3118, %v3114
  %v4031 = vpack.c.b16 %v3119, %v3115
  %v4032 = vpack.c.b16 %v3124, %v3120
  %v4033 = vpack.c.b16 %v3125, %v3121
  %v4034 = vpack.c.b16 %v3126, %v3122
  %v4035 = vpack.c.b16 %v3127, %v3123
  %v4036 = vpack.c.b16 %v3132, %v3128
  %v4037 = vpack.c.b16 %v3133, %v3129
  %v4038 = vpack.c.b16 %v3134, %v3130
  %v4039 = vpack.c.b16 %v3135, %v3131
  %v4040 = vpack.c.b16 %v3140, %v3136
  %v4041 = vpack.c.b16 %v3141, %v3137
  %v4042 = vpack.c.b16 %v3142, %v3138
  %v4043 = vpack.c.b16 %v3143, %v3139
  %v4044 = vpack.c.b16 %v3148, %v3144
  %v4045 = vpack.c.b16 %v3149, %v3145
  %v4046 = vpack.c.b16 %v3150, %v3146
  %v4047 = vpack.c.b16 %v3151, %v3147
  %v4048 = vpack.c.b16 %v3156, %v3152
  %v4049 = vpack.c.b16 %v3157, %v3153
  %v4050 = vpack.c.b16 %v3158, %v3154
  %v4051 = vpack.c.b16 %v3159, %v3155
  %v4052 = vpack.c.b16 %v3164, %v3160
  %v4053 = vpack.c.b16 %v3165, %v3161
  %v4054 = vpack.c.b16 %v3166, %v3162
  %v4055 = vpack.c.b16 %v3167, %v3163
  %v4056 = vpack.c.b16 %v3172, %v3168
  %v4057 = vpack.c.b16 %v3173, %v3169
  %v4058 = vpack.c.b16 %v3174, %v3170
  %v4059 = vpack.c.b16 %v3175, %v3171
  %v4060 = vpack.c.b16 %v3180, %v3176
  %v4061 = vpack.c.b16 %v3181, %v3177
  %v4062 = vpack.c.b16 %v3182, %v3178
  %v4063 = vpack.c.b16 %v3183, %v3179
  %v4064 = vpack.c.b16 %v3188, %v3184
  %v4065 = vpack.c.b16 %v3189, %v3185
  %v4066 = vpack.c.b16 %v3190, %v3186
  %v4067 = vpack.c.b16 %v3191, %v3187
  %v4068 = vpack.c.b16 %v3196, %v3192
  %v4069 = vpack.c.b16 %v3197, %v3193
  %v4070 = vpack.c.b16 %v3198, %v3194
  %v4071 = vpack.c.b16 %v3199, %v3195
  %v4072 = vpack.c.b16 %v3204, %v3200
  %v4073 = vpack.c.b16 %v3205, %v3201
  %v4074 = vpack.c.b16 %v3206, %v3202
  %v4075 = vpack.c.b16 %v3207, %v3203
  %v4076 = vpack.c.b16 %v3212, %v3208
  %v4077 = vpack.c.b16 %v3213, %v3209
  %v4078 = vpack.c.b16 %v3214, %v3210
  %v4079 = vpack.c.b16 %v3215, %v3211
  %v4080 = vpack.c.b16 %v3220, %v3216
  %v4081 = vpack.c.b16 %v3221, %v3217
  %v4082 = vpack.c.b16 %v3222, %v3218
  %v4083 = vpack.c.b16 %v3223, %v3219
  %v4084 = vpack.c.b16 %v3228, %v3224
  %v4085 = vpack.c.b16 %v3229, %v3225
  %v4086 = vpack.c.b16 %v3230, %v3226
  %v4087 = vpack.c.b16 %v3231, %v3227
  %v4088 = vpack.c.b16 %v3236, %v3232
  %v4089 = vpack.c.b16 %v3237, %v3233
  %v4090 = vpack.c.b16 %v3238, %v3234
  %v4091 = vpack.c.b16 %v3239, %v3235
  %v4092 = vpack.c.b16 %v3244, %v3240
  %v4093 = vpack.c.b16 %v3245, %v3241
  %v4094 = vpack.c.b16 %v3246, %v3242
  %v4095 = vpack.c.b16 %v3247, %v3243
  %v4096 = vpack.c.b16 %v3252, %v3248
  %v4097 = vpack.c.b16 %v3253, %v3249
  %v4098 = vpack.c.b16 %v3254, %v3250
  %v4099 = vpack.c.b16 %v3255, %v3251
  %v4100 = vpack.c.b16 %v3260, %v3256
  %v4101 = vpack.c.b16 %v3261, %v3257
  %v4102 = vpack.c.b16 %v3262, %v3258
  %v4103 = vpack.c.b16 %v3263, %v3259
  %v4104 = vpack.c.b16 %v3268, %v3264
  %v4105 = vpack.c.b16 %v3269, %v3265
  %v4106 = vpack.c.b16 %v3270, %v3266
  %v4107 = vpack.c.b16 %v3271, %v3267
  %v4108 = vpack.c.b16 %v3276, %v3272
  %v4109 = vpack.c.b16 %v3277, %v3273
  %v4110 = vpack.c.b16 %v3278, %v3274
  %v4111 = vpack.c.b16 %v3279, %v3275
  %v4112 = vpack.c.b16 %v3284, %v3280
  %v4113 = vpack.c.b16 %v3285, %v3281
  %v4114 = vpack.c.b16 %v3286, %v3282
  %v4115 = vpack.c.b16 %v3287, %v3283
  %v4116 = vpack.c.b16 %v3292, %v3288
  %v4117 = vpack.c.b16 %v3293, %v3289
  %v4118 = vpack.c.b16 %v3294, %v3290
  %v4119 = vpack.c.b16 %v3295, %v3291
  %v4120 = vpack.c.b16 %v3300, %v3296
  %v4121 = vpack.c.b16 %v3301, %v3297
  %v4122 = vpack.c.b16 %v3302, %v3298
  %v4123 = vpack.c.b16 %v3303, %v3299
  %v4124 = vpack.c.b16 %v3308, %v3304
  %v4125 = vpack.c.b16 %v3309, %v3305
  %v4126 = vpack.c.b16 %v3310, %v3306
  %v4127 = vpack.c.b16 %v3311, %v3307
  %v4128 = vpack.c.b16 %v3316, %v3312
  %v4129 = vpack.c.b16 %v3317, %v3313
  %v4130 = vpack.c.b16 %v3318, %v3314
  %v4131 = vpack.c.b16 %v3319, %v3315
  %v4132 = vpack.c.b16 %v3324, %v3320
  %v4133 = vpack.c.b16 %v3325, %v3321
  %v4134 = vpack.c.b16 %v3326, %v3322
  %v4135 = vpack.c.b16 %v3327, %v3323
  %v4136 = vpack.c.b16 %v3332, %v3328
  %v4137 = vpack.c.b16 %v3333, %v3329
  %v4138 = vpack.c.b16 %v3334, %v3330
  %v4139 = vpack.c.b16 %v3335, %v3331
  %v4140 = vpack.c.b16 %v3340, %v3336
  %v4141 = vpack.c.b16 %v3341, %v3337
  %v4142 = vpack.c.b16 %v3342, %v3338
  %v4143 = vpack.c.b16 %v3343, %v3339
  %4944 = vmatprep.subr.bf16.mxu0 %v3373
  %4945 = vmatpush1.bf16.msra.mxu0 %v3372
  %4946 = vmatprep.subr.bf16.mxu0 %v3369
  %4947 = vmatpush1.bf16.msra.mxu0 %v3368
  %4948 = vmatprep.subr.bf16.mxu0 %v3365
  %4949 = vmatpush1.bf16.msra.mxu0 %v3364
  %4950 = vmatprep.subr.bf16.mxu0 %v3361
  %4951 = vmatpush1.bf16.msra.mxu0 %v3360
  %4952 = vmatprep.subr.bf16.mxu0 %v3357
  %4953 = vmatpush1.bf16.msra.mxu0 %v3356
  %4954 = vmatprep.subr.bf16.mxu0 %v3353
  %4955 = vmatpush1.bf16.msra.mxu0 %v3352
  %4956 = vmatprep.subr.bf16.mxu0 %v3349
  %4957 = vmatpush1.bf16.msra.mxu0 %v3348
  %4958 = vmatprep.subr.bf16.mxu0 %v3345
  %4959 = vmatpush1.bf16.msra.mxu0 %v3344
  %4960 = vmatprep.subr.bf16.mxu0 %v3405
  %4961 = vmatpush2.bf16.msra.mxu0 %v3404
  %4962 = vmatprep.subr.bf16.mxu0 %v3401
  %4963 = vmatpush2.bf16.msra.mxu0 %v3400
  %4964 = vmatprep.subr.bf16.mxu0 %v3397
  %4965 = vmatpush2.bf16.msra.mxu0 %v3396
  %4966 = vmatprep.subr.bf16.mxu0 %v3393
  %4967 = vmatpush2.bf16.msra.mxu0 %v3392
  %4968 = vmatprep.subr.bf16.mxu0 %v3389
  %4969 = vmatpush2.bf16.msra.mxu0 %v3388
  %4970 = vmatprep.subr.bf16.mxu0 %v3385
  %4971 = vmatpush2.bf16.msra.mxu0 %v3384
  %4972 = vmatprep.subr.bf16.mxu0 %v3381
  %4973 = vmatpush2.bf16.msra.mxu0 %v3380
  %4974 = vmatprep.subr.bf16.mxu0 %v3377
  %4975 = vmatpush2.bf16.msra.mxu0 %v3376
  %4976 = vmatprep.mubr.bf16.mxu0 %v895
  %4977 = vmatmul.mubr.bf16.gmra.mxu0 %v894
  %v4978 = vpop.f32.mrf.mxu0
  %v4979 = vadd.f32 %v839, %v4978
  %v4980 = vpop.f32.mrf.mxu0
  %v4981 = vadd.f32 %v843, %v4980
  %v4982 = vpop.f32.mrf.mxu0
  %v4983 = vpop.f32.mrf.mxu0
  %4984 = vdwg.mxu0
  %4985 = vmatprep.subr.bf16.mxu0 %v3437
  %4986 = vmatpush1.bf16.msra.mxu0 %v3436
  %4987 = vmatprep.subr.bf16.mxu0 %v3433
  %4988 = vmatpush1.bf16.msra.mxu0 %v3432
  %4989 = vmatprep.subr.bf16.mxu0 %v3429
  %4990 = vmatpush1.bf16.msra.mxu0 %v3428
  %4991 = vmatprep.subr.bf16.mxu0 %v3425
  %4992 = vmatpush1.bf16.msra.mxu0 %v3424
  %4993 = vmatprep.subr.bf16.mxu0 %v3421
  %4994 = vmatpush1.bf16.msra.mxu0 %v3420
  %4995 = vmatprep.subr.bf16.mxu0 %v3417
  %4996 = vmatpush1.bf16.msra.mxu0 %v3416
  %4997 = vmatprep.subr.bf16.mxu0 %v3413
  %4998 = vmatpush1.bf16.msra.mxu0 %v3412
  %4999 = vmatprep.subr.bf16.mxu0 %v3409
  %5000 = vmatpush1.bf16.msra.mxu0 %v3408
  %5001 = vmatprep.subr.bf16.mxu0 %v3469
  %5002 = vmatpush2.bf16.msra.mxu0 %v3468
  %5003 = vmatprep.subr.bf16.mxu0 %v3465
  %5004 = vmatpush2.bf16.msra.mxu0 %v3464
  %5005 = vmatprep.subr.bf16.mxu0 %v3461
  %5006 = vmatpush2.bf16.msra.mxu0 %v3460
  %5007 = vmatprep.subr.bf16.mxu0 %v3457
  %5008 = vmatpush2.bf16.msra.mxu0 %v3456
  %5009 = vmatprep.subr.bf16.mxu0 %v3453
  %5010 = vmatpush2.bf16.msra.mxu0 %v3452
  %5011 = vmatprep.subr.bf16.mxu0 %v3449
  %5012 = vmatpush2.bf16.msra.mxu0 %v3448
  %5013 = vmatprep.subr.bf16.mxu0 %v3445
  %5014 = vmatpush2.bf16.msra.mxu0 %v3444
  %5015 = vmatprep.subr.bf16.mxu0 %v3441
  %5016 = vmatpush2.bf16.msra.mxu0 %v3440
  %5017 = vmatprep.mubr.bf16.mxu0 %v897
  %5018 = vmatmul.mubr.bf16.gmra.mxu0 %v896
  %v5019 = vpop.f32.mrf.mxu0
  %v5020 = vadd.f32 %v4979, %v5019
  %v5021 = vpop.f32.mrf.mxu0
  %v5022 = vadd.f32 %v4981, %v5021
  %v5023 = vpop.f32.mrf.mxu0
  %v5024 = vpop.f32.mrf.mxu0
  %5025 = vdwg.mxu0
  %5026 = vmatprep.subr.bf16.mxu0 %v3501
  %5027 = vmatpush1.bf16.msra.mxu0 %v3500
  %5028 = vmatprep.subr.bf16.mxu0 %v3497
  %5029 = vmatpush1.bf16.msra.mxu0 %v3496
  %5030 = vmatprep.subr.bf16.mxu0 %v3493
  %5031 = vmatpush1.bf16.msra.mxu0 %v3492
  %5032 = vmatprep.subr.bf16.mxu0 %v3489
  %5033 = vmatpush1.bf16.msra.mxu0 %v3488
  %5034 = vmatprep.subr.bf16.mxu0 %v3485
  %5035 = vmatpush1.bf16.msra.mxu0 %v3484
  %5036 = vmatprep.subr.bf16.mxu0 %v3481
  %5037 = vmatpush1.bf16.msra.mxu0 %v3480
  %5038 = vmatprep.subr.bf16.mxu0 %v3477
  %5039 = vmatpush1.bf16.msra.mxu0 %v3476
  %5040 = vmatprep.subr.bf16.mxu0 %v3473
  %5041 = vmatpush1.bf16.msra.mxu0 %v3472
  %5042 = vmatprep.subr.bf16.mxu0 %v3533
  %5043 = vmatpush2.bf16.msra.mxu0 %v3532
  %5044 = vmatprep.subr.bf16.mxu0 %v3529
  %5045 = vmatpush2.bf16.msra.mxu0 %v3528
  %5046 = vmatprep.subr.bf16.mxu0 %v3525
  %5047 = vmatpush2.bf16.msra.mxu0 %v3524
  %5048 = vmatprep.subr.bf16.mxu0 %v3521
  %5049 = vmatpush2.bf16.msra.mxu0 %v3520
  %5050 = vmatprep.subr.bf16.mxu0 %v3517
  %5051 = vmatpush2.bf16.msra.mxu0 %v3516
  %5052 = vmatprep.subr.bf16.mxu0 %v3513
  %5053 = vmatpush2.bf16.msra.mxu0 %v3512
  %5054 = vmatprep.subr.bf16.mxu0 %v3509
  %5055 = vmatpush2.bf16.msra.mxu0 %v3508
  %5056 = vmatprep.subr.bf16.mxu0 %v3505
  %5057 = vmatpush2.bf16.msra.mxu0 %v3504
  %5058 = vmatprep.mubr.bf16.mxu0 %v899
  %5059 = vmatmul.mubr.bf16.gmra.mxu0 %v898
  %v5060 = vpop.f32.mrf.mxu0
  %v5061 = vadd.f32 %v5020, %v5060
  %v5062 = vpop.f32.mrf.mxu0
  %v5063 = vadd.f32 %v5022, %v5062
  %v5064 = vpop.f32.mrf.mxu0
  %v5065 = vpop.f32.mrf.mxu0
  %5066 = vdwg.mxu0
  %5067 = vmatprep.subr.bf16.mxu0 %v3565
  %5068 = vmatpush1.bf16.msra.mxu0 %v3564
  %5069 = vmatprep.subr.bf16.mxu0 %v3561
  %5070 = vmatpush1.bf16.msra.mxu0 %v3560
  %5071 = vmatprep.subr.bf16.mxu0 %v3557
  %5072 = vmatpush1.bf16.msra.mxu0 %v3556
  %5073 = vmatprep.subr.bf16.mxu0 %v3553
  %5074 = vmatpush1.bf16.msra.mxu0 %v3552
  %5075 = vmatprep.subr.bf16.mxu0 %v3549
  %5076 = vmatpush1.bf16.msra.mxu0 %v3548
  %5077 = vmatprep.subr.bf16.mxu0 %v3545
  %5078 = vmatpush1.bf16.msra.mxu0 %v3544
  %5079 = vmatprep.subr.bf16.mxu0 %v3541
  %5080 = vmatpush1.bf16.msra.mxu0 %v3540
  %5081 = vmatprep.subr.bf16.mxu0 %v3537
  %5082 = vmatpush1.bf16.msra.mxu0 %v3536
  %5083 = vmatprep.subr.bf16.mxu0 %v3597
  %5084 = vmatpush2.bf16.msra.mxu0 %v3596
  %5085 = vmatprep.subr.bf16.mxu0 %v3593
  %5086 = vmatpush2.bf16.msra.mxu0 %v3592
  %5087 = vmatprep.subr.bf16.mxu0 %v3589
  %5088 = vmatpush2.bf16.msra.mxu0 %v3588
  %5089 = vmatprep.subr.bf16.mxu0 %v3585
  %5090 = vmatpush2.bf16.msra.mxu0 %v3584
  %5091 = vmatprep.subr.bf16.mxu0 %v3581
  %5092 = vmatpush2.bf16.msra.mxu0 %v3580
  %5093 = vmatprep.subr.bf16.mxu0 %v3577
  %5094 = vmatpush2.bf16.msra.mxu0 %v3576
  %5095 = vmatprep.subr.bf16.mxu0 %v3573
  %5096 = vmatpush2.bf16.msra.mxu0 %v3572
  %5097 = vmatprep.subr.bf16.mxu0 %v3569
  %5098 = vmatpush2.bf16.msra.mxu0 %v3568
  %5099 = vmatprep.mubr.bf16.mxu0 %v901
  %5100 = vmatmul.mubr.bf16.gmra.mxu0 %v900
  %v5101 = vpop.f32.mrf.mxu0
  %v5102 = vadd.f32 %v5061, %v5101
  %v5103 = vpop.f32.mrf.mxu0
  %v5104 = vadd.f32 %v5063, %v5103
  %v5105 = vpop.f32.mrf.mxu0
  %v5106 = vpop.f32.mrf.mxu0
  %5107 = vdwg.mxu0
  %5108 = vmatprep.subr.bf16.mxu0 %v3629
  %5109 = vmatpush1.bf16.msra.mxu0 %v3628
  %5110 = vmatprep.subr.bf16.mxu0 %v3625
  %5111 = vmatpush1.bf16.msra.mxu0 %v3624
  %5112 = vmatprep.subr.bf16.mxu0 %v3621
  %5113 = vmatpush1.bf16.msra.mxu0 %v3620
  %5114 = vmatprep.subr.bf16.mxu0 %v3617
  %5115 = vmatpush1.bf16.msra.mxu0 %v3616
  %5116 = vmatprep.subr.bf16.mxu0 %v3613
  %5117 = vmatpush1.bf16.msra.mxu0 %v3612
  %5118 = vmatprep.subr.bf16.mxu0 %v3609
  %5119 = vmatpush1.bf16.msra.mxu0 %v3608
  %5120 = vmatprep.subr.bf16.mxu0 %v3605
  %5121 = vmatpush1.bf16.msra.mxu0 %v3604
  %5122 = vmatprep.subr.bf16.mxu0 %v3601
  %5123 = vmatpush1.bf16.msra.mxu0 %v3600
  %5124 = vmatprep.subr.bf16.mxu0 %v3661
  %5125 = vmatpush2.bf16.msra.mxu0 %v3660
  %5126 = vmatprep.subr.bf16.mxu0 %v3657
  %5127 = vmatpush2.bf16.msra.mxu0 %v3656
  %5128 = vmatprep.subr.bf16.mxu0 %v3653
  %5129 = vmatpush2.bf16.msra.mxu0 %v3652
  %5130 = vmatprep.subr.bf16.mxu0 %v3649
  %5131 = vmatpush2.bf16.msra.mxu0 %v3648
  %5132 = vmatprep.subr.bf16.mxu0 %v3645
  %5133 = vmatpush2.bf16.msra.mxu0 %v3644
  %5134 = vmatprep.subr.bf16.mxu0 %v3641
  %5135 = vmatpush2.bf16.msra.mxu0 %v3640
  %5136 = vmatprep.subr.bf16.mxu0 %v3637
  %5137 = vmatpush2.bf16.msra.mxu0 %v3636
  %5138 = vmatprep.subr.bf16.mxu0 %v3633
  %5139 = vmatpush2.bf16.msra.mxu0 %v3632
  %5140 = vmatprep.mubr.bf16.mxu0 %v903
  %5141 = vmatmul.mubr.bf16.gmra.mxu0 %v902
  %v5142 = vpop.f32.mrf.mxu0
  %v5143 = vadd.f32 %v5102, %v5142
  %v5144 = vpop.f32.mrf.mxu0
  %v5145 = vadd.f32 %v5104, %v5144
  %v5146 = vpop.f32.mrf.mxu0
  %v5147 = vpop.f32.mrf.mxu0
  %5148 = vdwg.mxu0
  %5149 = vmatprep.subr.bf16.mxu0 %v3693
  %5150 = vmatpush1.bf16.msra.mxu0 %v3692
  %5151 = vmatprep.subr.bf16.mxu0 %v3689
  %5152 = vmatpush1.bf16.msra.mxu0 %v3688
  %5153 = vmatprep.subr.bf16.mxu0 %v3685
  %5154 = vmatpush1.bf16.msra.mxu0 %v3684
  %5155 = vmatprep.subr.bf16.mxu0 %v3681
  %5156 = vmatpush1.bf16.msra.mxu0 %v3680
  %5157 = vmatprep.subr.bf16.mxu0 %v3677
  %5158 = vmatpush1.bf16.msra.mxu0 %v3676
  %5159 = vmatprep.subr.bf16.mxu0 %v3673
  %5160 = vmatpush1.bf16.msra.mxu0 %v3672
  %5161 = vmatprep.subr.bf16.mxu0 %v3669
  %5162 = vmatpush1.bf16.msra.mxu0 %v3668
  %5163 = vmatprep.subr.bf16.mxu0 %v3665
  %5164 = vmatpush1.bf16.msra.mxu0 %v3664
  %5165 = vmatprep.subr.bf16.mxu0 %v3725
  %5166 = vmatpush2.bf16.msra.mxu0 %v3724
  %5167 = vmatprep.subr.bf16.mxu0 %v3721
  %5168 = vmatpush2.bf16.msra.mxu0 %v3720
  %5169 = vmatprep.subr.bf16.mxu0 %v3717
  %5170 = vmatpush2.bf16.msra.mxu0 %v3716
  %5171 = vmatprep.subr.bf16.mxu0 %v3713
  %5172 = vmatpush2.bf16.msra.mxu0 %v3712
  %5173 = vmatprep.subr.bf16.mxu0 %v3709
  %5174 = vmatpush2.bf16.msra.mxu0 %v3708
  %5175 = vmatprep.subr.bf16.mxu0 %v3705
  %5176 = vmatpush2.bf16.msra.mxu0 %v3704
  %5177 = vmatprep.subr.bf16.mxu0 %v3701
  %5178 = vmatpush2.bf16.msra.mxu0 %v3700
  %5179 = vmatprep.subr.bf16.mxu0 %v3697
  %5180 = vmatpush2.bf16.msra.mxu0 %v3696
  %5181 = vmatprep.mubr.bf16.mxu0 %v905
  %5182 = vmatmul.mubr.bf16.gmra.mxu0 %v904
  %v5183 = vpop.f32.mrf.mxu0
  %v5184 = vadd.f32 %v5143, %v5183
  %v5185 = vpop.f32.mrf.mxu0
  %v5186 = vadd.f32 %v5145, %v5185
  %v5187 = vpop.f32.mrf.mxu0
  %v5188 = vpop.f32.mrf.mxu0
  %5189 = vdwg.mxu0
  %5190 = vmatprep.subr.bf16.mxu0 %v3757
  %5191 = vmatpush1.bf16.msra.mxu0 %v3756
  %5192 = vmatprep.subr.bf16.mxu0 %v3753
  %5193 = vmatpush1.bf16.msra.mxu0 %v3752
  %5194 = vmatprep.subr.bf16.mxu0 %v3749
  %5195 = vmatpush1.bf16.msra.mxu0 %v3748
  %5196 = vmatprep.subr.bf16.mxu0 %v3745
  %5197 = vmatpush1.bf16.msra.mxu0 %v3744
  %5198 = vmatprep.subr.bf16.mxu0 %v3741
  %5199 = vmatpush1.bf16.msra.mxu0 %v3740
  %5200 = vmatprep.subr.bf16.mxu0 %v3737
  %5201 = vmatpush1.bf16.msra.mxu0 %v3736
  %5202 = vmatprep.subr.bf16.mxu0 %v3733
  %5203 = vmatpush1.bf16.msra.mxu0 %v3732
  %5204 = vmatprep.subr.bf16.mxu0 %v3729
  %5205 = vmatpush1.bf16.msra.mxu0 %v3728
  %5206 = vmatprep.subr.bf16.mxu0 %v3789
  %5207 = vmatpush2.bf16.msra.mxu0 %v3788
  %5208 = vmatprep.subr.bf16.mxu0 %v3785
  %5209 = vmatpush2.bf16.msra.mxu0 %v3784
  %5210 = vmatprep.subr.bf16.mxu0 %v3781
  %5211 = vmatpush2.bf16.msra.mxu0 %v3780
  %5212 = vmatprep.subr.bf16.mxu0 %v3777
  %5213 = vmatpush2.bf16.msra.mxu0 %v3776
  %5214 = vmatprep.subr.bf16.mxu0 %v3773
  %5215 = vmatpush2.bf16.msra.mxu0 %v3772
  %5216 = vmatprep.subr.bf16.mxu0 %v3769
  %5217 = vmatpush2.bf16.msra.mxu0 %v3768
  %5218 = vmatprep.subr.bf16.mxu0 %v3765
  %5219 = vmatpush2.bf16.msra.mxu0 %v3764
  %5220 = vmatprep.subr.bf16.mxu0 %v3761
  %5221 = vmatpush2.bf16.msra.mxu0 %v3760
  %5222 = vmatprep.mubr.bf16.mxu0 %v907
  %5223 = vmatmul.mubr.bf16.gmra.mxu0 %v906
  %v5224 = vpop.f32.mrf.mxu0
  %v5225 = vadd.f32 %v5184, %v5224
  %v5226 = vpop.f32.mrf.mxu0
  %v5227 = vadd.f32 %v5186, %v5226
  %v5228 = vpop.f32.mrf.mxu0
  %v5229 = vpop.f32.mrf.mxu0
  %5230 = vdwg.mxu0
  %5231 = vmatprep.subr.bf16.mxu0 %v3821
  %5232 = vmatpush1.bf16.msra.mxu0 %v3820
  %5233 = vmatprep.subr.bf16.mxu0 %v3817
  %5234 = vmatpush1.bf16.msra.mxu0 %v3816
  %5235 = vmatprep.subr.bf16.mxu0 %v3813
  %5236 = vmatpush1.bf16.msra.mxu0 %v3812
  %5237 = vmatprep.subr.bf16.mxu0 %v3809
  %5238 = vmatpush1.bf16.msra.mxu0 %v3808
  %5239 = vmatprep.subr.bf16.mxu0 %v3805
  %5240 = vmatpush1.bf16.msra.mxu0 %v3804
  %5241 = vmatprep.subr.bf16.mxu0 %v3801
  %5242 = vmatpush1.bf16.msra.mxu0 %v3800
  %5243 = vmatprep.subr.bf16.mxu0 %v3797
  %5244 = vmatpush1.bf16.msra.mxu0 %v3796
  %5245 = vmatprep.subr.bf16.mxu0 %v3793
  %5246 = vmatpush1.bf16.msra.mxu0 %v3792
  %5247 = vmatprep.subr.bf16.mxu0 %v3853
  %5248 = vmatpush2.bf16.msra.mxu0 %v3852
  %5249 = vmatprep.subr.bf16.mxu0 %v3849
  %5250 = vmatpush2.bf16.msra.mxu0 %v3848
  %5251 = vmatprep.subr.bf16.mxu0 %v3845
  %5252 = vmatpush2.bf16.msra.mxu0 %v3844
  %5253 = vmatprep.subr.bf16.mxu0 %v3841
  %5254 = vmatpush2.bf16.msra.mxu0 %v3840
  %5255 = vmatprep.subr.bf16.mxu0 %v3837
  %5256 = vmatpush2.bf16.msra.mxu0 %v3836
  %5257 = vmatprep.subr.bf16.mxu0 %v3833
  %5258 = vmatpush2.bf16.msra.mxu0 %v3832
  %5259 = vmatprep.subr.bf16.mxu0 %v3829
  %5260 = vmatpush2.bf16.msra.mxu0 %v3828
  %5261 = vmatprep.subr.bf16.mxu0 %v3825
  %5262 = vmatpush2.bf16.msra.mxu0 %v3824
  %5263 = vmatprep.mubr.bf16.mxu0 %v909
  %5264 = vmatmul.mubr.bf16.gmra.mxu0 %v908
  %v5265 = vpop.f32.mrf.mxu0
  %v5266 = vadd.f32 %v5225, %v5265
  %v5267 = vpop.f32.mrf.mxu0
  %v5268 = vadd.f32 %v5227, %v5267
  %v5269 = vpop.f32.mrf.mxu0
  %v5270 = vpop.f32.mrf.mxu0
  %5271 = vdwg.mxu0
  %5272 = vmatprep.subr.bf16.mxu0 %v3885
  %5273 = vmatpush1.bf16.msra.mxu0 %v3884
  %5274 = vmatprep.subr.bf16.mxu0 %v3881
  %5275 = vmatpush1.bf16.msra.mxu0 %v3880
  %5276 = vmatprep.subr.bf16.mxu0 %v3877
  %5277 = vmatpush1.bf16.msra.mxu0 %v3876
  %5278 = vmatprep.subr.bf16.mxu0 %v3873
  %5279 = vmatpush1.bf16.msra.mxu0 %v3872
  %5280 = vmatprep.subr.bf16.mxu0 %v3869
  %5281 = vmatpush1.bf16.msra.mxu0 %v3868
  %5282 = vmatprep.subr.bf16.mxu0 %v3865
  %5283 = vmatpush1.bf16.msra.mxu0 %v3864
  %5284 = vmatprep.subr.bf16.mxu0 %v3861
  %5285 = vmatpush1.bf16.msra.mxu0 %v3860
  %5286 = vmatprep.subr.bf16.mxu0 %v3857
  %5287 = vmatpush1.bf16.msra.mxu0 %v3856
  %5288 = vmatprep.subr.bf16.mxu0 %v3917
  %5289 = vmatpush2.bf16.msra.mxu0 %v3916
  %5290 = vmatprep.subr.bf16.mxu0 %v3913
  %5291 = vmatpush2.bf16.msra.mxu0 %v3912
  %5292 = vmatprep.subr.bf16.mxu0 %v3909
  %5293 = vmatpush2.bf16.msra.mxu0 %v3908
  %5294 = vmatprep.subr.bf16.mxu0 %v3905
  %5295 = vmatpush2.bf16.msra.mxu0 %v3904
  %5296 = vmatprep.subr.bf16.mxu0 %v3901
  %5297 = vmatpush2.bf16.msra.mxu0 %v3900
  %5298 = vmatprep.subr.bf16.mxu0 %v3897
  %5299 = vmatpush2.bf16.msra.mxu0 %v3896
  %5300 = vmatprep.subr.bf16.mxu0 %v3893
  %5301 = vmatpush2.bf16.msra.mxu0 %v3892
  %5302 = vmatprep.subr.bf16.mxu0 %v3889
  %5303 = vmatpush2.bf16.msra.mxu0 %v3888
  %5304 = vmatprep.mubr.bf16.mxu0 %v911
  %5305 = vmatmul.mubr.bf16.gmra.mxu0 %v910
  %v5306 = vpop.f32.mrf.mxu0
  %v5307 = vadd.f32 %v5266, %v5306
  %v5308 = vpop.f32.mrf.mxu0
  %v5309 = vadd.f32 %v5268, %v5308
  %v5310 = vpop.f32.mrf.mxu0
  %v5311 = vpop.f32.mrf.mxu0
  %5312 = vdwg.mxu0
  %5313 = vmatprep.subr.bf16.mxu0 %v3949
  %5314 = vmatpush1.bf16.msra.mxu0 %v3948
  %5315 = vmatprep.subr.bf16.mxu0 %v3945
  %5316 = vmatpush1.bf16.msra.mxu0 %v3944
  %5317 = vmatprep.subr.bf16.mxu0 %v3941
  %5318 = vmatpush1.bf16.msra.mxu0 %v3940
  %5319 = vmatprep.subr.bf16.mxu0 %v3937
  %5320 = vmatpush1.bf16.msra.mxu0 %v3936
  %5321 = vmatprep.subr.bf16.mxu0 %v3933
  %5322 = vmatpush1.bf16.msra.mxu0 %v3932
  %5323 = vmatprep.subr.bf16.mxu0 %v3929
  %5324 = vmatpush1.bf16.msra.mxu0 %v3928
  %5325 = vmatprep.subr.bf16.mxu0 %v3925
  %5326 = vmatpush1.bf16.msra.mxu0 %v3924
  %5327 = vmatprep.subr.bf16.mxu0 %v3921
  %5328 = vmatpush1.bf16.msra.mxu0 %v3920
  %5329 = vmatprep.subr.bf16.mxu0 %v3981
  %5330 = vmatpush2.bf16.msra.mxu0 %v3980
  %5331 = vmatprep.subr.bf16.mxu0 %v3977
  %5332 = vmatpush2.bf16.msra.mxu0 %v3976
  %5333 = vmatprep.subr.bf16.mxu0 %v3973
  %5334 = vmatpush2.bf16.msra.mxu0 %v3972
  %5335 = vmatprep.subr.bf16.mxu0 %v3969
  %5336 = vmatpush2.bf16.msra.mxu0 %v3968
  %5337 = vmatprep.subr.bf16.mxu0 %v3965
  %5338 = vmatpush2.bf16.msra.mxu0 %v3964
  %5339 = vmatprep.subr.bf16.mxu0 %v3961
  %5340 = vmatpush2.bf16.msra.mxu0 %v3960
  %5341 = vmatprep.subr.bf16.mxu0 %v3957
  %5342 = vmatpush2.bf16.msra.mxu0 %v3956
  %5343 = vmatprep.subr.bf16.mxu0 %v3953
  %5344 = vmatpush2.bf16.msra.mxu0 %v3952
  %5345 = vmatprep.mubr.bf16.mxu0 %v913
  %5346 = vmatmul.mubr.bf16.gmra.mxu0 %v912
  %v5347 = vpop.f32.mrf.mxu0
  %v5348 = vadd.f32 %v5307, %v5347
  %v5349 = vpop.f32.mrf.mxu0
  %v5350 = vadd.f32 %v5309, %v5349
  %v5351 = vpop.f32.mrf.mxu0
  %v5352 = vpop.f32.mrf.mxu0
  %5353 = vdwg.mxu0
  %5354 = vmatprep.subr.bf16.mxu0 %v4013
  %5355 = vmatpush1.bf16.msra.mxu0 %v4012
  %5356 = vmatprep.subr.bf16.mxu0 %v4009
  %5357 = vmatpush1.bf16.msra.mxu0 %v4008
  %5358 = vmatprep.subr.bf16.mxu0 %v4005
  %5359 = vmatpush1.bf16.msra.mxu0 %v4004
  %5360 = vmatprep.subr.bf16.mxu0 %v4001
  %5361 = vmatpush1.bf16.msra.mxu0 %v4000
  %5362 = vmatprep.subr.bf16.mxu0 %v3997
  %5363 = vmatpush1.bf16.msra.mxu0 %v3996
  %5364 = vmatprep.subr.bf16.mxu0 %v3993
  %5365 = vmatpush1.bf16.msra.mxu0 %v3992
  %5366 = vmatprep.subr.bf16.mxu0 %v3989
  %5367 = vmatpush1.bf16.msra.mxu0 %v3988
  %5368 = vmatprep.subr.bf16.mxu0 %v3985
  %5369 = vmatpush1.bf16.msra.mxu0 %v3984
  %5370 = vmatprep.subr.bf16.mxu0 %v4045
  %5371 = vmatpush2.bf16.msra.mxu0 %v4044
  %5372 = vmatprep.subr.bf16.mxu0 %v4041
  %5373 = vmatpush2.bf16.msra.mxu0 %v4040
  %5374 = vmatprep.subr.bf16.mxu0 %v4037
  %5375 = vmatpush2.bf16.msra.mxu0 %v4036
  %5376 = vmatprep.subr.bf16.mxu0 %v4033
  %5377 = vmatpush2.bf16.msra.mxu0 %v4032
  %5378 = vmatprep.subr.bf16.mxu0 %v4029
  %5379 = vmatpush2.bf16.msra.mxu0 %v4028
  %5380 = vmatprep.subr.bf16.mxu0 %v4025
  %5381 = vmatpush2.bf16.msra.mxu0 %v4024
  %5382 = vmatprep.subr.bf16.mxu0 %v4021
  %5383 = vmatpush2.bf16.msra.mxu0 %v4020
  %5384 = vmatprep.subr.bf16.mxu0 %v4017
  %5385 = vmatpush2.bf16.msra.mxu0 %v4016
  %5386 = vmatprep.mubr.bf16.mxu0 %v915
  %5387 = vmatmul.mubr.bf16.gmra.mxu0 %v914
  %v5388 = vpop.f32.mrf.mxu0
  %v5389 = vadd.f32 %v5348, %v5388
  %v5390 = vpop.f32.mrf.mxu0
  %v5391 = vadd.f32 %v5350, %v5390
  %v5392 = vpop.f32.mrf.mxu0
  %v5393 = vpop.f32.mrf.mxu0
  %5394 = vdwg.mxu0
  %5395 = vmatprep.subr.bf16.mxu0 %v4077
  %5396 = vmatpush1.bf16.msra.mxu0 %v4076
  %5397 = vmatprep.subr.bf16.mxu0 %v4073
  %5398 = vmatpush1.bf16.msra.mxu0 %v4072
  %5399 = vmatprep.subr.bf16.mxu0 %v4069
  %5400 = vmatpush1.bf16.msra.mxu0 %v4068
  %5401 = vmatprep.subr.bf16.mxu0 %v4065
  %5402 = vmatpush1.bf16.msra.mxu0 %v4064
  %5403 = vmatprep.subr.bf16.mxu0 %v4061
  %5404 = vmatpush1.bf16.msra.mxu0 %v4060
  %5405 = vmatprep.subr.bf16.mxu0 %v4057
  %5406 = vmatpush1.bf16.msra.mxu0 %v4056
  %5407 = vmatprep.subr.bf16.mxu0 %v4053
  %5408 = vmatpush1.bf16.msra.mxu0 %v4052
  %5409 = vmatprep.subr.bf16.mxu0 %v4049
  %5410 = vmatpush1.bf16.msra.mxu0 %v4048
  %5411 = vmatprep.subr.bf16.mxu0 %v4109
  %5412 = vmatpush2.bf16.msra.mxu0 %v4108
  %5413 = vmatprep.subr.bf16.mxu0 %v4105
  %5414 = vmatpush2.bf16.msra.mxu0 %v4104
  %5415 = vmatprep.subr.bf16.mxu0 %v4101
  %5416 = vmatpush2.bf16.msra.mxu0 %v4100
  %5417 = vmatprep.subr.bf16.mxu0 %v4097
  %5418 = vmatpush2.bf16.msra.mxu0 %v4096
  %5419 = vmatprep.subr.bf16.mxu0 %v4093
  %5420 = vmatpush2.bf16.msra.mxu0 %v4092
  %5421 = vmatprep.subr.bf16.mxu0 %v4089
  %5422 = vmatpush2.bf16.msra.mxu0 %v4088
  %5423 = vmatprep.subr.bf16.mxu0 %v4085
  %5424 = vmatpush2.bf16.msra.mxu0 %v4084
  %5425 = vmatprep.subr.bf16.mxu0 %v4081
  %5426 = vmatpush2.bf16.msra.mxu0 %v4080
  %5427 = vmatprep.mubr.bf16.mxu0 %v917
  %5428 = vmatmul.mubr.bf16.gmra.mxu0 %v916
  %v5429 = vpop.f32.mrf.mxu0
  %v5430 = vadd.f32 %v5389, %v5429
  %v5431 = vpop.f32.mrf.mxu0
  %v5432 = vadd.f32 %v5391, %v5431
  %v5433 = vpop.f32.mrf.mxu0
  %v5434 = vpop.f32.mrf.mxu0
  %5435 = vdwg.mxu0
  %5436 = vmatprep.subr.bf16.mxu0 %v4141
  %5437 = vmatpush1.bf16.msra.mxu0 %v4140
  %5438 = vmatprep.subr.bf16.mxu0 %v4137
  %5439 = vmatpush1.bf16.msra.mxu0 %v4136
  %5440 = vmatprep.subr.bf16.mxu0 %v4133
  %5441 = vmatpush1.bf16.msra.mxu0 %v4132
  %5442 = vmatprep.subr.bf16.mxu0 %v4129
  %5443 = vmatpush1.bf16.msra.mxu0 %v4128
  %5444 = vmatprep.subr.bf16.mxu0 %v4125
  %5445 = vmatpush1.bf16.msra.mxu0 %v4124
  %5446 = vmatprep.subr.bf16.mxu0 %v4121
  %5447 = vmatpush1.bf16.msra.mxu0 %v4120
  %5448 = vmatprep.subr.bf16.mxu0 %v4117
  %5449 = vmatpush1.bf16.msra.mxu0 %v4116
  %5450 = vmatprep.subr.bf16.mxu0 %v4113
  %5451 = vmatpush1.bf16.msra.mxu0 %v4112
  %5452 = vmatprep.subr.bf16.mxu0 0
  %5453 = vmatpush2.bf16.msra.mxu0 0
  %5454 = vmatprep.subr.bf16.mxu0 0
  %5455 = vmatpush2.bf16.msra.mxu0 0
  %5456 = vmatprep.subr.bf16.mxu0 0
  %5457 = vmatpush2.bf16.msra.mxu0 0
  %5458 = vmatprep.subr.bf16.mxu0 0
  %5459 = vmatpush2.bf16.msra.mxu0 0
  %5460 = vmatprep.subr.bf16.mxu0 0
  %5461 = vmatpush2.bf16.msra.mxu0 0
  %5462 = vmatprep.subr.bf16.mxu0 0
  %5463 = vmatpush2.bf16.msra.mxu0 0
  %5464 = vmatprep.subr.bf16.mxu0 0
  %5465 = vmatpush2.bf16.msra.mxu0 0
  %5466 = vmatprep.subr.bf16.mxu0 0
  %5467 = vmatpush2.bf16.msra.mxu0 0
  %5468 = vmatprep.mubr.bf16.mxu0 0
  %5469 = vmatmul.mubr.bf16.gmra.mxu0 %v918
  %v5470 = vpop.f32.mrf.mxu0
  %v5471 = vadd.f32 %v5430, %v5470
  %v5472 = vpop.f32.mrf.mxu0
  %v5473 = vadd.f32 %v5432, %v5472
  %v5474 = vpop.f32.mrf.mxu0
  %v5475 = vpop.f32.mrf.mxu0
  %5476 = vdwg.mxu0
  %5477 = vmatprep.subr.bf16.mxu0 %v3375
  %5478 = vmatpush1.bf16.msra.mxu0 %v3374
  %5479 = vmatprep.subr.bf16.mxu0 %v3371
  %5480 = vmatpush1.bf16.msra.mxu0 %v3370
  %5481 = vmatprep.subr.bf16.mxu0 %v3367
  %5482 = vmatpush1.bf16.msra.mxu0 %v3366
  %5483 = vmatprep.subr.bf16.mxu0 %v3363
  %5484 = vmatpush1.bf16.msra.mxu0 %v3362
  %5485 = vmatprep.subr.bf16.mxu0 %v3359
  %5486 = vmatpush1.bf16.msra.mxu0 %v3358
  %5487 = vmatprep.subr.bf16.mxu0 %v3355
  %5488 = vmatpush1.bf16.msra.mxu0 %v3354
  %5489 = vmatprep.subr.bf16.mxu0 %v3351
  %5490 = vmatpush1.bf16.msra.mxu0 %v3350
  %5491 = vmatprep.subr.bf16.mxu0 %v3347
  %5492 = vmatpush1.bf16.msra.mxu0 %v3346
  %5493 = vmatprep.subr.bf16.mxu0 %v3407
  %5494 = vmatpush2.bf16.msra.mxu0 %v3406
  %5495 = vmatprep.subr.bf16.mxu0 %v3403
  %5496 = vmatpush2.bf16.msra.mxu0 %v3402
  %5497 = vmatprep.subr.bf16.mxu0 %v3399
  %5498 = vmatpush2.bf16.msra.mxu0 %v3398
  %5499 = vmatprep.subr.bf16.mxu0 %v3395
  %5500 = vmatpush2.bf16.msra.mxu0 %v3394
  %5501 = vmatprep.subr.bf16.mxu0 %v3391
  %5502 = vmatpush2.bf16.msra.mxu0 %v3390
  %5503 = vmatprep.subr.bf16.mxu0 %v3387
  %5504 = vmatpush2.bf16.msra.mxu0 %v3386
  %5505 = vmatprep.subr.bf16.mxu0 %v3383
  %5506 = vmatpush2.bf16.msra.mxu0 %v3382
  %5507 = vmatprep.subr.bf16.mxu0 %v3379
  %5508 = vmatpush2.bf16.msra.mxu0 %v3378
  %5509 = vmatprep.mubr.bf16.mxu0 %v895
  %5510 = vmatmul.mubr.bf16.gmra.mxu0 %v894
  %v5511 = vpop.f32.mrf.mxu0
  %v5512 = vadd.f32 %v847, %v5511
  %v5513 = vpop.f32.mrf.mxu0
  %v5514 = vadd.f32 %v851, %v5513
  %v5515 = vpop.f32.mrf.mxu0
  %v5516 = vpop.f32.mrf.mxu0
  %5517 = vdwg.mxu0
  %5518 = vmatprep.subr.bf16.mxu0 %v3439
  %5519 = vmatpush1.bf16.msra.mxu0 %v3438
  %5520 = vmatprep.subr.bf16.mxu0 %v3435
  %5521 = vmatpush1.bf16.msra.mxu0 %v3434
  %5522 = vmatprep.subr.bf16.mxu0 %v3431
  %5523 = vmatpush1.bf16.msra.mxu0 %v3430
  %5524 = vmatprep.subr.bf16.mxu0 %v3427
  %5525 = vmatpush1.bf16.msra.mxu0 %v3426
  %5526 = vmatprep.subr.bf16.mxu0 %v3423
  %5527 = vmatpush1.bf16.msra.mxu0 %v3422
  %5528 = vmatprep.subr.bf16.mxu0 %v3419
  %5529 = vmatpush1.bf16.msra.mxu0 %v3418
  %5530 = vmatprep.subr.bf16.mxu0 %v3415
  %5531 = vmatpush1.bf16.msra.mxu0 %v3414
  %5532 = vmatprep.subr.bf16.mxu0 %v3411
  %5533 = vmatpush1.bf16.msra.mxu0 %v3410
  %5534 = vmatprep.subr.bf16.mxu0 %v3471
  %5535 = vmatpush2.bf16.msra.mxu0 %v3470
  %5536 = vmatprep.subr.bf16.mxu0 %v3467
  %5537 = vmatpush2.bf16.msra.mxu0 %v3466
  %5538 = vmatprep.subr.bf16.mxu0 %v3463
  %5539 = vmatpush2.bf16.msra.mxu0 %v3462
  %5540 = vmatprep.subr.bf16.mxu0 %v3459
  %5541 = vmatpush2.bf16.msra.mxu0 %v3458
  %5542 = vmatprep.subr.bf16.mxu0 %v3455
  %5543 = vmatpush2.bf16.msra.mxu0 %v3454
  %5544 = vmatprep.subr.bf16.mxu0 %v3451
  %5545 = vmatpush2.bf16.msra.mxu0 %v3450
  %5546 = vmatprep.subr.bf16.mxu0 %v3447
  %5547 = vmatpush2.bf16.msra.mxu0 %v3446
  %5548 = vmatprep.subr.bf16.mxu0 %v3443
  %5549 = vmatpush2.bf16.msra.mxu0 %v3442
  %5550 = vmatprep.mubr.bf16.mxu0 %v897
  %5551 = vmatmul.mubr.bf16.gmra.mxu0 %v896
  %v5552 = vpop.f32.mrf.mxu0
  %v5553 = vadd.f32 %v5512, %v5552
  %v5554 = vpop.f32.mrf.mxu0
  %v5555 = vadd.f32 %v5514, %v5554
  %v5556 = vpop.f32.mrf.mxu0
  %v5557 = vpop.f32.mrf.mxu0
  %5558 = vdwg.mxu0
  %5559 = vmatprep.subr.bf16.mxu0 %v3503
  %5560 = vmatpush1.bf16.msra.mxu0 %v3502
  %5561 = vmatprep.subr.bf16.mxu0 %v3499
  %5562 = vmatpush1.bf16.msra.mxu0 %v3498
  %5563 = vmatprep.subr.bf16.mxu0 %v3495
  %5564 = vmatpush1.bf16.msra.mxu0 %v3494
  %5565 = vmatprep.subr.bf16.mxu0 %v3491
  %5566 = vmatpush1.bf16.msra.mxu0 %v3490
  %5567 = vmatprep.subr.bf16.mxu0 %v3487
  %5568 = vmatpush1.bf16.msra.mxu0 %v3486
  %5569 = vmatprep.subr.bf16.mxu0 %v3483
  %5570 = vmatpush1.bf16.msra.mxu0 %v3482
  %5571 = vmatprep.subr.bf16.mxu0 %v3479
  %5572 = vmatpush1.bf16.msra.mxu0 %v3478
  %5573 = vmatprep.subr.bf16.mxu0 %v3475
  %5574 = vmatpush1.bf16.msra.mxu0 %v3474
  %5575 = vmatprep.subr.bf16.mxu0 %v3535
  %5576 = vmatpush2.bf16.msra.mxu0 %v3534
  %5577 = vmatprep.subr.bf16.mxu0 %v3531
  %5578 = vmatpush2.bf16.msra.mxu0 %v3530
  %5579 = vmatprep.subr.bf16.mxu0 %v3527
  %5580 = vmatpush2.bf16.msra.mxu0 %v3526
  %5581 = vmatprep.subr.bf16.mxu0 %v3523
  %5582 = vmatpush2.bf16.msra.mxu0 %v3522
  %5583 = vmatprep.subr.bf16.mxu0 %v3519
  %5584 = vmatpush2.bf16.msra.mxu0 %v3518
  %5585 = vmatprep.subr.bf16.mxu0 %v3515
  %5586 = vmatpush2.bf16.msra.mxu0 %v3514
  %5587 = vmatprep.subr.bf16.mxu0 %v3511
  %5588 = vmatpush2.bf16.msra.mxu0 %v3510
  %5589 = vmatprep.subr.bf16.mxu0 %v3507
  %5590 = vmatpush2.bf16.msra.mxu0 %v3506
  %5591 = vmatprep.mubr.bf16.mxu0 %v899
  %5592 = vmatmul.mubr.bf16.gmra.mxu0 %v898
  %v5593 = vpop.f32.mrf.mxu0
  %v5594 = vadd.f32 %v5553, %v5593
  %v5595 = vpop.f32.mrf.mxu0
  %v5596 = vadd.f32 %v5555, %v5595
  %v5597 = vpop.f32.mrf.mxu0
  %v5598 = vpop.f32.mrf.mxu0
  %5599 = vdwg.mxu0
  %5600 = vmatprep.subr.bf16.mxu0 %v3567
  %5601 = vmatpush1.bf16.msra.mxu0 %v3566
  %5602 = vmatprep.subr.bf16.mxu0 %v3563
  %5603 = vmatpush1.bf16.msra.mxu0 %v3562
  %5604 = vmatprep.subr.bf16.mxu0 %v3559
  %5605 = vmatpush1.bf16.msra.mxu0 %v3558
  %5606 = vmatprep.subr.bf16.mxu0 %v3555
  %5607 = vmatpush1.bf16.msra.mxu0 %v3554
  %5608 = vmatprep.subr.bf16.mxu0 %v3551
  %5609 = vmatpush1.bf16.msra.mxu0 %v3550
  %5610 = vmatprep.subr.bf16.mxu0 %v3547
  %5611 = vmatpush1.bf16.msra.mxu0 %v3546
  %5612 = vmatprep.subr.bf16.mxu0 %v3543
  %5613 = vmatpush1.bf16.msra.mxu0 %v3542
  %5614 = vmatprep.subr.bf16.mxu0 %v3539
  %5615 = vmatpush1.bf16.msra.mxu0 %v3538
  %5616 = vmatprep.subr.bf16.mxu0 %v3599
  %5617 = vmatpush2.bf16.msra.mxu0 %v3598
  %5618 = vmatprep.subr.bf16.mxu0 %v3595
  %5619 = vmatpush2.bf16.msra.mxu0 %v3594
  %5620 = vmatprep.subr.bf16.mxu0 %v3591
  %5621 = vmatpush2.bf16.msra.mxu0 %v3590
  %5622 = vmatprep.subr.bf16.mxu0 %v3587
  %5623 = vmatpush2.bf16.msra.mxu0 %v3586
  %5624 = vmatprep.subr.bf16.mxu0 %v3583
  %5625 = vmatpush2.bf16.msra.mxu0 %v3582
  %5626 = vmatprep.subr.bf16.mxu0 %v3579
  %5627 = vmatpush2.bf16.msra.mxu0 %v3578
  %5628 = vmatprep.subr.bf16.mxu0 %v3575
  %5629 = vmatpush2.bf16.msra.mxu0 %v3574
  %5630 = vmatprep.subr.bf16.mxu0 %v3571
  %5631 = vmatpush2.bf16.msra.mxu0 %v3570
  %5632 = vmatprep.mubr.bf16.mxu0 %v901
  %5633 = vmatmul.mubr.bf16.gmra.mxu0 %v900
  %v5634 = vpop.f32.mrf.mxu0
  %v5635 = vadd.f32 %v5594, %v5634
  %v5636 = vpop.f32.mrf.mxu0
  %v5637 = vadd.f32 %v5596, %v5636
  %v5638 = vpop.f32.mrf.mxu0
  %v5639 = vpop.f32.mrf.mxu0
  %5640 = vdwg.mxu0
  %5641 = vmatprep.subr.bf16.mxu0 %v3631
  %5642 = vmatpush1.bf16.msra.mxu0 %v3630
  %5643 = vmatprep.subr.bf16.mxu0 %v3627
  %5644 = vmatpush1.bf16.msra.mxu0 %v3626
  %5645 = vmatprep.subr.bf16.mxu0 %v3623
  %5646 = vmatpush1.bf16.msra.mxu0 %v3622
  %5647 = vmatprep.subr.bf16.mxu0 %v3619
  %5648 = vmatpush1.bf16.msra.mxu0 %v3618
  %5649 = vmatprep.subr.bf16.mxu0 %v3615
  %5650 = vmatpush1.bf16.msra.mxu0 %v3614
  %5651 = vmatprep.subr.bf16.mxu0 %v3611
  %5652 = vmatpush1.bf16.msra.mxu0 %v3610
  %5653 = vmatprep.subr.bf16.mxu0 %v3607
  %5654 = vmatpush1.bf16.msra.mxu0 %v3606
  %5655 = vmatprep.subr.bf16.mxu0 %v3603
  %5656 = vmatpush1.bf16.msra.mxu0 %v3602
  %5657 = vmatprep.subr.bf16.mxu0 %v3663
  %5658 = vmatpush2.bf16.msra.mxu0 %v3662
  %5659 = vmatprep.subr.bf16.mxu0 %v3659
  %5660 = vmatpush2.bf16.msra.mxu0 %v3658
  %5661 = vmatprep.subr.bf16.mxu0 %v3655
  %5662 = vmatpush2.bf16.msra.mxu0 %v3654
  %5663 = vmatprep.subr.bf16.mxu0 %v3651
  %5664 = vmatpush2.bf16.msra.mxu0 %v3650
  %5665 = vmatprep.subr.bf16.mxu0 %v3647
  %5666 = vmatpush2.bf16.msra.mxu0 %v3646
  %5667 = vmatprep.subr.bf16.mxu0 %v3643
  %5668 = vmatpush2.bf16.msra.mxu0 %v3642
  %5669 = vmatprep.subr.bf16.mxu0 %v3639
  %5670 = vmatpush2.bf16.msra.mxu0 %v3638
  %5671 = vmatprep.subr.bf16.mxu0 %v3635
  %5672 = vmatpush2.bf16.msra.mxu0 %v3634
  %5673 = vmatprep.mubr.bf16.mxu0 %v903
  %5674 = vmatmul.mubr.bf16.gmra.mxu0 %v902
  %v5675 = vpop.f32.mrf.mxu0
  %v5676 = vadd.f32 %v5635, %v5675
  %v5677 = vpop.f32.mrf.mxu0
  %v5678 = vadd.f32 %v5637, %v5677
  %v5679 = vpop.f32.mrf.mxu0
  %v5680 = vpop.f32.mrf.mxu0
  %5681 = vdwg.mxu0
  %5682 = vmatprep.subr.bf16.mxu0 %v3695
  %5683 = vmatpush1.bf16.msra.mxu0 %v3694
  %5684 = vmatprep.subr.bf16.mxu0 %v3691
  %5685 = vmatpush1.bf16.msra.mxu0 %v3690
  %5686 = vmatprep.subr.bf16.mxu0 %v3687
  %5687 = vmatpush1.bf16.msra.mxu0 %v3686
  %5688 = vmatprep.subr.bf16.mxu0 %v3683
  %5689 = vmatpush1.bf16.msra.mxu0 %v3682
  %5690 = vmatprep.subr.bf16.mxu0 %v3679
  %5691 = vmatpush1.bf16.msra.mxu0 %v3678
  %5692 = vmatprep.subr.bf16.mxu0 %v3675
  %5693 = vmatpush1.bf16.msra.mxu0 %v3674
  %5694 = vmatprep.subr.bf16.mxu0 %v3671
  %5695 = vmatpush1.bf16.msra.mxu0 %v3670
  %5696 = vmatprep.subr.bf16.mxu0 %v3667
  %5697 = vmatpush1.bf16.msra.mxu0 %v3666
  %5698 = vmatprep.subr.bf16.mxu0 %v3727
  %5699 = vmatpush2.bf16.msra.mxu0 %v3726
  %5700 = vmatprep.subr.bf16.mxu0 %v3723
  %5701 = vmatpush2.bf16.msra.mxu0 %v3722
  %5702 = vmatprep.subr.bf16.mxu0 %v3719
  %5703 = vmatpush2.bf16.msra.mxu0 %v3718
  %5704 = vmatprep.subr.bf16.mxu0 %v3715
  %5705 = vmatpush2.bf16.msra.mxu0 %v3714
  %5706 = vmatprep.subr.bf16.mxu0 %v3711
  %5707 = vmatpush2.bf16.msra.mxu0 %v3710
  %5708 = vmatprep.subr.bf16.mxu0 %v3707
  %5709 = vmatpush2.bf16.msra.mxu0 %v3706
  %5710 = vmatprep.subr.bf16.mxu0 %v3703
  %5711 = vmatpush2.bf16.msra.mxu0 %v3702
  %5712 = vmatprep.subr.bf16.mxu0 %v3699
  %5713 = vmatpush2.bf16.msra.mxu0 %v3698
  %5714 = vmatprep.mubr.bf16.mxu0 %v905
  %5715 = vmatmul.mubr.bf16.gmra.mxu0 %v904
  %v5716 = vpop.f32.mrf.mxu0
  %v5717 = vadd.f32 %v5676, %v5716
  %v5718 = vpop.f32.mrf.mxu0
  %v5719 = vadd.f32 %v5678, %v5718
  %v5720 = vpop.f32.mrf.mxu0
  %v5721 = vpop.f32.mrf.mxu0
  %5722 = vdwg.mxu0
  %5723 = vmatprep.subr.bf16.mxu0 %v3759
  %5724 = vmatpush1.bf16.msra.mxu0 %v3758
  %5725 = vmatprep.subr.bf16.mxu0 %v3755
  %5726 = vmatpush1.bf16.msra.mxu0 %v3754
  %5727 = vmatprep.subr.bf16.mxu0 %v3751
  %5728 = vmatpush1.bf16.msra.mxu0 %v3750
  %5729 = vmatprep.subr.bf16.mxu0 %v3747
  %5730 = vmatpush1.bf16.msra.mxu0 %v3746
  %5731 = vmatprep.subr.bf16.mxu0 %v3743
  %5732 = vmatpush1.bf16.msra.mxu0 %v3742
  %5733 = vmatprep.subr.bf16.mxu0 %v3739
  %5734 = vmatpush1.bf16.msra.mxu0 %v3738
  %5735 = vmatprep.subr.bf16.mxu0 %v3735
  %5736 = vmatpush1.bf16.msra.mxu0 %v3734
  %5737 = vmatprep.subr.bf16.mxu0 %v3731
  %5738 = vmatpush1.bf16.msra.mxu0 %v3730
  %5739 = vmatprep.subr.bf16.mxu0 %v3791
  %5740 = vmatpush2.bf16.msra.mxu0 %v3790
  %5741 = vmatprep.subr.bf16.mxu0 %v3787
  %5742 = vmatpush2.bf16.msra.mxu0 %v3786
  %5743 = vmatprep.subr.bf16.mxu0 %v3783
  %5744 = vmatpush2.bf16.msra.mxu0 %v3782
  %5745 = vmatprep.subr.bf16.mxu0 %v3779
  %5746 = vmatpush2.bf16.msra.mxu0 %v3778
  %5747 = vmatprep.subr.bf16.mxu0 %v3775
  %5748 = vmatpush2.bf16.msra.mxu0 %v3774
  %5749 = vmatprep.subr.bf16.mxu0 %v3771
  %5750 = vmatpush2.bf16.msra.mxu0 %v3770
  %5751 = vmatprep.subr.bf16.mxu0 %v3767
  %5752 = vmatpush2.bf16.msra.mxu0 %v3766
  %5753 = vmatprep.subr.bf16.mxu0 %v3763
  %5754 = vmatpush2.bf16.msra.mxu0 %v3762
  %5755 = vmatprep.mubr.bf16.mxu0 %v907
  %5756 = vmatmul.mubr.bf16.gmra.mxu0 %v906
  %v5757 = vpop.f32.mrf.mxu0
  %v5758 = vadd.f32 %v5717, %v5757
  %v5759 = vpop.f32.mrf.mxu0
  %v5760 = vadd.f32 %v5719, %v5759
  %v5761 = vpop.f32.mrf.mxu0
  %v5762 = vpop.f32.mrf.mxu0
  %5763 = vdwg.mxu0
  %5764 = vmatprep.subr.bf16.mxu0 %v3823
  %5765 = vmatpush1.bf16.msra.mxu0 %v3822
  %5766 = vmatprep.subr.bf16.mxu0 %v3819
  %5767 = vmatpush1.bf16.msra.mxu0 %v3818
  %5768 = vmatprep.subr.bf16.mxu0 %v3815
  %5769 = vmatpush1.bf16.msra.mxu0 %v3814
  %5770 = vmatprep.subr.bf16.mxu0 %v3811
  %5771 = vmatpush1.bf16.msra.mxu0 %v3810
  %5772 = vmatprep.subr.bf16.mxu0 %v3807
  %5773 = vmatpush1.bf16.msra.mxu0 %v3806
  %5774 = vmatprep.subr.bf16.mxu0 %v3803
  %5775 = vmatpush1.bf16.msra.mxu0 %v3802
  %5776 = vmatprep.subr.bf16.mxu0 %v3799
  %5777 = vmatpush1.bf16.msra.mxu0 %v3798
  %5778 = vmatprep.subr.bf16.mxu0 %v3795
  %5779 = vmatpush1.bf16.msra.mxu0 %v3794
  %5780 = vmatprep.subr.bf16.mxu0 %v3855
  %5781 = vmatpush2.bf16.msra.mxu0 %v3854
  %5782 = vmatprep.subr.bf16.mxu0 %v3851
  %5783 = vmatpush2.bf16.msra.mxu0 %v3850
  %5784 = vmatprep.subr.bf16.mxu0 %v3847
  %5785 = vmatpush2.bf16.msra.mxu0 %v3846
  %5786 = vmatprep.subr.bf16.mxu0 %v3843
  %5787 = vmatpush2.bf16.msra.mxu0 %v3842
  %5788 = vmatprep.subr.bf16.mxu0 %v3839
  %5789 = vmatpush2.bf16.msra.mxu0 %v3838
  %5790 = vmatprep.subr.bf16.mxu0 %v3835
  %5791 = vmatpush2.bf16.msra.mxu0 %v3834
  %5792 = vmatprep.subr.bf16.mxu0 %v3831
  %5793 = vmatpush2.bf16.msra.mxu0 %v3830
  %5794 = vmatprep.subr.bf16.mxu0 %v3827
  %5795 = vmatpush2.bf16.msra.mxu0 %v3826
  %5796 = vmatprep.mubr.bf16.mxu0 %v909
  %5797 = vmatmul.mubr.bf16.gmra.mxu0 %v908
  %v5798 = vpop.f32.mrf.mxu0
  %v5799 = vadd.f32 %v5758, %v5798
  %v5800 = vpop.f32.mrf.mxu0
  %v5801 = vadd.f32 %v5760, %v5800
  %v5802 = vpop.f32.mrf.mxu0
  %v5803 = vpop.f32.mrf.mxu0
  %5804 = vdwg.mxu0
  %5805 = vmatprep.subr.bf16.mxu0 %v3887
  %5806 = vmatpush1.bf16.msra.mxu0 %v3886
  %5807 = vmatprep.subr.bf16.mxu0 %v3883
  %5808 = vmatpush1.bf16.msra.mxu0 %v3882
  %5809 = vmatprep.subr.bf16.mxu0 %v3879
  %5810 = vmatpush1.bf16.msra.mxu0 %v3878
  %5811 = vmatprep.subr.bf16.mxu0 %v3875
  %5812 = vmatpush1.bf16.msra.mxu0 %v3874
  %5813 = vmatprep.subr.bf16.mxu0 %v3871
  %5814 = vmatpush1.bf16.msra.mxu0 %v3870
  %5815 = vmatprep.subr.bf16.mxu0 %v3867
  %5816 = vmatpush1.bf16.msra.mxu0 %v3866
  %5817 = vmatprep.subr.bf16.mxu0 %v3863
  %5818 = vmatpush1.bf16.msra.mxu0 %v3862
  %5819 = vmatprep.subr.bf16.mxu0 %v3859
  %5820 = vmatpush1.bf16.msra.mxu0 %v3858
  %5821 = vmatprep.subr.bf16.mxu0 %v3919
  %5822 = vmatpush2.bf16.msra.mxu0 %v3918
  %5823 = vmatprep.subr.bf16.mxu0 %v3915
  %5824 = vmatpush2.bf16.msra.mxu0 %v3914
  %5825 = vmatprep.subr.bf16.mxu0 %v3911
  %5826 = vmatpush2.bf16.msra.mxu0 %v3910
  %5827 = vmatprep.subr.bf16.mxu0 %v3907
  %5828 = vmatpush2.bf16.msra.mxu0 %v3906
  %5829 = vmatprep.subr.bf16.mxu0 %v3903
  %5830 = vmatpush2.bf16.msra.mxu0 %v3902
  %5831 = vmatprep.subr.bf16.mxu0 %v3899
  %5832 = vmatpush2.bf16.msra.mxu0 %v3898
  %5833 = vmatprep.subr.bf16.mxu0 %v3895
  %5834 = vmatpush2.bf16.msra.mxu0 %v3894
  %5835 = vmatprep.subr.bf16.mxu0 %v3891
  %5836 = vmatpush2.bf16.msra.mxu0 %v3890
  %5837 = vmatprep.mubr.bf16.mxu0 %v911
  %5838 = vmatmul.mubr.bf16.gmra.mxu0 %v910
  %v5839 = vpop.f32.mrf.mxu0
  %v5840 = vadd.f32 %v5799, %v5839
  %v5841 = vpop.f32.mrf.mxu0
  %v5842 = vadd.f32 %v5801, %v5841
  %v5843 = vpop.f32.mrf.mxu0
  %v5844 = vpop.f32.mrf.mxu0
  %5845 = vdwg.mxu0
  %5846 = vmatprep.subr.bf16.mxu0 %v3951
  %5847 = vmatpush1.bf16.msra.mxu0 %v3950
  %5848 = vmatprep.subr.bf16.mxu0 %v3947
  %5849 = vmatpush1.bf16.msra.mxu0 %v3946
  %5850 = vmatprep.subr.bf16.mxu0 %v3943
  %5851 = vmatpush1.bf16.msra.mxu0 %v3942
  %5852 = vmatprep.subr.bf16.mxu0 %v3939
  %5853 = vmatpush1.bf16.msra.mxu0 %v3938
  %5854 = vmatprep.subr.bf16.mxu0 %v3935
  %5855 = vmatpush1.bf16.msra.mxu0 %v3934
  %5856 = vmatprep.subr.bf16.mxu0 %v3931
  %5857 = vmatpush1.bf16.msra.mxu0 %v3930
  %5858 = vmatprep.subr.bf16.mxu0 %v3927
  %5859 = vmatpush1.bf16.msra.mxu0 %v3926
  %5860 = vmatprep.subr.bf16.mxu0 %v3923
  %5861 = vmatpush1.bf16.msra.mxu0 %v3922
  %5862 = vmatprep.subr.bf16.mxu0 %v3983
  %5863 = vmatpush2.bf16.msra.mxu0 %v3982
  %5864 = vmatprep.subr.bf16.mxu0 %v3979
  %5865 = vmatpush2.bf16.msra.mxu0 %v3978
  %5866 = vmatprep.subr.bf16.mxu0 %v3975
  %5867 = vmatpush2.bf16.msra.mxu0 %v3974
  %5868 = vmatprep.subr.bf16.mxu0 %v3971
  %5869 = vmatpush2.bf16.msra.mxu0 %v3970
  %5870 = vmatprep.subr.bf16.mxu0 %v3967
  %5871 = vmatpush2.bf16.msra.mxu0 %v3966
  %5872 = vmatprep.subr.bf16.mxu0 %v3963
  %5873 = vmatpush2.bf16.msra.mxu0 %v3962
  %5874 = vmatprep.subr.bf16.mxu0 %v3959
  %5875 = vmatpush2.bf16.msra.mxu0 %v3958
  %5876 = vmatprep.subr.bf16.mxu0 %v3955
  %5877 = vmatpush2.bf16.msra.mxu0 %v3954
  %5878 = vmatprep.mubr.bf16.mxu0 %v913
  %5879 = vmatmul.mubr.bf16.gmra.mxu0 %v912
  %v5880 = vpop.f32.mrf.mxu0
  %v5881 = vadd.f32 %v5840, %v5880
  %v5882 = vpop.f32.mrf.mxu0
  %v5883 = vadd.f32 %v5842, %v5882
  %v5884 = vpop.f32.mrf.mxu0
  %v5885 = vpop.f32.mrf.mxu0
  %5886 = vdwg.mxu0
  %5887 = vmatprep.subr.bf16.mxu0 %v4015
  %5888 = vmatpush1.bf16.msra.mxu0 %v4014
  %5889 = vmatprep.subr.bf16.mxu0 %v4011
  %5890 = vmatpush1.bf16.msra.mxu0 %v4010
  %5891 = vmatprep.subr.bf16.mxu0 %v4007
  %5892 = vmatpush1.bf16.msra.mxu0 %v4006
  %5893 = vmatprep.subr.bf16.mxu0 %v4003
  %5894 = vmatpush1.bf16.msra.mxu0 %v4002
  %5895 = vmatprep.subr.bf16.mxu0 %v3999
  %5896 = vmatpush1.bf16.msra.mxu0 %v3998
  %5897 = vmatprep.subr.bf16.mxu0 %v3995
  %5898 = vmatpush1.bf16.msra.mxu0 %v3994
  %5899 = vmatprep.subr.bf16.mxu0 %v3991
  %5900 = vmatpush1.bf16.msra.mxu0 %v3990
  %5901 = vmatprep.subr.bf16.mxu0 %v3987
  %5902 = vmatpush1.bf16.msra.mxu0 %v3986
  %5903 = vmatprep.subr.bf16.mxu0 %v4047
  %5904 = vmatpush2.bf16.msra.mxu0 %v4046
  %5905 = vmatprep.subr.bf16.mxu0 %v4043
  %5906 = vmatpush2.bf16.msra.mxu0 %v4042
  %5907 = vmatprep.subr.bf16.mxu0 %v4039
  %5908 = vmatpush2.bf16.msra.mxu0 %v4038
  %5909 = vmatprep.subr.bf16.mxu0 %v4035
  %5910 = vmatpush2.bf16.msra.mxu0 %v4034
  %5911 = vmatprep.subr.bf16.mxu0 %v4031
  %5912 = vmatpush2.bf16.msra.mxu0 %v4030
  %5913 = vmatprep.subr.bf16.mxu0 %v4027
  %5914 = vmatpush2.bf16.msra.mxu0 %v4026
  %5915 = vmatprep.subr.bf16.mxu0 %v4023
  %5916 = vmatpush2.bf16.msra.mxu0 %v4022
  %5917 = vmatprep.subr.bf16.mxu0 %v4019
  %5918 = vmatpush2.bf16.msra.mxu0 %v4018
  %5919 = vmatprep.mubr.bf16.mxu0 %v915
  %5920 = vmatmul.mubr.bf16.gmra.mxu0 %v914
  %v5921 = vpop.f32.mrf.mxu0
  %v5922 = vadd.f32 %v5881, %v5921
  %v5923 = vpop.f32.mrf.mxu0
  %v5924 = vadd.f32 %v5883, %v5923
  %v5925 = vpop.f32.mrf.mxu0
  %v5926 = vpop.f32.mrf.mxu0
  %5927 = vdwg.mxu0
  %5928 = vmatprep.subr.bf16.mxu0 %v4079
  %5929 = vmatpush1.bf16.msra.mxu0 %v4078
  %5930 = vmatprep.subr.bf16.mxu0 %v4075
  %5931 = vmatpush1.bf16.msra.mxu0 %v4074
  %5932 = vmatprep.subr.bf16.mxu0 %v4071
  %5933 = vmatpush1.bf16.msra.mxu0 %v4070
  %5934 = vmatprep.subr.bf16.mxu0 %v4067
  %5935 = vmatpush1.bf16.msra.mxu0 %v4066
  %5936 = vmatprep.subr.bf16.mxu0 %v4063
  %5937 = vmatpush1.bf16.msra.mxu0 %v4062
  %5938 = vmatprep.subr.bf16.mxu0 %v4059
  %5939 = vmatpush1.bf16.msra.mxu0 %v4058
  %5940 = vmatprep.subr.bf16.mxu0 %v4055
  %5941 = vmatpush1.bf16.msra.mxu0 %v4054
  %5942 = vmatprep.subr.bf16.mxu0 %v4051
  %5943 = vmatpush1.bf16.msra.mxu0 %v4050
  %5944 = vmatprep.subr.bf16.mxu0 %v4111
  %5945 = vmatpush2.bf16.msra.mxu0 %v4110
  %5946 = vmatprep.subr.bf16.mxu0 %v4107
  %5947 = vmatpush2.bf16.msra.mxu0 %v4106
  %5948 = vmatprep.subr.bf16.mxu0 %v4103
  %5949 = vmatpush2.bf16.msra.mxu0 %v4102
  %5950 = vmatprep.subr.bf16.mxu0 %v4099
  %5951 = vmatpush2.bf16.msra.mxu0 %v4098
  %5952 = vmatprep.subr.bf16.mxu0 %v4095
  %5953 = vmatpush2.bf16.msra.mxu0 %v4094
  %5954 = vmatprep.subr.bf16.mxu0 %v4091
  %5955 = vmatpush2.bf16.msra.mxu0 %v4090
  %5956 = vmatprep.subr.bf16.mxu0 %v4087
  %5957 = vmatpush2.bf16.msra.mxu0 %v4086
  %5958 = vmatprep.subr.bf16.mxu0 %v4083
  %5959 = vmatpush2.bf16.msra.mxu0 %v4082
  %5960 = vmatprep.mubr.bf16.mxu0 %v917
  %5961 = vmatmul.mubr.bf16.gmra.mxu0 %v916
  %v5962 = vpop.f32.mrf.mxu0
  %v5963 = vadd.f32 %v5922, %v5962
  %v5964 = vpop.f32.mrf.mxu0
  %v5965 = vadd.f32 %v5924, %v5964
  %v5966 = vpop.f32.mrf.mxu0
  %v5967 = vpop.f32.mrf.mxu0
  %5968 = vdwg.mxu0
  %5969 = vmatprep.subr.bf16.mxu0 %v4143
  %5970 = vmatpush1.bf16.msra.mxu0 %v4142
  %5971 = vmatprep.subr.bf16.mxu0 %v4139
  %5972 = vmatpush1.bf16.msra.mxu0 %v4138
  %5973 = vmatprep.subr.bf16.mxu0 %v4135
  %5974 = vmatpush1.bf16.msra.mxu0 %v4134
  %5975 = vmatprep.subr.bf16.mxu0 %v4131
  %5976 = vmatpush1.bf16.msra.mxu0 %v4130
  %5977 = vmatprep.subr.bf16.mxu0 %v4127
  %5978 = vmatpush1.bf16.msra.mxu0 %v4126
  %5979 = vmatprep.subr.bf16.mxu0 %v4123
  %5980 = vmatpush1.bf16.msra.mxu0 %v4122
  %5981 = vmatprep.subr.bf16.mxu0 %v4119
  %5982 = vmatpush1.bf16.msra.mxu0 %v4118
  %5983 = vmatprep.subr.bf16.mxu0 %v4115
  %5984 = vmatpush1.bf16.msra.mxu0 %v4114
  %5985 = vmatprep.subr.bf16.mxu0 0
  %5986 = vmatpush2.bf16.msra.mxu0 0
  %5987 = vmatprep.subr.bf16.mxu0 0
  %5988 = vmatpush2.bf16.msra.mxu0 0
  %5989 = vmatprep.subr.bf16.mxu0 0
  %5990 = vmatpush2.bf16.msra.mxu0 0
  %5991 = vmatprep.subr.bf16.mxu0 0
  %5992 = vmatpush2.bf16.msra.mxu0 0
  %5993 = vmatprep.subr.bf16.mxu0 0
  %5994 = vmatpush2.bf16.msra.mxu0 0
  %5995 = vmatprep.subr.bf16.mxu0 0
  %5996 = vmatpush2.bf16.msra.mxu0 0
  %5997 = vmatprep.subr.bf16.mxu0 0
  %5998 = vmatpush2.bf16.msra.mxu0 0
  %5999 = vmatprep.subr.bf16.mxu0 0
  %6000 = vmatpush2.bf16.msra.mxu0 0
  %6001 = vmatprep.mubr.bf16.mxu0 0
  %6002 = vmatmul.mubr.bf16.gmra.mxu0 %v918
  %v6003 = vpop.f32.mrf.mxu0
  %v6004 = vadd.f32 %v5963, %v6003
  %v6005 = vpop.f32.mrf.mxu0
  %v6006 = vadd.f32 %v5965, %v6005
  %v6007 = vpop.f32.mrf.mxu0
  %v6008 = vpop.f32.mrf.mxu0
  %6009 = vdwg.mxu0
  %v6010 = vmax.f32 %v5471, 0.0
  %v6011 = vmax.f32 %v5473, 0.0
  %v6012 = vmax.f32 %v6004, 0.0
  %v6013 = vmax.f32 %v6006, 0.0
  %v6014 = vpack.c.bf16 %v6010, %v6010
  %v6015 = vpack.c.bf16 %v6011, %v6011
  %v6016 = vpack.c.bf16 %v6012, %v6012
  %v6017 = vpack.c.bf16 %v6013, %v6013
  %v6018 = vld [vmem:[%s3] sm:$0xf]
  %v6019 = vld [vmem:[%s3 + $0x4] sm:$0xf]
  %v6020 = vld [vmem:[%s3 + $0x8] sm:$0xf]
  %v6021 = vld [vmem:[%s3 + $0xc] sm:$0xf]
  %v6022 = vld [vmem:[%s3 + $0x10] sm:$0xf]
  %v6023 = vld [vmem:[%s3 + $0x14] sm:$0xf]
  %v6024 = vld [vmem:[%s3 + $0x18] sm:$0xf]
  %v6025 = vld [vmem:[%s3 + $0x1c] sm:$0xf]
  %v6026 = vld [vmem:[%s3 + $0x20] sm:$0xf]
  %v6027 = vld [vmem:[%s3 + $0x24] sm:$0xf]
  %v6028 = vld [vmem:[%s3 + $0x28] sm:$0xf]
  %v6029 = vld [vmem:[%s3 + $0x2c] sm:$0xf]
  %v6030 = vld [vmem:[%s3 + $0x30] sm:$0xf]
  %v6031 = vld [vmem:[%s3 + $0x34] sm:$0xf]
  %v6032 = vld [vmem:[%s3 + $0x38] sm:$0xf]
  %v6033 = vld [vmem:[%s3 + $0x3c] sm:$0xf]
  %v6034 = vld [vmem:[%s3 + $0x40] sm:$0xf]
  %v6035 = vld [vmem:[%s3 + $0x44] sm:$0xf]
  %v6036 = vld [vmem:[%s3 + $0x48] sm:$0xf]
  %v6037 = vld [vmem:[%s3 + $0x4c] sm:$0xf]
  %v6038 = vld [vmem:[%s3 + $0x50] sm:$0xf]
  %v6039 = vld [vmem:[%s3 + $0x54] sm:$0xf]
  %v6040 = vld [vmem:[%s3 + $0x58] sm:$0xf]
  %v6041 = vld [vmem:[%s3 + $0x5c] sm:$0xf]
  %v6042 = vld [vmem:[%s3 + $0x60] sm:$0xf]
  %v6043 = vld [vmem:[%s3 + $0x64] sm:$0xf]
  %v6044 = vld [vmem:[%s3 + $0x68] sm:$0xf]
  %v6045 = vld [vmem:[%s3 + $0x6c] sm:$0xf]
  %v6046 = vld [vmem:[%s3 + $0x70] sm:$0xf]
  %v6047 = vld [vmem:[%s3 + $0x74] sm:$0xf]
  %v6048 = vld [vmem:[%s3 + $0x78] sm:$0xf]
  %v6049 = vld [vmem:[%s3 + $0x7c] sm:$0xf]
  %v6050 = vld [vmem:[%s3 + $0x80] sm:$0xf]
  %v6051 = vld [vmem:[%s3 + $0x84] sm:$0xf]
  %v6052 = vld [vmem:[%s3 + $0x88] sm:$0xf]
  %v6053 = vld [vmem:[%s3 + $0x8c] sm:$0xf]
  %v6054 = vld [vmem:[%s3 + $0x90] sm:$0xf]
  %v6055 = vld [vmem:[%s3 + $0x94] sm:$0xf]
  %v6056 = vld [vmem:[%s3 + $0x98] sm:$0xf]
  %v6057 = vld [vmem:[%s3 + $0x9c] sm:$0xf]
  %v6058 = vld [vmem:[%s3 + $0xa0] sm:$0xf]
  %v6059 = vld [vmem:[%s3 + $0xa4] sm:$0xf]
  %v6060 = vld [vmem:[%s3 + $0xa8] sm:$0xf]
  %v6061 = vld [vmem:[%s3 + $0xac] sm:$0xf]
  %v6062 = vld [vmem:[%s3 + $0xb0] sm:$0xf]
  %v6063 = vld [vmem:[%s3 + $0xb4] sm:$0xf]
  %v6064 = vld [vmem:[%s3 + $0xb8] sm:$0xf]
  %v6065 = vld [vmem:[%s3 + $0xbc] sm:$0xf]
  %v6066 = vld [vmem:[%s3 + $0xc0] sm:$0xf]
  %v6067 = vld [vmem:[%s3 + $0xc4] sm:$0xf]
  %v6068 = vld [vmem:[%s3 + $0xc8] sm:$0xf]
  %v6069 = vld [vmem:[%s3 + $0xcc] sm:$0xf]
  %v6070 = vld [vmem:[%s3 + $0xd0] sm:$0xf]
  %v6071 = vld [vmem:[%s3 + $0xd4] sm:$0xf]
  %v6072 = vld [vmem:[%s3 + $0xd8] sm:$0xf]
  %v6073 = vld [vmem:[%s3 + $0xdc] sm:$0xf]
  %v6074 = vld [vmem:[%s3 + $0xe0] sm:$0xf]
  %v6075 = vld [vmem:[%s3 + $0xe4] sm:$0xf]
  %v6076 = vld [vmem:[%s3 + $0xe8] sm:$0xf]
  %v6077 = vld [vmem:[%s3 + $0xec] sm:$0xf]
  %v6078 = vld [vmem:[%s3 + $0xf0] sm:$0xf]
  %v6079 = vld [vmem:[%s3 + $0xf4] sm:$0xf]
  %v6080 = vld [vmem:[%s3 + $0xf8] sm:$0xf]
  %v6081 = vld [vmem:[%s3 + $0xfc] sm:$0xf]
  %v6082 = vld [vmem:[%s4] sm:$0x1]
  %v6084 = vlaneseq
  %v6085 = vshrl.u32 %v6084, 7
  %v6086 = vsub.s32 0, %v6085
  %v6087 = vrot.slane %v6082, %v6086
  %v6153 = vunpack.c.l.b16 %v6018
  %v6154 = vunpack.c.l.b16 %v6019
  %v6155 = vunpack.c.l.b16 %v6020
  %v6156 = vunpack.c.l.b16 %v6021
  %v6157 = vunpack.c.l.b16 %v6022
  %v6158 = vunpack.c.l.b16 %v6023
  %v6159 = vunpack.c.l.b16 %v6024
  %v6160 = vunpack.c.l.b16 %v6025
  %v6161 = vunpack.c.l.b16 %v6026
  %v6162 = vunpack.c.l.b16 %v6027
  %v6163 = vunpack.c.l.b16 %v6028
  %v6164 = vunpack.c.l.b16 %v6029
  %v6165 = vunpack.c.l.b16 %v6030
  %v6166 = vunpack.c.l.b16 %v6031
  %v6167 = vunpack.c.l.b16 %v6032
  %v6168 = vunpack.c.l.b16 %v6033
  %v6169 = vunpack.c.l.b16 %v6034
  %v6170 = vunpack.c.l.b16 %v6035
  %v6171 = vunpack.c.l.b16 %v6036
  %v6172 = vunpack.c.l.b16 %v6037
  %v6173 = vunpack.c.l.b16 %v6038
  %v6174 = vunpack.c.l.b16 %v6039
  %v6175 = vunpack.c.l.b16 %v6040
  %v6176 = vunpack.c.l.b16 %v6041
  %v6177 = vunpack.c.l.b16 %v6042
  %v6178 = vunpack.c.l.b16 %v6043
  %v6179 = vunpack.c.l.b16 %v6044
  %v6180 = vunpack.c.l.b16 %v6045
  %v6181 = vunpack.c.l.b16 %v6046
  %v6182 = vunpack.c.l.b16 %v6047
  %v6183 = vunpack.c.l.b16 %v6048
  %v6184 = vunpack.c.l.b16 %v6049
  %v6185 = vunpack.c.l.b16 %v6050
  %v6186 = vunpack.c.l.b16 %v6051
  %v6187 = vunpack.c.l.b16 %v6052
  %v6188 = vunpack.c.l.b16 %v6053
  %v6189 = vunpack.c.l.b16 %v6054
  %v6190 = vunpack.c.l.b16 %v6055
  %v6191 = vunpack.c.l.b16 %v6056
  %v6192 = vunpack.c.l.b16 %v6057
  %v6193 = vunpack.c.l.b16 %v6058
  %v6194 = vunpack.c.l.b16 %v6059
  %v6195 = vunpack.c.l.b16 %v6060
  %v6196 = vunpack.c.l.b16 %v6061
  %v6197 = vunpack.c.l.b16 %v6062
  %v6198 = vunpack.c.l.b16 %v6063
  %v6199 = vunpack.c.l.b16 %v6064
  %v6200 = vunpack.c.l.b16 %v6065
  %v6201 = vunpack.c.l.b16 %v6066
  %v6202 = vunpack.c.l.b16 %v6067
  %v6203 = vunpack.c.l.b16 %v6068
  %v6204 = vunpack.c.l.b16 %v6069
  %v6205 = vunpack.c.l.b16 %v6070
  %v6206 = vunpack.c.l.b16 %v6071
  %v6207 = vunpack.c.l.b16 %v6072
  %v6208 = vunpack.c.l.b16 %v6073
  %v6209 = vunpack.c.l.b16 %v6074
  %v6210 = vunpack.c.l.b16 %v6075
  %v6211 = vunpack.c.l.b16 %v6076
  %v6212 = vunpack.c.l.b16 %v6077
  %v6213 = vunpack.c.l.b16 %v6078
  %v6214 = vunpack.c.l.b16 %v6079
  %v6215 = vunpack.c.l.b16 %v6080
  %v6216 = vunpack.c.l.b16 %v6081
  %v6217 = vpack.c.b16 %v6154, %v6153
  %v6218 = vpack.c.b16 %v6156, %v6155
  %v6219 = vpack.c.b16 %v6158, %v6157
  %v6220 = vpack.c.b16 %v6160, %v6159
  %v6221 = vpack.c.b16 %v6162, %v6161
  %v6222 = vpack.c.b16 %v6164, %v6163
  %v6223 = vpack.c.b16 %v6166, %v6165
  %v6224 = vpack.c.b16 %v6168, %v6167
  %v6225 = vpack.c.b16 %v6170, %v6169
  %v6226 = vpack.c.b16 %v6172, %v6171
  %v6227 = vpack.c.b16 %v6174, %v6173
  %v6228 = vpack.c.b16 %v6176, %v6175
  %v6229 = vpack.c.b16 %v6178, %v6177
  %v6230 = vpack.c.b16 %v6180, %v6179
  %v6231 = vpack.c.b16 %v6182, %v6181
  %v6232 = vpack.c.b16 %v6184, %v6183
  %v6233 = vpack.c.b16 %v6186, %v6185
  %v6234 = vpack.c.b16 %v6188, %v6187
  %v6235 = vpack.c.b16 %v6190, %v6189
  %v6236 = vpack.c.b16 %v6192, %v6191
  %v6237 = vpack.c.b16 %v6194, %v6193
  %v6238 = vpack.c.b16 %v6196, %v6195
  %v6239 = vpack.c.b16 %v6198, %v6197
  %v6240 = vpack.c.b16 %v6200, %v6199
  %v6241 = vpack.c.b16 %v6202, %v6201
  %v6242 = vpack.c.b16 %v6204, %v6203
  %v6243 = vpack.c.b16 %v6206, %v6205
  %v6244 = vpack.c.b16 %v6208, %v6207
  %v6245 = vpack.c.b16 %v6210, %v6209
  %v6246 = vpack.c.b16 %v6212, %v6211
  %v6247 = vpack.c.b16 %v6214, %v6213
  %v6248 = vpack.c.b16 %v6216, %v6215
  %6281 = vmatprep.subr.bf16.mxu0 0
  %6282 = vmatpush1.bf16.msra.mxu0 %v6224
  %6283 = vmatprep.subr.bf16.mxu0 0
  %6284 = vmatpush1.bf16.msra.mxu0 %v6223
  %6285 = vmatprep.subr.bf16.mxu0 0
  %6286 = vmatpush1.bf16.msra.mxu0 %v6222
  %6287 = vmatprep.subr.bf16.mxu0 0
  %6288 = vmatpush1.bf16.msra.mxu0 %v6221
  %6289 = vmatprep.subr.bf16.mxu0 0
  %6290 = vmatpush1.bf16.msra.mxu0 %v6220
  %6291 = vmatprep.subr.bf16.mxu0 0
  %6292 = vmatpush1.bf16.msra.mxu0 %v6219
  %6293 = vmatprep.subr.bf16.mxu0 0
  %6294 = vmatpush1.bf16.msra.mxu0 %v6218
  %6295 = vmatprep.subr.bf16.mxu0 0
  %6296 = vmatpush1.bf16.msra.mxu0 %v6217
  %6297 = vmatprep.subr.bf16.mxu0 0
  %6298 = vmatpush2.bf16.msra.mxu0 %v6232
  %6299 = vmatprep.subr.bf16.mxu0 0
  %6300 = vmatpush2.bf16.msra.mxu0 %v6231
  %6301 = vmatprep.subr.bf16.mxu0 0
  %6302 = vmatpush2.bf16.msra.mxu0 %v6230
  %6303 = vmatprep.subr.bf16.mxu0 0
  %6304 = vmatpush2.bf16.msra.mxu0 %v6229
  %6305 = vmatprep.subr.bf16.mxu0 0
  %6306 = vmatpush2.bf16.msra.mxu0 %v6228
  %6307 = vmatprep.subr.bf16.mxu0 0
  %6308 = vmatpush2.bf16.msra.mxu0 %v6227
  %6309 = vmatprep.subr.bf16.mxu0 0
  %6310 = vmatpush2.bf16.msra.mxu0 %v6226
  %6311 = vmatprep.subr.bf16.mxu0 0
  %6312 = vmatpush2.bf16.msra.mxu0 %v6225
  %6313 = vmatprep.mubr.bf16.mxu0 %v6015
  %6314 = vmatmul.mubr.bf16.gmra.mxu0 %v6014
  %v6315 = vpop.f32.mrf.mxu0
  %v6316 = vadd.f32 %v6087, %v6315
  %v6317 = vpop.f32.mrf.mxu0
  %v6318 = vpop.f32.mrf.mxu0
  %v6319 = vpop.f32.mrf.mxu0
  %6320 = vdwg.mxu0
  %6321 = vmatprep.subr.bf16.mxu0 0
  %6322 = vmatpush1.bf16.msra.mxu0 %v6240
  %6323 = vmatprep.subr.bf16.mxu0 0
  %6324 = vmatpush1.bf16.msra.mxu0 %v6239
  %6325 = vmatprep.subr.bf16.mxu0 0
  %6326 = vmatpush1.bf16.msra.mxu0 %v6238
  %6327 = vmatprep.subr.bf16.mxu0 0
  %6328 = vmatpush1.bf16.msra.mxu0 %v6237
  %6329 = vmatprep.subr.bf16.mxu0 0
  %6330 = vmatpush1.bf16.msra.mxu0 %v6236
  %6331 = vmatprep.subr.bf16.mxu0 0
  %6332 = vmatpush1.bf16.msra.mxu0 %v6235
  %6333 = vmatprep.subr.bf16.mxu0 0
  %6334 = vmatpush1.bf16.msra.mxu0 %v6234
  %6335 = vmatprep.subr.bf16.mxu0 0
  %6336 = vmatpush1.bf16.msra.mxu0 %v6233
  %6337 = vmatprep.subr.bf16.mxu0 0
  %6338 = vmatpush2.bf16.msra.mxu0 %v6248
  %6339 = vmatprep.subr.bf16.mxu0 0
  %6340 = vmatpush2.bf16.msra.mxu0 %v6247
  %6341 = vmatprep.subr.bf16.mxu0 0
  %6342 = vmatpush2.bf16.msra.mxu0 %v6246
  %6343 = vmatprep.subr.bf16.mxu0 0
  %6344 = vmatpush2.bf16.msra.mxu0 %v6245
  %6345 = vmatprep.subr.bf16.mxu0 0
  %6346 = vmatpush2.bf16.msra.mxu0 %v6244
  %6347 = vmatprep.subr.bf16.mxu0 0
  %6348 = vmatpush2.bf16.msra.mxu0 %v6243
  %6349 = vmatprep.subr.bf16.mxu0 0
  %6350 = vmatpush2.bf16.msra.mxu0 %v6242
  %6351 = vmatprep.subr.bf16.mxu0 0
  %6352 = vmatpush2.bf16.msra.mxu0 %v6241
  %6353 = vmatprep.mubr.bf16.mxu0 %v6017
  %6354 = vmatmul.mubr.bf16.gmra.mxu0 %v6016
  %v6355 = vpop.f32.mrf.mxu0
  %v6356 = vadd.f32 %v6316, %v6355
  %v6357 = vpop.f32.mrf.mxu0
  %v6358 = vpop.f32.mrf.mxu0
  %v6359 = vpop.f32.mrf.mxu0
  %6360 = vdwg.mxu0
  %vm6361 = vcmask 48128
  %6362 = vst.msk [vmem:[%s5] sm:$0xff] %vm6361, %v6356
  // Predicated region
  $region22: #{dqn_forward.9} parent=0 // pred_check
    _
  $region23: #{dqn_forward.9} parent=0 // pred_check_branch
    %6364 = sbr.rel (0) target = $region25
  $region24: #{dqn_forward.9} parent=0 // pred_region
    _
  $region25: #{dqn_forward.9} parent=0 // pred_fallthru
    _
  // Predicated region
  $region26: #{dqn_forward.9} parent=0 // pred_check
    _
  $region27: #{dqn_forward.9} parent=0 // pred_check_branch
    %6366 = sbr.rel (0) target = $region29
  $region28: #{dqn_forward.9} parent=0 // pred_region
    _
  $region29: #{dqn_forward.9} parent=0 // pred_fallthru
    _

</llo_original>
